<compile_context>
chip_gen: v6e
topology: v6e:2x2x1
jax: 0.10.0
libtpu: 0.0.40
codegen_flags: <defaults>
</compile_context>

<pallas_src>
import functools

import jax
import jax.numpy as jnp
import numpy as np
from jax import lax
from jax.experimental import pallas as pl
from jax.experimental.pallas import tpu as pltpu

NEG_SLOPE = 0.01  # torch.nn.LeakyReLU default


def _round_up(x, m):
    return (x + m - 1) // m * m


# --------------------------------------------------------------------------
# Fused kernel: 4 x (conv-transpose 3x3 + bias + LeakyReLU) for one image.
# --------------------------------------------------------------------------
def _dense_t_kernel(x_ref, w1_ref, w2_ref, w3_ref, w4_ref, b_ref, o_ref,
                    xpad_ref, slab_ref, *, ch, H, W, blk):
    """Refs:
      x_ref : (1, ch, H, W)         input image (NCHW block)
      wN_ref: (ch, N*blk)           packed im2col weight for layer N
      b_ref : (4, ch, 1)            biases
      o_ref : (1, ch, H*W)          lane-dense output (x4)
      xpad_ref: (ch, H+2, W+2)      zero-padded activation scratch (reused)
      slab_ref: (4*blk, H*W)        growing im2col K-slab (f32)
    """
    HW = H * W

    # Zero scratches: slab pad-rows and xpad borders must be 0 every step.
    xpad_ref[...] = jnp.zeros_like(xpad_ref)
    slab_ref[...] = jnp.zeros_like(slab_ref)

    def im2col(src_idx):
        """Append source `src_idx` (currently held in xpad) to the K-slab."""
        xp = xpad_ref[...]                              # (ch, H+2, W+2)
        patches = []
        for kh in range(3):
            for kw in range(3):
                patches.append(xp[:, kh:kh + H, kw:kw + W].reshape(ch, HW))
        block = jnp.concatenate(patches, axis=0)        # (9*ch, HW)
        base = src_idx * blk
        slab_ref[base:base + 9 * ch, :] = block

    def layer(w_ref, layer_idx, n_src):
        k = n_src * blk
        y = jnp.dot(w_ref[...], slab_ref[0:k, :],
                    preferred_element_type=jnp.float32)  # (ch, HW)
        y = y + b_ref[layer_idx]                         # (ch, 1) broadcast
        return jnp.where(y >= 0, y, NEG_SLOPE * y)       # LeakyReLU

    # source 0: the input image
    xpad_ref[:, 1:H + 1, 1:W + 1] = x_ref[0].astype(jnp.float32)
    im2col(0)

    x1 = layer(w1_ref, 0, 1)
    xpad_ref[:, 1:H + 1, 1:W + 1] = x1.reshape(ch, H, W)
    im2col(1)

    x2 = layer(w2_ref, 1, 2)
    xpad_ref[:, 1:H + 1, 1:W + 1] = x2.reshape(ch, H, W)
    im2col(2)

    x3 = layer(w3_ref, 2, 3)
    xpad_ref[:, 1:H + 1, 1:W + 1] = x3.reshape(ch, H, W)
    im2col(3)

    x4 = layer(w4_ref, 3, 4)
    o_ref[0] = x4.astype(o_ref.dtype)


# --------------------------------------------------------------------------
# Weight packing (torch ConvTranspose2d layout -> im2col matrix / HWIO)
# --------------------------------------------------------------------------
def convT_weight_to_matrix(w_pt, ch, blk):
    """PyTorch ConvTranspose2d weight (Cin_total, ch, 3, 3) -> (ch, n_src*blk)
    matrix whose columns are ordered (source, kh, kw, cin_within_source),
    each 9*ch source block zero-padded to `blk` columns."""
    cin_total = w_pt.shape[0]
    n_src = cin_total // ch
    # Equivalent cross-correlation weight: Weq[co, ci, kh, kw] = W[ci, co, 2-kh, 2-kw]
    w_eq = jnp.transpose(w_pt[:, :, ::-1, ::-1], (1, 0, 2, 3))   # (ch, Cin, 3, 3)
    w_eq = w_eq.reshape(ch, n_src, ch, 3, 3)                     # (co, src, c, kh, kw)
    w_eq = jnp.transpose(w_eq, (0, 1, 3, 4, 2))                  # (co, src, kh, kw, c)
    w_eq = w_eq.reshape(ch, n_src, 9 * ch)
    w_eq = jnp.pad(w_eq, ((0, 0), (0, 0), (0, blk - 9 * ch)))
    return w_eq.reshape(ch, n_src * blk)


def convT_weight_to_hwio(w_pt):
    """Same identity, packed as HWIO for the lax.conv reference."""
    w = w_pt[:, :, ::-1, ::-1]                  # flip spatially
    return jnp.transpose(w, (2, 3, 0, 1))       # (kh, kw, Cin, Cout)


def make_torch_params(ch, key):
    """Deterministic synthetic parameters matching DenseT.__init__ shapes.
    ConvTranspose2d weight shape: (in_channels, out_channels, 3, 3)."""
    # TODO(synk): conversion parity vs. real torch.nn.ConvTranspose2d output
    # cannot be checked in-script (no torch on the TPU sandbox).
    params = []
    for i in range(1, 5):
        cin = i * ch
        key, kw, kb = jax.random.split(key, 3)
        bound = 1.0 / np.sqrt(cin * 9)
        w_pt = jax.random.uniform(kw, (cin, ch, 3, 3), jnp.float32,
                                  minval=-bound, maxval=bound)
        b = jax.random.uniform(kb, (ch,), jnp.float32,
                               minval=-bound, maxval=bound)
        params.append((w_pt, b))
    return params


# --------------------------------------------------------------------------
# Forward pass (NCHW in / NCHW out, like the PyTorch module)
# --------------------------------------------------------------------------
def dense_t_forward(x_nchw, torch_params):
    N, ch, H, W = x_nchw.shape
    HW = H * W
    blk = _round_up(9 * ch, 8)

    w_mats = [convT_weight_to_matrix(w, ch, blk) for w, _ in torch_params]
    b_all = jnp.stack([b for _, b in torch_params]).reshape(4, ch, 1)

    flops = 2 * N * HW * 9 * ch * ch * (1 + 2 + 3 + 4)
    bytes_accessed = 4 * (2 * N * ch * HW
                          + sum(int(np.prod(w.shape)) for w in w_mats)
                          + 4 * ch)

    kernel = functools.partial(_dense_t_kernel, ch=ch, H=H, W=W, blk=blk)

    out_flat = pl.pallas_call(
        kernel,
        out_shape=jax.ShapeDtypeStruct((N, ch, HW), x_nchw.dtype),
        grid_spec=pltpu.PrefetchScalarGridSpec(
            num_scalar_prefetch=0,
            grid=(N,),
            in_specs=[
                pl.BlockSpec((1, ch, H, W), lambda n: (n, 0, 0, 0)),
                pl.BlockSpec((ch, 1 * blk), lambda n: (0, 0)),
                pl.BlockSpec((ch, 2 * blk), lambda n: (0, 0)),
                pl.BlockSpec((ch, 3 * blk), lambda n: (0, 0)),
                pl.BlockSpec((ch, 4 * blk), lambda n: (0, 0)),
                pl.BlockSpec((4, ch, 1), lambda n: (0, 0, 0)),
            ],
            out_specs=pl.BlockSpec((1, ch, HW), lambda n: (n, 0, 0)),
            scratch_shapes=[
                pltpu.VMEM((ch, H + 2, W + 2), jnp.float32),  # padded activation
                pltpu.VMEM((4 * blk, HW), jnp.float32),       # im2col K-slab
            ],
        ),
        compiler_params=pltpu.CompilerParams(
            dimension_semantics=("parallel",),
        ),
        cost_estimate=pl.CostEstimate(
            flops=flops, transcendentals=0, bytes_accessed=bytes_accessed),
    )(x_nchw, *w_mats, b_all)

    return out_flat.reshape(N, ch, H, W)


# --------------------------------------------------------------------------
# Pure-JAX reference (same math via lax.conv_general_dilated, NHWC)
# --------------------------------------------------------------------------
def _ref_layer(x_nhwc, w_hwio, b):
    y = lax.conv_general_dilated(
        x_nhwc, w_hwio, window_strides=(1, 1), padding=((1, 1), (1, 1)),
        dimension_numbers=("NHWC", "HWIO", "NHWC"))
    y = y + b[None, None, None, :]
    return jnp.where(y >= 0, y, NEG_SLOPE * y)


def dense_t_reference(x_nchw, torch_params):
    x = jnp.transpose(x_nchw, (0, 2, 3, 1))
    (w1, b1), (w2, b2), (w3, b3), (w4, b4) = [
        (convT_weight_to_hwio(w), b) for w, b in torch_params]
    x1 = _ref_layer(x, w1, b1)
    x2 = _ref_layer(jnp.concatenate([x, x1], axis=-1), w2, b2)
    x3 = _ref_layer(jnp.concatenate([x, x1, x2], axis=-1), w3, b3)
    x4 = _ref_layer(jnp.concatenate([x, x1, x2, x3], axis=-1), w4, b4)
    return jnp.transpose(x4, (0, 3, 1, 2))


if __name__ == "__main__":
    key = jax.random.PRNGKey(0)
    k_in, k_par = jax.random.split(key)

    N, CH, H, W = 2, 4, 16, 16
    x = jax.random.normal(k_in, (N, CH, H, W), jnp.float32)  # NCHW like torch
    torch_params = make_torch_params(CH, k_par)

    out = dense_t_forward(x, torch_params)
    out = jax.block_until_ready(out)

    ref = jax.block_until_ready(dense_t_reference(x, torch_params))
    assert out.shape == (N, CH, H, W)
    np.testing.assert_allclose(np.asarray(out), np.asarray(ref),
                               rtol=1e-4, atol=1e-4)
    print("KERNEL_OK")
</pallas_src>

<mosaic_0001>
module attributes {stable_mosaic.version = 11 : i64} {
  func.func @_dense_t_kernel(%arg0: i32, %arg1: memref<1x4x16x16xf32, #tpu.memory_space<vmem>>, %arg2: memref<4x40xf32, #tpu.memory_space<vmem>>, %arg3: memref<4x80xf32, #tpu.memory_space<vmem>>, %arg4: memref<4x120xf32, #tpu.memory_space<vmem>>, %arg5: memref<4x160xf32, #tpu.memory_space<vmem>>, %arg6: memref<4x4x1xf32, #tpu.memory_space<vmem>>, %arg7: memref<1x4x256xf32, #tpu.memory_space<vmem>>, %arg8: memref<4x18x18xf32, #tpu.memory_space<vmem>>, %arg9: memref<160x256xf32, #tpu.memory_space<vmem>>) attributes {dimension_semantics = [#tpu.dimension_semantics<parallel>], iteration_bounds = array<i64: 2>, scalar_prefetch = 0 : i64, scratch_operands = 2 : i64, tpu.core_type = #tpu.core_type<tc>, window_params = [{transform_indices = @transform_0, window_bounds = array<i64: 1, 4, 16, 16>}, {pipeline_mode = #tpu.pipeline_mode<synchronous>, transform_indices = @transform_1, window_bounds = array<i64: 4, 40>}, {pipeline_mode = #tpu.pipeline_mode<synchronous>, transform_indices = @transform_2, window_bounds = array<i64: 4, 80>}, {pipeline_mode = #tpu.pipeline_mode<synchronous>, transform_indices = @transform_3, window_bounds = array<i64: 4, 120>}, {pipeline_mode = #tpu.pipeline_mode<synchronous>, transform_indices = @transform_4, window_bounds = array<i64: 4, 160>}, {pipeline_mode = #tpu.pipeline_mode<synchronous>, transform_indices = @transform_5, window_bounds = array<i64: 4, 4, 1>}, {transform_indices = @transform_6, window_bounds = array<i64: 1, 4, 256>}]} {
    %cst = arith.constant 0.000000e+00 : f32
    %0 = vector.broadcast %cst : f32 to vector<4x18x18xf32>
    %c0 = arith.constant 0 : index
    %c0_0 = arith.constant 0 : index
    %c0_1 = arith.constant 0 : index
    %1 = vector.load %arg8[%c0, %c0_0, %c0_1] : memref<4x18x18xf32, #tpu.memory_space<vmem>>, vector<4x18x18xf32>
    tpu.vector_store %arg8[%c0, %c0_0, %c0_1], %0 {strides = array<i32>} : memref<4x18x18xf32, #tpu.memory_space<vmem>>, vector<4x18x18xf32>,
    %cst_2 = arith.constant 0.000000e+00 : f32
    %2 = vector.broadcast %cst_2 : f32 to vector<160x256xf32>
    %c0_3 = arith.constant 0 : index
    %c0_4 = arith.constant 0 : index
    %3 = vector.load %arg9[%c0_3, %c0_4] : memref<160x256xf32, #tpu.memory_space<vmem>>, vector<160x256xf32>
    tpu.vector_store %arg9[%c0_3, %c0_4], %2 {strides = array<i32>} : memref<160x256xf32, #tpu.memory_space<vmem>>, vector<160x256xf32>,
    %c0_5 = arith.constant 0 : index
    %c0_6 = arith.constant 0 : index
    %c0_7 = arith.constant 0 : index
    %c0_8 = arith.constant 0 : index
    %4 = vector.load %arg1[%c0_5, %c0_6, %c0_7, %c0_8] : memref<1x4x16x16xf32, #tpu.memory_space<vmem>>, vector<1x4x16x16xf32>
    %5 = vector.shape_cast %4 : vector<1x4x16x16xf32> to vector<4x16x16xf32>
    %c0_9 = arith.constant 0 : index
    %c1 = arith.constant 1 : index
    %c1_10 = arith.constant 1 : index
    %6 = vector.load %arg8[%c0_9, %c1, %c1_10] : memref<4x18x18xf32, #tpu.memory_space<vmem>>, vector<4x16x16xf32>
    tpu.vector_store %arg8[%c0_9, %c1, %c1_10], %5 {strides = array<i32>} : memref<4x18x18xf32, #tpu.memory_space<vmem>>, vector<4x16x16xf32>,
    %c0_11 = arith.constant 0 : index
    %c0_12 = arith.constant 0 : index
    %c0_13 = arith.constant 0 : index
    %7 = vector.load %arg8[%c0_11, %c0_12, %c0_13] : memref<4x18x18xf32, #tpu.memory_space<vmem>>, vector<4x18x18xf32>
    %8 = vector.extract_strided_slice %7 {offsets = [0, 0, 0], sizes = [4, 16, 16], strides = [1, 1, 1]} : vector<4x18x18xf32> to vector<4x16x16xf32>
    %9 = vector.shape_cast %8 : vector<4x16x16xf32> to vector<4x256xf32>
    %10 = vector.extract_strided_slice %7 {offsets = [0, 0, 1], sizes = [4, 16, 16], strides = [1, 1, 1]} : vector<4x18x18xf32> to vector<4x16x16xf32>
    %11 = vector.shape_cast %10 : vector<4x16x16xf32> to vector<4x256xf32>
    %12 = vector.extract_strided_slice %7 {offsets = [0, 0, 2], sizes = [4, 16, 16], strides = [1, 1, 1]} : vector<4x18x18xf32> to vector<4x16x16xf32>
    %13 = vector.shape_cast %12 : vector<4x16x16xf32> to vector<4x256xf32>
    %14 = vector.extract_strided_slice %7 {offsets = [0, 1, 0], sizes = [4, 16, 16], strides = [1, 1, 1]} : vector<4x18x18xf32> to vector<4x16x16xf32>
    %15 = vector.shape_cast %14 : vector<4x16x16xf32> to vector<4x256xf32>
    %16 = vector.extract_strided_slice %7 {offsets = [0, 1, 1], sizes = [4, 16, 16], strides = [1, 1, 1]} : vector<4x18x18xf32> to vector<4x16x16xf32>
    %17 = vector.shape_cast %16 : vector<4x16x16xf32> to vector<4x256xf32>
    %18 = vector.extract_strided_slice %7 {offsets = [0, 1, 2], sizes = [4, 16, 16], strides = [1, 1, 1]} : vector<4x18x18xf32> to vector<4x16x16xf32>
    %19 = vector.shape_cast %18 : vector<4x16x16xf32> to vector<4x256xf32>
    %20 = vector.extract_strided_slice %7 {offsets = [0, 2, 0], sizes = [4, 16, 16], strides = [1, 1, 1]} : vector<4x18x18xf32> to vector<4x16x16xf32>
    %21 = vector.shape_cast %20 : vector<4x16x16xf32> to vector<4x256xf32>
    %22 = vector.extract_strided_slice %7 {offsets = [0, 2, 1], sizes = [4, 16, 16], strides = [1, 1, 1]} : vector<4x18x18xf32> to vector<4x16x16xf32>
    %23 = vector.shape_cast %22 : vector<4x16x16xf32> to vector<4x256xf32>
    %24 = vector.extract_strided_slice %7 {offsets = [0, 2, 2], sizes = [4, 16, 16], strides = [1, 1, 1]} : vector<4x18x18xf32> to vector<4x16x16xf32>
    %25 = vector.shape_cast %24 : vector<4x16x16xf32> to vector<4x256xf32>
    %26 = tpu.concatenate %9, %11, %13, %15, %17, %19, %21, %23, %25 in 0 : vector<4x256xf32>, vector<4x256xf32>, vector<4x256xf32>, vector<4x256xf32>, vector<4x256xf32>, vector<4x256xf32>, vector<4x256xf32>, vector<4x256xf32>, vector<4x256xf32> -> vector<36x256xf32>
    %c0_14 = arith.constant 0 : index
    %c0_15 = arith.constant 0 : index
    %27 = vector.load %arg9[%c0_14, %c0_15] : memref<160x256xf32, #tpu.memory_space<vmem>>, vector<36x256xf32>
    tpu.vector_store %arg9[%c0_14, %c0_15], %26 {strides = array<i32>} : memref<160x256xf32, #tpu.memory_space<vmem>>, vector<36x256xf32>,
    %c0_16 = arith.constant 0 : index
    %c0_17 = arith.constant 0 : index
    %28 = vector.load %arg2[%c0_16, %c0_17] : memref<4x40xf32, #tpu.memory_space<vmem>>, vector<4x40xf32>
    %c0_18 = arith.constant 0 : index
    %c0_19 = arith.constant 0 : index
    %29 = vector.load %arg9[%c0_18, %c0_19] : memref<160x256xf32, #tpu.memory_space<vmem>>, vector<40x256xf32>
    %cst_20 = arith.constant dense<0.000000e+00> : vector<4x256xf32>
    %30 = tpu.matmul %28, %29, %cst_20 {dimension_numbers = #tpu.dot_dimension_numbers<[1], [0], [0], [1], [0, 0, 1, 1], [], []>} : vector<4x40xf32>, vector<40x256xf32>, vector<4x256xf32> -> vector<4x256xf32>
    %c0_21 = arith.constant 0 : index
    %c0_22 = arith.constant 0 : index
    %c0_23 = arith.constant 0 : index
    %31 = vector.load %arg6[%c0_21, %c0_22, %c0_23] : memref<4x4x1xf32, #tpu.memory_space<vmem>>, vector<1x4x1xf32>
    %32 = vector.shape_cast %31 : vector<1x4x1xf32> to vector<4x1xf32>
    %33 = vector.broadcast %32 : vector<4x1xf32> to vector<4x256xf32>
    %34 = arith.addf %30, %33 : vector<4x256xf32>
    %cst_24 = arith.constant 0.000000e+00 : f32
    %35 = vector.broadcast %cst_24 : f32 to vector<4x256xf32>
    %36 = arith.cmpf oge, %34, %35 : vector<4x256xf32>
    %cst_25 = arith.constant 0.00999999977 : f32
    %37 = vector.broadcast %cst_25 : f32 to vector<4x256xf32>
    %38 = arith.mulf %37, %34 : vector<4x256xf32>
    %39 = arith.select %36, %34, %38 : vector<4x256xi1>, vector<4x256xf32>
    %40 = vector.shape_cast %39 : vector<4x256xf32> to vector<4x16x16xf32>
    %c0_26 = arith.constant 0 : index
    %c1_27 = arith.constant 1 : index
    %c1_28 = arith.constant 1 : index
    %41 = vector.load %arg8[%c0_26, %c1_27, %c1_28] : memref<4x18x18xf32, #tpu.memory_space<vmem>>, vector<4x16x16xf32>
    tpu.vector_store %arg8[%c0_26, %c1_27, %c1_28], %40 {strides = array<i32>} : memref<4x18x18xf32, #tpu.memory_space<vmem>>, vector<4x16x16xf32>,
    %c0_29 = arith.constant 0 : index
    %c0_30 = arith.constant 0 : index
    %c0_31 = arith.constant 0 : index
    %42 = vector.load %arg8[%c0_29, %c0_30, %c0_31] : memref<4x18x18xf32, #tpu.memory_space<vmem>>, vector<4x18x18xf32>
    %43 = vector.extract_strided_slice %42 {offsets = [0, 0, 0], sizes = [4, 16, 16], strides = [1, 1, 1]} : vector<4x18x18xf32> to vector<4x16x16xf32>
    %44 = vector.shape_cast %43 : vector<4x16x16xf32> to vector<4x256xf32>
    %45 = vector.extract_strided_slice %42 {offsets = [0, 0, 1], sizes = [4, 16, 16], strides = [1, 1, 1]} : vector<4x18x18xf32> to vector<4x16x16xf32>
    %46 = vector.shape_cast %45 : vector<4x16x16xf32> to vector<4x256xf32>
    %47 = vector.extract_strided_slice %42 {offsets = [0, 0, 2], sizes = [4, 16, 16], strides = [1, 1, 1]} : vector<4x18x18xf32> to vector<4x16x16xf32>
    %48 = vector.shape_cast %47 : vector<4x16x16xf32> to vector<4x256xf32>
    %49 = vector.extract_strided_slice %42 {offsets = [0, 1, 0], sizes = [4, 16, 16], strides = [1, 1, 1]} : vector<4x18x18xf32> to vector<4x16x16xf32>
    %50 = vector.shape_cast %49 : vector<4x16x16xf32> to vector<4x256xf32>
    %51 = vector.extract_strided_slice %42 {offsets = [0, 1, 1], sizes = [4, 16, 16], strides = [1, 1, 1]} : vector<4x18x18xf32> to vector<4x16x16xf32>
    %52 = vector.shape_cast %51 : vector<4x16x16xf32> to vector<4x256xf32>
    %53 = vector.extract_strided_slice %42 {offsets = [0, 1, 2], sizes = [4, 16, 16], strides = [1, 1, 1]} : vector<4x18x18xf32> to vector<4x16x16xf32>
    %54 = vector.shape_cast %53 : vector<4x16x16xf32> to vector<4x256xf32>
    %55 = vector.extract_strided_slice %42 {offsets = [0, 2, 0], sizes = [4, 16, 16], strides = [1, 1, 1]} : vector<4x18x18xf32> to vector<4x16x16xf32>
    %56 = vector.shape_cast %55 : vector<4x16x16xf32> to vector<4x256xf32>
    %57 = vector.extract_strided_slice %42 {offsets = [0, 2, 1], sizes = [4, 16, 16], strides = [1, 1, 1]} : vector<4x18x18xf32> to vector<4x16x16xf32>
    %58 = vector.shape_cast %57 : vector<4x16x16xf32> to vector<4x256xf32>
    %59 = vector.extract_strided_slice %42 {offsets = [0, 2, 2], sizes = [4, 16, 16], strides = [1, 1, 1]} : vector<4x18x18xf32> to vector<4x16x16xf32>
    %60 = vector.shape_cast %59 : vector<4x16x16xf32> to vector<4x256xf32>
    %61 = tpu.concatenate %44, %46, %48, %50, %52, %54, %56, %58, %60 in 0 : vector<4x256xf32>, vector<4x256xf32>, vector<4x256xf32>, vector<4x256xf32>, vector<4x256xf32>, vector<4x256xf32>, vector<4x256xf32>, vector<4x256xf32>, vector<4x256xf32> -> vector<36x256xf32>
    %c40 = arith.constant 40 : index
    %c0_32 = arith.constant 0 : index
    %62 = vector.load %arg9[%c40, %c0_32] : memref<160x256xf32, #tpu.memory_space<vmem>>, vector<36x256xf32>
    tpu.vector_store %arg9[%c40, %c0_32], %61 {strides = array<i32>} : memref<160x256xf32, #tpu.memory_space<vmem>>, vector<36x256xf32>,
    %c0_33 = arith.constant 0 : index
    %c0_34 = arith.constant 0 : index
    %63 = vector.load %arg3[%c0_33, %c0_34] : memref<4x80xf32, #tpu.memory_space<vmem>>, vector<4x80xf32>
    %c0_35 = arith.constant 0 : index
    %c0_36 = arith.constant 0 : index
    %64 = vector.load %arg9[%c0_35, %c0_36] : memref<160x256xf32, #tpu.memory_space<vmem>>, vector<80x256xf32>
    %cst_37 = arith.constant dense<0.000000e+00> : vector<4x256xf32>
    %65 = tpu.matmul %63, %64, %cst_37 {dimension_numbers = #tpu.dot_dimension_numbers<[1], [0], [0], [1], [0, 0, 1, 1], [], []>} : vector<4x80xf32>, vector<80x256xf32>, vector<4x256xf32> -> vector<4x256xf32>
    %c1_38 = arith.constant 1 : index
    %c0_39 = arith.constant 0 : index
    %c0_40 = arith.constant 0 : index
    %66 = vector.load %arg6[%c1_38, %c0_39, %c0_40] : memref<4x4x1xf32, #tpu.memory_space<vmem>>, vector<1x4x1xf32>
    %67 = vector.shape_cast %66 : vector<1x4x1xf32> to vector<4x1xf32>
    %68 = vector.broadcast %67 : vector<4x1xf32> to vector<4x256xf32>
    %69 = arith.addf %65, %68 : vector<4x256xf32>
    %cst_41 = arith.constant 0.000000e+00 : f32
    %70 = vector.broadcast %cst_41 : f32 to vector<4x256xf32>
    %71 = arith.cmpf oge, %69, %70 : vector<4x256xf32>
    %cst_42 = arith.constant 0.00999999977 : f32
    %72 = vector.broadcast %cst_42 : f32 to vector<4x256xf32>
    %73 = arith.mulf %72, %69 : vector<4x256xf32>
    %74 = arith.select %71, %69, %73 : vector<4x256xi1>, vector<4x256xf32>
    %75 = vector.shape_cast %74 : vector<4x256xf32> to vector<4x16x16xf32>
    %c0_43 = arith.constant 0 : index
    %c1_44 = arith.constant 1 : index
    %c1_45 = arith.constant 1 : index
    %76 = vector.load %arg8[%c0_43, %c1_44, %c1_45] : memref<4x18x18xf32, #tpu.memory_space<vmem>>, vector<4x16x16xf32>
    tpu.vector_store %arg8[%c0_43, %c1_44, %c1_45], %75 {strides = array<i32>} : memref<4x18x18xf32, #tpu.memory_space<vmem>>, vector<4x16x16xf32>,
    %c0_46 = arith.constant 0 : index
    %c0_47 = arith.constant 0 : index
    %c0_48 = arith.constant 0 : index
    %77 = vector.load %arg8[%c0_46, %c0_47, %c0_48] : memref<4x18x18xf32, #tpu.memory_space<vmem>>, vector<4x18x18xf32>
    %78 = vector.extract_strided_slice %77 {offsets = [0, 0, 0], sizes = [4, 16, 16], strides = [1, 1, 1]} : vector<4x18x18xf32> to vector<4x16x16xf32>
    %79 = vector.shape_cast %78 : vector<4x16x16xf32> to vector<4x256xf32>
    %80 = vector.extract_strided_slice %77 {offsets = [0, 0, 1], sizes = [4, 16, 16], strides = [1, 1, 1]} : vector<4x18x18xf32> to vector<4x16x16xf32>
    %81 = vector.shape_cast %80 : vector<4x16x16xf32> to vector<4x256xf32>
    %82 = vector.extract_strided_slice %77 {offsets = [0, 0, 2], sizes = [4, 16, 16], strides = [1, 1, 1]} : vector<4x18x18xf32> to vector<4x16x16xf32>
    %83 = vector.shape_cast %82 : vector<4x16x16xf32> to vector<4x256xf32>
    %84 = vector.extract_strided_slice %77 {offsets = [0, 1, 0], sizes = [4, 16, 16], strides = [1, 1, 1]} : vector<4x18x18xf32> to vector<4x16x16xf32>
    %85 = vector.shape_cast %84 : vector<4x16x16xf32> to vector<4x256xf32>
    %86 = vector.extract_strided_slice %77 {offsets = [0, 1, 1], sizes = [4, 16, 16], strides = [1, 1, 1]} : vector<4x18x18xf32> to vector<4x16x16xf32>
    %87 = vector.shape_cast %86 : vector<4x16x16xf32> to vector<4x256xf32>
    %88 = vector.extract_strided_slice %77 {offsets = [0, 1, 2], sizes = [4, 16, 16], strides = [1, 1, 1]} : vector<4x18x18xf32> to vector<4x16x16xf32>
    %89 = vector.shape_cast %88 : vector<4x16x16xf32> to vector<4x256xf32>
    %90 = vector.extract_strided_slice %77 {offsets = [0, 2, 0], sizes = [4, 16, 16], strides = [1, 1, 1]} : vector<4x18x18xf32> to vector<4x16x16xf32>
    %91 = vector.shape_cast %90 : vector<4x16x16xf32> to vector<4x256xf32>
    %92 = vector.extract_strided_slice %77 {offsets = [0, 2, 1], sizes = [4, 16, 16], strides = [1, 1, 1]} : vector<4x18x18xf32> to vector<4x16x16xf32>
    %93 = vector.shape_cast %92 : vector<4x16x16xf32> to vector<4x256xf32>
    %94 = vector.extract_strided_slice %77 {offsets = [0, 2, 2], sizes = [4, 16, 16], strides = [1, 1, 1]} : vector<4x18x18xf32> to vector<4x16x16xf32>
    %95 = vector.shape_cast %94 : vector<4x16x16xf32> to vector<4x256xf32>
    %96 = tpu.concatenate %79, %81, %83, %85, %87, %89, %91, %93, %95 in 0 : vector<4x256xf32>, vector<4x256xf32>, vector<4x256xf32>, vector<4x256xf32>, vector<4x256xf32>, vector<4x256xf32>, vector<4x256xf32>, vector<4x256xf32>, vector<4x256xf32> -> vector<36x256xf32>
    %c80 = arith.constant 80 : index
    %c0_49 = arith.constant 0 : index
    %97 = vector.load %arg9[%c80, %c0_49] : memref<160x256xf32, #tpu.memory_space<vmem>>, vector<36x256xf32>
    tpu.vector_store %arg9[%c80, %c0_49], %96 {strides = array<i32>} : memref<160x256xf32, #tpu.memory_space<vmem>>, vector<36x256xf32>,
    %c0_50 = arith.constant 0 : index
    %c0_51 = arith.constant 0 : index
    %98 = vector.load %arg4[%c0_50, %c0_51] : memref<4x120xf32, #tpu.memory_space<vmem>>, vector<4x120xf32>
    %c0_52 = arith.constant 0 : index
    %c0_53 = arith.constant 0 : index
    %99 = vector.load %arg9[%c0_52, %c0_53] : memref<160x256xf32, #tpu.memory_space<vmem>>, vector<120x256xf32>
    %cst_54 = arith.constant dense<0.000000e+00> : vector<4x256xf32>
    %100 = tpu.matmul %98, %99, %cst_54 {dimension_numbers = #tpu.dot_dimension_numbers<[1], [0], [0], [1], [0, 0, 1, 1], [], []>} : vector<4x120xf32>, vector<120x256xf32>, vector<4x256xf32> -> vector<4x256xf32>
    %c2 = arith.constant 2 : index
    %c0_55 = arith.constant 0 : index
    %c0_56 = arith.constant 0 : index
    %101 = vector.load %arg6[%c2, %c0_55, %c0_56] : memref<4x4x1xf32, #tpu.memory_space<vmem>>, vector<1x4x1xf32>
    %102 = vector.shape_cast %101 : vector<1x4x1xf32> to vector<4x1xf32>
    %103 = vector.broadcast %102 : vector<4x1xf32> to vector<4x256xf32>
    %104 = arith.addf %100, %103 : vector<4x256xf32>
    %cst_57 = arith.constant 0.000000e+00 : f32
    %105 = vector.broadcast %cst_57 : f32 to vector<4x256xf32>
    %106 = arith.cmpf oge, %104, %105 : vector<4x256xf32>
    %cst_58 = arith.constant 0.00999999977 : f32
    %107 = vector.broadcast %cst_58 : f32 to vector<4x256xf32>
    %108 = arith.mulf %107, %104 : vector<4x256xf32>
    %109 = arith.select %106, %104, %108 : vector<4x256xi1>, vector<4x256xf32>
    %110 = vector.shape_cast %109 : vector<4x256xf32> to vector<4x16x16xf32>
    %c0_59 = arith.constant 0 : index
    %c1_60 = arith.constant 1 : index
    %c1_61 = arith.constant 1 : index
    %111 = vector.load %arg8[%c0_59, %c1_60, %c1_61] : memref<4x18x18xf32, #tpu.memory_space<vmem>>, vector<4x16x16xf32>
    tpu.vector_store %arg8[%c0_59, %c1_60, %c1_61], %110 {strides = array<i32>} : memref<4x18x18xf32, #tpu.memory_space<vmem>>, vector<4x16x16xf32>,
    %c0_62 = arith.constant 0 : index
    %c0_63 = arith.constant 0 : index
    %c0_64 = arith.constant 0 : index
    %112 = vector.load %arg8[%c0_62, %c0_63, %c0_64] : memref<4x18x18xf32, #tpu.memory_space<vmem>>, vector<4x18x18xf32>
    %113 = vector.extract_strided_slice %112 {offsets = [0, 0, 0], sizes = [4, 16, 16], strides = [1, 1, 1]} : vector<4x18x18xf32> to vector<4x16x16xf32>
    %114 = vector.shape_cast %113 : vector<4x16x16xf32> to vector<4x256xf32>
    %115 = vector.extract_strided_slice %112 {offsets = [0, 0, 1], sizes = [4, 16, 16], strides = [1, 1, 1]} : vector<4x18x18xf32> to vector<4x16x16xf32>
    %116 = vector.shape_cast %115 : vector<4x16x16xf32> to vector<4x256xf32>
    %117 = vector.extract_strided_slice %112 {offsets = [0, 0, 2], sizes = [4, 16, 16], strides = [1, 1, 1]} : vector<4x18x18xf32> to vector<4x16x16xf32>
    %118 = vector.shape_cast %117 : vector<4x16x16xf32> to vector<4x256xf32>
    %119 = vector.extract_strided_slice %112 {offsets = [0, 1, 0], sizes = [4, 16, 16], strides = [1, 1, 1]} : vector<4x18x18xf32> to vector<4x16x16xf32>
    %120 = vector.shape_cast %119 : vector<4x16x16xf32> to vector<4x256xf32>
    %121 = vector.extract_strided_slice %112 {offsets = [0, 1, 1], sizes = [4, 16, 16], strides = [1, 1, 1]} : vector<4x18x18xf32> to vector<4x16x16xf32>
    %122 = vector.shape_cast %121 : vector<4x16x16xf32> to vector<4x256xf32>
    %123 = vector.extract_strided_slice %112 {offsets = [0, 1, 2], sizes = [4, 16, 16], strides = [1, 1, 1]} : vector<4x18x18xf32> to vector<4x16x16xf32>
    %124 = vector.shape_cast %123 : vector<4x16x16xf32> to vector<4x256xf32>
    %125 = vector.extract_strided_slice %112 {offsets = [0, 2, 0], sizes = [4, 16, 16], strides = [1, 1, 1]} : vector<4x18x18xf32> to vector<4x16x16xf32>
    %126 = vector.shape_cast %125 : vector<4x16x16xf32> to vector<4x256xf32>
    %127 = vector.extract_strided_slice %112 {offsets = [0, 2, 1], sizes = [4, 16, 16], strides = [1, 1, 1]} : vector<4x18x18xf32> to vector<4x16x16xf32>
    %128 = vector.shape_cast %127 : vector<4x16x16xf32> to vector<4x256xf32>
    %129 = vector.extract_strided_slice %112 {offsets = [0, 2, 2], sizes = [4, 16, 16], strides = [1, 1, 1]} : vector<4x18x18xf32> to vector<4x16x16xf32>
    %130 = vector.shape_cast %129 : vector<4x16x16xf32> to vector<4x256xf32>
    %131 = tpu.concatenate %114, %116, %118, %120, %122, %124, %126, %128, %130 in 0 : vector<4x256xf32>, vector<4x256xf32>, vector<4x256xf32>, vector<4x256xf32>, vector<4x256xf32>, vector<4x256xf32>, vector<4x256xf32>, vector<4x256xf32>, vector<4x256xf32> -> vector<36x256xf32>
    %c120 = arith.constant 120 : index
    %c0_65 = arith.constant 0 : index
    %132 = vector.load %arg9[%c120, %c0_65] : memref<160x256xf32, #tpu.memory_space<vmem>>, vector<36x256xf32>
    tpu.vector_store %arg9[%c120, %c0_65], %131 {strides = array<i32>} : memref<160x256xf32, #tpu.memory_space<vmem>>, vector<36x256xf32>,
    %c0_66 = arith.constant 0 : index
    %c0_67 = arith.constant 0 : index
    %133 = vector.load %arg5[%c0_66, %c0_67] : memref<4x160xf32, #tpu.memory_space<vmem>>, vector<4x160xf32>
    %c0_68 = arith.constant 0 : index
    %c0_69 = arith.constant 0 : index
    %134 = vector.load %arg9[%c0_68, %c0_69] : memref<160x256xf32, #tpu.memory_space<vmem>>, vector<160x256xf32>
    %cst_70 = arith.constant dense<0.000000e+00> : vector<4x256xf32>
    %135 = tpu.matmul %133, %134, %cst_70 {dimension_numbers = #tpu.dot_dimension_numbers<[1], [0], [0], [1], [0, 0, 1, 1], [], []>} : vector<4x160xf32>, vector<160x256xf32>, vector<4x256xf32> -> vector<4x256xf32>
    %c3 = arith.constant 3 : index
    %c0_71 = arith.constant 0 : index
    %c0_72 = arith.constant 0 : index
    %136 = vector.load %arg6[%c3, %c0_71, %c0_72] : memref<4x4x1xf32, #tpu.memory_space<vmem>>, vector<1x4x1xf32>
    %137 = vector.shape_cast %136 : vector<1x4x1xf32> to vector<4x1xf32>
    %138 = vector.broadcast %137 : vector<4x1xf32> to vector<4x256xf32>
    %139 = arith.addf %135, %138 : vector<4x256xf32>
    %cst_73 = arith.constant 0.000000e+00 : f32
    %140 = vector.broadcast %cst_73 : f32 to vector<4x256xf32>
    %141 = arith.cmpf oge, %139, %140 : vector<4x256xf32>
    %cst_74 = arith.constant 0.00999999977 : f32
    %142 = vector.broadcast %cst_74 : f32 to vector<4x256xf32>
    %143 = arith.mulf %142, %139 : vector<4x256xf32>
    %144 = arith.select %141, %139, %143 : vector<4x256xi1>, vector<4x256xf32>
    %c0_75 = arith.constant 0 : index
    %c0_76 = arith.constant 0 : index
    %c0_77 = arith.constant 0 : index
    %145 = vector.load %arg7[%c0_75, %c0_76, %c0_77] : memref<1x4x256xf32, #tpu.memory_space<vmem>>, vector<1x4x256xf32>
    %146 = vector.shape_cast %145 : vector<1x4x256xf32> to vector<4x256xf32>
    %147 = vector.shape_cast %144 : vector<4x256xf32> to vector<1x4x256xf32>
    tpu.vector_store %arg7[%c0_75, %c0_76, %c0_77], %147 {strides = array<i32>} : memref<1x4x256xf32, #tpu.memory_space<vmem>>, vector<1x4x256xf32>,
    return
  }
  func.func @transform_0(%arg0: i32) -> (i32, i32, i32, i32) {
    %c0_i32 = arith.constant 0 : i32
    %c0_i32_0 = arith.constant 0 : i32
    %c0_i32_1 = arith.constant 0 : i32
    %c0_i32_2 = arith.constant 0 : i32
    return %arg0, %c0_i32, %c0_i32_0, %c0_i32_1 : i32, i32, i32, i32
  }
  func.func @transform_1(%arg0: i32) -> (i32, i32) {
    %c0_i32 = arith.constant 0 : i32
    %c0_i32_0 = arith.constant 0 : i32
    %c0_i32_1 = arith.constant 0 : i32
    return %c0_i32, %c0_i32_0 : i32, i32
  }
  func.func @transform_2(%arg0: i32) -> (i32, i32) {
    %c0_i32 = arith.constant 0 : i32
    %c0_i32_0 = arith.constant 0 : i32
    %c0_i32_1 = arith.constant 0 : i32
    return %c0_i32, %c0_i32_0 : i32, i32
  }
  func.func @transform_3(%arg0: i32) -> (i32, i32) {
    %c0_i32 = arith.constant 0 : i32
    %c0_i32_0 = arith.constant 0 : i32
    %c0_i32_1 = arith.constant 0 : i32
    return %c0_i32, %c0_i32_0 : i32, i32
  }
  func.func @transform_4(%arg0: i32) -> (i32, i32) {
    %c0_i32 = arith.constant 0 : i32
    %c0_i32_0 = arith.constant 0 : i32
    %c0_i32_1 = arith.constant 0 : i32
    return %c0_i32, %c0_i32_0 : i32, i32
  }
  func.func @transform_5(%arg0: i32) -> (i32, i32, i32) {
    %c0_i32 = arith.constant 0 : i32
    %c0_i32_0 = arith.constant 0 : i32
    %c0_i32_1 = arith.constant 0 : i32
    %c0_i32_2 = arith.constant 0 : i32
    return %c0_i32, %c0_i32_0, %c0_i32_1 : i32, i32, i32
  }
  func.func @transform_6(%arg0: i32) -> (i32, i32, i32) {
    %c0_i32 = arith.constant 0 : i32
    %c0_i32_0 = arith.constant 0 : i32
    %c0_i32_1 = arith.constant 0 : i32
    return %arg0, %c0_i32, %c0_i32_0 : i32, i32, i32
  }
}

</mosaic_0001>

<llo_original>
// kernel: tpu_custom_call.1
$region0: #{tpu_custom_call.1}
  #allocation0 [shape = 'u32[]', space=smem, size = 0x4, offset = 0x4, fixed_abs, tag = 'smem constant byte address 0x4 - core index']
  #allocation1 [shape = 'u32[144,128]{1,0:T(1,128)}', space=vmem, size = 0x12000, scoped, tag = 'internal scratch']
  #allocation2 [shape = 'f32[4,18,18]{2,1,0:T(8,128)}', space=vmem, size = 0xc000, scoped, tag = 'scratch operand']
  #allocation3 [shape = 'f32[160,256]{1,0:T(8,128)}', space=vmem, size = 0x28000, scoped, tag = 'scratch operand']
  %s0 = inlined_call_operand.hbm [shape: f32[2,4,16,16], index: 0, kind: input, shape index: {}]
  %s1 = inlined_call_operand.vmem [shape: f32[4,40], index: 1, kind: input, shape index: {}]
  %s2 = inlined_call_operand.vmem [shape: f32[4,80], index: 2, kind: input, shape index: {}]
  %s3 = inlined_call_operand.vmem [shape: f32[4,120], index: 3, kind: input, shape index: {}]
  %s4 = inlined_call_operand.vmem [shape: f32[4,160], index: 4, kind: input, shape index: {}]
  %s5 = inlined_call_operand.vmem [shape: f32[4,4,1], index: 5, kind: input, shape index: {}]
  %s6 = inlined_call_operand.hbm [shape: f32[2,4,256], index: 6, kind: output, shape index: {}]
  %s7 = sld [smem:[#allocation0]]
  $region61: #{tpu_custom_call.1} parent=0
    _
  %s9 = ssub.s32 1, %s7
  %s10 = scalar_select 0, %s9, %s7
  $region1: #{tpu_custom_call.1} parent=0
    #allocation4 [shape = 'u8[65536]{0}', space=vmem, size = 0x10000, scoped, tag = 'input window, operand 0']
    #allocation5 [shape = 's32[2]{0}', space=sflag, size = 0x8, scoped, tag = 'scoped memory for tpu_custom_call.1']
    #allocation6 [shape = 's32[2]{0}', space=sflag, size = 0x8, scoped, tag = 'scoped memory for tpu_custom_call.1']
    #allocation7 [shape = 'u8[8192]{0}', space=vmem, size = 0x2000, scoped, tag = 'output window, operand 0']
    %11 = vsyncpa [#allocation5], 0
    %s12 = scalar_lea.sflag [#allocation5], 1
    %13 = vsyncpa %s12, 0
    %14 = vsyncpa [#allocation6], 0
    %s15 = scalar_lea.sflag [#allocation6], 1
    %16 = vsyncpa %s15, 0
    loop: start=0, step=1, limit=4
    $region2: #{tpu_custom_call.1} parent=1 // loop_pre_header
      _
    $region3: #{tpu_custom_call.1} parent=1 // loop_header
      %s18 = sphi 0, %s22
      %p19 = scmp.ge.s32.totalorder %s18, 4
      %s28 = sphi 0, %s30
      %s31 = sphi 0, %s28
      %s32 = sphi 0, %s31
      %s48 = sphi 0, %s32
      %s52 = sphi 0, %s52
      %s54 = sphi 0, %s52
      %s55 = sphi 0, %s54
      %s69 = sphi 0, %s55
      %s73 = sphi 0, %s73
      %s75 = sphi 0, %s73
      %s76 = sphi 0, %s75
      %s90 = sphi 0, %s76
      %s94 = sphi 0, %s94
      %s96 = sphi 0, %s94
      %s97 = sphi 0, %s96
      %s111 = sphi 0, %s97
      %s115 = sphi 0, %s115
      %s117 = sphi 0, %s115
      %s118 = sphi 0, %s117
      %s132 = sphi 0, %s118
      %s136 = sphi 0, %s136
      %s138 = sphi 0, %s136
      %s139 = sphi 0, %s138
      %s153 = sphi 0, %s139
      %s159 = sphi 0, %s161
      %s162 = sphi 0, %s159
      %s163 = sphi 0, %s162
      %s179 = sphi 0, %s163
    $region4: #{tpu_custom_call.1} parent=1 // loop_header_branch
      %21 = sbr.rel (%p19) target = $region8
    $region5: #{tpu_custom_call.1} parent=1 // loop_body
      %s23 = ssub.s32 %s18, 1
      %s24 = ssub.s32 %s18, 2
      %s25 = sadd.s32 %s18, 1
      %s26 = ssub.s32 %s18, %s25
      %p27 = scmp.eq.s32.totalorder %s26, 0
      %s29 = sadd.s32 %s28, 1
      %s30 = scalar_select %p27, %s28, %s29
      %p33 = pneg %p27
      %p34 = scmp.eq.s32.totalorder %s18, 1
      %p35 = por %p33, %p34
      %p36 = scmp.ne.s32.totalorder %s28, %s31
      %p37 = scmp.eq.s32.totalorder %s18, 0
      %p38 = por %p36, %p37
      %p39 = scmp.ne.s32.totalorder %s28, %s31
      %p40 = scmp.eq.s32.totalorder %s23, 1
      %p41 = por %p39, %p40
      %p42 = scmp.ne.s32.totalorder %s31, %s32
      %p43 = scmp.eq.s32.totalorder %s23, 0
      %p44 = por %p42, %p43
      %p45 = scmp.ne.s32.totalorder %s31, %s32
      %p46 = scmp.eq.s32.totalorder %s24, 1
      %p47 = por %p45, %p46
      %p49 = scmp.ne.s32.totalorder %s32, %s48
      %p50 = scmp.eq.s32.totalorder %s24, 0
      %p51 = por %p49, %p50
      %s53 = sadd.s32 %s52, 1
      %p56 = scmp.eq.s32.totalorder %s18, 1
      %p57 = scmp.ne.s32.totalorder %s52, %s54
      %p58 = scmp.eq.s32.totalorder %s18, 0
      %p59 = por %p57, %p58
      %p60 = scmp.ne.s32.totalorder %s52, %s54
      %p61 = scmp.eq.s32.totalorder %s23, 1
      %p62 = por %p60, %p61
      %p63 = scmp.ne.s32.totalorder %s54, %s55
      %p64 = scmp.eq.s32.totalorder %s23, 0
      %p65 = por %p63, %p64
      %p66 = scmp.ne.s32.totalorder %s54, %s55
      %p67 = scmp.eq.s32.totalorder %s24, 1
      %p68 = por %p66, %p67
      %p70 = scmp.ne.s32.totalorder %s55, %s69
      %p71 = scmp.eq.s32.totalorder %s24, 0
      %p72 = por %p70, %p71
      %s74 = sadd.s32 %s73, 1
      %p77 = scmp.eq.s32.totalorder %s18, 1
      %p78 = scmp.ne.s32.totalorder %s73, %s75
      %p79 = scmp.eq.s32.totalorder %s18, 0
      %p80 = por %p78, %p79
      %p81 = scmp.ne.s32.totalorder %s73, %s75
      %p82 = scmp.eq.s32.totalorder %s23, 1
      %p83 = por %p81, %p82
      %p84 = scmp.ne.s32.totalorder %s75, %s76
      %p85 = scmp.eq.s32.totalorder %s23, 0
      %p86 = por %p84, %p85
      %p87 = scmp.ne.s32.totalorder %s75, %s76
      %p88 = scmp.eq.s32.totalorder %s24, 1
      %p89 = por %p87, %p88
      %p91 = scmp.ne.s32.totalorder %s76, %s90
      %p92 = scmp.eq.s32.totalorder %s24, 0
      %p93 = por %p91, %p92
      %s95 = sadd.s32 %s94, 1
      %p98 = scmp.eq.s32.totalorder %s18, 1
      %p99 = scmp.ne.s32.totalorder %s94, %s96
      %p100 = scmp.eq.s32.totalorder %s18, 0
      %p101 = por %p99, %p100
      %p102 = scmp.ne.s32.totalorder %s94, %s96
      %p103 = scmp.eq.s32.totalorder %s23, 1
      %p104 = por %p102, %p103
      %p105 = scmp.ne.s32.totalorder %s96, %s97
      %p106 = scmp.eq.s32.totalorder %s23, 0
      %p107 = por %p105, %p106
      %p108 = scmp.ne.s32.totalorder %s96, %s97
      %p109 = scmp.eq.s32.totalorder %s24, 1
      %p110 = por %p108, %p109
      %p112 = scmp.ne.s32.totalorder %s97, %s111
      %p113 = scmp.eq.s32.totalorder %s24, 0
      %p114 = por %p112, %p113
      %s116 = sadd.s32 %s115, 1
      %p119 = scmp.eq.s32.totalorder %s18, 1
      %p120 = scmp.ne.s32.totalorder %s115, %s117
      %p121 = scmp.eq.s32.totalorder %s18, 0
      %p122 = por %p120, %p121
      %p123 = scmp.ne.s32.totalorder %s115, %s117
      %p124 = scmp.eq.s32.totalorder %s23, 1
      %p125 = por %p123, %p124
      %p126 = scmp.ne.s32.totalorder %s117, %s118
      %p127 = scmp.eq.s32.totalorder %s23, 0
      %p128 = por %p126, %p127
      %p129 = scmp.ne.s32.totalorder %s117, %s118
      %p130 = scmp.eq.s32.totalorder %s24, 1
      %p131 = por %p129, %p130
      %p133 = scmp.ne.s32.totalorder %s118, %s132
      %p134 = scmp.eq.s32.totalorder %s24, 0
      %p135 = por %p133, %p134
      %s137 = sadd.s32 %s136, 1
      %p140 = scmp.eq.s32.totalorder %s18, 1
      %p141 = scmp.ne.s32.totalorder %s136, %s138
      %p142 = scmp.eq.s32.totalorder %s18, 0
      %p143 = por %p141, %p142
      %p144 = scmp.ne.s32.totalorder %s136, %s138
      %p145 = scmp.eq.s32.totalorder %s23, 1
      %p146 = por %p144, %p145
      %p147 = scmp.ne.s32.totalorder %s138, %s139
      %p148 = scmp.eq.s32.totalorder %s23, 0
      %p149 = por %p147, %p148
      %p150 = scmp.ne.s32.totalorder %s138, %s139
      %p151 = scmp.eq.s32.totalorder %s24, 1
      %p152 = por %p150, %p151
      %p154 = scmp.ne.s32.totalorder %s139, %s153
      %p155 = scmp.eq.s32.totalorder %s24, 0
      %p156 = por %p154, %p155
      %s157 = ssub.s32 %s18, %s25
      %p158 = scmp.eq.s32.totalorder %s157, 0
      %s160 = sadd.s32 %s159, 1
      %s161 = scalar_select %p158, %s159, %s160
      %p164 = pneg %p158
      %p165 = scmp.eq.s32.totalorder %s18, 1
      %p166 = por %p164, %p165
      %p167 = scmp.ne.s32.totalorder %s159, %s162
      %p168 = scmp.eq.s32.totalorder %s18, 0
      %p169 = por %p167, %p168
      %p170 = scmp.ne.s32.totalorder %s159, %s162
      %p171 = scmp.eq.s32.totalorder %s23, 1
      %p172 = por %p170, %p171
      %p173 = scmp.ne.s32.totalorder %s162, %s163
      %p174 = scmp.eq.s32.totalorder %s23, 0
      %p175 = por %p173, %p174
      %p176 = scmp.ne.s32.totalorder %s162, %s163
      %p177 = scmp.eq.s32.totalorder %s24, 1
      %p178 = por %p176, %p177
      %p180 = scmp.ne.s32.totalorder %s163, %s179
      %p181 = scmp.eq.s32.totalorder %s24, 0
      %p182 = por %p180, %p181
      %p183 = scmp.le.s32.totalorder 1, %s18
      %p184 = scmp.lt.s32.totalorder %s18, 3
      %p185 = pnand %p183, %p184
      %p186 = pneg %p185
      // Predicated region
      $region9: #{tpu_custom_call.1} parent=5 // pred_check
        _
      $region10: #{tpu_custom_call.1} parent=5 // pred_check_branch
        %188 = sbr.rel (%p185) target = $region12
      $region11: #{tpu_custom_call.1} parent=5 // pred_region
        %s189 = ssub.s32 %s18, 1
        // Predicated region
        $region13: #{tpu_custom_call.1} parent=11 // pred_check
          %p190 = pneg %p65
        $region14: #{tpu_custom_call.1} parent=11 // pred_check_branch
          %192 = sbr.rel (%p190) target = $region16
        $region15: #{tpu_custom_call.1} parent=11 // pred_region
          _
        $region16: #{tpu_custom_call.1} parent=11 // pred_fallthru
          _
        // Predicated region
        $region17: #{tpu_custom_call.1} parent=11 // pred_check
          %p193 = pneg %p86
        $region18: #{tpu_custom_call.1} parent=11 // pred_check_branch
          %195 = sbr.rel (%p193) target = $region20
        $region19: #{tpu_custom_call.1} parent=11 // pred_region
          _
        $region20: #{tpu_custom_call.1} parent=11 // pred_fallthru
          _
        // Predicated region
        $region21: #{tpu_custom_call.1} parent=11 // pred_check
          %p196 = pneg %p107
        $region22: #{tpu_custom_call.1} parent=11 // pred_check_branch
          %198 = sbr.rel (%p196) target = $region24
        $region23: #{tpu_custom_call.1} parent=11 // pred_region
          _
        $region24: #{tpu_custom_call.1} parent=11 // pred_fallthru
          _
        // Predicated region
        $region25: #{tpu_custom_call.1} parent=11 // pred_check
          %p199 = pneg %p128
        $region26: #{tpu_custom_call.1} parent=11 // pred_check_branch
          %201 = sbr.rel (%p199) target = $region28
        $region27: #{tpu_custom_call.1} parent=11 // pred_region
          _
        $region28: #{tpu_custom_call.1} parent=11 // pred_fallthru
          _
        // Predicated region
        $region29: #{tpu_custom_call.1} parent=11 // pred_check
          %p202 = pneg %p149
        $region30: #{tpu_custom_call.1} parent=11 // pred_check_branch
          %204 = sbr.rel (%p202) target = $region32
        $region31: #{tpu_custom_call.1} parent=11 // pred_region
          _
        $region32: #{tpu_custom_call.1} parent=11 // pred_fallthru
          _
      $region12: #{tpu_custom_call.1} parent=5 // pred_fallthru
        _
      %p205 = scmp.lt.s32.totalorder %s18, 2
      // Predicated region
      $region33: #{tpu_custom_call.1} parent=5 // pred_check
        %p206 = pneg %p205
      $region34: #{tpu_custom_call.1} parent=5 // pred_check_branch
        %208 = sbr.rel (%p206) target = $region36
      $region35: #{tpu_custom_call.1} parent=5 // pred_region
        // Predicated region
        $region37: #{tpu_custom_call.1} parent=35 // pred_check
          %p209 = pneg %p38
        $region38: #{tpu_custom_call.1} parent=35 // pred_check_branch
          %211 = sbr.rel (%p209) target = $region40
        $region39: #{tpu_custom_call.1} parent=35 // pred_region
          %s212 = sand.u32 %s28, 1
          %s213 = scalar_lea.sflag [#allocation5], %s212
          %s214 = sand.u32 %s28, 1
          %s215 = smul.addr %s214, 64
          %s216 = scalar_lea.vmem [#allocation4], %s215
          %s218 = ssub.s32 1024, 1024
          %219 = vsyncadd %s213, %s218
          %s220 = smul.addr %s18, 8
          %s221 = smul.addr %s220, 128
          %s222 = scalar_lea.hbm %s0, %s221
          %s223 = sshll.u32 %s216, 4
          %s224 = int_to_ptr.vmem [resolvable:$true] %s223
          %229 = dma.hbm_to_vmem [thread:$0]  %s222, 1024, %s224, %s213, 128, 128, 8
        $region40: #{tpu_custom_call.1} parent=35 // pred_fallthru
          _
      $region36: #{tpu_custom_call.1} parent=5 // pred_fallthru
        _
      %p230 = scmp.le.s32.totalorder 1, %s18
      %p231 = scmp.lt.s32.totalorder %s18, 3
      %p232 = pnand %p230, %p231
      %p233 = pneg %p232
      // Predicated region
      $region41: #{tpu_custom_call.1} parent=5 // pred_check
        _
      $region42: #{tpu_custom_call.1} parent=5 // pred_check_branch
        %235 = sbr.rel (%p232) target = $region44
      $region43: #{tpu_custom_call.1} parent=5 // pred_region
        %s236 = ssub.s32 %s18, 1
        %s237 = sand.u32 %s31, 1
        %s238 = scalar_lea.sflag [#allocation5], %s237
        %s239 = sand.u32 %s31, 1
        %s240 = smul.addr %s239, 64
        %s241 = scalar_lea.vmem [#allocation4], %s240
        // Predicated region
        $region45: #{tpu_custom_call.1} parent=43 // pred_check
          %p242 = pneg %p44
        $region46: #{tpu_custom_call.1} parent=43 // pred_check_branch
          %244 = sbr.rel (%p242) target = $region48
        $region47: #{tpu_custom_call.1} parent=43 // pred_region
          %245 = dma.done %s238, 1024
        $region48: #{tpu_custom_call.1} parent=43 // pred_fallthru
          _
        %s246 = sand.u32 %s31, 1
        %s247 = scalar_lea.sflag [#allocation5], %s246
        %s248 = sand.u32 %s31, 1
        %s249 = smul.addr %s248, 64
        %s250 = scalar_lea.vmem [#allocation4], %s249
        %p251 = pneg %p44
        %p252 = pneg %p41
        %p253 = pneg %p65
        %p254 = pneg %p62
        %p255 = pneg %p86
        %p256 = pneg %p83
        %p257 = pneg %p107
        %p258 = pneg %p104
        %p259 = pneg %p128
        %p260 = pneg %p125
        %p261 = pneg %p149
        %p262 = pneg %p146
        %p263 = pneg %p175
        %p264 = pneg %p172
        %s265 = sand.u32 %s162, 1
        %s266 = scalar_lea.sflag [#allocation6], %s265
        %s267 = sand.u32 %s162, 1
        %s268 = smul.addr %s267, 8
        %s269 = scalar_lea.vmem [#allocation7], %s268
        %vm270 = vcmask 146432
        %271 = vst.msk [vmem:[#allocation2] sm:$0xff] %vm270, 0.0
        %272 = vst.msk [vmem:[#allocation2 + $0x8] sm:$0xff] %vm270, 0.0
        %vm273 = vcmask 140288
        %274 = vst.msk [vmem:[#allocation2 + $0x10] sm:$0x3] %vm273, 0.0
        %275 = vst.msk [vmem:[#allocation2 + $0x18] sm:$0xff] %vm270, 0.0
        %276 = vst.msk [vmem:[#allocation2 + $0x20] sm:$0xff] %vm270, 0.0
        %277 = vst.msk [vmem:[#allocation2 + $0x28] sm:$0x3] %vm273, 0.0
        %278 = vst.msk [vmem:[#allocation2 + $0x30] sm:$0xff] %vm270, 0.0
        %279 = vst.msk [vmem:[#allocation2 + $0x38] sm:$0xff] %vm270, 0.0
        %280 = vst.msk [vmem:[#allocation2 + $0x40] sm:$0x3] %vm273, 0.0
        %281 = vst.msk [vmem:[#allocation2 + $0x48] sm:$0xff] %vm270, 0.0
        %282 = vst.msk [vmem:[#allocation2 + $0x50] sm:$0xff] %vm270, 0.0
        %283 = vst.msk [vmem:[#allocation2 + $0x58] sm:$0x3] %vm273, 0.0
        %284 = vst [vmem:[#allocation3] sm:$0xff] 0.0
        %285 = vst [vmem:[#allocation3 + $0x8] sm:$0xff] 0.0
        %286 = vst [vmem:[#allocation3 + $0x10] sm:$0xff] 0.0
        %287 = vst [vmem:[#allocation3 + $0x18] sm:$0xff] 0.0
        %288 = vst [vmem:[#allocation3 + $0x20] sm:$0xff] 0.0
        %289 = vst [vmem:[#allocation3 + $0x28] sm:$0xff] 0.0
        %290 = vst [vmem:[#allocation3 + $0x30] sm:$0xff] 0.0
        %291 = vst [vmem:[#allocation3 + $0x38] sm:$0xff] 0.0
        %292 = vst [vmem:[#allocation3 + $0x40] sm:$0xff] 0.0
        %293 = vst [vmem:[#allocation3 + $0x48] sm:$0xff] 0.0
        %294 = vst [vmem:[#allocation3 + $0x50] sm:$0xff] 0.0
        %295 = vst [vmem:[#allocation3 + $0x58] sm:$0xff] 0.0
        %296 = vst [vmem:[#allocation3 + $0x60] sm:$0xff] 0.0
        %297 = vst [vmem:[#allocation3 + $0x68] sm:$0xff] 0.0
        %298 = vst [vmem:[#allocation3 + $0x70] sm:$0xff] 0.0
        %299 = vst [vmem:[#allocation3 + $0x78] sm:$0xff] 0.0
        %300 = vst [vmem:[#allocation3 + $0x80] sm:$0xff] 0.0
        %301 = vst [vmem:[#allocation3 + $0x88] sm:$0xff] 0.0
        %302 = vst [vmem:[#allocation3 + $0x90] sm:$0xff] 0.0
        %303 = vst [vmem:[#allocation3 + $0x98] sm:$0xff] 0.0
        %304 = vst [vmem:[#allocation3 + $0xa0] sm:$0xff] 0.0
        %305 = vst [vmem:[#allocation3 + $0xa8] sm:$0xff] 0.0
        %306 = vst [vmem:[#allocation3 + $0xb0] sm:$0xff] 0.0
        %307 = vst [vmem:[#allocation3 + $0xb8] sm:$0xff] 0.0
        %308 = vst [vmem:[#allocation3 + $0xc0] sm:$0xff] 0.0
        %309 = vst [vmem:[#allocation3 + $0xc8] sm:$0xff] 0.0
        %310 = vst [vmem:[#allocation3 + $0xd0] sm:$0xff] 0.0
        %311 = vst [vmem:[#allocation3 + $0xd8] sm:$0xff] 0.0
        %312 = vst [vmem:[#allocation3 + $0xe0] sm:$0xff] 0.0
        %313 = vst [vmem:[#allocation3 + $0xe8] sm:$0xff] 0.0
        %314 = vst [vmem:[#allocation3 + $0xf0] sm:$0xff] 0.0
        %315 = vst [vmem:[#allocation3 + $0xf8] sm:$0xff] 0.0
        %316 = vst [vmem:[#allocation3 + $0x100] sm:$0xff] 0.0
        %317 = vst [vmem:[#allocation3 + $0x108] sm:$0xff] 0.0
        %318 = vst [vmem:[#allocation3 + $0x110] sm:$0xff] 0.0
        %319 = vst [vmem:[#allocation3 + $0x118] sm:$0xff] 0.0
        %320 = vst [vmem:[#allocation3 + $0x120] sm:$0xff] 0.0
        %321 = vst [vmem:[#allocation3 + $0x128] sm:$0xff] 0.0
        %322 = vst [vmem:[#allocation3 + $0x130] sm:$0xff] 0.0
        %323 = vst [vmem:[#allocation3 + $0x138] sm:$0xff] 0.0
        %v324 = vld [vmem:[%s241] sm:$0xff]
        %v325 = vld [vmem:[%s241 + $0x8] sm:$0xff]
        %v326 = vld [vmem:[%s241 + $0x10] sm:$0xff]
        %v327 = vld [vmem:[%s241 + $0x18] sm:$0xff]
        %v328 = vld [vmem:[%s241 + $0x20] sm:$0xff]
        %v329 = vld [vmem:[%s241 + $0x28] sm:$0xff]
        %v330 = vld [vmem:[%s241 + $0x30] sm:$0xff]
        %v331 = vld [vmem:[%s241 + $0x38] sm:$0xff]
        %340 = vrot.lane.b32.xlu0 %v324, 1
        %v341 = vpop.permute.xlu0 %340
        %342 = vrot.lane.b32.xlu0 %v325, 1
        %v343 = vpop.permute.xlu0 %342
        %344 = vrot.lane.b32.xlu0 %v326, 1
        %v345 = vpop.permute.xlu0 %344
        %346 = vrot.lane.b32.xlu0 %v327, 1
        %v347 = vpop.permute.xlu0 %346
        %348 = vrot.lane.b32.xlu0 %v328, 1
        %v349 = vpop.permute.xlu0 %348
        %350 = vrot.lane.b32.xlu0 %v329, 1
        %v351 = vpop.permute.xlu0 %350
        %352 = vrot.lane.b32.xlu0 %v330, 1
        %v353 = vpop.permute.xlu0 %352
        %354 = vrot.lane.b32.xlu0 %v331, 1
        %v355 = vpop.permute.xlu0 %354
        %vm364 = vcmask 138248
        %365 = vst.msk [vmem:[#allocation2 + $0x1] sm:$0xff] %vm364, %v341
        %366 = vst.msk [vmem:[#allocation2 + $0x9] sm:$0xff] %vm364, %v343
        %367 = vst.msk [vmem:[#allocation2 + $0x19] sm:$0xff] %vm364, %v345
        %368 = vst.msk [vmem:[#allocation2 + $0x21] sm:$0xff] %vm364, %v347
        %369 = vst.msk [vmem:[#allocation2 + $0x31] sm:$0xff] %vm364, %v349
        %370 = vst.msk [vmem:[#allocation2 + $0x39] sm:$0xff] %vm364, %v351
        %371 = vst.msk [vmem:[#allocation2 + $0x49] sm:$0xff] %vm364, %v353
        %372 = vst.msk [vmem:[#allocation2 + $0x51] sm:$0xff] %vm364, %v355
        %v373 = vld [vmem:[#allocation2] sm:$0xff]
        %v374 = vld [vmem:[#allocation2 + $0x8] sm:$0xff]
        %v375 = vld [vmem:[#allocation2 + $0x10] sm:$0x3]
        %v376 = vld [vmem:[#allocation2 + $0x18] sm:$0xff]
        %v377 = vld [vmem:[#allocation2 + $0x20] sm:$0xff]
        %v378 = vld [vmem:[#allocation2 + $0x28] sm:$0x3]
        %v379 = vld [vmem:[#allocation2 + $0x30] sm:$0xff]
        %v380 = vld [vmem:[#allocation2 + $0x38] sm:$0xff]
        %v381 = vld [vmem:[#allocation2 + $0x40] sm:$0x3]
        %v382 = vld [vmem:[#allocation2 + $0x48] sm:$0xff]
        %v383 = vld [vmem:[#allocation2 + $0x50] sm:$0xff]
        %v384 = vld [vmem:[#allocation2 + $0x58] sm:$0x3]
        %v385 = vcombine.low %v373, %v379
        %v386 = vcombine.high %v373, %v379
        %v388 = vunpack.c.l.s4 1983009808
        %v389 = vunpack.c.0.s8 %v388
        %v390 = vlaneseq
        %v391 = vshrl.u32 %v390, 7
        %v392 = vsub.s32 %v389, %v391
        %v393 = vrot.slane %v385, %v392
        %v395 = vunpack.c.l.s4 1983009808
        %v396 = vunpack.c.0.s8 %v395
        %v397 = vlaneseq
        %v398 = vshrl.u32 %v397, 7
        %v399 = vsub.s32 %v396, %v398
        %v400 = vrot.slane %v386, %v399
        %v401 = vcombine.low %v376, %v382
        %v402 = vcombine.high %v376, %v382
        %v404 = vunpack.c.l.s4 1983009808
        %v405 = vunpack.c.0.s8 %v404
        %v406 = vlaneseq
        %v407 = vshrl.u32 %v406, 7
        %v408 = vsub.s32 %v405, %v407
        %v409 = vrot.slane %v401, %v408
        %v411 = vunpack.c.l.s4 1983009808
        %v412 = vunpack.c.0.s8 %v411
        %v413 = vlaneseq
        %v414 = vshrl.u32 %v413, 7
        %v415 = vsub.s32 %v412, %v414
        %v416 = vrot.slane %v402, %v415
        %v417 = vcombine.low %v393, %v409
        %v418 = vcombine.high %v393, %v409
        %v420 = vunpack.c.l.s4 1934713408
        %v421 = vunpack.c.0.s8 %v420
        %v422 = vlaneseq
        %v423 = vshrl.u32 %v422, 7
        %v424 = vsub.s32 %v421, %v423
        %v425 = vrot.slane %v417, %v424
        %v427 = vunpack.c.l.s4 1934713408
        %v428 = vunpack.c.0.s8 %v427
        %v429 = vlaneseq
        %v430 = vshrl.u32 %v429, 7
        %v431 = vsub.s32 %v428, %v430
        %v432 = vrot.slane %v418, %v431
        %v433 = vcombine.low %v400, %v416
        %v434 = vcombine.high %v400, %v416
        %v436 = vunpack.c.l.s4 1934713408
        %v437 = vunpack.c.0.s8 %v436
        %v438 = vlaneseq
        %v439 = vshrl.u32 %v438, 7
        %v440 = vsub.s32 %v437, %v439
        %v441 = vrot.slane %v433, %v440
        %v443 = vunpack.c.l.s4 1934713408
        %v444 = vunpack.c.0.s8 %v443
        %v445 = vlaneseq
        %v446 = vshrl.u32 %v445, 7
        %v447 = vsub.s32 %v444, %v446
        %v448 = vrot.slane %v434, %v447
        %v449 = vcombine.high %v425, 0.0
        %v450 = vcombine.high %v432, 0.0
        %v451 = vcombine.high %v441, 0.0
        %v452 = vcombine.high %v448, 0.0
        %v453 = vcombine.low %v374, %v380
        %v454 = vcombine.high %v374, %v380
        %v456 = vunpack.c.l.s4 1983009808
        %v457 = vunpack.c.0.s8 %v456
        %v458 = vlaneseq
        %v459 = vshrl.u32 %v458, 7
        %v460 = vsub.s32 %v457, %v459
        %v461 = vrot.slane %v453, %v460
        %v463 = vunpack.c.l.s4 1983009808
        %v464 = vunpack.c.0.s8 %v463
        %v465 = vlaneseq
        %v466 = vshrl.u32 %v465, 7
        %v467 = vsub.s32 %v464, %v466
        %v468 = vrot.slane %v454, %v467
        %v469 = vcombine.low %v377, %v383
        %v470 = vcombine.high %v377, %v383
        %v472 = vunpack.c.l.s4 1983009808
        %v473 = vunpack.c.0.s8 %v472
        %v474 = vlaneseq
        %v475 = vshrl.u32 %v474, 7
        %v476 = vsub.s32 %v473, %v475
        %v477 = vrot.slane %v469, %v476
        %v479 = vunpack.c.l.s4 1983009808
        %v480 = vunpack.c.0.s8 %v479
        %v481 = vlaneseq
        %v482 = vshrl.u32 %v481, 7
        %v483 = vsub.s32 %v480, %v482
        %v484 = vrot.slane %v470, %v483
        %v485 = vcombine.low %v461, %v477
        %v486 = vcombine.high %v461, %v477
        %v488 = vunpack.c.l.s4 1934713408
        %v489 = vunpack.c.0.s8 %v488
        %v490 = vlaneseq
        %v491 = vshrl.u32 %v490, 7
        %v492 = vsub.s32 %v489, %v491
        %v493 = vrot.slane %v485, %v492
        %v495 = vunpack.c.l.s4 1934713408
        %v496 = vunpack.c.0.s8 %v495
        %v497 = vlaneseq
        %v498 = vshrl.u32 %v497, 7
        %v499 = vsub.s32 %v496, %v498
        %v500 = vrot.slane %v486, %v499
        %v501 = vcombine.low %v468, %v484
        %v502 = vcombine.high %v468, %v484
        %v504 = vunpack.c.l.s4 1934713408
        %v505 = vunpack.c.0.s8 %v504
        %v506 = vlaneseq
        %v507 = vshrl.u32 %v506, 7
        %v508 = vsub.s32 %v505, %v507
        %v509 = vrot.slane %v501, %v508
        %v511 = vunpack.c.l.s4 1934713408
        %v512 = vunpack.c.0.s8 %v511
        %v513 = vlaneseq
        %v514 = vshrl.u32 %v513, 7
        %v515 = vsub.s32 %v512, %v514
        %v516 = vrot.slane %v502, %v515
        %v517 = vcombine.high %v493, 0.0
        %v518 = vcombine.high %v500, 0.0
        %v519 = vcombine.high %v509, 0.0
        %v520 = vcombine.high %v516, 0.0
        %522 = vrot.lane.b32.xlu0 %v449, 16
        %v523 = vpop.permute.xlu0 %522
        %526 = vrot.lane.b32.xlu0 %v432, 32
        %v527 = vpop.permute.xlu0 %526
        %530 = vrot.lane.b32.xlu0 %v450, 48
        %v531 = vpop.permute.xlu0 %530
        %534 = vrot.lane.b32.xlu0 %v441, 64
        %v535 = vpop.permute.xlu0 %534
        %538 = vrot.lane.b32.xlu0 %v451, 80
        %v539 = vpop.permute.xlu0 %538
        %542 = vrot.lane.b32.xlu0 %v448, 96
        %v543 = vpop.permute.xlu0 %542
        %546 = vrot.lane.b32.xlu0 %v452, 112
        %v547 = vpop.permute.xlu0 %546
        %550 = vrot.lane.b32.xlu0 %v517, 16
        %v551 = vpop.permute.xlu0 %550
        %554 = vrot.lane.b32.xlu0 %v500, 32
        %v555 = vpop.permute.xlu0 %554
        %558 = vrot.lane.b32.xlu0 %v518, 48
        %v559 = vpop.permute.xlu0 %558
        %562 = vrot.lane.b32.xlu0 %v509, 64
        %v563 = vpop.permute.xlu0 %562
        %566 = vrot.lane.b32.xlu0 %v519, 80
        %v567 = vpop.permute.xlu0 %566
        %570 = vrot.lane.b32.xlu0 %v516, 96
        %v571 = vpop.permute.xlu0 %570
        %574 = vrot.lane.b32.xlu0 %v520, 112
        %v575 = vpop.permute.xlu0 %574
        %vm577 = vcmask 130048
        %v578 = vsel %vm577, %v425, %v523
        %vm579 = vcmask 261120
        %v580 = vsel %vm579, %v578, %v527
        %vm581 = vcmask 392192
        %v582 = vsel %vm581, %v580, %v531
        %vm583 = vcmask 523264
        %v584 = vsel %vm583, %v582, %v535
        %vm585 = vcmask 654336
        %v586 = vsel %vm585, %v584, %v539
        %vm587 = vcmask 785408
        %v588 = vsel %vm587, %v586, %v543
        %vm589 = vcmask 916480
        %v590 = vsel %vm589, %v588, %v547
        %v591 = vsel %vm577, %v493, %v551
        %v592 = vsel %vm579, %v591, %v555
        %v593 = vsel %vm581, %v592, %v559
        %v594 = vsel %vm583, %v593, %v563
        %v595 = vsel %vm585, %v594, %v567
        %v596 = vsel %vm587, %v595, %v571
        %v597 = vsel %vm589, %v596, %v575
        %606 = vrot.lane.b32.xlu0 %v373, 127
        %v607 = vpop.permute.xlu0 %606
        %608 = vrot.lane.b32.xlu0 %v374, 127
        %v609 = vpop.permute.xlu0 %608
        %610 = vrot.lane.b32.xlu0 %v376, 127
        %v611 = vpop.permute.xlu0 %610
        %612 = vrot.lane.b32.xlu0 %v377, 127
        %v613 = vpop.permute.xlu0 %612
        %614 = vrot.lane.b32.xlu0 %v379, 127
        %v615 = vpop.permute.xlu0 %614
        %616 = vrot.lane.b32.xlu0 %v380, 127
        %v617 = vpop.permute.xlu0 %616
        %618 = vrot.lane.b32.xlu0 %v382, 127
        %v619 = vpop.permute.xlu0 %618
        %620 = vrot.lane.b32.xlu0 %v383, 127
        %v621 = vpop.permute.xlu0 %620
        %v630 = vcombine.low %v607, %v615
        %v631 = vcombine.high %v607, %v615
        %v633 = vunpack.c.l.s4 1983009808
        %v634 = vunpack.c.0.s8 %v633
        %v635 = vlaneseq
        %v636 = vshrl.u32 %v635, 7
        %v637 = vsub.s32 %v634, %v636
        %v638 = vrot.slane %v630, %v637
        %v640 = vunpack.c.l.s4 1983009808
        %v641 = vunpack.c.0.s8 %v640
        %v642 = vlaneseq
        %v643 = vshrl.u32 %v642, 7
        %v644 = vsub.s32 %v641, %v643
        %v645 = vrot.slane %v631, %v644
        %v646 = vcombine.low %v611, %v619
        %v647 = vcombine.high %v611, %v619
        %v649 = vunpack.c.l.s4 1983009808
        %v650 = vunpack.c.0.s8 %v649
        %v651 = vlaneseq
        %v652 = vshrl.u32 %v651, 7
        %v653 = vsub.s32 %v650, %v652
        %v654 = vrot.slane %v646, %v653
        %v656 = vunpack.c.l.s4 1983009808
        %v657 = vunpack.c.0.s8 %v656
        %v658 = vlaneseq
        %v659 = vshrl.u32 %v658, 7
        %v660 = vsub.s32 %v657, %v659
        %v661 = vrot.slane %v647, %v660
        %v662 = vcombine.low %v638, %v654
        %v663 = vcombine.high %v638, %v654
        %v665 = vunpack.c.l.s4 1934713408
        %v666 = vunpack.c.0.s8 %v665
        %v667 = vlaneseq
        %v668 = vshrl.u32 %v667, 7
        %v669 = vsub.s32 %v666, %v668
        %v670 = vrot.slane %v662, %v669
        %v672 = vunpack.c.l.s4 1934713408
        %v673 = vunpack.c.0.s8 %v672
        %v674 = vlaneseq
        %v675 = vshrl.u32 %v674, 7
        %v676 = vsub.s32 %v673, %v675
        %v677 = vrot.slane %v663, %v676
        %v678 = vcombine.low %v645, %v661
        %v679 = vcombine.high %v645, %v661
        %v681 = vunpack.c.l.s4 1934713408
        %v682 = vunpack.c.0.s8 %v681
        %v683 = vlaneseq
        %v684 = vshrl.u32 %v683, 7
        %v685 = vsub.s32 %v682, %v684
        %v686 = vrot.slane %v678, %v685
        %v688 = vunpack.c.l.s4 1934713408
        %v689 = vunpack.c.0.s8 %v688
        %v690 = vlaneseq
        %v691 = vshrl.u32 %v690, 7
        %v692 = vsub.s32 %v689, %v691
        %v693 = vrot.slane %v679, %v692
        %v694 = vcombine.high %v670, 0.0
        %v695 = vcombine.high %v677, 0.0
        %v696 = vcombine.high %v686, 0.0
        %v697 = vcombine.high %v693, 0.0
        %v698 = vcombine.low %v609, %v617
        %v699 = vcombine.high %v609, %v617
        %v701 = vunpack.c.l.s4 1983009808
        %v702 = vunpack.c.0.s8 %v701
        %v703 = vlaneseq
        %v704 = vshrl.u32 %v703, 7
        %v705 = vsub.s32 %v702, %v704
        %v706 = vrot.slane %v698, %v705
        %v708 = vunpack.c.l.s4 1983009808
        %v709 = vunpack.c.0.s8 %v708
        %v710 = vlaneseq
        %v711 = vshrl.u32 %v710, 7
        %v712 = vsub.s32 %v709, %v711
        %v713 = vrot.slane %v699, %v712
        %v714 = vcombine.low %v613, %v621
        %v715 = vcombine.high %v613, %v621
        %v717 = vunpack.c.l.s4 1983009808
        %v718 = vunpack.c.0.s8 %v717
        %v719 = vlaneseq
        %v720 = vshrl.u32 %v719, 7
        %v721 = vsub.s32 %v718, %v720
        %v722 = vrot.slane %v714, %v721
        %v724 = vunpack.c.l.s4 1983009808
        %v725 = vunpack.c.0.s8 %v724
        %v726 = vlaneseq
        %v727 = vshrl.u32 %v726, 7
        %v728 = vsub.s32 %v725, %v727
        %v729 = vrot.slane %v715, %v728
        %v730 = vcombine.low %v706, %v722
        %v731 = vcombine.high %v706, %v722
        %v733 = vunpack.c.l.s4 1934713408
        %v734 = vunpack.c.0.s8 %v733
        %v735 = vlaneseq
        %v736 = vshrl.u32 %v735, 7
        %v737 = vsub.s32 %v734, %v736
        %v738 = vrot.slane %v730, %v737
        %v740 = vunpack.c.l.s4 1934713408
        %v741 = vunpack.c.0.s8 %v740
        %v742 = vlaneseq
        %v743 = vshrl.u32 %v742, 7
        %v744 = vsub.s32 %v741, %v743
        %v745 = vrot.slane %v731, %v744
        %v746 = vcombine.low %v713, %v729
        %v747 = vcombine.high %v713, %v729
        %v749 = vunpack.c.l.s4 1934713408
        %v750 = vunpack.c.0.s8 %v749
        %v751 = vlaneseq
        %v752 = vshrl.u32 %v751, 7
        %v753 = vsub.s32 %v750, %v752
        %v754 = vrot.slane %v746, %v753
        %v756 = vunpack.c.l.s4 1934713408
        %v757 = vunpack.c.0.s8 %v756
        %v758 = vlaneseq
        %v759 = vshrl.u32 %v758, 7
        %v760 = vsub.s32 %v757, %v759
        %v761 = vrot.slane %v747, %v760
        %v762 = vcombine.high %v738, 0.0
        %v763 = vcombine.high %v745, 0.0
        %v764 = vcombine.high %v754, 0.0
        %v765 = vcombine.high %v761, 0.0
        %767 = vrot.lane.b32.xlu0 %v694, 16
        %v768 = vpop.permute.xlu0 %767
        %771 = vrot.lane.b32.xlu0 %v677, 32
        %v772 = vpop.permute.xlu0 %771
        %775 = vrot.lane.b32.xlu0 %v695, 48
        %v776 = vpop.permute.xlu0 %775
        %779 = vrot.lane.b32.xlu0 %v686, 64
        %v780 = vpop.permute.xlu0 %779
        %783 = vrot.lane.b32.xlu0 %v696, 80
        %v784 = vpop.permute.xlu0 %783
        %787 = vrot.lane.b32.xlu0 %v693, 96
        %v788 = vpop.permute.xlu0 %787
        %791 = vrot.lane.b32.xlu0 %v697, 112
        %v792 = vpop.permute.xlu0 %791
        %795 = vrot.lane.b32.xlu0 %v762, 16
        %v796 = vpop.permute.xlu0 %795
        %799 = vrot.lane.b32.xlu0 %v745, 32
        %v800 = vpop.permute.xlu0 %799
        %803 = vrot.lane.b32.xlu0 %v763, 48
        %v804 = vpop.permute.xlu0 %803
        %807 = vrot.lane.b32.xlu0 %v754, 64
        %v808 = vpop.permute.xlu0 %807
        %811 = vrot.lane.b32.xlu0 %v764, 80
        %v812 = vpop.permute.xlu0 %811
        %815 = vrot.lane.b32.xlu0 %v761, 96
        %v816 = vpop.permute.xlu0 %815
        %819 = vrot.lane.b32.xlu0 %v765, 112
        %v820 = vpop.permute.xlu0 %819
        %v822 = vsel %vm577, %v670, %v768
        %v823 = vsel %vm579, %v822, %v772
        %v824 = vsel %vm581, %v823, %v776
        %v825 = vsel %vm583, %v824, %v780
        %v826 = vsel %vm585, %v825, %v784
        %v827 = vsel %vm587, %v826, %v788
        %v828 = vsel %vm589, %v827, %v792
        %v829 = vsel %vm577, %v738, %v796
        %v830 = vsel %vm579, %v829, %v800
        %v831 = vsel %vm581, %v830, %v804
        %v832 = vsel %vm583, %v831, %v808
        %v833 = vsel %vm585, %v832, %v812
        %v834 = vsel %vm587, %v833, %v816
        %v835 = vsel %vm589, %v834, %v820
        %836 = vrot.lane.b32.xlu0 %v373, 126
        %v837 = vpop.permute.xlu0 %836
        %838 = vrot.lane.b32.xlu0 %v374, 126
        %v839 = vpop.permute.xlu0 %838
        %840 = vrot.lane.b32.xlu0 %v376, 126
        %v841 = vpop.permute.xlu0 %840
        %842 = vrot.lane.b32.xlu0 %v377, 126
        %v843 = vpop.permute.xlu0 %842
        %844 = vrot.lane.b32.xlu0 %v379, 126
        %v845 = vpop.permute.xlu0 %844
        %846 = vrot.lane.b32.xlu0 %v380, 126
        %v847 = vpop.permute.xlu0 %846
        %848 = vrot.lane.b32.xlu0 %v382, 126
        %v849 = vpop.permute.xlu0 %848
        %850 = vrot.lane.b32.xlu0 %v383, 126
        %v851 = vpop.permute.xlu0 %850
        %v860 = vcombine.low %v837, %v845
        %v861 = vcombine.high %v837, %v845
        %v863 = vunpack.c.l.s4 1983009808
        %v864 = vunpack.c.0.s8 %v863
        %v865 = vlaneseq
        %v866 = vshrl.u32 %v865, 7
        %v867 = vsub.s32 %v864, %v866
        %v868 = vrot.slane %v860, %v867
        %v870 = vunpack.c.l.s4 1983009808
        %v871 = vunpack.c.0.s8 %v870
        %v872 = vlaneseq
        %v873 = vshrl.u32 %v872, 7
        %v874 = vsub.s32 %v871, %v873
        %v875 = vrot.slane %v861, %v874
        %v876 = vcombine.low %v841, %v849
        %v877 = vcombine.high %v841, %v849
        %v879 = vunpack.c.l.s4 1983009808
        %v880 = vunpack.c.0.s8 %v879
        %v881 = vlaneseq
        %v882 = vshrl.u32 %v881, 7
        %v883 = vsub.s32 %v880, %v882
        %v884 = vrot.slane %v876, %v883
        %v886 = vunpack.c.l.s4 1983009808
        %v887 = vunpack.c.0.s8 %v886
        %v888 = vlaneseq
        %v889 = vshrl.u32 %v888, 7
        %v890 = vsub.s32 %v887, %v889
        %v891 = vrot.slane %v877, %v890
        %v892 = vcombine.low %v868, %v884
        %v893 = vcombine.high %v868, %v884
        %v895 = vunpack.c.l.s4 1934713408
        %v896 = vunpack.c.0.s8 %v895
        %v897 = vlaneseq
        %v898 = vshrl.u32 %v897, 7
        %v899 = vsub.s32 %v896, %v898
        %v900 = vrot.slane %v892, %v899
        %v902 = vunpack.c.l.s4 1934713408
        %v903 = vunpack.c.0.s8 %v902
        %v904 = vlaneseq
        %v905 = vshrl.u32 %v904, 7
        %v906 = vsub.s32 %v903, %v905
        %v907 = vrot.slane %v893, %v906
        %v908 = vcombine.low %v875, %v891
        %v909 = vcombine.high %v875, %v891
        %v911 = vunpack.c.l.s4 1934713408
        %v912 = vunpack.c.0.s8 %v911
        %v913 = vlaneseq
        %v914 = vshrl.u32 %v913, 7
        %v915 = vsub.s32 %v912, %v914
        %v916 = vrot.slane %v908, %v915
        %v918 = vunpack.c.l.s4 1934713408
        %v919 = vunpack.c.0.s8 %v918
        %v920 = vlaneseq
        %v921 = vshrl.u32 %v920, 7
        %v922 = vsub.s32 %v919, %v921
        %v923 = vrot.slane %v909, %v922
        %v924 = vcombine.high %v900, 0.0
        %v925 = vcombine.high %v907, 0.0
        %v926 = vcombine.high %v916, 0.0
        %v927 = vcombine.high %v923, 0.0
        %v928 = vcombine.low %v839, %v847
        %v929 = vcombine.high %v839, %v847
        %v931 = vunpack.c.l.s4 1983009808
        %v932 = vunpack.c.0.s8 %v931
        %v933 = vlaneseq
        %v934 = vshrl.u32 %v933, 7
        %v935 = vsub.s32 %v932, %v934
        %v936 = vrot.slane %v928, %v935
        %v938 = vunpack.c.l.s4 1983009808
        %v939 = vunpack.c.0.s8 %v938
        %v940 = vlaneseq
        %v941 = vshrl.u32 %v940, 7
        %v942 = vsub.s32 %v939, %v941
        %v943 = vrot.slane %v929, %v942
        %v944 = vcombine.low %v843, %v851
        %v945 = vcombine.high %v843, %v851
        %v947 = vunpack.c.l.s4 1983009808
        %v948 = vunpack.c.0.s8 %v947
        %v949 = vlaneseq
        %v950 = vshrl.u32 %v949, 7
        %v951 = vsub.s32 %v948, %v950
        %v952 = vrot.slane %v944, %v951
        %v954 = vunpack.c.l.s4 1983009808
        %v955 = vunpack.c.0.s8 %v954
        %v956 = vlaneseq
        %v957 = vshrl.u32 %v956, 7
        %v958 = vsub.s32 %v955, %v957
        %v959 = vrot.slane %v945, %v958
        %v960 = vcombine.low %v936, %v952
        %v961 = vcombine.high %v936, %v952
        %v963 = vunpack.c.l.s4 1934713408
        %v964 = vunpack.c.0.s8 %v963
        %v965 = vlaneseq
        %v966 = vshrl.u32 %v965, 7
        %v967 = vsub.s32 %v964, %v966
        %v968 = vrot.slane %v960, %v967
        %v970 = vunpack.c.l.s4 1934713408
        %v971 = vunpack.c.0.s8 %v970
        %v972 = vlaneseq
        %v973 = vshrl.u32 %v972, 7
        %v974 = vsub.s32 %v971, %v973
        %v975 = vrot.slane %v961, %v974
        %v976 = vcombine.low %v943, %v959
        %v977 = vcombine.high %v943, %v959
        %v979 = vunpack.c.l.s4 1934713408
        %v980 = vunpack.c.0.s8 %v979
        %v981 = vlaneseq
        %v982 = vshrl.u32 %v981, 7
        %v983 = vsub.s32 %v980, %v982
        %v984 = vrot.slane %v976, %v983
        %v986 = vunpack.c.l.s4 1934713408
        %v987 = vunpack.c.0.s8 %v986
        %v988 = vlaneseq
        %v989 = vshrl.u32 %v988, 7
        %v990 = vsub.s32 %v987, %v989
        %v991 = vrot.slane %v977, %v990
        %v992 = vcombine.high %v968, 0.0
        %v993 = vcombine.high %v975, 0.0
        %v994 = vcombine.high %v984, 0.0
        %v995 = vcombine.high %v991, 0.0
        %997 = vrot.lane.b32.xlu0 %v924, 16
        %v998 = vpop.permute.xlu0 %997
        %1001 = vrot.lane.b32.xlu0 %v907, 32
        %v1002 = vpop.permute.xlu0 %1001
        %1005 = vrot.lane.b32.xlu0 %v925, 48
        %v1006 = vpop.permute.xlu0 %1005
        %1009 = vrot.lane.b32.xlu0 %v916, 64
        %v1010 = vpop.permute.xlu0 %1009
        %1013 = vrot.lane.b32.xlu0 %v926, 80
        %v1014 = vpop.permute.xlu0 %1013
        %1017 = vrot.lane.b32.xlu0 %v923, 96
        %v1018 = vpop.permute.xlu0 %1017
        %1021 = vrot.lane.b32.xlu0 %v927, 112
        %v1022 = vpop.permute.xlu0 %1021
        %1025 = vrot.lane.b32.xlu0 %v992, 16
        %v1026 = vpop.permute.xlu0 %1025
        %1029 = vrot.lane.b32.xlu0 %v975, 32
        %v1030 = vpop.permute.xlu0 %1029
        %1033 = vrot.lane.b32.xlu0 %v993, 48
        %v1034 = vpop.permute.xlu0 %1033
        %1037 = vrot.lane.b32.xlu0 %v984, 64
        %v1038 = vpop.permute.xlu0 %1037
        %1041 = vrot.lane.b32.xlu0 %v994, 80
        %v1042 = vpop.permute.xlu0 %1041
        %1045 = vrot.lane.b32.xlu0 %v991, 96
        %v1046 = vpop.permute.xlu0 %1045
        %1049 = vrot.lane.b32.xlu0 %v995, 112
        %v1050 = vpop.permute.xlu0 %1049
        %v1052 = vsel %vm577, %v900, %v998
        %v1053 = vsel %vm579, %v1052, %v1002
        %v1054 = vsel %vm581, %v1053, %v1006
        %v1055 = vsel %vm583, %v1054, %v1010
        %v1056 = vsel %vm585, %v1055, %v1014
        %v1057 = vsel %vm587, %v1056, %v1018
        %v1058 = vsel %vm589, %v1057, %v1022
        %v1059 = vsel %vm577, %v968, %v1026
        %v1060 = vsel %vm579, %v1059, %v1030
        %v1061 = vsel %vm581, %v1060, %v1034
        %v1062 = vsel %vm583, %v1061, %v1038
        %v1063 = vsel %vm585, %v1062, %v1042
        %v1064 = vsel %vm587, %v1063, %v1046
        %v1065 = vsel %vm589, %v1064, %v1050
        %vm1070 = vcmask 1046528
        %v1071 = vrot.slane %v373, 1
        %v1072 = vrot.slane %v374, 1
        %v1073 = vsel %vm1070, %v1071, %v1072
        %v1074 = vrot.slane %v375, 1
        %v1075 = vsel %vm1070, %v1072, %v1074
        %v1076 = vrot.slane %v376, 1
        %v1077 = vrot.slane %v377, 1
        %v1078 = vsel %vm1070, %v1076, %v1077
        %v1079 = vrot.slane %v378, 1
        %v1080 = vsel %vm1070, %v1077, %v1079
        %v1081 = vrot.slane %v379, 1
        %v1082 = vrot.slane %v380, 1
        %v1083 = vsel %vm1070, %v1081, %v1082
        %v1084 = vrot.slane %v381, 1
        %v1085 = vsel %vm1070, %v1082, %v1084
        %v1086 = vrot.slane %v382, 1
        %v1087 = vrot.slane %v383, 1
        %v1088 = vsel %vm1070, %v1086, %v1087
        %v1089 = vrot.slane %v384, 1
        %v1090 = vsel %vm1070, %v1087, %v1089
        %v1099 = vcombine.low %v1073, %v1083
        %v1100 = vcombine.high %v1073, %v1083
        %v1102 = vunpack.c.l.s4 1983009808
        %v1103 = vunpack.c.0.s8 %v1102
        %v1104 = vlaneseq
        %v1105 = vshrl.u32 %v1104, 7
        %v1106 = vsub.s32 %v1103, %v1105
        %v1107 = vrot.slane %v1099, %v1106
        %v1109 = vunpack.c.l.s4 1983009808
        %v1110 = vunpack.c.0.s8 %v1109
        %v1111 = vlaneseq
        %v1112 = vshrl.u32 %v1111, 7
        %v1113 = vsub.s32 %v1110, %v1112
        %v1114 = vrot.slane %v1100, %v1113
        %v1115 = vcombine.low %v1078, %v1088
        %v1116 = vcombine.high %v1078, %v1088
        %v1118 = vunpack.c.l.s4 1983009808
        %v1119 = vunpack.c.0.s8 %v1118
        %v1120 = vlaneseq
        %v1121 = vshrl.u32 %v1120, 7
        %v1122 = vsub.s32 %v1119, %v1121
        %v1123 = vrot.slane %v1115, %v1122
        %v1125 = vunpack.c.l.s4 1983009808
        %v1126 = vunpack.c.0.s8 %v1125
        %v1127 = vlaneseq
        %v1128 = vshrl.u32 %v1127, 7
        %v1129 = vsub.s32 %v1126, %v1128
        %v1130 = vrot.slane %v1116, %v1129
        %v1131 = vcombine.low %v1107, %v1123
        %v1132 = vcombine.high %v1107, %v1123
        %v1134 = vunpack.c.l.s4 1934713408
        %v1135 = vunpack.c.0.s8 %v1134
        %v1136 = vlaneseq
        %v1137 = vshrl.u32 %v1136, 7
        %v1138 = vsub.s32 %v1135, %v1137
        %v1139 = vrot.slane %v1131, %v1138
        %v1141 = vunpack.c.l.s4 1934713408
        %v1142 = vunpack.c.0.s8 %v1141
        %v1143 = vlaneseq
        %v1144 = vshrl.u32 %v1143, 7
        %v1145 = vsub.s32 %v1142, %v1144
        %v1146 = vrot.slane %v1132, %v1145
        %v1147 = vcombine.low %v1114, %v1130
        %v1148 = vcombine.high %v1114, %v1130
        %v1150 = vunpack.c.l.s4 1934713408
        %v1151 = vunpack.c.0.s8 %v1150
        %v1152 = vlaneseq
        %v1153 = vshrl.u32 %v1152, 7
        %v1154 = vsub.s32 %v1151, %v1153
        %v1155 = vrot.slane %v1147, %v1154
        %v1157 = vunpack.c.l.s4 1934713408
        %v1158 = vunpack.c.0.s8 %v1157
        %v1159 = vlaneseq
        %v1160 = vshrl.u32 %v1159, 7
        %v1161 = vsub.s32 %v1158, %v1160
        %v1162 = vrot.slane %v1148, %v1161
        %v1163 = vcombine.high %v1139, 0.0
        %v1164 = vcombine.high %v1146, 0.0
        %v1165 = vcombine.high %v1155, 0.0
        %v1166 = vcombine.high %v1162, 0.0
        %v1167 = vcombine.low %v1075, %v1085
        %v1168 = vcombine.high %v1075, %v1085
        %v1170 = vunpack.c.l.s4 1983009808
        %v1171 = vunpack.c.0.s8 %v1170
        %v1172 = vlaneseq
        %v1173 = vshrl.u32 %v1172, 7
        %v1174 = vsub.s32 %v1171, %v1173
        %v1175 = vrot.slane %v1167, %v1174
        %v1177 = vunpack.c.l.s4 1983009808
        %v1178 = vunpack.c.0.s8 %v1177
        %v1179 = vlaneseq
        %v1180 = vshrl.u32 %v1179, 7
        %v1181 = vsub.s32 %v1178, %v1180
        %v1182 = vrot.slane %v1168, %v1181
        %v1183 = vcombine.low %v1080, %v1090
        %v1184 = vcombine.high %v1080, %v1090
        %v1186 = vunpack.c.l.s4 1983009808
        %v1187 = vunpack.c.0.s8 %v1186
        %v1188 = vlaneseq
        %v1189 = vshrl.u32 %v1188, 7
        %v1190 = vsub.s32 %v1187, %v1189
        %v1191 = vrot.slane %v1183, %v1190
        %v1193 = vunpack.c.l.s4 1983009808
        %v1194 = vunpack.c.0.s8 %v1193
        %v1195 = vlaneseq
        %v1196 = vshrl.u32 %v1195, 7
        %v1197 = vsub.s32 %v1194, %v1196
        %v1198 = vrot.slane %v1184, %v1197
        %v1199 = vcombine.low %v1175, %v1191
        %v1200 = vcombine.high %v1175, %v1191
        %v1202 = vunpack.c.l.s4 1934713408
        %v1203 = vunpack.c.0.s8 %v1202
        %v1204 = vlaneseq
        %v1205 = vshrl.u32 %v1204, 7
        %v1206 = vsub.s32 %v1203, %v1205
        %v1207 = vrot.slane %v1199, %v1206
        %v1209 = vunpack.c.l.s4 1934713408
        %v1210 = vunpack.c.0.s8 %v1209
        %v1211 = vlaneseq
        %v1212 = vshrl.u32 %v1211, 7
        %v1213 = vsub.s32 %v1210, %v1212
        %v1214 = vrot.slane %v1200, %v1213
        %v1215 = vcombine.low %v1182, %v1198
        %v1216 = vcombine.high %v1182, %v1198
        %v1218 = vunpack.c.l.s4 1934713408
        %v1219 = vunpack.c.0.s8 %v1218
        %v1220 = vlaneseq
        %v1221 = vshrl.u32 %v1220, 7
        %v1222 = vsub.s32 %v1219, %v1221
        %v1223 = vrot.slane %v1215, %v1222
        %v1225 = vunpack.c.l.s4 1934713408
        %v1226 = vunpack.c.0.s8 %v1225
        %v1227 = vlaneseq
        %v1228 = vshrl.u32 %v1227, 7
        %v1229 = vsub.s32 %v1226, %v1228
        %v1230 = vrot.slane %v1216, %v1229
        %v1231 = vcombine.high %v1207, 0.0
        %v1232 = vcombine.high %v1214, 0.0
        %v1233 = vcombine.high %v1223, 0.0
        %v1234 = vcombine.high %v1230, 0.0
        %1236 = vrot.lane.b32.xlu0 %v1163, 16
        %v1237 = vpop.permute.xlu0 %1236
        %1240 = vrot.lane.b32.xlu0 %v1146, 32
        %v1241 = vpop.permute.xlu0 %1240
        %1244 = vrot.lane.b32.xlu0 %v1164, 48
        %v1245 = vpop.permute.xlu0 %1244
        %1248 = vrot.lane.b32.xlu0 %v1155, 64
        %v1249 = vpop.permute.xlu0 %1248
        %1252 = vrot.lane.b32.xlu0 %v1165, 80
        %v1253 = vpop.permute.xlu0 %1252
        %1256 = vrot.lane.b32.xlu0 %v1162, 96
        %v1257 = vpop.permute.xlu0 %1256
        %1260 = vrot.lane.b32.xlu0 %v1166, 112
        %v1261 = vpop.permute.xlu0 %1260
        %1264 = vrot.lane.b32.xlu0 %v1231, 16
        %v1265 = vpop.permute.xlu0 %1264
        %1268 = vrot.lane.b32.xlu0 %v1214, 32
        %v1269 = vpop.permute.xlu0 %1268
        %1272 = vrot.lane.b32.xlu0 %v1232, 48
        %v1273 = vpop.permute.xlu0 %1272
        %1276 = vrot.lane.b32.xlu0 %v1223, 64
        %v1277 = vpop.permute.xlu0 %1276
        %1280 = vrot.lane.b32.xlu0 %v1233, 80
        %v1281 = vpop.permute.xlu0 %1280
        %1284 = vrot.lane.b32.xlu0 %v1230, 96
        %v1285 = vpop.permute.xlu0 %1284
        %1288 = vrot.lane.b32.xlu0 %v1234, 112
        %v1289 = vpop.permute.xlu0 %1288
        %v1291 = vsel %vm577, %v1139, %v1237
        %v1292 = vsel %vm579, %v1291, %v1241
        %v1293 = vsel %vm581, %v1292, %v1245
        %v1294 = vsel %vm583, %v1293, %v1249
        %v1295 = vsel %vm585, %v1294, %v1253
        %v1296 = vsel %vm587, %v1295, %v1257
        %v1297 = vsel %vm589, %v1296, %v1261
        %v1298 = vsel %vm577, %v1207, %v1265
        %v1299 = vsel %vm579, %v1298, %v1269
        %v1300 = vsel %vm581, %v1299, %v1273
        %v1301 = vsel %vm583, %v1300, %v1277
        %v1302 = vsel %vm585, %v1301, %v1281
        %v1303 = vsel %vm587, %v1302, %v1285
        %v1304 = vsel %vm589, %v1303, %v1289
        %1305 = vrot.lane.b32.xlu0 %v1073, 127
        %v1306 = vpop.permute.xlu0 %1305
        %1307 = vrot.lane.b32.xlu0 %v1075, 127
        %v1308 = vpop.permute.xlu0 %1307
        %1309 = vrot.lane.b32.xlu0 %v1078, 127
        %v1310 = vpop.permute.xlu0 %1309
        %1311 = vrot.lane.b32.xlu0 %v1080, 127
        %v1312 = vpop.permute.xlu0 %1311
        %1313 = vrot.lane.b32.xlu0 %v1083, 127
        %v1314 = vpop.permute.xlu0 %1313
        %1315 = vrot.lane.b32.xlu0 %v1085, 127
        %v1316 = vpop.permute.xlu0 %1315
        %1317 = vrot.lane.b32.xlu0 %v1088, 127
        %v1318 = vpop.permute.xlu0 %1317
        %1319 = vrot.lane.b32.xlu0 %v1090, 127
        %v1320 = vpop.permute.xlu0 %1319
        %v1329 = vcombine.low %v1306, %v1314
        %v1330 = vcombine.high %v1306, %v1314
        %v1332 = vunpack.c.l.s4 1983009808
        %v1333 = vunpack.c.0.s8 %v1332
        %v1334 = vlaneseq
        %v1335 = vshrl.u32 %v1334, 7
        %v1336 = vsub.s32 %v1333, %v1335
        %v1337 = vrot.slane %v1329, %v1336
        %v1339 = vunpack.c.l.s4 1983009808
        %v1340 = vunpack.c.0.s8 %v1339
        %v1341 = vlaneseq
        %v1342 = vshrl.u32 %v1341, 7
        %v1343 = vsub.s32 %v1340, %v1342
        %v1344 = vrot.slane %v1330, %v1343
        %v1345 = vcombine.low %v1310, %v1318
        %v1346 = vcombine.high %v1310, %v1318
        %v1348 = vunpack.c.l.s4 1983009808
        %v1349 = vunpack.c.0.s8 %v1348
        %v1350 = vlaneseq
        %v1351 = vshrl.u32 %v1350, 7
        %v1352 = vsub.s32 %v1349, %v1351
        %v1353 = vrot.slane %v1345, %v1352
        %v1355 = vunpack.c.l.s4 1983009808
        %v1356 = vunpack.c.0.s8 %v1355
        %v1357 = vlaneseq
        %v1358 = vshrl.u32 %v1357, 7
        %v1359 = vsub.s32 %v1356, %v1358
        %v1360 = vrot.slane %v1346, %v1359
        %v1361 = vcombine.low %v1337, %v1353
        %v1362 = vcombine.high %v1337, %v1353
        %v1364 = vunpack.c.l.s4 1934713408
        %v1365 = vunpack.c.0.s8 %v1364
        %v1366 = vlaneseq
        %v1367 = vshrl.u32 %v1366, 7
        %v1368 = vsub.s32 %v1365, %v1367
        %v1369 = vrot.slane %v1361, %v1368
        %v1371 = vunpack.c.l.s4 1934713408
        %v1372 = vunpack.c.0.s8 %v1371
        %v1373 = vlaneseq
        %v1374 = vshrl.u32 %v1373, 7
        %v1375 = vsub.s32 %v1372, %v1374
        %v1376 = vrot.slane %v1362, %v1375
        %v1377 = vcombine.low %v1344, %v1360
        %v1378 = vcombine.high %v1344, %v1360
        %v1380 = vunpack.c.l.s4 1934713408
        %v1381 = vunpack.c.0.s8 %v1380
        %v1382 = vlaneseq
        %v1383 = vshrl.u32 %v1382, 7
        %v1384 = vsub.s32 %v1381, %v1383
        %v1385 = vrot.slane %v1377, %v1384
        %v1387 = vunpack.c.l.s4 1934713408
        %v1388 = vunpack.c.0.s8 %v1387
        %v1389 = vlaneseq
        %v1390 = vshrl.u32 %v1389, 7
        %v1391 = vsub.s32 %v1388, %v1390
        %v1392 = vrot.slane %v1378, %v1391
        %v1393 = vcombine.high %v1369, 0.0
        %v1394 = vcombine.high %v1376, 0.0
        %v1395 = vcombine.high %v1385, 0.0
        %v1396 = vcombine.high %v1392, 0.0
        %v1397 = vcombine.low %v1308, %v1316
        %v1398 = vcombine.high %v1308, %v1316
        %v1400 = vunpack.c.l.s4 1983009808
        %v1401 = vunpack.c.0.s8 %v1400
        %v1402 = vlaneseq
        %v1403 = vshrl.u32 %v1402, 7
        %v1404 = vsub.s32 %v1401, %v1403
        %v1405 = vrot.slane %v1397, %v1404
        %v1407 = vunpack.c.l.s4 1983009808
        %v1408 = vunpack.c.0.s8 %v1407
        %v1409 = vlaneseq
        %v1410 = vshrl.u32 %v1409, 7
        %v1411 = vsub.s32 %v1408, %v1410
        %v1412 = vrot.slane %v1398, %v1411
        %v1413 = vcombine.low %v1312, %v1320
        %v1414 = vcombine.high %v1312, %v1320
        %v1416 = vunpack.c.l.s4 1983009808
        %v1417 = vunpack.c.0.s8 %v1416
        %v1418 = vlaneseq
        %v1419 = vshrl.u32 %v1418, 7
        %v1420 = vsub.s32 %v1417, %v1419
        %v1421 = vrot.slane %v1413, %v1420
        %v1423 = vunpack.c.l.s4 1983009808
        %v1424 = vunpack.c.0.s8 %v1423
        %v1425 = vlaneseq
        %v1426 = vshrl.u32 %v1425, 7
        %v1427 = vsub.s32 %v1424, %v1426
        %v1428 = vrot.slane %v1414, %v1427
        %v1429 = vcombine.low %v1405, %v1421
        %v1430 = vcombine.high %v1405, %v1421
        %v1432 = vunpack.c.l.s4 1934713408
        %v1433 = vunpack.c.0.s8 %v1432
        %v1434 = vlaneseq
        %v1435 = vshrl.u32 %v1434, 7
        %v1436 = vsub.s32 %v1433, %v1435
        %v1437 = vrot.slane %v1429, %v1436
        %v1439 = vunpack.c.l.s4 1934713408
        %v1440 = vunpack.c.0.s8 %v1439
        %v1441 = vlaneseq
        %v1442 = vshrl.u32 %v1441, 7
        %v1443 = vsub.s32 %v1440, %v1442
        %v1444 = vrot.slane %v1430, %v1443
        %v1445 = vcombine.low %v1412, %v1428
        %v1446 = vcombine.high %v1412, %v1428
        %v1448 = vunpack.c.l.s4 1934713408
        %v1449 = vunpack.c.0.s8 %v1448
        %v1450 = vlaneseq
        %v1451 = vshrl.u32 %v1450, 7
        %v1452 = vsub.s32 %v1449, %v1451
        %v1453 = vrot.slane %v1445, %v1452
        %v1455 = vunpack.c.l.s4 1934713408
        %v1456 = vunpack.c.0.s8 %v1455
        %v1457 = vlaneseq
        %v1458 = vshrl.u32 %v1457, 7
        %v1459 = vsub.s32 %v1456, %v1458
        %v1460 = vrot.slane %v1446, %v1459
        %v1461 = vcombine.high %v1437, 0.0
        %v1462 = vcombine.high %v1444, 0.0
        %v1463 = vcombine.high %v1453, 0.0
        %v1464 = vcombine.high %v1460, 0.0
        %1466 = vrot.lane.b32.xlu0 %v1393, 16
        %v1467 = vpop.permute.xlu0 %1466
        %1470 = vrot.lane.b32.xlu0 %v1376, 32
        %v1471 = vpop.permute.xlu0 %1470
        %1474 = vrot.lane.b32.xlu0 %v1394, 48
        %v1475 = vpop.permute.xlu0 %1474
        %1478 = vrot.lane.b32.xlu0 %v1385, 64
        %v1479 = vpop.permute.xlu0 %1478
        %1482 = vrot.lane.b32.xlu0 %v1395, 80
        %v1483 = vpop.permute.xlu0 %1482
        %1486 = vrot.lane.b32.xlu0 %v1392, 96
        %v1487 = vpop.permute.xlu0 %1486
        %1490 = vrot.lane.b32.xlu0 %v1396, 112
        %v1491 = vpop.permute.xlu0 %1490
        %1494 = vrot.lane.b32.xlu0 %v1461, 16
        %v1495 = vpop.permute.xlu0 %1494
        %1498 = vrot.lane.b32.xlu0 %v1444, 32
        %v1499 = vpop.permute.xlu0 %1498
        %1502 = vrot.lane.b32.xlu0 %v1462, 48
        %v1503 = vpop.permute.xlu0 %1502
        %1506 = vrot.lane.b32.xlu0 %v1453, 64
        %v1507 = vpop.permute.xlu0 %1506
        %1510 = vrot.lane.b32.xlu0 %v1463, 80
        %v1511 = vpop.permute.xlu0 %1510
        %1514 = vrot.lane.b32.xlu0 %v1460, 96
        %v1515 = vpop.permute.xlu0 %1514
        %1518 = vrot.lane.b32.xlu0 %v1464, 112
        %v1519 = vpop.permute.xlu0 %1518
        %v1521 = vsel %vm577, %v1369, %v1467
        %v1522 = vsel %vm579, %v1521, %v1471
        %v1523 = vsel %vm581, %v1522, %v1475
        %v1524 = vsel %vm583, %v1523, %v1479
        %v1525 = vsel %vm585, %v1524, %v1483
        %v1526 = vsel %vm587, %v1525, %v1487
        %v1527 = vsel %vm589, %v1526, %v1491
        %v1528 = vsel %vm577, %v1437, %v1495
        %v1529 = vsel %vm579, %v1528, %v1499
        %v1530 = vsel %vm581, %v1529, %v1503
        %v1531 = vsel %vm583, %v1530, %v1507
        %v1532 = vsel %vm585, %v1531, %v1511
        %v1533 = vsel %vm587, %v1532, %v1515
        %v1534 = vsel %vm589, %v1533, %v1519
        %1535 = vrot.lane.b32.xlu0 %v1073, 126
        %v1536 = vpop.permute.xlu0 %1535
        %1537 = vrot.lane.b32.xlu0 %v1075, 126
        %v1538 = vpop.permute.xlu0 %1537
        %1539 = vrot.lane.b32.xlu0 %v1078, 126
        %v1540 = vpop.permute.xlu0 %1539
        %1541 = vrot.lane.b32.xlu0 %v1080, 126
        %v1542 = vpop.permute.xlu0 %1541
        %1543 = vrot.lane.b32.xlu0 %v1083, 126
        %v1544 = vpop.permute.xlu0 %1543
        %1545 = vrot.lane.b32.xlu0 %v1085, 126
        %v1546 = vpop.permute.xlu0 %1545
        %1547 = vrot.lane.b32.xlu0 %v1088, 126
        %v1548 = vpop.permute.xlu0 %1547
        %1549 = vrot.lane.b32.xlu0 %v1090, 126
        %v1550 = vpop.permute.xlu0 %1549
        %v1559 = vcombine.low %v1536, %v1544
        %v1560 = vcombine.high %v1536, %v1544
        %v1562 = vunpack.c.l.s4 1983009808
        %v1563 = vunpack.c.0.s8 %v1562
        %v1564 = vlaneseq
        %v1565 = vshrl.u32 %v1564, 7
        %v1566 = vsub.s32 %v1563, %v1565
        %v1567 = vrot.slane %v1559, %v1566
        %v1569 = vunpack.c.l.s4 1983009808
        %v1570 = vunpack.c.0.s8 %v1569
        %v1571 = vlaneseq
        %v1572 = vshrl.u32 %v1571, 7
        %v1573 = vsub.s32 %v1570, %v1572
        %v1574 = vrot.slane %v1560, %v1573
        %v1575 = vcombine.low %v1540, %v1548
        %v1576 = vcombine.high %v1540, %v1548
        %v1578 = vunpack.c.l.s4 1983009808
        %v1579 = vunpack.c.0.s8 %v1578
        %v1580 = vlaneseq
        %v1581 = vshrl.u32 %v1580, 7
        %v1582 = vsub.s32 %v1579, %v1581
        %v1583 = vrot.slane %v1575, %v1582
        %v1585 = vunpack.c.l.s4 1983009808
        %v1586 = vunpack.c.0.s8 %v1585
        %v1587 = vlaneseq
        %v1588 = vshrl.u32 %v1587, 7
        %v1589 = vsub.s32 %v1586, %v1588
        %v1590 = vrot.slane %v1576, %v1589
        %v1591 = vcombine.low %v1567, %v1583
        %v1592 = vcombine.high %v1567, %v1583
        %v1594 = vunpack.c.l.s4 1934713408
        %v1595 = vunpack.c.0.s8 %v1594
        %v1596 = vlaneseq
        %v1597 = vshrl.u32 %v1596, 7
        %v1598 = vsub.s32 %v1595, %v1597
        %v1599 = vrot.slane %v1591, %v1598
        %v1601 = vunpack.c.l.s4 1934713408
        %v1602 = vunpack.c.0.s8 %v1601
        %v1603 = vlaneseq
        %v1604 = vshrl.u32 %v1603, 7
        %v1605 = vsub.s32 %v1602, %v1604
        %v1606 = vrot.slane %v1592, %v1605
        %v1607 = vcombine.low %v1574, %v1590
        %v1608 = vcombine.high %v1574, %v1590
        %v1610 = vunpack.c.l.s4 1934713408
        %v1611 = vunpack.c.0.s8 %v1610
        %v1612 = vlaneseq
        %v1613 = vshrl.u32 %v1612, 7
        %v1614 = vsub.s32 %v1611, %v1613
        %v1615 = vrot.slane %v1607, %v1614
        %v1617 = vunpack.c.l.s4 1934713408
        %v1618 = vunpack.c.0.s8 %v1617
        %v1619 = vlaneseq
        %v1620 = vshrl.u32 %v1619, 7
        %v1621 = vsub.s32 %v1618, %v1620
        %v1622 = vrot.slane %v1608, %v1621
        %v1623 = vcombine.high %v1599, 0.0
        %v1624 = vcombine.high %v1606, 0.0
        %v1625 = vcombine.high %v1615, 0.0
        %v1626 = vcombine.high %v1622, 0.0
        %v1627 = vcombine.low %v1538, %v1546
        %v1628 = vcombine.high %v1538, %v1546
        %v1630 = vunpack.c.l.s4 1983009808
        %v1631 = vunpack.c.0.s8 %v1630
        %v1632 = vlaneseq
        %v1633 = vshrl.u32 %v1632, 7
        %v1634 = vsub.s32 %v1631, %v1633
        %v1635 = vrot.slane %v1627, %v1634
        %v1637 = vunpack.c.l.s4 1983009808
        %v1638 = vunpack.c.0.s8 %v1637
        %v1639 = vlaneseq
        %v1640 = vshrl.u32 %v1639, 7
        %v1641 = vsub.s32 %v1638, %v1640
        %v1642 = vrot.slane %v1628, %v1641
        %v1643 = vcombine.low %v1542, %v1550
        %v1644 = vcombine.high %v1542, %v1550
        %v1646 = vunpack.c.l.s4 1983009808
        %v1647 = vunpack.c.0.s8 %v1646
        %v1648 = vlaneseq
        %v1649 = vshrl.u32 %v1648, 7
        %v1650 = vsub.s32 %v1647, %v1649
        %v1651 = vrot.slane %v1643, %v1650
        %v1653 = vunpack.c.l.s4 1983009808
        %v1654 = vunpack.c.0.s8 %v1653
        %v1655 = vlaneseq
        %v1656 = vshrl.u32 %v1655, 7
        %v1657 = vsub.s32 %v1654, %v1656
        %v1658 = vrot.slane %v1644, %v1657
        %v1659 = vcombine.low %v1635, %v1651
        %v1660 = vcombine.high %v1635, %v1651
        %v1662 = vunpack.c.l.s4 1934713408
        %v1663 = vunpack.c.0.s8 %v1662
        %v1664 = vlaneseq
        %v1665 = vshrl.u32 %v1664, 7
        %v1666 = vsub.s32 %v1663, %v1665
        %v1667 = vrot.slane %v1659, %v1666
        %v1669 = vunpack.c.l.s4 1934713408
        %v1670 = vunpack.c.0.s8 %v1669
        %v1671 = vlaneseq
        %v1672 = vshrl.u32 %v1671, 7
        %v1673 = vsub.s32 %v1670, %v1672
        %v1674 = vrot.slane %v1660, %v1673
        %v1675 = vcombine.low %v1642, %v1658
        %v1676 = vcombine.high %v1642, %v1658
        %v1678 = vunpack.c.l.s4 1934713408
        %v1679 = vunpack.c.0.s8 %v1678
        %v1680 = vlaneseq
        %v1681 = vshrl.u32 %v1680, 7
        %v1682 = vsub.s32 %v1679, %v1681
        %v1683 = vrot.slane %v1675, %v1682
        %v1685 = vunpack.c.l.s4 1934713408
        %v1686 = vunpack.c.0.s8 %v1685
        %v1687 = vlaneseq
        %v1688 = vshrl.u32 %v1687, 7
        %v1689 = vsub.s32 %v1686, %v1688
        %v1690 = vrot.slane %v1676, %v1689
        %v1691 = vcombine.high %v1667, 0.0
        %v1692 = vcombine.high %v1674, 0.0
        %v1693 = vcombine.high %v1683, 0.0
        %v1694 = vcombine.high %v1690, 0.0
        %1696 = vrot.lane.b32.xlu0 %v1623, 16
        %v1697 = vpop.permute.xlu0 %1696
        %1700 = vrot.lane.b32.xlu0 %v1606, 32
        %v1701 = vpop.permute.xlu0 %1700
        %1704 = vrot.lane.b32.xlu0 %v1624, 48
        %v1705 = vpop.permute.xlu0 %1704
        %1708 = vrot.lane.b32.xlu0 %v1615, 64
        %v1709 = vpop.permute.xlu0 %1708
        %1712 = vrot.lane.b32.xlu0 %v1625, 80
        %v1713 = vpop.permute.xlu0 %1712
        %1716 = vrot.lane.b32.xlu0 %v1622, 96
        %v1717 = vpop.permute.xlu0 %1716
        %1720 = vrot.lane.b32.xlu0 %v1626, 112
        %v1721 = vpop.permute.xlu0 %1720
        %1724 = vrot.lane.b32.xlu0 %v1691, 16
        %v1725 = vpop.permute.xlu0 %1724
        %1728 = vrot.lane.b32.xlu0 %v1674, 32
        %v1729 = vpop.permute.xlu0 %1728
        %1732 = vrot.lane.b32.xlu0 %v1692, 48
        %v1733 = vpop.permute.xlu0 %1732
        %1736 = vrot.lane.b32.xlu0 %v1683, 64
        %v1737 = vpop.permute.xlu0 %1736
        %1740 = vrot.lane.b32.xlu0 %v1693, 80
        %v1741 = vpop.permute.xlu0 %1740
        %1744 = vrot.lane.b32.xlu0 %v1690, 96
        %v1745 = vpop.permute.xlu0 %1744
        %1748 = vrot.lane.b32.xlu0 %v1694, 112
        %v1749 = vpop.permute.xlu0 %1748
        %v1751 = vsel %vm577, %v1599, %v1697
        %v1752 = vsel %vm579, %v1751, %v1701
        %v1753 = vsel %vm581, %v1752, %v1705
        %v1754 = vsel %vm583, %v1753, %v1709
        %v1755 = vsel %vm585, %v1754, %v1713
        %v1756 = vsel %vm587, %v1755, %v1717
        %v1757 = vsel %vm589, %v1756, %v1721
        %v1758 = vsel %vm577, %v1667, %v1725
        %v1759 = vsel %vm579, %v1758, %v1729
        %v1760 = vsel %vm581, %v1759, %v1733
        %v1761 = vsel %vm583, %v1760, %v1737
        %v1762 = vsel %vm585, %v1761, %v1741
        %v1763 = vsel %vm587, %v1762, %v1745
        %v1764 = vsel %vm589, %v1763, %v1749
        %vm1765 = vcmask 1045504
        %v1766 = vrot.slane %v373, 2
        %v1767 = vrot.slane %v374, 2
        %v1768 = vsel %vm1765, %v1766, %v1767
        %v1769 = vrot.slane %v375, 2
        %v1770 = vsel %vm1765, %v1767, %v1769
        %v1771 = vrot.slane %v376, 2
        %v1772 = vrot.slane %v377, 2
        %v1773 = vsel %vm1765, %v1771, %v1772
        %v1774 = vrot.slane %v378, 2
        %v1775 = vsel %vm1765, %v1772, %v1774
        %v1776 = vrot.slane %v379, 2
        %v1777 = vrot.slane %v380, 2
        %v1778 = vsel %vm1765, %v1776, %v1777
        %v1779 = vrot.slane %v381, 2
        %v1780 = vsel %vm1765, %v1777, %v1779
        %v1781 = vrot.slane %v382, 2
        %v1782 = vrot.slane %v383, 2
        %v1783 = vsel %vm1765, %v1781, %v1782
        %v1784 = vrot.slane %v384, 2
        %v1785 = vsel %vm1765, %v1782, %v1784
        %v1794 = vcombine.low %v1768, %v1778
        %v1795 = vcombine.high %v1768, %v1778
        %v1797 = vunpack.c.l.s4 1983009808
        %v1798 = vunpack.c.0.s8 %v1797
        %v1799 = vlaneseq
        %v1800 = vshrl.u32 %v1799, 7
        %v1801 = vsub.s32 %v1798, %v1800
        %v1802 = vrot.slane %v1794, %v1801
        %v1804 = vunpack.c.l.s4 1983009808
        %v1805 = vunpack.c.0.s8 %v1804
        %v1806 = vlaneseq
        %v1807 = vshrl.u32 %v1806, 7
        %v1808 = vsub.s32 %v1805, %v1807
        %v1809 = vrot.slane %v1795, %v1808
        %v1810 = vcombine.low %v1773, %v1783
        %v1811 = vcombine.high %v1773, %v1783
        %v1813 = vunpack.c.l.s4 1983009808
        %v1814 = vunpack.c.0.s8 %v1813
        %v1815 = vlaneseq
        %v1816 = vshrl.u32 %v1815, 7
        %v1817 = vsub.s32 %v1814, %v1816
        %v1818 = vrot.slane %v1810, %v1817
        %v1820 = vunpack.c.l.s4 1983009808
        %v1821 = vunpack.c.0.s8 %v1820
        %v1822 = vlaneseq
        %v1823 = vshrl.u32 %v1822, 7
        %v1824 = vsub.s32 %v1821, %v1823
        %v1825 = vrot.slane %v1811, %v1824
        %v1826 = vcombine.low %v1802, %v1818
        %v1827 = vcombine.high %v1802, %v1818
        %v1829 = vunpack.c.l.s4 1934713408
        %v1830 = vunpack.c.0.s8 %v1829
        %v1831 = vlaneseq
        %v1832 = vshrl.u32 %v1831, 7
        %v1833 = vsub.s32 %v1830, %v1832
        %v1834 = vrot.slane %v1826, %v1833
        %v1836 = vunpack.c.l.s4 1934713408
        %v1837 = vunpack.c.0.s8 %v1836
        %v1838 = vlaneseq
        %v1839 = vshrl.u32 %v1838, 7
        %v1840 = vsub.s32 %v1837, %v1839
        %v1841 = vrot.slane %v1827, %v1840
        %v1842 = vcombine.low %v1809, %v1825
        %v1843 = vcombine.high %v1809, %v1825
        %v1845 = vunpack.c.l.s4 1934713408
        %v1846 = vunpack.c.0.s8 %v1845
        %v1847 = vlaneseq
        %v1848 = vshrl.u32 %v1847, 7
        %v1849 = vsub.s32 %v1846, %v1848
        %v1850 = vrot.slane %v1842, %v1849
        %v1852 = vunpack.c.l.s4 1934713408
        %v1853 = vunpack.c.0.s8 %v1852
        %v1854 = vlaneseq
        %v1855 = vshrl.u32 %v1854, 7
        %v1856 = vsub.s32 %v1853, %v1855
        %v1857 = vrot.slane %v1843, %v1856
        %v1858 = vcombine.high %v1834, 0.0
        %v1859 = vcombine.high %v1841, 0.0
        %v1860 = vcombine.high %v1850, 0.0
        %v1861 = vcombine.high %v1857, 0.0
        %v1862 = vcombine.low %v1770, %v1780
        %v1863 = vcombine.high %v1770, %v1780
        %v1865 = vunpack.c.l.s4 1983009808
        %v1866 = vunpack.c.0.s8 %v1865
        %v1867 = vlaneseq
        %v1868 = vshrl.u32 %v1867, 7
        %v1869 = vsub.s32 %v1866, %v1868
        %v1870 = vrot.slane %v1862, %v1869
        %v1872 = vunpack.c.l.s4 1983009808
        %v1873 = vunpack.c.0.s8 %v1872
        %v1874 = vlaneseq
        %v1875 = vshrl.u32 %v1874, 7
        %v1876 = vsub.s32 %v1873, %v1875
        %v1877 = vrot.slane %v1863, %v1876
        %v1878 = vcombine.low %v1775, %v1785
        %v1879 = vcombine.high %v1775, %v1785
        %v1881 = vunpack.c.l.s4 1983009808
        %v1882 = vunpack.c.0.s8 %v1881
        %v1883 = vlaneseq
        %v1884 = vshrl.u32 %v1883, 7
        %v1885 = vsub.s32 %v1882, %v1884
        %v1886 = vrot.slane %v1878, %v1885
        %v1888 = vunpack.c.l.s4 1983009808
        %v1889 = vunpack.c.0.s8 %v1888
        %v1890 = vlaneseq
        %v1891 = vshrl.u32 %v1890, 7
        %v1892 = vsub.s32 %v1889, %v1891
        %v1893 = vrot.slane %v1879, %v1892
        %v1894 = vcombine.low %v1870, %v1886
        %v1895 = vcombine.high %v1870, %v1886
        %v1897 = vunpack.c.l.s4 1934713408
        %v1898 = vunpack.c.0.s8 %v1897
        %v1899 = vlaneseq
        %v1900 = vshrl.u32 %v1899, 7
        %v1901 = vsub.s32 %v1898, %v1900
        %v1902 = vrot.slane %v1894, %v1901
        %v1904 = vunpack.c.l.s4 1934713408
        %v1905 = vunpack.c.0.s8 %v1904
        %v1906 = vlaneseq
        %v1907 = vshrl.u32 %v1906, 7
        %v1908 = vsub.s32 %v1905, %v1907
        %v1909 = vrot.slane %v1895, %v1908
        %v1910 = vcombine.low %v1877, %v1893
        %v1911 = vcombine.high %v1877, %v1893
        %v1913 = vunpack.c.l.s4 1934713408
        %v1914 = vunpack.c.0.s8 %v1913
        %v1915 = vlaneseq
        %v1916 = vshrl.u32 %v1915, 7
        %v1917 = vsub.s32 %v1914, %v1916
        %v1918 = vrot.slane %v1910, %v1917
        %v1920 = vunpack.c.l.s4 1934713408
        %v1921 = vunpack.c.0.s8 %v1920
        %v1922 = vlaneseq
        %v1923 = vshrl.u32 %v1922, 7
        %v1924 = vsub.s32 %v1921, %v1923
        %v1925 = vrot.slane %v1911, %v1924
        %v1926 = vcombine.high %v1902, 0.0
        %v1927 = vcombine.high %v1909, 0.0
        %v1928 = vcombine.high %v1918, 0.0
        %v1929 = vcombine.high %v1925, 0.0
        %1931 = vrot.lane.b32.xlu0 %v1858, 16
        %v1932 = vpop.permute.xlu0 %1931
        %1935 = vrot.lane.b32.xlu0 %v1841, 32
        %v1936 = vpop.permute.xlu0 %1935
        %1939 = vrot.lane.b32.xlu0 %v1859, 48
        %v1940 = vpop.permute.xlu0 %1939
        %1943 = vrot.lane.b32.xlu0 %v1850, 64
        %v1944 = vpop.permute.xlu0 %1943
        %1947 = vrot.lane.b32.xlu0 %v1860, 80
        %v1948 = vpop.permute.xlu0 %1947
        %1951 = vrot.lane.b32.xlu0 %v1857, 96
        %v1952 = vpop.permute.xlu0 %1951
        %1955 = vrot.lane.b32.xlu0 %v1861, 112
        %v1956 = vpop.permute.xlu0 %1955
        %1959 = vrot.lane.b32.xlu0 %v1926, 16
        %v1960 = vpop.permute.xlu0 %1959
        %1963 = vrot.lane.b32.xlu0 %v1909, 32
        %v1964 = vpop.permute.xlu0 %1963
        %1967 = vrot.lane.b32.xlu0 %v1927, 48
        %v1968 = vpop.permute.xlu0 %1967
        %1971 = vrot.lane.b32.xlu0 %v1918, 64
        %v1972 = vpop.permute.xlu0 %1971
        %1975 = vrot.lane.b32.xlu0 %v1928, 80
        %v1976 = vpop.permute.xlu0 %1975
        %1979 = vrot.lane.b32.xlu0 %v1925, 96
        %v1980 = vpop.permute.xlu0 %1979
        %1983 = vrot.lane.b32.xlu0 %v1929, 112
        %v1984 = vpop.permute.xlu0 %1983
        %v1986 = vsel %vm577, %v1834, %v1932
        %v1987 = vsel %vm579, %v1986, %v1936
        %v1988 = vsel %vm581, %v1987, %v1940
        %v1989 = vsel %vm583, %v1988, %v1944
        %v1990 = vsel %vm585, %v1989, %v1948
        %v1991 = vsel %vm587, %v1990, %v1952
        %v1992 = vsel %vm589, %v1991, %v1956
        %v1993 = vsel %vm577, %v1902, %v1960
        %v1994 = vsel %vm579, %v1993, %v1964
        %v1995 = vsel %vm581, %v1994, %v1968
        %v1996 = vsel %vm583, %v1995, %v1972
        %v1997 = vsel %vm585, %v1996, %v1976
        %v1998 = vsel %vm587, %v1997, %v1980
        %v1999 = vsel %vm589, %v1998, %v1984
        %2000 = vrot.lane.b32.xlu0 %v1768, 127
        %v2001 = vpop.permute.xlu0 %2000
        %2002 = vrot.lane.b32.xlu0 %v1770, 127
        %v2003 = vpop.permute.xlu0 %2002
        %2004 = vrot.lane.b32.xlu0 %v1773, 127
        %v2005 = vpop.permute.xlu0 %2004
        %2006 = vrot.lane.b32.xlu0 %v1775, 127
        %v2007 = vpop.permute.xlu0 %2006
        %2008 = vrot.lane.b32.xlu0 %v1778, 127
        %v2009 = vpop.permute.xlu0 %2008
        %2010 = vrot.lane.b32.xlu0 %v1780, 127
        %v2011 = vpop.permute.xlu0 %2010
        %2012 = vrot.lane.b32.xlu0 %v1783, 127
        %v2013 = vpop.permute.xlu0 %2012
        %2014 = vrot.lane.b32.xlu0 %v1785, 127
        %v2015 = vpop.permute.xlu0 %2014
        %v2024 = vcombine.low %v2001, %v2009
        %v2025 = vcombine.high %v2001, %v2009
        %v2027 = vunpack.c.l.s4 1983009808
        %v2028 = vunpack.c.0.s8 %v2027
        %v2029 = vlaneseq
        %v2030 = vshrl.u32 %v2029, 7
        %v2031 = vsub.s32 %v2028, %v2030
        %v2032 = vrot.slane %v2024, %v2031
        %v2034 = vunpack.c.l.s4 1983009808
        %v2035 = vunpack.c.0.s8 %v2034
        %v2036 = vlaneseq
        %v2037 = vshrl.u32 %v2036, 7
        %v2038 = vsub.s32 %v2035, %v2037
        %v2039 = vrot.slane %v2025, %v2038
        %v2040 = vcombine.low %v2005, %v2013
        %v2041 = vcombine.high %v2005, %v2013
        %v2043 = vunpack.c.l.s4 1983009808
        %v2044 = vunpack.c.0.s8 %v2043
        %v2045 = vlaneseq
        %v2046 = vshrl.u32 %v2045, 7
        %v2047 = vsub.s32 %v2044, %v2046
        %v2048 = vrot.slane %v2040, %v2047
        %v2050 = vunpack.c.l.s4 1983009808
        %v2051 = vunpack.c.0.s8 %v2050
        %v2052 = vlaneseq
        %v2053 = vshrl.u32 %v2052, 7
        %v2054 = vsub.s32 %v2051, %v2053
        %v2055 = vrot.slane %v2041, %v2054
        %v2056 = vcombine.low %v2032, %v2048
        %v2057 = vcombine.high %v2032, %v2048
        %v2059 = vunpack.c.l.s4 1934713408
        %v2060 = vunpack.c.0.s8 %v2059
        %v2061 = vlaneseq
        %v2062 = vshrl.u32 %v2061, 7
        %v2063 = vsub.s32 %v2060, %v2062
        %v2064 = vrot.slane %v2056, %v2063
        %v2066 = vunpack.c.l.s4 1934713408
        %v2067 = vunpack.c.0.s8 %v2066
        %v2068 = vlaneseq
        %v2069 = vshrl.u32 %v2068, 7
        %v2070 = vsub.s32 %v2067, %v2069
        %v2071 = vrot.slane %v2057, %v2070
        %v2072 = vcombine.low %v2039, %v2055
        %v2073 = vcombine.high %v2039, %v2055
        %v2075 = vunpack.c.l.s4 1934713408
        %v2076 = vunpack.c.0.s8 %v2075
        %v2077 = vlaneseq
        %v2078 = vshrl.u32 %v2077, 7
        %v2079 = vsub.s32 %v2076, %v2078
        %v2080 = vrot.slane %v2072, %v2079
        %v2082 = vunpack.c.l.s4 1934713408
        %v2083 = vunpack.c.0.s8 %v2082
        %v2084 = vlaneseq
        %v2085 = vshrl.u32 %v2084, 7
        %v2086 = vsub.s32 %v2083, %v2085
        %v2087 = vrot.slane %v2073, %v2086
        %v2088 = vcombine.high %v2064, 0.0
        %v2089 = vcombine.high %v2071, 0.0
        %v2090 = vcombine.high %v2080, 0.0
        %v2091 = vcombine.high %v2087, 0.0
        %v2092 = vcombine.low %v2003, %v2011
        %v2093 = vcombine.high %v2003, %v2011
        %v2095 = vunpack.c.l.s4 1983009808
        %v2096 = vunpack.c.0.s8 %v2095
        %v2097 = vlaneseq
        %v2098 = vshrl.u32 %v2097, 7
        %v2099 = vsub.s32 %v2096, %v2098
        %v2100 = vrot.slane %v2092, %v2099
        %v2102 = vunpack.c.l.s4 1983009808
        %v2103 = vunpack.c.0.s8 %v2102
        %v2104 = vlaneseq
        %v2105 = vshrl.u32 %v2104, 7
        %v2106 = vsub.s32 %v2103, %v2105
        %v2107 = vrot.slane %v2093, %v2106
        %v2108 = vcombine.low %v2007, %v2015
        %v2109 = vcombine.high %v2007, %v2015
        %v2111 = vunpack.c.l.s4 1983009808
        %v2112 = vunpack.c.0.s8 %v2111
        %v2113 = vlaneseq
        %v2114 = vshrl.u32 %v2113, 7
        %v2115 = vsub.s32 %v2112, %v2114
        %v2116 = vrot.slane %v2108, %v2115
        %v2118 = vunpack.c.l.s4 1983009808
        %v2119 = vunpack.c.0.s8 %v2118
        %v2120 = vlaneseq
        %v2121 = vshrl.u32 %v2120, 7
        %v2122 = vsub.s32 %v2119, %v2121
        %v2123 = vrot.slane %v2109, %v2122
        %v2124 = vcombine.low %v2100, %v2116
        %v2125 = vcombine.high %v2100, %v2116
        %v2127 = vunpack.c.l.s4 1934713408
        %v2128 = vunpack.c.0.s8 %v2127
        %v2129 = vlaneseq
        %v2130 = vshrl.u32 %v2129, 7
        %v2131 = vsub.s32 %v2128, %v2130
        %v2132 = vrot.slane %v2124, %v2131
        %v2134 = vunpack.c.l.s4 1934713408
        %v2135 = vunpack.c.0.s8 %v2134
        %v2136 = vlaneseq
        %v2137 = vshrl.u32 %v2136, 7
        %v2138 = vsub.s32 %v2135, %v2137
        %v2139 = vrot.slane %v2125, %v2138
        %v2140 = vcombine.low %v2107, %v2123
        %v2141 = vcombine.high %v2107, %v2123
        %v2143 = vunpack.c.l.s4 1934713408
        %v2144 = vunpack.c.0.s8 %v2143
        %v2145 = vlaneseq
        %v2146 = vshrl.u32 %v2145, 7
        %v2147 = vsub.s32 %v2144, %v2146
        %v2148 = vrot.slane %v2140, %v2147
        %v2150 = vunpack.c.l.s4 1934713408
        %v2151 = vunpack.c.0.s8 %v2150
        %v2152 = vlaneseq
        %v2153 = vshrl.u32 %v2152, 7
        %v2154 = vsub.s32 %v2151, %v2153
        %v2155 = vrot.slane %v2141, %v2154
        %v2156 = vcombine.high %v2132, 0.0
        %v2157 = vcombine.high %v2139, 0.0
        %v2158 = vcombine.high %v2148, 0.0
        %v2159 = vcombine.high %v2155, 0.0
        %2161 = vrot.lane.b32.xlu0 %v2088, 16
        %v2162 = vpop.permute.xlu0 %2161
        %2165 = vrot.lane.b32.xlu0 %v2071, 32
        %v2166 = vpop.permute.xlu0 %2165
        %2169 = vrot.lane.b32.xlu0 %v2089, 48
        %v2170 = vpop.permute.xlu0 %2169
        %2173 = vrot.lane.b32.xlu0 %v2080, 64
        %v2174 = vpop.permute.xlu0 %2173
        %2177 = vrot.lane.b32.xlu0 %v2090, 80
        %v2178 = vpop.permute.xlu0 %2177
        %2181 = vrot.lane.b32.xlu0 %v2087, 96
        %v2182 = vpop.permute.xlu0 %2181
        %2185 = vrot.lane.b32.xlu0 %v2091, 112
        %v2186 = vpop.permute.xlu0 %2185
        %2189 = vrot.lane.b32.xlu0 %v2156, 16
        %v2190 = vpop.permute.xlu0 %2189
        %2193 = vrot.lane.b32.xlu0 %v2139, 32
        %v2194 = vpop.permute.xlu0 %2193
        %2197 = vrot.lane.b32.xlu0 %v2157, 48
        %v2198 = vpop.permute.xlu0 %2197
        %2201 = vrot.lane.b32.xlu0 %v2148, 64
        %v2202 = vpop.permute.xlu0 %2201
        %2205 = vrot.lane.b32.xlu0 %v2158, 80
        %v2206 = vpop.permute.xlu0 %2205
        %2209 = vrot.lane.b32.xlu0 %v2155, 96
        %v2210 = vpop.permute.xlu0 %2209
        %2213 = vrot.lane.b32.xlu0 %v2159, 112
        %v2214 = vpop.permute.xlu0 %2213
        %v2216 = vsel %vm577, %v2064, %v2162
        %v2217 = vsel %vm579, %v2216, %v2166
        %v2218 = vsel %vm581, %v2217, %v2170
        %v2219 = vsel %vm583, %v2218, %v2174
        %v2220 = vsel %vm585, %v2219, %v2178
        %v2221 = vsel %vm587, %v2220, %v2182
        %v2222 = vsel %vm589, %v2221, %v2186
        %v2223 = vsel %vm577, %v2132, %v2190
        %v2224 = vsel %vm579, %v2223, %v2194
        %v2225 = vsel %vm581, %v2224, %v2198
        %v2226 = vsel %vm583, %v2225, %v2202
        %v2227 = vsel %vm585, %v2226, %v2206
        %v2228 = vsel %vm587, %v2227, %v2210
        %v2229 = vsel %vm589, %v2228, %v2214
        %2230 = vrot.lane.b32.xlu0 %v1768, 126
        %v2231 = vpop.permute.xlu0 %2230
        %2232 = vrot.lane.b32.xlu0 %v1770, 126
        %v2233 = vpop.permute.xlu0 %2232
        %2234 = vrot.lane.b32.xlu0 %v1773, 126
        %v2235 = vpop.permute.xlu0 %2234
        %2236 = vrot.lane.b32.xlu0 %v1775, 126
        %v2237 = vpop.permute.xlu0 %2236
        %2238 = vrot.lane.b32.xlu0 %v1778, 126
        %v2239 = vpop.permute.xlu0 %2238
        %2240 = vrot.lane.b32.xlu0 %v1780, 126
        %v2241 = vpop.permute.xlu0 %2240
        %2242 = vrot.lane.b32.xlu0 %v1783, 126
        %v2243 = vpop.permute.xlu0 %2242
        %2244 = vrot.lane.b32.xlu0 %v1785, 126
        %v2245 = vpop.permute.xlu0 %2244
        %v2254 = vcombine.low %v2231, %v2239
        %v2255 = vcombine.high %v2231, %v2239
        %v2257 = vunpack.c.l.s4 1983009808
        %v2258 = vunpack.c.0.s8 %v2257
        %v2259 = vlaneseq
        %v2260 = vshrl.u32 %v2259, 7
        %v2261 = vsub.s32 %v2258, %v2260
        %v2262 = vrot.slane %v2254, %v2261
        %v2264 = vunpack.c.l.s4 1983009808
        %v2265 = vunpack.c.0.s8 %v2264
        %v2266 = vlaneseq
        %v2267 = vshrl.u32 %v2266, 7
        %v2268 = vsub.s32 %v2265, %v2267
        %v2269 = vrot.slane %v2255, %v2268
        %v2270 = vcombine.low %v2235, %v2243
        %v2271 = vcombine.high %v2235, %v2243
        %v2273 = vunpack.c.l.s4 1983009808
        %v2274 = vunpack.c.0.s8 %v2273
        %v2275 = vlaneseq
        %v2276 = vshrl.u32 %v2275, 7
        %v2277 = vsub.s32 %v2274, %v2276
        %v2278 = vrot.slane %v2270, %v2277
        %v2280 = vunpack.c.l.s4 1983009808
        %v2281 = vunpack.c.0.s8 %v2280
        %v2282 = vlaneseq
        %v2283 = vshrl.u32 %v2282, 7
        %v2284 = vsub.s32 %v2281, %v2283
        %v2285 = vrot.slane %v2271, %v2284
        %v2286 = vcombine.low %v2262, %v2278
        %v2287 = vcombine.high %v2262, %v2278
        %v2289 = vunpack.c.l.s4 1934713408
        %v2290 = vunpack.c.0.s8 %v2289
        %v2291 = vlaneseq
        %v2292 = vshrl.u32 %v2291, 7
        %v2293 = vsub.s32 %v2290, %v2292
        %v2294 = vrot.slane %v2286, %v2293
        %v2296 = vunpack.c.l.s4 1934713408
        %v2297 = vunpack.c.0.s8 %v2296
        %v2298 = vlaneseq
        %v2299 = vshrl.u32 %v2298, 7
        %v2300 = vsub.s32 %v2297, %v2299
        %v2301 = vrot.slane %v2287, %v2300
        %v2302 = vcombine.low %v2269, %v2285
        %v2303 = vcombine.high %v2269, %v2285
        %v2305 = vunpack.c.l.s4 1934713408
        %v2306 = vunpack.c.0.s8 %v2305
        %v2307 = vlaneseq
        %v2308 = vshrl.u32 %v2307, 7
        %v2309 = vsub.s32 %v2306, %v2308
        %v2310 = vrot.slane %v2302, %v2309
        %v2312 = vunpack.c.l.s4 1934713408
        %v2313 = vunpack.c.0.s8 %v2312
        %v2314 = vlaneseq
        %v2315 = vshrl.u32 %v2314, 7
        %v2316 = vsub.s32 %v2313, %v2315
        %v2317 = vrot.slane %v2303, %v2316
        %v2318 = vcombine.high %v2294, 0.0
        %v2319 = vcombine.high %v2301, 0.0
        %v2320 = vcombine.high %v2310, 0.0
        %v2321 = vcombine.high %v2317, 0.0
        %v2322 = vcombine.low %v2233, %v2241
        %v2323 = vcombine.high %v2233, %v2241
        %v2325 = vunpack.c.l.s4 1983009808
        %v2326 = vunpack.c.0.s8 %v2325
        %v2327 = vlaneseq
        %v2328 = vshrl.u32 %v2327, 7
        %v2329 = vsub.s32 %v2326, %v2328
        %v2330 = vrot.slane %v2322, %v2329
        %v2332 = vunpack.c.l.s4 1983009808
        %v2333 = vunpack.c.0.s8 %v2332
        %v2334 = vlaneseq
        %v2335 = vshrl.u32 %v2334, 7
        %v2336 = vsub.s32 %v2333, %v2335
        %v2337 = vrot.slane %v2323, %v2336
        %v2338 = vcombine.low %v2237, %v2245
        %v2339 = vcombine.high %v2237, %v2245
        %v2341 = vunpack.c.l.s4 1983009808
        %v2342 = vunpack.c.0.s8 %v2341
        %v2343 = vlaneseq
        %v2344 = vshrl.u32 %v2343, 7
        %v2345 = vsub.s32 %v2342, %v2344
        %v2346 = vrot.slane %v2338, %v2345
        %v2348 = vunpack.c.l.s4 1983009808
        %v2349 = vunpack.c.0.s8 %v2348
        %v2350 = vlaneseq
        %v2351 = vshrl.u32 %v2350, 7
        %v2352 = vsub.s32 %v2349, %v2351
        %v2353 = vrot.slane %v2339, %v2352
        %v2354 = vcombine.low %v2330, %v2346
        %v2355 = vcombine.high %v2330, %v2346
        %v2357 = vunpack.c.l.s4 1934713408
        %v2358 = vunpack.c.0.s8 %v2357
        %v2359 = vlaneseq
        %v2360 = vshrl.u32 %v2359, 7
        %v2361 = vsub.s32 %v2358, %v2360
        %v2362 = vrot.slane %v2354, %v2361
        %v2364 = vunpack.c.l.s4 1934713408
        %v2365 = vunpack.c.0.s8 %v2364
        %v2366 = vlaneseq
        %v2367 = vshrl.u32 %v2366, 7
        %v2368 = vsub.s32 %v2365, %v2367
        %v2369 = vrot.slane %v2355, %v2368
        %v2370 = vcombine.low %v2337, %v2353
        %v2371 = vcombine.high %v2337, %v2353
        %v2373 = vunpack.c.l.s4 1934713408
        %v2374 = vunpack.c.0.s8 %v2373
        %v2375 = vlaneseq
        %v2376 = vshrl.u32 %v2375, 7
        %v2377 = vsub.s32 %v2374, %v2376
        %v2378 = vrot.slane %v2370, %v2377
        %v2380 = vunpack.c.l.s4 1934713408
        %v2381 = vunpack.c.0.s8 %v2380
        %v2382 = vlaneseq
        %v2383 = vshrl.u32 %v2382, 7
        %v2384 = vsub.s32 %v2381, %v2383
        %v2385 = vrot.slane %v2371, %v2384
        %v2386 = vcombine.high %v2362, 0.0
        %v2387 = vcombine.high %v2369, 0.0
        %v2388 = vcombine.high %v2378, 0.0
        %v2389 = vcombine.high %v2385, 0.0
        %2391 = vrot.lane.b32.xlu0 %v2318, 16
        %v2392 = vpop.permute.xlu0 %2391
        %2395 = vrot.lane.b32.xlu0 %v2301, 32
        %v2396 = vpop.permute.xlu0 %2395
        %2399 = vrot.lane.b32.xlu0 %v2319, 48
        %v2400 = vpop.permute.xlu0 %2399
        %2403 = vrot.lane.b32.xlu0 %v2310, 64
        %v2404 = vpop.permute.xlu0 %2403
        %2407 = vrot.lane.b32.xlu0 %v2320, 80
        %v2408 = vpop.permute.xlu0 %2407
        %2411 = vrot.lane.b32.xlu0 %v2317, 96
        %v2412 = vpop.permute.xlu0 %2411
        %2415 = vrot.lane.b32.xlu0 %v2321, 112
        %v2416 = vpop.permute.xlu0 %2415
        %2419 = vrot.lane.b32.xlu0 %v2386, 16
        %v2420 = vpop.permute.xlu0 %2419
        %2423 = vrot.lane.b32.xlu0 %v2369, 32
        %v2424 = vpop.permute.xlu0 %2423
        %2427 = vrot.lane.b32.xlu0 %v2387, 48
        %v2428 = vpop.permute.xlu0 %2427
        %2431 = vrot.lane.b32.xlu0 %v2378, 64
        %v2432 = vpop.permute.xlu0 %2431
        %2435 = vrot.lane.b32.xlu0 %v2388, 80
        %v2436 = vpop.permute.xlu0 %2435
        %2439 = vrot.lane.b32.xlu0 %v2385, 96
        %v2440 = vpop.permute.xlu0 %2439
        %2443 = vrot.lane.b32.xlu0 %v2389, 112
        %v2444 = vpop.permute.xlu0 %2443
        %v2446 = vsel %vm577, %v2294, %v2392
        %v2447 = vsel %vm579, %v2446, %v2396
        %v2448 = vsel %vm581, %v2447, %v2400
        %v2449 = vsel %vm583, %v2448, %v2404
        %v2450 = vsel %vm585, %v2449, %v2408
        %v2451 = vsel %vm587, %v2450, %v2412
        %v2452 = vsel %vm589, %v2451, %v2416
        %v2453 = vsel %vm577, %v2362, %v2420
        %v2454 = vsel %vm579, %v2453, %v2424
        %v2455 = vsel %vm581, %v2454, %v2428
        %v2456 = vsel %vm583, %v2455, %v2432
        %v2457 = vsel %vm585, %v2456, %v2436
        %v2458 = vsel %vm587, %v2457, %v2440
        %v2459 = vsel %vm589, %v2458, %v2444
        %v2462 = vrot.slane %v828, 4
        %v2463 = vrot.slane %v835, 4
        %v2468 = vrot.slane %v1297, 4
        %v2469 = vrot.slane %v1304, 4
        %v2474 = vrot.slane %v1757, 4
        %v2475 = vrot.slane %v1764, 4
        %v2480 = vrot.slane %v2222, 4
        %v2481 = vrot.slane %v2229, 4
        %vm2484 = vcmask 1043456
        %v2485 = vsel %vm2484, %v590, %v2462
        %v2486 = vsel %vm2484, %v597, %v2463
        %v2487 = vsel %vm2484, %v1058, %v2468
        %v2488 = vsel %vm2484, %v1065, %v2469
        %v2489 = vsel %vm2484, %v1527, %v2474
        %v2490 = vsel %vm2484, %v1534, %v2475
        %v2491 = vsel %vm2484, %v1992, %v2480
        %v2492 = vsel %vm2484, %v1999, %v2481
        %2493 = vst [vmem:[#allocation3] sm:$0xff] %v2485
        %2494 = vst [vmem:[#allocation3 + $0x8] sm:$0xff] %v2486
        %2495 = vst [vmem:[#allocation3 + $0x10] sm:$0xff] %v2487
        %2496 = vst [vmem:[#allocation3 + $0x18] sm:$0xff] %v2488
        %2497 = vst [vmem:[#allocation3 + $0x20] sm:$0xff] %v2489
        %2498 = vst [vmem:[#allocation3 + $0x28] sm:$0xff] %v2490
        %2499 = vst [vmem:[#allocation3 + $0x30] sm:$0xff] %v2491
        %2500 = vst [vmem:[#allocation3 + $0x38] sm:$0xff] %v2492
        %2501 = vst [vmem:[#allocation3 + $0x40] sm:$0xf] %v2452
        %2502 = vst [vmem:[#allocation3 + $0x48] sm:$0xf] %v2459
        %v2503 = vld [vmem:[%s1] sm:$0xf]
        %v2504 = vld [vmem:[#allocation3] sm:$0xff]
        %v2505 = vld [vmem:[#allocation3 + $0x8] sm:$0xff]
        %v2506 = vld [vmem:[#allocation3 + $0x10] sm:$0xff]
        %v2507 = vld [vmem:[#allocation3 + $0x18] sm:$0xff]
        %v2508 = vld [vmem:[#allocation3 + $0x20] sm:$0xff]
        %v2509 = vld [vmem:[#allocation3 + $0x28] sm:$0xff]
        %v2510 = vld [vmem:[#allocation3 + $0x30] sm:$0xff]
        %v2511 = vld [vmem:[#allocation3 + $0x38] sm:$0xff]
        %v2512 = vld [vmem:[#allocation3 + $0x40] sm:$0xff]
        %v2513 = vld [vmem:[#allocation3 + $0x48] sm:$0xff]
        %v2514 = vld [vmem:[%s5] sm:$0xf]
        %2516 = vset.pattern.permute.xlu0 0
        %2517 = vperm.xlu0 %2516, %v2514
        %v2518 = vpop.permute.xlu0 %2517
        %vm2520 = vcmask 326656
        %v2522 = vsel %vm2520, %v2503, 0
        %2524 = vmatprep.subr.mxu0 0.0
        %2525 = vmatpush1.msra.mxu0 0.0
        %2526 = vmatprep.subr.mxu0 0.0
        %2527 = vmatpush1.msra.mxu0 0.0
        %2528 = vmatprep.subr.mxu0 0.0
        %2529 = vmatpush1.msra.mxu0 0.0
        %2530 = vmatprep.subr.mxu0 0.0
        %2531 = vmatpush1.msra.mxu0 0.0
        %2532 = vmatprep.subr.mxu0 0.0
        %2533 = vmatpush1.msra.mxu0 0.0
        %2534 = vmatprep.subr.mxu0 0.0
        %2535 = vmatpush1.msra.mxu0 0.0
        %2536 = vmatprep.subr.mxu0 0.0
        %2537 = vmatpush1.msra.mxu0 0.0
        %2538 = vmatprep.subr.mxu0 0.0
        %2539 = vmatpush1.msra.mxu0 0.0
        %2540 = vmatprep.subr.mxu0 0.0
        %2541 = vmatpush1.msra.mxu0 0.0
        %2542 = vmatprep.subr.mxu0 0.0
        %2543 = vmatpush1.msra.mxu0 0.0
        %2544 = vmatprep.subr.mxu0 0.0
        %2545 = vmatpush1.msra.mxu0 0.0
        %2546 = vmatprep.subr.mxu0 %v2513
        %2547 = vmatpush1.msra.mxu0 %v2512
        %2548 = vmatprep.subr.mxu0 %v2511
        %2549 = vmatpush1.msra.mxu0 %v2510
        %2550 = vmatprep.subr.mxu0 %v2509
        %2551 = vmatpush1.msra.mxu0 %v2508
        %2552 = vmatprep.subr.mxu0 %v2507
        %2553 = vmatpush1.msra.mxu0 %v2506
        %2554 = vmatprep.subr.mxu0 %v2505
        %2555 = vmatpush1.msra.mxu0 %v2504
        %2556 = vmatprep.subr.mxu0 0.0
        %2557 = vmatpush2.msra.mxu0 0.0
        %2558 = vmatprep.subr.mxu0 0.0
        %2559 = vmatpush2.msra.mxu0 0.0
        %2560 = vmatprep.subr.mxu0 0.0
        %2561 = vmatpush2.msra.mxu0 0.0
        %2562 = vmatprep.subr.mxu0 0.0
        %2563 = vmatpush2.msra.mxu0 0.0
        %2564 = vmatprep.subr.mxu0 0.0
        %2565 = vmatpush2.msra.mxu0 0.0
        %2566 = vmatprep.subr.mxu0 0.0
        %2567 = vmatpush2.msra.mxu0 0.0
        %2568 = vmatprep.subr.mxu0 0.0
        %2569 = vmatpush2.msra.mxu0 0.0
        %2570 = vmatprep.subr.mxu0 0.0
        %2571 = vmatpush2.msra.mxu0 0.0
        %2572 = vmatprep.subr.mxu0 0.0
        %2573 = vmatpush2.msra.mxu0 0.0
        %2574 = vmatprep.subr.mxu0 0.0
        %2575 = vmatpush2.msra.mxu0 0.0
        %2576 = vmatprep.subr.mxu0 0.0
        %2577 = vmatpush2.msra.mxu0 0.0
        %2578 = vmatprep.subr.mxu0 0.0
        %2579 = vmatpush2.msra.mxu0 0.0
        %2580 = vmatprep.subr.mxu0 0.0
        %2581 = vmatpush2.msra.mxu0 0.0
        %2582 = vmatprep.subr.mxu0 0.0
        %2583 = vmatpush2.msra.mxu0 0.0
        %2584 = vmatprep.subr.mxu0 0.0
        %2585 = vmatpush2.msra.mxu0 0.0
        %2586 = vmatprep.subr.mxu0 0.0
        %2587 = vmatpush2.msra.mxu0 0.0
        %2588 = vmatprep.mubr.f32.mxu0 0.0
        %2589 = vmatmul.mubr.f32.gmra.mxu0 %v2522
        %v2590 = vpop.f32.mrf.mxu0
        %v2591 = vadd.f32 %v2518, %v2590
        %v2592 = vpop.f32.mrf.mxu0
        %v2593 = vadd.f32 %v2518, %v2592
        %2594 = vdwg.mxu0
        %vm2595 = vcmp.ge.f32.partialorder %v2591, 0.0
        %vm2596 = vcmp.ge.f32.partialorder %v2593, 0.0
        %v2597 = vmul.f32 %v2591, 0.01
        %v2598 = vmul.f32 %v2593, 0.01
        %v2599 = vsel %vm2595, %v2591, %v2597
        %v2600 = vsel %vm2596, %v2593, %v2598
        %2602 = vrot.lane.b32.xlu0 %v2599, 112
        %v2603 = vpop.permute.xlu0 %2602
        %2605 = vrot.lane.b32.xlu0 %v2599, 96
        %v2606 = vpop.permute.xlu0 %2605
        %2608 = vrot.lane.b32.xlu0 %v2599, 80
        %v2609 = vpop.permute.xlu0 %2608
        %2611 = vrot.lane.b32.xlu0 %v2599, 64
        %v2612 = vpop.permute.xlu0 %2611
        %2614 = vrot.lane.b32.xlu0 %v2599, 48
        %v2615 = vpop.permute.xlu0 %2614
        %2617 = vrot.lane.b32.xlu0 %v2599, 32
        %v2618 = vpop.permute.xlu0 %2617
        %2620 = vrot.lane.b32.xlu0 %v2599, 16
        %v2621 = vpop.permute.xlu0 %2620
        %2624 = vrot.lane.b32.xlu0 %v2600, 112
        %v2625 = vpop.permute.xlu0 %2624
        %2627 = vrot.lane.b32.xlu0 %v2600, 96
        %v2628 = vpop.permute.xlu0 %2627
        %2630 = vrot.lane.b32.xlu0 %v2600, 80
        %v2631 = vpop.permute.xlu0 %2630
        %2633 = vrot.lane.b32.xlu0 %v2600, 64
        %v2634 = vpop.permute.xlu0 %2633
        %2636 = vrot.lane.b32.xlu0 %v2600, 48
        %v2637 = vpop.permute.xlu0 %2636
        %2639 = vrot.lane.b32.xlu0 %v2600, 32
        %v2640 = vpop.permute.xlu0 %2639
        %2642 = vrot.lane.b32.xlu0 %v2600, 16
        %v2643 = vpop.permute.xlu0 %2642
        %v2645 = vcombine.low %v2599, %v2606
        %v2647 = vunpack.c.l.s4 1983009808
        %v2648 = vunpack.c.0.s8 %v2647
        %v2649 = vlaneseq
        %v2650 = vshrl.u32 %v2649, 7
        %v2651 = vsub.s32 %v2648, %v2650
        %v2652 = vrot.slane %v2645, %v2651
        %v2653 = vcombine.low %v2603, %v2609
        %v2655 = vunpack.c.l.s4 1983009808
        %v2656 = vunpack.c.0.s8 %v2655
        %v2657 = vlaneseq
        %v2658 = vshrl.u32 %v2657, 7
        %v2659 = vsub.s32 %v2656, %v2658
        %v2660 = vrot.slane %v2653, %v2659
        %v2661 = vcombine.low %v2612, %v2618
        %v2663 = vunpack.c.l.s4 1983009808
        %v2664 = vunpack.c.0.s8 %v2663
        %v2665 = vlaneseq
        %v2666 = vshrl.u32 %v2665, 7
        %v2667 = vsub.s32 %v2664, %v2666
        %v2668 = vrot.slane %v2661, %v2667
        %v2669 = vcombine.low %v2615, %v2621
        %v2671 = vunpack.c.l.s4 1983009808
        %v2672 = vunpack.c.0.s8 %v2671
        %v2673 = vlaneseq
        %v2674 = vshrl.u32 %v2673, 7
        %v2675 = vsub.s32 %v2672, %v2674
        %v2676 = vrot.slane %v2669, %v2675
        %v2677 = vcombine.low %v2652, %v2660
        %v2678 = vcombine.high %v2652, %v2660
        %v2680 = vunpack.c.l.s4 1934713408
        %v2681 = vunpack.c.0.s8 %v2680
        %v2682 = vlaneseq
        %v2683 = vshrl.u32 %v2682, 7
        %v2684 = vsub.s32 %v2681, %v2683
        %v2685 = vrot.slane %v2677, %v2684
        %v2687 = vunpack.c.l.s4 1934713408
        %v2688 = vunpack.c.0.s8 %v2687
        %v2689 = vlaneseq
        %v2690 = vshrl.u32 %v2689, 7
        %v2691 = vsub.s32 %v2688, %v2690
        %v2692 = vrot.slane %v2678, %v2691
        %v2693 = vcombine.low %v2668, %v2676
        %v2694 = vcombine.high %v2668, %v2676
        %v2696 = vunpack.c.l.s4 1934713408
        %v2697 = vunpack.c.0.s8 %v2696
        %v2698 = vlaneseq
        %v2699 = vshrl.u32 %v2698, 7
        %v2700 = vsub.s32 %v2697, %v2699
        %v2701 = vrot.slane %v2693, %v2700
        %v2703 = vunpack.c.l.s4 1934713408
        %v2704 = vunpack.c.0.s8 %v2703
        %v2705 = vlaneseq
        %v2706 = vshrl.u32 %v2705, 7
        %v2707 = vsub.s32 %v2704, %v2706
        %v2708 = vrot.slane %v2694, %v2707
        %v2709 = vcombine.low %v2685, %v2701
        %v2710 = vcombine.high %v2685, %v2701
        %v2711 = vcombine.low %v2692, %v2708
        %v2712 = vcombine.high %v2692, %v2708
        %v2713 = vcombine.low %v2600, %v2628
        %v2715 = vunpack.c.l.s4 1983009808
        %v2716 = vunpack.c.0.s8 %v2715
        %v2717 = vlaneseq
        %v2718 = vshrl.u32 %v2717, 7
        %v2719 = vsub.s32 %v2716, %v2718
        %v2720 = vrot.slane %v2713, %v2719
        %v2721 = vcombine.low %v2625, %v2631
        %v2723 = vunpack.c.l.s4 1983009808
        %v2724 = vunpack.c.0.s8 %v2723
        %v2725 = vlaneseq
        %v2726 = vshrl.u32 %v2725, 7
        %v2727 = vsub.s32 %v2724, %v2726
        %v2728 = vrot.slane %v2721, %v2727
        %v2729 = vcombine.low %v2634, %v2640
        %v2731 = vunpack.c.l.s4 1983009808
        %v2732 = vunpack.c.0.s8 %v2731
        %v2733 = vlaneseq
        %v2734 = vshrl.u32 %v2733, 7
        %v2735 = vsub.s32 %v2732, %v2734
        %v2736 = vrot.slane %v2729, %v2735
        %v2737 = vcombine.low %v2637, %v2643
        %v2739 = vunpack.c.l.s4 1983009808
        %v2740 = vunpack.c.0.s8 %v2739
        %v2741 = vlaneseq
        %v2742 = vshrl.u32 %v2741, 7
        %v2743 = vsub.s32 %v2740, %v2742
        %v2744 = vrot.slane %v2737, %v2743
        %v2745 = vcombine.low %v2720, %v2728
        %v2746 = vcombine.high %v2720, %v2728
        %v2748 = vunpack.c.l.s4 1934713408
        %v2749 = vunpack.c.0.s8 %v2748
        %v2750 = vlaneseq
        %v2751 = vshrl.u32 %v2750, 7
        %v2752 = vsub.s32 %v2749, %v2751
        %v2753 = vrot.slane %v2745, %v2752
        %v2755 = vunpack.c.l.s4 1934713408
        %v2756 = vunpack.c.0.s8 %v2755
        %v2757 = vlaneseq
        %v2758 = vshrl.u32 %v2757, 7
        %v2759 = vsub.s32 %v2756, %v2758
        %v2760 = vrot.slane %v2746, %v2759
        %v2761 = vcombine.low %v2736, %v2744
        %v2762 = vcombine.high %v2736, %v2744
        %v2764 = vunpack.c.l.s4 1934713408
        %v2765 = vunpack.c.0.s8 %v2764
        %v2766 = vlaneseq
        %v2767 = vshrl.u32 %v2766, 7
        %v2768 = vsub.s32 %v2765, %v2767
        %v2769 = vrot.slane %v2761, %v2768
        %v2771 = vunpack.c.l.s4 1934713408
        %v2772 = vunpack.c.0.s8 %v2771
        %v2773 = vlaneseq
        %v2774 = vshrl.u32 %v2773, 7
        %v2775 = vsub.s32 %v2772, %v2774
        %v2776 = vrot.slane %v2762, %v2775
        %v2777 = vcombine.low %v2753, %v2769
        %v2778 = vcombine.high %v2753, %v2769
        %v2779 = vcombine.low %v2760, %v2776
        %v2780 = vcombine.high %v2760, %v2776
        %2789 = vrot.lane.b32.xlu0 %v2709, 1
        %v2790 = vpop.permute.xlu0 %2789
        %2791 = vrot.lane.b32.xlu0 %v2777, 1
        %v2792 = vpop.permute.xlu0 %2791
        %2793 = vrot.lane.b32.xlu0 %v2710, 1
        %v2794 = vpop.permute.xlu0 %2793
        %2795 = vrot.lane.b32.xlu0 %v2778, 1
        %v2796 = vpop.permute.xlu0 %2795
        %2797 = vrot.lane.b32.xlu0 %v2711, 1
        %v2798 = vpop.permute.xlu0 %2797
        %2799 = vrot.lane.b32.xlu0 %v2779, 1
        %v2800 = vpop.permute.xlu0 %2799
        %2801 = vrot.lane.b32.xlu0 %v2712, 1
        %v2802 = vpop.permute.xlu0 %2801
        %2803 = vrot.lane.b32.xlu0 %v2780, 1
        %v2804 = vpop.permute.xlu0 %2803
        %2813 = vst.msk [vmem:[#allocation2 + $0x1] sm:$0xff] %vm364, %v2790
        %2814 = vst.msk [vmem:[#allocation2 + $0x9] sm:$0xff] %vm364, %v2792
        %2815 = vst.msk [vmem:[#allocation2 + $0x19] sm:$0xff] %vm364, %v2794
        %2816 = vst.msk [vmem:[#allocation2 + $0x21] sm:$0xff] %vm364, %v2796
        %2817 = vst.msk [vmem:[#allocation2 + $0x31] sm:$0xff] %vm364, %v2798
        %2818 = vst.msk [vmem:[#allocation2 + $0x39] sm:$0xff] %vm364, %v2800
        %2819 = vst.msk [vmem:[#allocation2 + $0x49] sm:$0xff] %vm364, %v2802
        %2820 = vst.msk [vmem:[#allocation2 + $0x51] sm:$0xff] %vm364, %v2804
        %v2821 = vld [vmem:[#allocation2] sm:$0xff]
        %v2822 = vld [vmem:[#allocation2 + $0x8] sm:$0xff]
        %v2823 = vld [vmem:[#allocation2 + $0x10] sm:$0x3]
        %v2824 = vld [vmem:[#allocation2 + $0x18] sm:$0xff]
        %v2825 = vld [vmem:[#allocation2 + $0x20] sm:$0xff]
        %v2826 = vld [vmem:[#allocation2 + $0x28] sm:$0x3]
        %v2827 = vld [vmem:[#allocation2 + $0x30] sm:$0xff]
        %v2828 = vld [vmem:[#allocation2 + $0x38] sm:$0xff]
        %v2829 = vld [vmem:[#allocation2 + $0x40] sm:$0x3]
        %v2830 = vld [vmem:[#allocation2 + $0x48] sm:$0xff]
        %v2831 = vld [vmem:[#allocation2 + $0x50] sm:$0xff]
        %v2832 = vld [vmem:[#allocation2 + $0x58] sm:$0x3]
        %v2833 = vcombine.low %v2821, %v2827
        %v2834 = vcombine.high %v2821, %v2827
        %v2836 = vunpack.c.l.s4 1983009808
        %v2837 = vunpack.c.0.s8 %v2836
        %v2838 = vlaneseq
        %v2839 = vshrl.u32 %v2838, 7
        %v2840 = vsub.s32 %v2837, %v2839
        %v2841 = vrot.slane %v2833, %v2840
        %v2843 = vunpack.c.l.s4 1983009808
        %v2844 = vunpack.c.0.s8 %v2843
        %v2845 = vlaneseq
        %v2846 = vshrl.u32 %v2845, 7
        %v2847 = vsub.s32 %v2844, %v2846
        %v2848 = vrot.slane %v2834, %v2847
        %v2849 = vcombine.low %v2824, %v2830
        %v2850 = vcombine.high %v2824, %v2830
        %v2852 = vunpack.c.l.s4 1983009808
        %v2853 = vunpack.c.0.s8 %v2852
        %v2854 = vlaneseq
        %v2855 = vshrl.u32 %v2854, 7
        %v2856 = vsub.s32 %v2853, %v2855
        %v2857 = vrot.slane %v2849, %v2856
        %v2859 = vunpack.c.l.s4 1983009808
        %v2860 = vunpack.c.0.s8 %v2859
        %v2861 = vlaneseq
        %v2862 = vshrl.u32 %v2861, 7
        %v2863 = vsub.s32 %v2860, %v2862
        %v2864 = vrot.slane %v2850, %v2863
        %v2865 = vcombine.low %v2841, %v2857
        %v2866 = vcombine.high %v2841, %v2857
        %v2868 = vunpack.c.l.s4 1934713408
        %v2869 = vunpack.c.0.s8 %v2868
        %v2870 = vlaneseq
        %v2871 = vshrl.u32 %v2870, 7
        %v2872 = vsub.s32 %v2869, %v2871
        %v2873 = vrot.slane %v2865, %v2872
        %v2875 = vunpack.c.l.s4 1934713408
        %v2876 = vunpack.c.0.s8 %v2875
        %v2877 = vlaneseq
        %v2878 = vshrl.u32 %v2877, 7
        %v2879 = vsub.s32 %v2876, %v2878
        %v2880 = vrot.slane %v2866, %v2879
        %v2881 = vcombine.low %v2848, %v2864
        %v2882 = vcombine.high %v2848, %v2864
        %v2884 = vunpack.c.l.s4 1934713408
        %v2885 = vunpack.c.0.s8 %v2884
        %v2886 = vlaneseq
        %v2887 = vshrl.u32 %v2886, 7
        %v2888 = vsub.s32 %v2885, %v2887
        %v2889 = vrot.slane %v2881, %v2888
        %v2891 = vunpack.c.l.s4 1934713408
        %v2892 = vunpack.c.0.s8 %v2891
        %v2893 = vlaneseq
        %v2894 = vshrl.u32 %v2893, 7
        %v2895 = vsub.s32 %v2892, %v2894
        %v2896 = vrot.slane %v2882, %v2895
        %v2897 = vcombine.high %v2873, 0.0
        %v2898 = vcombine.high %v2880, 0.0
        %v2899 = vcombine.high %v2889, 0.0
        %v2900 = vcombine.high %v2896, 0.0
        %v2901 = vcombine.low %v2822, %v2828
        %v2902 = vcombine.high %v2822, %v2828
        %v2904 = vunpack.c.l.s4 1983009808
        %v2905 = vunpack.c.0.s8 %v2904
        %v2906 = vlaneseq
        %v2907 = vshrl.u32 %v2906, 7
        %v2908 = vsub.s32 %v2905, %v2907
        %v2909 = vrot.slane %v2901, %v2908
        %v2911 = vunpack.c.l.s4 1983009808
        %v2912 = vunpack.c.0.s8 %v2911
        %v2913 = vlaneseq
        %v2914 = vshrl.u32 %v2913, 7
        %v2915 = vsub.s32 %v2912, %v2914
        %v2916 = vrot.slane %v2902, %v2915
        %v2917 = vcombine.low %v2825, %v2831
        %v2918 = vcombine.high %v2825, %v2831
        %v2920 = vunpack.c.l.s4 1983009808
        %v2921 = vunpack.c.0.s8 %v2920
        %v2922 = vlaneseq
        %v2923 = vshrl.u32 %v2922, 7
        %v2924 = vsub.s32 %v2921, %v2923
        %v2925 = vrot.slane %v2917, %v2924
        %v2927 = vunpack.c.l.s4 1983009808
        %v2928 = vunpack.c.0.s8 %v2927
        %v2929 = vlaneseq
        %v2930 = vshrl.u32 %v2929, 7
        %v2931 = vsub.s32 %v2928, %v2930
        %v2932 = vrot.slane %v2918, %v2931
        %v2933 = vcombine.low %v2909, %v2925
        %v2934 = vcombine.high %v2909, %v2925
        %v2936 = vunpack.c.l.s4 1934713408
        %v2937 = vunpack.c.0.s8 %v2936
        %v2938 = vlaneseq
        %v2939 = vshrl.u32 %v2938, 7
        %v2940 = vsub.s32 %v2937, %v2939
        %v2941 = vrot.slane %v2933, %v2940
        %v2943 = vunpack.c.l.s4 1934713408
        %v2944 = vunpack.c.0.s8 %v2943
        %v2945 = vlaneseq
        %v2946 = vshrl.u32 %v2945, 7
        %v2947 = vsub.s32 %v2944, %v2946
        %v2948 = vrot.slane %v2934, %v2947
        %v2949 = vcombine.low %v2916, %v2932
        %v2950 = vcombine.high %v2916, %v2932
        %v2952 = vunpack.c.l.s4 1934713408
        %v2953 = vunpack.c.0.s8 %v2952
        %v2954 = vlaneseq
        %v2955 = vshrl.u32 %v2954, 7
        %v2956 = vsub.s32 %v2953, %v2955
        %v2957 = vrot.slane %v2949, %v2956
        %v2959 = vunpack.c.l.s4 1934713408
        %v2960 = vunpack.c.0.s8 %v2959
        %v2961 = vlaneseq
        %v2962 = vshrl.u32 %v2961, 7
        %v2963 = vsub.s32 %v2960, %v2962
        %v2964 = vrot.slane %v2950, %v2963
        %v2965 = vcombine.high %v2941, 0.0
        %v2966 = vcombine.high %v2948, 0.0
        %v2967 = vcombine.high %v2957, 0.0
        %v2968 = vcombine.high %v2964, 0.0
        %2970 = vrot.lane.b32.xlu0 %v2897, 16
        %v2971 = vpop.permute.xlu0 %2970
        %2974 = vrot.lane.b32.xlu0 %v2880, 32
        %v2975 = vpop.permute.xlu0 %2974
        %2978 = vrot.lane.b32.xlu0 %v2898, 48
        %v2979 = vpop.permute.xlu0 %2978
        %2982 = vrot.lane.b32.xlu0 %v2889, 64
        %v2983 = vpop.permute.xlu0 %2982
        %2986 = vrot.lane.b32.xlu0 %v2899, 80
        %v2987 = vpop.permute.xlu0 %2986
        %2990 = vrot.lane.b32.xlu0 %v2896, 96
        %v2991 = vpop.permute.xlu0 %2990
        %2994 = vrot.lane.b32.xlu0 %v2900, 112
        %v2995 = vpop.permute.xlu0 %2994
        %2998 = vrot.lane.b32.xlu0 %v2965, 16
        %v2999 = vpop.permute.xlu0 %2998
        %3002 = vrot.lane.b32.xlu0 %v2948, 32
        %v3003 = vpop.permute.xlu0 %3002
        %3006 = vrot.lane.b32.xlu0 %v2966, 48
        %v3007 = vpop.permute.xlu0 %3006
        %3010 = vrot.lane.b32.xlu0 %v2957, 64
        %v3011 = vpop.permute.xlu0 %3010
        %3014 = vrot.lane.b32.xlu0 %v2967, 80
        %v3015 = vpop.permute.xlu0 %3014
        %3018 = vrot.lane.b32.xlu0 %v2964, 96
        %v3019 = vpop.permute.xlu0 %3018
        %3022 = vrot.lane.b32.xlu0 %v2968, 112
        %v3023 = vpop.permute.xlu0 %3022
        %v3025 = vsel %vm577, %v2873, %v2971
        %v3026 = vsel %vm579, %v3025, %v2975
        %v3027 = vsel %vm581, %v3026, %v2979
        %v3028 = vsel %vm583, %v3027, %v2983
        %v3029 = vsel %vm585, %v3028, %v2987
        %v3030 = vsel %vm587, %v3029, %v2991
        %v3031 = vsel %vm589, %v3030, %v2995
        %v3032 = vsel %vm577, %v2941, %v2999
        %v3033 = vsel %vm579, %v3032, %v3003
        %v3034 = vsel %vm581, %v3033, %v3007
        %v3035 = vsel %vm583, %v3034, %v3011
        %v3036 = vsel %vm585, %v3035, %v3015
        %v3037 = vsel %vm587, %v3036, %v3019
        %v3038 = vsel %vm589, %v3037, %v3023
        %3047 = vrot.lane.b32.xlu0 %v2821, 127
        %v3048 = vpop.permute.xlu0 %3047
        %3049 = vrot.lane.b32.xlu0 %v2822, 127
        %v3050 = vpop.permute.xlu0 %3049
        %3051 = vrot.lane.b32.xlu0 %v2824, 127
        %v3052 = vpop.permute.xlu0 %3051
        %3053 = vrot.lane.b32.xlu0 %v2825, 127
        %v3054 = vpop.permute.xlu0 %3053
        %3055 = vrot.lane.b32.xlu0 %v2827, 127
        %v3056 = vpop.permute.xlu0 %3055
        %3057 = vrot.lane.b32.xlu0 %v2828, 127
        %v3058 = vpop.permute.xlu0 %3057
        %3059 = vrot.lane.b32.xlu0 %v2830, 127
        %v3060 = vpop.permute.xlu0 %3059
        %3061 = vrot.lane.b32.xlu0 %v2831, 127
        %v3062 = vpop.permute.xlu0 %3061
        %v3071 = vcombine.low %v3048, %v3056
        %v3072 = vcombine.high %v3048, %v3056
        %v3074 = vunpack.c.l.s4 1983009808
        %v3075 = vunpack.c.0.s8 %v3074
        %v3076 = vlaneseq
        %v3077 = vshrl.u32 %v3076, 7
        %v3078 = vsub.s32 %v3075, %v3077
        %v3079 = vrot.slane %v3071, %v3078
        %v3081 = vunpack.c.l.s4 1983009808
        %v3082 = vunpack.c.0.s8 %v3081
        %v3083 = vlaneseq
        %v3084 = vshrl.u32 %v3083, 7
        %v3085 = vsub.s32 %v3082, %v3084
        %v3086 = vrot.slane %v3072, %v3085
        %v3087 = vcombine.low %v3052, %v3060
        %v3088 = vcombine.high %v3052, %v3060
        %v3090 = vunpack.c.l.s4 1983009808
        %v3091 = vunpack.c.0.s8 %v3090
        %v3092 = vlaneseq
        %v3093 = vshrl.u32 %v3092, 7
        %v3094 = vsub.s32 %v3091, %v3093
        %v3095 = vrot.slane %v3087, %v3094
        %v3097 = vunpack.c.l.s4 1983009808
        %v3098 = vunpack.c.0.s8 %v3097
        %v3099 = vlaneseq
        %v3100 = vshrl.u32 %v3099, 7
        %v3101 = vsub.s32 %v3098, %v3100
        %v3102 = vrot.slane %v3088, %v3101
        %v3103 = vcombine.low %v3079, %v3095
        %v3104 = vcombine.high %v3079, %v3095
        %v3106 = vunpack.c.l.s4 1934713408
        %v3107 = vunpack.c.0.s8 %v3106
        %v3108 = vlaneseq
        %v3109 = vshrl.u32 %v3108, 7
        %v3110 = vsub.s32 %v3107, %v3109
        %v3111 = vrot.slane %v3103, %v3110
        %v3113 = vunpack.c.l.s4 1934713408
        %v3114 = vunpack.c.0.s8 %v3113
        %v3115 = vlaneseq
        %v3116 = vshrl.u32 %v3115, 7
        %v3117 = vsub.s32 %v3114, %v3116
        %v3118 = vrot.slane %v3104, %v3117
        %v3119 = vcombine.low %v3086, %v3102
        %v3120 = vcombine.high %v3086, %v3102
        %v3122 = vunpack.c.l.s4 1934713408
        %v3123 = vunpack.c.0.s8 %v3122
        %v3124 = vlaneseq
        %v3125 = vshrl.u32 %v3124, 7
        %v3126 = vsub.s32 %v3123, %v3125
        %v3127 = vrot.slane %v3119, %v3126
        %v3129 = vunpack.c.l.s4 1934713408
        %v3130 = vunpack.c.0.s8 %v3129
        %v3131 = vlaneseq
        %v3132 = vshrl.u32 %v3131, 7
        %v3133 = vsub.s32 %v3130, %v3132
        %v3134 = vrot.slane %v3120, %v3133
        %v3135 = vcombine.high %v3111, 0.0
        %v3136 = vcombine.high %v3118, 0.0
        %v3137 = vcombine.high %v3127, 0.0
        %v3138 = vcombine.high %v3134, 0.0
        %v3139 = vcombine.low %v3050, %v3058
        %v3140 = vcombine.high %v3050, %v3058
        %v3142 = vunpack.c.l.s4 1983009808
        %v3143 = vunpack.c.0.s8 %v3142
        %v3144 = vlaneseq
        %v3145 = vshrl.u32 %v3144, 7
        %v3146 = vsub.s32 %v3143, %v3145
        %v3147 = vrot.slane %v3139, %v3146
        %v3149 = vunpack.c.l.s4 1983009808
        %v3150 = vunpack.c.0.s8 %v3149
        %v3151 = vlaneseq
        %v3152 = vshrl.u32 %v3151, 7
        %v3153 = vsub.s32 %v3150, %v3152
        %v3154 = vrot.slane %v3140, %v3153
        %v3155 = vcombine.low %v3054, %v3062
        %v3156 = vcombine.high %v3054, %v3062
        %v3158 = vunpack.c.l.s4 1983009808
        %v3159 = vunpack.c.0.s8 %v3158
        %v3160 = vlaneseq
        %v3161 = vshrl.u32 %v3160, 7
        %v3162 = vsub.s32 %v3159, %v3161
        %v3163 = vrot.slane %v3155, %v3162
        %v3165 = vunpack.c.l.s4 1983009808
        %v3166 = vunpack.c.0.s8 %v3165
        %v3167 = vlaneseq
        %v3168 = vshrl.u32 %v3167, 7
        %v3169 = vsub.s32 %v3166, %v3168
        %v3170 = vrot.slane %v3156, %v3169
        %v3171 = vcombine.low %v3147, %v3163
        %v3172 = vcombine.high %v3147, %v3163
        %v3174 = vunpack.c.l.s4 1934713408
        %v3175 = vunpack.c.0.s8 %v3174
        %v3176 = vlaneseq
        %v3177 = vshrl.u32 %v3176, 7
        %v3178 = vsub.s32 %v3175, %v3177
        %v3179 = vrot.slane %v3171, %v3178
        %v3181 = vunpack.c.l.s4 1934713408
        %v3182 = vunpack.c.0.s8 %v3181
        %v3183 = vlaneseq
        %v3184 = vshrl.u32 %v3183, 7
        %v3185 = vsub.s32 %v3182, %v3184
        %v3186 = vrot.slane %v3172, %v3185
        %v3187 = vcombine.low %v3154, %v3170
        %v3188 = vcombine.high %v3154, %v3170
        %v3190 = vunpack.c.l.s4 1934713408
        %v3191 = vunpack.c.0.s8 %v3190
        %v3192 = vlaneseq
        %v3193 = vshrl.u32 %v3192, 7
        %v3194 = vsub.s32 %v3191, %v3193
        %v3195 = vrot.slane %v3187, %v3194
        %v3197 = vunpack.c.l.s4 1934713408
        %v3198 = vunpack.c.0.s8 %v3197
        %v3199 = vlaneseq
        %v3200 = vshrl.u32 %v3199, 7
        %v3201 = vsub.s32 %v3198, %v3200
        %v3202 = vrot.slane %v3188, %v3201
        %v3203 = vcombine.high %v3179, 0.0
        %v3204 = vcombine.high %v3186, 0.0
        %v3205 = vcombine.high %v3195, 0.0
        %v3206 = vcombine.high %v3202, 0.0
        %3208 = vrot.lane.b32.xlu0 %v3135, 16
        %v3209 = vpop.permute.xlu0 %3208
        %3212 = vrot.lane.b32.xlu0 %v3118, 32
        %v3213 = vpop.permute.xlu0 %3212
        %3216 = vrot.lane.b32.xlu0 %v3136, 48
        %v3217 = vpop.permute.xlu0 %3216
        %3220 = vrot.lane.b32.xlu0 %v3127, 64
        %v3221 = vpop.permute.xlu0 %3220
        %3224 = vrot.lane.b32.xlu0 %v3137, 80
        %v3225 = vpop.permute.xlu0 %3224
        %3228 = vrot.lane.b32.xlu0 %v3134, 96
        %v3229 = vpop.permute.xlu0 %3228
        %3232 = vrot.lane.b32.xlu0 %v3138, 112
        %v3233 = vpop.permute.xlu0 %3232
        %3236 = vrot.lane.b32.xlu0 %v3203, 16
        %v3237 = vpop.permute.xlu0 %3236
        %3240 = vrot.lane.b32.xlu0 %v3186, 32
        %v3241 = vpop.permute.xlu0 %3240
        %3244 = vrot.lane.b32.xlu0 %v3204, 48
        %v3245 = vpop.permute.xlu0 %3244
        %3248 = vrot.lane.b32.xlu0 %v3195, 64
        %v3249 = vpop.permute.xlu0 %3248
        %3252 = vrot.lane.b32.xlu0 %v3205, 80
        %v3253 = vpop.permute.xlu0 %3252
        %3256 = vrot.lane.b32.xlu0 %v3202, 96
        %v3257 = vpop.permute.xlu0 %3256
        %3260 = vrot.lane.b32.xlu0 %v3206, 112
        %v3261 = vpop.permute.xlu0 %3260
        %v3263 = vsel %vm577, %v3111, %v3209
        %v3264 = vsel %vm579, %v3263, %v3213
        %v3265 = vsel %vm581, %v3264, %v3217
        %v3266 = vsel %vm583, %v3265, %v3221
        %v3267 = vsel %vm585, %v3266, %v3225
        %v3268 = vsel %vm587, %v3267, %v3229
        %v3269 = vsel %vm589, %v3268, %v3233
        %v3270 = vsel %vm577, %v3179, %v3237
        %v3271 = vsel %vm579, %v3270, %v3241
        %v3272 = vsel %vm581, %v3271, %v3245
        %v3273 = vsel %vm583, %v3272, %v3249
        %v3274 = vsel %vm585, %v3273, %v3253
        %v3275 = vsel %vm587, %v3274, %v3257
        %v3276 = vsel %vm589, %v3275, %v3261
        %3277 = vrot.lane.b32.xlu0 %v2821, 126
        %v3278 = vpop.permute.xlu0 %3277
        %3279 = vrot.lane.b32.xlu0 %v2822, 126
        %v3280 = vpop.permute.xlu0 %3279
        %3281 = vrot.lane.b32.xlu0 %v2824, 126
        %v3282 = vpop.permute.xlu0 %3281
        %3283 = vrot.lane.b32.xlu0 %v2825, 126
        %v3284 = vpop.permute.xlu0 %3283
        %3285 = vrot.lane.b32.xlu0 %v2827, 126
        %v3286 = vpop.permute.xlu0 %3285
        %3287 = vrot.lane.b32.xlu0 %v2828, 126
        %v3288 = vpop.permute.xlu0 %3287
        %3289 = vrot.lane.b32.xlu0 %v2830, 126
        %v3290 = vpop.permute.xlu0 %3289
        %3291 = vrot.lane.b32.xlu0 %v2831, 126
        %v3292 = vpop.permute.xlu0 %3291
        %v3301 = vcombine.low %v3278, %v3286
        %v3302 = vcombine.high %v3278, %v3286
        %v3304 = vunpack.c.l.s4 1983009808
        %v3305 = vunpack.c.0.s8 %v3304
        %v3306 = vlaneseq
        %v3307 = vshrl.u32 %v3306, 7
        %v3308 = vsub.s32 %v3305, %v3307
        %v3309 = vrot.slane %v3301, %v3308
        %v3311 = vunpack.c.l.s4 1983009808
        %v3312 = vunpack.c.0.s8 %v3311
        %v3313 = vlaneseq
        %v3314 = vshrl.u32 %v3313, 7
        %v3315 = vsub.s32 %v3312, %v3314
        %v3316 = vrot.slane %v3302, %v3315
        %v3317 = vcombine.low %v3282, %v3290
        %v3318 = vcombine.high %v3282, %v3290
        %v3320 = vunpack.c.l.s4 1983009808
        %v3321 = vunpack.c.0.s8 %v3320
        %v3322 = vlaneseq
        %v3323 = vshrl.u32 %v3322, 7
        %v3324 = vsub.s32 %v3321, %v3323
        %v3325 = vrot.slane %v3317, %v3324
        %v3327 = vunpack.c.l.s4 1983009808
        %v3328 = vunpack.c.0.s8 %v3327
        %v3329 = vlaneseq
        %v3330 = vshrl.u32 %v3329, 7
        %v3331 = vsub.s32 %v3328, %v3330
        %v3332 = vrot.slane %v3318, %v3331
        %v3333 = vcombine.low %v3309, %v3325
        %v3334 = vcombine.high %v3309, %v3325
        %v3336 = vunpack.c.l.s4 1934713408
        %v3337 = vunpack.c.0.s8 %v3336
        %v3338 = vlaneseq
        %v3339 = vshrl.u32 %v3338, 7
        %v3340 = vsub.s32 %v3337, %v3339
        %v3341 = vrot.slane %v3333, %v3340
        %v3343 = vunpack.c.l.s4 1934713408
        %v3344 = vunpack.c.0.s8 %v3343
        %v3345 = vlaneseq
        %v3346 = vshrl.u32 %v3345, 7
        %v3347 = vsub.s32 %v3344, %v3346
        %v3348 = vrot.slane %v3334, %v3347
        %v3349 = vcombine.low %v3316, %v3332
        %v3350 = vcombine.high %v3316, %v3332
        %v3352 = vunpack.c.l.s4 1934713408
        %v3353 = vunpack.c.0.s8 %v3352
        %v3354 = vlaneseq
        %v3355 = vshrl.u32 %v3354, 7
        %v3356 = vsub.s32 %v3353, %v3355
        %v3357 = vrot.slane %v3349, %v3356
        %v3359 = vunpack.c.l.s4 1934713408
        %v3360 = vunpack.c.0.s8 %v3359
        %v3361 = vlaneseq
        %v3362 = vshrl.u32 %v3361, 7
        %v3363 = vsub.s32 %v3360, %v3362
        %v3364 = vrot.slane %v3350, %v3363
        %v3365 = vcombine.high %v3341, 0.0
        %v3366 = vcombine.high %v3348, 0.0
        %v3367 = vcombine.high %v3357, 0.0
        %v3368 = vcombine.high %v3364, 0.0
        %v3369 = vcombine.low %v3280, %v3288
        %v3370 = vcombine.high %v3280, %v3288
        %v3372 = vunpack.c.l.s4 1983009808
        %v3373 = vunpack.c.0.s8 %v3372
        %v3374 = vlaneseq
        %v3375 = vshrl.u32 %v3374, 7
        %v3376 = vsub.s32 %v3373, %v3375
        %v3377 = vrot.slane %v3369, %v3376
        %v3379 = vunpack.c.l.s4 1983009808
        %v3380 = vunpack.c.0.s8 %v3379
        %v3381 = vlaneseq
        %v3382 = vshrl.u32 %v3381, 7
        %v3383 = vsub.s32 %v3380, %v3382
        %v3384 = vrot.slane %v3370, %v3383
        %v3385 = vcombine.low %v3284, %v3292
        %v3386 = vcombine.high %v3284, %v3292
        %v3388 = vunpack.c.l.s4 1983009808
        %v3389 = vunpack.c.0.s8 %v3388
        %v3390 = vlaneseq
        %v3391 = vshrl.u32 %v3390, 7
        %v3392 = vsub.s32 %v3389, %v3391
        %v3393 = vrot.slane %v3385, %v3392
        %v3395 = vunpack.c.l.s4 1983009808
        %v3396 = vunpack.c.0.s8 %v3395
        %v3397 = vlaneseq
        %v3398 = vshrl.u32 %v3397, 7
        %v3399 = vsub.s32 %v3396, %v3398
        %v3400 = vrot.slane %v3386, %v3399
        %v3401 = vcombine.low %v3377, %v3393
        %v3402 = vcombine.high %v3377, %v3393
        %v3404 = vunpack.c.l.s4 1934713408
        %v3405 = vunpack.c.0.s8 %v3404
        %v3406 = vlaneseq
        %v3407 = vshrl.u32 %v3406, 7
        %v3408 = vsub.s32 %v3405, %v3407
        %v3409 = vrot.slane %v3401, %v3408
        %v3411 = vunpack.c.l.s4 1934713408
        %v3412 = vunpack.c.0.s8 %v3411
        %v3413 = vlaneseq
        %v3414 = vshrl.u32 %v3413, 7
        %v3415 = vsub.s32 %v3412, %v3414
        %v3416 = vrot.slane %v3402, %v3415
        %v3417 = vcombine.low %v3384, %v3400
        %v3418 = vcombine.high %v3384, %v3400
        %v3420 = vunpack.c.l.s4 1934713408
        %v3421 = vunpack.c.0.s8 %v3420
        %v3422 = vlaneseq
        %v3423 = vshrl.u32 %v3422, 7
        %v3424 = vsub.s32 %v3421, %v3423
        %v3425 = vrot.slane %v3417, %v3424
        %v3427 = vunpack.c.l.s4 1934713408
        %v3428 = vunpack.c.0.s8 %v3427
        %v3429 = vlaneseq
        %v3430 = vshrl.u32 %v3429, 7
        %v3431 = vsub.s32 %v3428, %v3430
        %v3432 = vrot.slane %v3418, %v3431
        %v3433 = vcombine.high %v3409, 0.0
        %v3434 = vcombine.high %v3416, 0.0
        %v3435 = vcombine.high %v3425, 0.0
        %v3436 = vcombine.high %v3432, 0.0
        %3438 = vrot.lane.b32.xlu0 %v3365, 16
        %v3439 = vpop.permute.xlu0 %3438
        %3442 = vrot.lane.b32.xlu0 %v3348, 32
        %v3443 = vpop.permute.xlu0 %3442
        %3446 = vrot.lane.b32.xlu0 %v3366, 48
        %v3447 = vpop.permute.xlu0 %3446
        %3450 = vrot.lane.b32.xlu0 %v3357, 64
        %v3451 = vpop.permute.xlu0 %3450
        %3454 = vrot.lane.b32.xlu0 %v3367, 80
        %v3455 = vpop.permute.xlu0 %3454
        %3458 = vrot.lane.b32.xlu0 %v3364, 96
        %v3459 = vpop.permute.xlu0 %3458
        %3462 = vrot.lane.b32.xlu0 %v3368, 112
        %v3463 = vpop.permute.xlu0 %3462
        %3466 = vrot.lane.b32.xlu0 %v3433, 16
        %v3467 = vpop.permute.xlu0 %3466
        %3470 = vrot.lane.b32.xlu0 %v3416, 32
        %v3471 = vpop.permute.xlu0 %3470
        %3474 = vrot.lane.b32.xlu0 %v3434, 48
        %v3475 = vpop.permute.xlu0 %3474
        %3478 = vrot.lane.b32.xlu0 %v3425, 64
        %v3479 = vpop.permute.xlu0 %3478
        %3482 = vrot.lane.b32.xlu0 %v3435, 80
        %v3483 = vpop.permute.xlu0 %3482
        %3486 = vrot.lane.b32.xlu0 %v3432, 96
        %v3487 = vpop.permute.xlu0 %3486
        %3490 = vrot.lane.b32.xlu0 %v3436, 112
        %v3491 = vpop.permute.xlu0 %3490
        %v3493 = vsel %vm577, %v3341, %v3439
        %v3494 = vsel %vm579, %v3493, %v3443
        %v3495 = vsel %vm581, %v3494, %v3447
        %v3496 = vsel %vm583, %v3495, %v3451
        %v3497 = vsel %vm585, %v3496, %v3455
        %v3498 = vsel %vm587, %v3497, %v3459
        %v3499 = vsel %vm589, %v3498, %v3463
        %v3500 = vsel %vm577, %v3409, %v3467
        %v3501 = vsel %vm579, %v3500, %v3471
        %v3502 = vsel %vm581, %v3501, %v3475
        %v3503 = vsel %vm583, %v3502, %v3479
        %v3504 = vsel %vm585, %v3503, %v3483
        %v3505 = vsel %vm587, %v3504, %v3487
        %v3506 = vsel %vm589, %v3505, %v3491
        %v3511 = vrot.slane %v2821, 1
        %v3512 = vrot.slane %v2822, 1
        %v3513 = vsel %vm1070, %v3511, %v3512
        %v3514 = vrot.slane %v2823, 1
        %v3515 = vsel %vm1070, %v3512, %v3514
        %v3516 = vrot.slane %v2824, 1
        %v3517 = vrot.slane %v2825, 1
        %v3518 = vsel %vm1070, %v3516, %v3517
        %v3519 = vrot.slane %v2826, 1
        %v3520 = vsel %vm1070, %v3517, %v3519
        %v3521 = vrot.slane %v2827, 1
        %v3522 = vrot.slane %v2828, 1
        %v3523 = vsel %vm1070, %v3521, %v3522
        %v3524 = vrot.slane %v2829, 1
        %v3525 = vsel %vm1070, %v3522, %v3524
        %v3526 = vrot.slane %v2830, 1
        %v3527 = vrot.slane %v2831, 1
        %v3528 = vsel %vm1070, %v3526, %v3527
        %v3529 = vrot.slane %v2832, 1
        %v3530 = vsel %vm1070, %v3527, %v3529
        %v3539 = vcombine.low %v3513, %v3523
        %v3540 = vcombine.high %v3513, %v3523
        %v3542 = vunpack.c.l.s4 1983009808
        %v3543 = vunpack.c.0.s8 %v3542
        %v3544 = vlaneseq
        %v3545 = vshrl.u32 %v3544, 7
        %v3546 = vsub.s32 %v3543, %v3545
        %v3547 = vrot.slane %v3539, %v3546
        %v3549 = vunpack.c.l.s4 1983009808
        %v3550 = vunpack.c.0.s8 %v3549
        %v3551 = vlaneseq
        %v3552 = vshrl.u32 %v3551, 7
        %v3553 = vsub.s32 %v3550, %v3552
        %v3554 = vrot.slane %v3540, %v3553
        %v3555 = vcombine.low %v3518, %v3528
        %v3556 = vcombine.high %v3518, %v3528
        %v3558 = vunpack.c.l.s4 1983009808
        %v3559 = vunpack.c.0.s8 %v3558
        %v3560 = vlaneseq
        %v3561 = vshrl.u32 %v3560, 7
        %v3562 = vsub.s32 %v3559, %v3561
        %v3563 = vrot.slane %v3555, %v3562
        %v3565 = vunpack.c.l.s4 1983009808
        %v3566 = vunpack.c.0.s8 %v3565
        %v3567 = vlaneseq
        %v3568 = vshrl.u32 %v3567, 7
        %v3569 = vsub.s32 %v3566, %v3568
        %v3570 = vrot.slane %v3556, %v3569
        %v3571 = vcombine.low %v3547, %v3563
        %v3572 = vcombine.high %v3547, %v3563
        %v3574 = vunpack.c.l.s4 1934713408
        %v3575 = vunpack.c.0.s8 %v3574
        %v3576 = vlaneseq
        %v3577 = vshrl.u32 %v3576, 7
        %v3578 = vsub.s32 %v3575, %v3577
        %v3579 = vrot.slane %v3571, %v3578
        %v3581 = vunpack.c.l.s4 1934713408
        %v3582 = vunpack.c.0.s8 %v3581
        %v3583 = vlaneseq
        %v3584 = vshrl.u32 %v3583, 7
        %v3585 = vsub.s32 %v3582, %v3584
        %v3586 = vrot.slane %v3572, %v3585
        %v3587 = vcombine.low %v3554, %v3570
        %v3588 = vcombine.high %v3554, %v3570
        %v3590 = vunpack.c.l.s4 1934713408
        %v3591 = vunpack.c.0.s8 %v3590
        %v3592 = vlaneseq
        %v3593 = vshrl.u32 %v3592, 7
        %v3594 = vsub.s32 %v3591, %v3593
        %v3595 = vrot.slane %v3587, %v3594
        %v3597 = vunpack.c.l.s4 1934713408
        %v3598 = vunpack.c.0.s8 %v3597
        %v3599 = vlaneseq
        %v3600 = vshrl.u32 %v3599, 7
        %v3601 = vsub.s32 %v3598, %v3600
        %v3602 = vrot.slane %v3588, %v3601
        %v3603 = vcombine.high %v3579, 0.0
        %v3604 = vcombine.high %v3586, 0.0
        %v3605 = vcombine.high %v3595, 0.0
        %v3606 = vcombine.high %v3602, 0.0
        %v3607 = vcombine.low %v3515, %v3525
        %v3608 = vcombine.high %v3515, %v3525
        %v3610 = vunpack.c.l.s4 1983009808
        %v3611 = vunpack.c.0.s8 %v3610
        %v3612 = vlaneseq
        %v3613 = vshrl.u32 %v3612, 7
        %v3614 = vsub.s32 %v3611, %v3613
        %v3615 = vrot.slane %v3607, %v3614
        %v3617 = vunpack.c.l.s4 1983009808
        %v3618 = vunpack.c.0.s8 %v3617
        %v3619 = vlaneseq
        %v3620 = vshrl.u32 %v3619, 7
        %v3621 = vsub.s32 %v3618, %v3620
        %v3622 = vrot.slane %v3608, %v3621
        %v3623 = vcombine.low %v3520, %v3530
        %v3624 = vcombine.high %v3520, %v3530
        %v3626 = vunpack.c.l.s4 1983009808
        %v3627 = vunpack.c.0.s8 %v3626
        %v3628 = vlaneseq
        %v3629 = vshrl.u32 %v3628, 7
        %v3630 = vsub.s32 %v3627, %v3629
        %v3631 = vrot.slane %v3623, %v3630
        %v3633 = vunpack.c.l.s4 1983009808
        %v3634 = vunpack.c.0.s8 %v3633
        %v3635 = vlaneseq
        %v3636 = vshrl.u32 %v3635, 7
        %v3637 = vsub.s32 %v3634, %v3636
        %v3638 = vrot.slane %v3624, %v3637
        %v3639 = vcombine.low %v3615, %v3631
        %v3640 = vcombine.high %v3615, %v3631
        %v3642 = vunpack.c.l.s4 1934713408
        %v3643 = vunpack.c.0.s8 %v3642
        %v3644 = vlaneseq
        %v3645 = vshrl.u32 %v3644, 7
        %v3646 = vsub.s32 %v3643, %v3645
        %v3647 = vrot.slane %v3639, %v3646
        %v3649 = vunpack.c.l.s4 1934713408
        %v3650 = vunpack.c.0.s8 %v3649
        %v3651 = vlaneseq
        %v3652 = vshrl.u32 %v3651, 7
        %v3653 = vsub.s32 %v3650, %v3652
        %v3654 = vrot.slane %v3640, %v3653
        %v3655 = vcombine.low %v3622, %v3638
        %v3656 = vcombine.high %v3622, %v3638
        %v3658 = vunpack.c.l.s4 1934713408
        %v3659 = vunpack.c.0.s8 %v3658
        %v3660 = vlaneseq
        %v3661 = vshrl.u32 %v3660, 7
        %v3662 = vsub.s32 %v3659, %v3661
        %v3663 = vrot.slane %v3655, %v3662
        %v3665 = vunpack.c.l.s4 1934713408
        %v3666 = vunpack.c.0.s8 %v3665
        %v3667 = vlaneseq
        %v3668 = vshrl.u32 %v3667, 7
        %v3669 = vsub.s32 %v3666, %v3668
        %v3670 = vrot.slane %v3656, %v3669
        %v3671 = vcombine.high %v3647, 0.0
        %v3672 = vcombine.high %v3654, 0.0
        %v3673 = vcombine.high %v3663, 0.0
        %v3674 = vcombine.high %v3670, 0.0
        %3676 = vrot.lane.b32.xlu0 %v3603, 16
        %v3677 = vpop.permute.xlu0 %3676
        %3680 = vrot.lane.b32.xlu0 %v3586, 32
        %v3681 = vpop.permute.xlu0 %3680
        %3684 = vrot.lane.b32.xlu0 %v3604, 48
        %v3685 = vpop.permute.xlu0 %3684
        %3688 = vrot.lane.b32.xlu0 %v3595, 64
        %v3689 = vpop.permute.xlu0 %3688
        %3692 = vrot.lane.b32.xlu0 %v3605, 80
        %v3693 = vpop.permute.xlu0 %3692
        %3696 = vrot.lane.b32.xlu0 %v3602, 96
        %v3697 = vpop.permute.xlu0 %3696
        %3700 = vrot.lane.b32.xlu0 %v3606, 112
        %v3701 = vpop.permute.xlu0 %3700
        %3704 = vrot.lane.b32.xlu0 %v3671, 16
        %v3705 = vpop.permute.xlu0 %3704
        %3708 = vrot.lane.b32.xlu0 %v3654, 32
        %v3709 = vpop.permute.xlu0 %3708
        %3712 = vrot.lane.b32.xlu0 %v3672, 48
        %v3713 = vpop.permute.xlu0 %3712
        %3716 = vrot.lane.b32.xlu0 %v3663, 64
        %v3717 = vpop.permute.xlu0 %3716
        %3720 = vrot.lane.b32.xlu0 %v3673, 80
        %v3721 = vpop.permute.xlu0 %3720
        %3724 = vrot.lane.b32.xlu0 %v3670, 96
        %v3725 = vpop.permute.xlu0 %3724
        %3728 = vrot.lane.b32.xlu0 %v3674, 112
        %v3729 = vpop.permute.xlu0 %3728
        %v3731 = vsel %vm577, %v3579, %v3677
        %v3732 = vsel %vm579, %v3731, %v3681
        %v3733 = vsel %vm581, %v3732, %v3685
        %v3734 = vsel %vm583, %v3733, %v3689
        %v3735 = vsel %vm585, %v3734, %v3693
        %v3736 = vsel %vm587, %v3735, %v3697
        %v3737 = vsel %vm589, %v3736, %v3701
        %v3738 = vsel %vm577, %v3647, %v3705
        %v3739 = vsel %vm579, %v3738, %v3709
        %v3740 = vsel %vm581, %v3739, %v3713
        %v3741 = vsel %vm583, %v3740, %v3717
        %v3742 = vsel %vm585, %v3741, %v3721
        %v3743 = vsel %vm587, %v3742, %v3725
        %v3744 = vsel %vm589, %v3743, %v3729
        %3745 = vrot.lane.b32.xlu0 %v3513, 127
        %v3746 = vpop.permute.xlu0 %3745
        %3747 = vrot.lane.b32.xlu0 %v3515, 127
        %v3748 = vpop.permute.xlu0 %3747
        %3749 = vrot.lane.b32.xlu0 %v3518, 127
        %v3750 = vpop.permute.xlu0 %3749
        %3751 = vrot.lane.b32.xlu0 %v3520, 127
        %v3752 = vpop.permute.xlu0 %3751
        %3753 = vrot.lane.b32.xlu0 %v3523, 127
        %v3754 = vpop.permute.xlu0 %3753
        %3755 = vrot.lane.b32.xlu0 %v3525, 127
        %v3756 = vpop.permute.xlu0 %3755
        %3757 = vrot.lane.b32.xlu0 %v3528, 127
        %v3758 = vpop.permute.xlu0 %3757
        %3759 = vrot.lane.b32.xlu0 %v3530, 127
        %v3760 = vpop.permute.xlu0 %3759
        %v3769 = vcombine.low %v3746, %v3754
        %v3770 = vcombine.high %v3746, %v3754
        %v3772 = vunpack.c.l.s4 1983009808
        %v3773 = vunpack.c.0.s8 %v3772
        %v3774 = vlaneseq
        %v3775 = vshrl.u32 %v3774, 7
        %v3776 = vsub.s32 %v3773, %v3775
        %v3777 = vrot.slane %v3769, %v3776
        %v3779 = vunpack.c.l.s4 1983009808
        %v3780 = vunpack.c.0.s8 %v3779
        %v3781 = vlaneseq
        %v3782 = vshrl.u32 %v3781, 7
        %v3783 = vsub.s32 %v3780, %v3782
        %v3784 = vrot.slane %v3770, %v3783
        %v3785 = vcombine.low %v3750, %v3758
        %v3786 = vcombine.high %v3750, %v3758
        %v3788 = vunpack.c.l.s4 1983009808
        %v3789 = vunpack.c.0.s8 %v3788
        %v3790 = vlaneseq
        %v3791 = vshrl.u32 %v3790, 7
        %v3792 = vsub.s32 %v3789, %v3791
        %v3793 = vrot.slane %v3785, %v3792
        %v3795 = vunpack.c.l.s4 1983009808
        %v3796 = vunpack.c.0.s8 %v3795
        %v3797 = vlaneseq
        %v3798 = vshrl.u32 %v3797, 7
        %v3799 = vsub.s32 %v3796, %v3798
        %v3800 = vrot.slane %v3786, %v3799
        %v3801 = vcombine.low %v3777, %v3793
        %v3802 = vcombine.high %v3777, %v3793
        %v3804 = vunpack.c.l.s4 1934713408
        %v3805 = vunpack.c.0.s8 %v3804
        %v3806 = vlaneseq
        %v3807 = vshrl.u32 %v3806, 7
        %v3808 = vsub.s32 %v3805, %v3807
        %v3809 = vrot.slane %v3801, %v3808
        %v3811 = vunpack.c.l.s4 1934713408
        %v3812 = vunpack.c.0.s8 %v3811
        %v3813 = vlaneseq
        %v3814 = vshrl.u32 %v3813, 7
        %v3815 = vsub.s32 %v3812, %v3814
        %v3816 = vrot.slane %v3802, %v3815
        %v3817 = vcombine.low %v3784, %v3800
        %v3818 = vcombine.high %v3784, %v3800
        %v3820 = vunpack.c.l.s4 1934713408
        %v3821 = vunpack.c.0.s8 %v3820
        %v3822 = vlaneseq
        %v3823 = vshrl.u32 %v3822, 7
        %v3824 = vsub.s32 %v3821, %v3823
        %v3825 = vrot.slane %v3817, %v3824
        %v3827 = vunpack.c.l.s4 1934713408
        %v3828 = vunpack.c.0.s8 %v3827
        %v3829 = vlaneseq
        %v3830 = vshrl.u32 %v3829, 7
        %v3831 = vsub.s32 %v3828, %v3830
        %v3832 = vrot.slane %v3818, %v3831
        %v3833 = vcombine.high %v3809, 0.0
        %v3834 = vcombine.high %v3816, 0.0
        %v3835 = vcombine.high %v3825, 0.0
        %v3836 = vcombine.high %v3832, 0.0
        %v3837 = vcombine.low %v3748, %v3756
        %v3838 = vcombine.high %v3748, %v3756
        %v3840 = vunpack.c.l.s4 1983009808
        %v3841 = vunpack.c.0.s8 %v3840
        %v3842 = vlaneseq
        %v3843 = vshrl.u32 %v3842, 7
        %v3844 = vsub.s32 %v3841, %v3843
        %v3845 = vrot.slane %v3837, %v3844
        %v3847 = vunpack.c.l.s4 1983009808
        %v3848 = vunpack.c.0.s8 %v3847
        %v3849 = vlaneseq
        %v3850 = vshrl.u32 %v3849, 7
        %v3851 = vsub.s32 %v3848, %v3850
        %v3852 = vrot.slane %v3838, %v3851
        %v3853 = vcombine.low %v3752, %v3760
        %v3854 = vcombine.high %v3752, %v3760
        %v3856 = vunpack.c.l.s4 1983009808
        %v3857 = vunpack.c.0.s8 %v3856
        %v3858 = vlaneseq
        %v3859 = vshrl.u32 %v3858, 7
        %v3860 = vsub.s32 %v3857, %v3859
        %v3861 = vrot.slane %v3853, %v3860
        %v3863 = vunpack.c.l.s4 1983009808
        %v3864 = vunpack.c.0.s8 %v3863
        %v3865 = vlaneseq
        %v3866 = vshrl.u32 %v3865, 7
        %v3867 = vsub.s32 %v3864, %v3866
        %v3868 = vrot.slane %v3854, %v3867
        %v3869 = vcombine.low %v3845, %v3861
        %v3870 = vcombine.high %v3845, %v3861
        %v3872 = vunpack.c.l.s4 1934713408
        %v3873 = vunpack.c.0.s8 %v3872
        %v3874 = vlaneseq
        %v3875 = vshrl.u32 %v3874, 7
        %v3876 = vsub.s32 %v3873, %v3875
        %v3877 = vrot.slane %v3869, %v3876
        %v3879 = vunpack.c.l.s4 1934713408
        %v3880 = vunpack.c.0.s8 %v3879
        %v3881 = vlaneseq
        %v3882 = vshrl.u32 %v3881, 7
        %v3883 = vsub.s32 %v3880, %v3882
        %v3884 = vrot.slane %v3870, %v3883
        %v3885 = vcombine.low %v3852, %v3868
        %v3886 = vcombine.high %v3852, %v3868
        %v3888 = vunpack.c.l.s4 1934713408
        %v3889 = vunpack.c.0.s8 %v3888
        %v3890 = vlaneseq
        %v3891 = vshrl.u32 %v3890, 7
        %v3892 = vsub.s32 %v3889, %v3891
        %v3893 = vrot.slane %v3885, %v3892
        %v3895 = vunpack.c.l.s4 1934713408
        %v3896 = vunpack.c.0.s8 %v3895
        %v3897 = vlaneseq
        %v3898 = vshrl.u32 %v3897, 7
        %v3899 = vsub.s32 %v3896, %v3898
        %v3900 = vrot.slane %v3886, %v3899
        %v3901 = vcombine.high %v3877, 0.0
        %v3902 = vcombine.high %v3884, 0.0
        %v3903 = vcombine.high %v3893, 0.0
        %v3904 = vcombine.high %v3900, 0.0
        %3906 = vrot.lane.b32.xlu0 %v3833, 16
        %v3907 = vpop.permute.xlu0 %3906
        %3910 = vrot.lane.b32.xlu0 %v3816, 32
        %v3911 = vpop.permute.xlu0 %3910
        %3914 = vrot.lane.b32.xlu0 %v3834, 48
        %v3915 = vpop.permute.xlu0 %3914
        %3918 = vrot.lane.b32.xlu0 %v3825, 64
        %v3919 = vpop.permute.xlu0 %3918
        %3922 = vrot.lane.b32.xlu0 %v3835, 80
        %v3923 = vpop.permute.xlu0 %3922
        %3926 = vrot.lane.b32.xlu0 %v3832, 96
        %v3927 = vpop.permute.xlu0 %3926
        %3930 = vrot.lane.b32.xlu0 %v3836, 112
        %v3931 = vpop.permute.xlu0 %3930
        %3934 = vrot.lane.b32.xlu0 %v3901, 16
        %v3935 = vpop.permute.xlu0 %3934
        %3938 = vrot.lane.b32.xlu0 %v3884, 32
        %v3939 = vpop.permute.xlu0 %3938
        %3942 = vrot.lane.b32.xlu0 %v3902, 48
        %v3943 = vpop.permute.xlu0 %3942
        %3946 = vrot.lane.b32.xlu0 %v3893, 64
        %v3947 = vpop.permute.xlu0 %3946
        %3950 = vrot.lane.b32.xlu0 %v3903, 80
        %v3951 = vpop.permute.xlu0 %3950
        %3954 = vrot.lane.b32.xlu0 %v3900, 96
        %v3955 = vpop.permute.xlu0 %3954
        %3958 = vrot.lane.b32.xlu0 %v3904, 112
        %v3959 = vpop.permute.xlu0 %3958
        %v3961 = vsel %vm577, %v3809, %v3907
        %v3962 = vsel %vm579, %v3961, %v3911
        %v3963 = vsel %vm581, %v3962, %v3915
        %v3964 = vsel %vm583, %v3963, %v3919
        %v3965 = vsel %vm585, %v3964, %v3923
        %v3966 = vsel %vm587, %v3965, %v3927
        %v3967 = vsel %vm589, %v3966, %v3931
        %v3968 = vsel %vm577, %v3877, %v3935
        %v3969 = vsel %vm579, %v3968, %v3939
        %v3970 = vsel %vm581, %v3969, %v3943
        %v3971 = vsel %vm583, %v3970, %v3947
        %v3972 = vsel %vm585, %v3971, %v3951
        %v3973 = vsel %vm587, %v3972, %v3955
        %v3974 = vsel %vm589, %v3973, %v3959
        %3975 = vrot.lane.b32.xlu0 %v3513, 126
        %v3976 = vpop.permute.xlu0 %3975
        %3977 = vrot.lane.b32.xlu0 %v3515, 126
        %v3978 = vpop.permute.xlu0 %3977
        %3979 = vrot.lane.b32.xlu0 %v3518, 126
        %v3980 = vpop.permute.xlu0 %3979
        %3981 = vrot.lane.b32.xlu0 %v3520, 126
        %v3982 = vpop.permute.xlu0 %3981
        %3983 = vrot.lane.b32.xlu0 %v3523, 126
        %v3984 = vpop.permute.xlu0 %3983
        %3985 = vrot.lane.b32.xlu0 %v3525, 126
        %v3986 = vpop.permute.xlu0 %3985
        %3987 = vrot.lane.b32.xlu0 %v3528, 126
        %v3988 = vpop.permute.xlu0 %3987
        %3989 = vrot.lane.b32.xlu0 %v3530, 126
        %v3990 = vpop.permute.xlu0 %3989
        %v3999 = vcombine.low %v3976, %v3984
        %v4000 = vcombine.high %v3976, %v3984
        %v4002 = vunpack.c.l.s4 1983009808
        %v4003 = vunpack.c.0.s8 %v4002
        %v4004 = vlaneseq
        %v4005 = vshrl.u32 %v4004, 7
        %v4006 = vsub.s32 %v4003, %v4005
        %v4007 = vrot.slane %v3999, %v4006
        %v4009 = vunpack.c.l.s4 1983009808
        %v4010 = vunpack.c.0.s8 %v4009
        %v4011 = vlaneseq
        %v4012 = vshrl.u32 %v4011, 7
        %v4013 = vsub.s32 %v4010, %v4012
        %v4014 = vrot.slane %v4000, %v4013
        %v4015 = vcombine.low %v3980, %v3988
        %v4016 = vcombine.high %v3980, %v3988
        %v4018 = vunpack.c.l.s4 1983009808
        %v4019 = vunpack.c.0.s8 %v4018
        %v4020 = vlaneseq
        %v4021 = vshrl.u32 %v4020, 7
        %v4022 = vsub.s32 %v4019, %v4021
        %v4023 = vrot.slane %v4015, %v4022
        %v4025 = vunpack.c.l.s4 1983009808
        %v4026 = vunpack.c.0.s8 %v4025
        %v4027 = vlaneseq
        %v4028 = vshrl.u32 %v4027, 7
        %v4029 = vsub.s32 %v4026, %v4028
        %v4030 = vrot.slane %v4016, %v4029
        %v4031 = vcombine.low %v4007, %v4023
        %v4032 = vcombine.high %v4007, %v4023
        %v4034 = vunpack.c.l.s4 1934713408
        %v4035 = vunpack.c.0.s8 %v4034
        %v4036 = vlaneseq
        %v4037 = vshrl.u32 %v4036, 7
        %v4038 = vsub.s32 %v4035, %v4037
        %v4039 = vrot.slane %v4031, %v4038
        %v4041 = vunpack.c.l.s4 1934713408
        %v4042 = vunpack.c.0.s8 %v4041
        %v4043 = vlaneseq
        %v4044 = vshrl.u32 %v4043, 7
        %v4045 = vsub.s32 %v4042, %v4044
        %v4046 = vrot.slane %v4032, %v4045
        %v4047 = vcombine.low %v4014, %v4030
        %v4048 = vcombine.high %v4014, %v4030
        %v4050 = vunpack.c.l.s4 1934713408
        %v4051 = vunpack.c.0.s8 %v4050
        %v4052 = vlaneseq
        %v4053 = vshrl.u32 %v4052, 7
        %v4054 = vsub.s32 %v4051, %v4053
        %v4055 = vrot.slane %v4047, %v4054
        %v4057 = vunpack.c.l.s4 1934713408
        %v4058 = vunpack.c.0.s8 %v4057
        %v4059 = vlaneseq
        %v4060 = vshrl.u32 %v4059, 7
        %v4061 = vsub.s32 %v4058, %v4060
        %v4062 = vrot.slane %v4048, %v4061
        %v4063 = vcombine.high %v4039, 0.0
        %v4064 = vcombine.high %v4046, 0.0
        %v4065 = vcombine.high %v4055, 0.0
        %v4066 = vcombine.high %v4062, 0.0
        %v4067 = vcombine.low %v3978, %v3986
        %v4068 = vcombine.high %v3978, %v3986
        %v4070 = vunpack.c.l.s4 1983009808
        %v4071 = vunpack.c.0.s8 %v4070
        %v4072 = vlaneseq
        %v4073 = vshrl.u32 %v4072, 7
        %v4074 = vsub.s32 %v4071, %v4073
        %v4075 = vrot.slane %v4067, %v4074
        %v4077 = vunpack.c.l.s4 1983009808
        %v4078 = vunpack.c.0.s8 %v4077
        %v4079 = vlaneseq
        %v4080 = vshrl.u32 %v4079, 7
        %v4081 = vsub.s32 %v4078, %v4080
        %v4082 = vrot.slane %v4068, %v4081
        %v4083 = vcombine.low %v3982, %v3990
        %v4084 = vcombine.high %v3982, %v3990
        %v4086 = vunpack.c.l.s4 1983009808
        %v4087 = vunpack.c.0.s8 %v4086
        %v4088 = vlaneseq
        %v4089 = vshrl.u32 %v4088, 7
        %v4090 = vsub.s32 %v4087, %v4089
        %v4091 = vrot.slane %v4083, %v4090
        %v4093 = vunpack.c.l.s4 1983009808
        %v4094 = vunpack.c.0.s8 %v4093
        %v4095 = vlaneseq
        %v4096 = vshrl.u32 %v4095, 7
        %v4097 = vsub.s32 %v4094, %v4096
        %v4098 = vrot.slane %v4084, %v4097
        %v4099 = vcombine.low %v4075, %v4091
        %v4100 = vcombine.high %v4075, %v4091
        %v4102 = vunpack.c.l.s4 1934713408
        %v4103 = vunpack.c.0.s8 %v4102
        %v4104 = vlaneseq
        %v4105 = vshrl.u32 %v4104, 7
        %v4106 = vsub.s32 %v4103, %v4105
        %v4107 = vrot.slane %v4099, %v4106
        %v4109 = vunpack.c.l.s4 1934713408
        %v4110 = vunpack.c.0.s8 %v4109
        %v4111 = vlaneseq
        %v4112 = vshrl.u32 %v4111, 7
        %v4113 = vsub.s32 %v4110, %v4112
        %v4114 = vrot.slane %v4100, %v4113
        %v4115 = vcombine.low %v4082, %v4098
        %v4116 = vcombine.high %v4082, %v4098
        %v4118 = vunpack.c.l.s4 1934713408
        %v4119 = vunpack.c.0.s8 %v4118
        %v4120 = vlaneseq
        %v4121 = vshrl.u32 %v4120, 7
        %v4122 = vsub.s32 %v4119, %v4121
        %v4123 = vrot.slane %v4115, %v4122
        %v4125 = vunpack.c.l.s4 1934713408
        %v4126 = vunpack.c.0.s8 %v4125
        %v4127 = vlaneseq
        %v4128 = vshrl.u32 %v4127, 7
        %v4129 = vsub.s32 %v4126, %v4128
        %v4130 = vrot.slane %v4116, %v4129
        %v4131 = vcombine.high %v4107, 0.0
        %v4132 = vcombine.high %v4114, 0.0
        %v4133 = vcombine.high %v4123, 0.0
        %v4134 = vcombine.high %v4130, 0.0
        %4136 = vrot.lane.b32.xlu0 %v4063, 16
        %v4137 = vpop.permute.xlu0 %4136
        %4140 = vrot.lane.b32.xlu0 %v4046, 32
        %v4141 = vpop.permute.xlu0 %4140
        %4144 = vrot.lane.b32.xlu0 %v4064, 48
        %v4145 = vpop.permute.xlu0 %4144
        %4148 = vrot.lane.b32.xlu0 %v4055, 64
        %v4149 = vpop.permute.xlu0 %4148
        %4152 = vrot.lane.b32.xlu0 %v4065, 80
        %v4153 = vpop.permute.xlu0 %4152
        %4156 = vrot.lane.b32.xlu0 %v4062, 96
        %v4157 = vpop.permute.xlu0 %4156
        %4160 = vrot.lane.b32.xlu0 %v4066, 112
        %v4161 = vpop.permute.xlu0 %4160
        %4164 = vrot.lane.b32.xlu0 %v4131, 16
        %v4165 = vpop.permute.xlu0 %4164
        %4168 = vrot.lane.b32.xlu0 %v4114, 32
        %v4169 = vpop.permute.xlu0 %4168
        %4172 = vrot.lane.b32.xlu0 %v4132, 48
        %v4173 = vpop.permute.xlu0 %4172
        %4176 = vrot.lane.b32.xlu0 %v4123, 64
        %v4177 = vpop.permute.xlu0 %4176
        %4180 = vrot.lane.b32.xlu0 %v4133, 80
        %v4181 = vpop.permute.xlu0 %4180
        %4184 = vrot.lane.b32.xlu0 %v4130, 96
        %v4185 = vpop.permute.xlu0 %4184
        %4188 = vrot.lane.b32.xlu0 %v4134, 112
        %v4189 = vpop.permute.xlu0 %4188
        %v4191 = vsel %vm577, %v4039, %v4137
        %v4192 = vsel %vm579, %v4191, %v4141
        %v4193 = vsel %vm581, %v4192, %v4145
        %v4194 = vsel %vm583, %v4193, %v4149
        %v4195 = vsel %vm585, %v4194, %v4153
        %v4196 = vsel %vm587, %v4195, %v4157
        %v4197 = vsel %vm589, %v4196, %v4161
        %v4198 = vsel %vm577, %v4107, %v4165
        %v4199 = vsel %vm579, %v4198, %v4169
        %v4200 = vsel %vm581, %v4199, %v4173
        %v4201 = vsel %vm583, %v4200, %v4177
        %v4202 = vsel %vm585, %v4201, %v4181
        %v4203 = vsel %vm587, %v4202, %v4185
        %v4204 = vsel %vm589, %v4203, %v4189
        %v4205 = vrot.slane %v2821, 2
        %v4206 = vrot.slane %v2822, 2
        %v4207 = vsel %vm1765, %v4205, %v4206
        %v4208 = vrot.slane %v2823, 2
        %v4209 = vsel %vm1765, %v4206, %v4208
        %v4210 = vrot.slane %v2824, 2
        %v4211 = vrot.slane %v2825, 2
        %v4212 = vsel %vm1765, %v4210, %v4211
        %v4213 = vrot.slane %v2826, 2
        %v4214 = vsel %vm1765, %v4211, %v4213
        %v4215 = vrot.slane %v2827, 2
        %v4216 = vrot.slane %v2828, 2
        %v4217 = vsel %vm1765, %v4215, %v4216
        %v4218 = vrot.slane %v2829, 2
        %v4219 = vsel %vm1765, %v4216, %v4218
        %v4220 = vrot.slane %v2830, 2
        %v4221 = vrot.slane %v2831, 2
        %v4222 = vsel %vm1765, %v4220, %v4221
        %v4223 = vrot.slane %v2832, 2
        %v4224 = vsel %vm1765, %v4221, %v4223
        %v4233 = vcombine.low %v4207, %v4217
        %v4234 = vcombine.high %v4207, %v4217
        %v4236 = vunpack.c.l.s4 1983009808
        %v4237 = vunpack.c.0.s8 %v4236
        %v4238 = vlaneseq
        %v4239 = vshrl.u32 %v4238, 7
        %v4240 = vsub.s32 %v4237, %v4239
        %v4241 = vrot.slane %v4233, %v4240
        %v4243 = vunpack.c.l.s4 1983009808
        %v4244 = vunpack.c.0.s8 %v4243
        %v4245 = vlaneseq
        %v4246 = vshrl.u32 %v4245, 7
        %v4247 = vsub.s32 %v4244, %v4246
        %v4248 = vrot.slane %v4234, %v4247
        %v4249 = vcombine.low %v4212, %v4222
        %v4250 = vcombine.high %v4212, %v4222
        %v4252 = vunpack.c.l.s4 1983009808
        %v4253 = vunpack.c.0.s8 %v4252
        %v4254 = vlaneseq
        %v4255 = vshrl.u32 %v4254, 7
        %v4256 = vsub.s32 %v4253, %v4255
        %v4257 = vrot.slane %v4249, %v4256
        %v4259 = vunpack.c.l.s4 1983009808
        %v4260 = vunpack.c.0.s8 %v4259
        %v4261 = vlaneseq
        %v4262 = vshrl.u32 %v4261, 7
        %v4263 = vsub.s32 %v4260, %v4262
        %v4264 = vrot.slane %v4250, %v4263
        %v4265 = vcombine.low %v4241, %v4257
        %v4266 = vcombine.high %v4241, %v4257
        %v4268 = vunpack.c.l.s4 1934713408
        %v4269 = vunpack.c.0.s8 %v4268
        %v4270 = vlaneseq
        %v4271 = vshrl.u32 %v4270, 7
        %v4272 = vsub.s32 %v4269, %v4271
        %v4273 = vrot.slane %v4265, %v4272
        %v4275 = vunpack.c.l.s4 1934713408
        %v4276 = vunpack.c.0.s8 %v4275
        %v4277 = vlaneseq
        %v4278 = vshrl.u32 %v4277, 7
        %v4279 = vsub.s32 %v4276, %v4278
        %v4280 = vrot.slane %v4266, %v4279
        %v4281 = vcombine.low %v4248, %v4264
        %v4282 = vcombine.high %v4248, %v4264
        %v4284 = vunpack.c.l.s4 1934713408
        %v4285 = vunpack.c.0.s8 %v4284
        %v4286 = vlaneseq
        %v4287 = vshrl.u32 %v4286, 7
        %v4288 = vsub.s32 %v4285, %v4287
        %v4289 = vrot.slane %v4281, %v4288
        %v4291 = vunpack.c.l.s4 1934713408
        %v4292 = vunpack.c.0.s8 %v4291
        %v4293 = vlaneseq
        %v4294 = vshrl.u32 %v4293, 7
        %v4295 = vsub.s32 %v4292, %v4294
        %v4296 = vrot.slane %v4282, %v4295
        %v4297 = vcombine.high %v4273, 0.0
        %v4298 = vcombine.high %v4280, 0.0
        %v4299 = vcombine.high %v4289, 0.0
        %v4300 = vcombine.high %v4296, 0.0
        %v4301 = vcombine.low %v4209, %v4219
        %v4302 = vcombine.high %v4209, %v4219
        %v4304 = vunpack.c.l.s4 1983009808
        %v4305 = vunpack.c.0.s8 %v4304
        %v4306 = vlaneseq
        %v4307 = vshrl.u32 %v4306, 7
        %v4308 = vsub.s32 %v4305, %v4307
        %v4309 = vrot.slane %v4301, %v4308
        %v4311 = vunpack.c.l.s4 1983009808
        %v4312 = vunpack.c.0.s8 %v4311
        %v4313 = vlaneseq
        %v4314 = vshrl.u32 %v4313, 7
        %v4315 = vsub.s32 %v4312, %v4314
        %v4316 = vrot.slane %v4302, %v4315
        %v4317 = vcombine.low %v4214, %v4224
        %v4318 = vcombine.high %v4214, %v4224
        %v4320 = vunpack.c.l.s4 1983009808
        %v4321 = vunpack.c.0.s8 %v4320
        %v4322 = vlaneseq
        %v4323 = vshrl.u32 %v4322, 7
        %v4324 = vsub.s32 %v4321, %v4323
        %v4325 = vrot.slane %v4317, %v4324
        %v4327 = vunpack.c.l.s4 1983009808
        %v4328 = vunpack.c.0.s8 %v4327
        %v4329 = vlaneseq
        %v4330 = vshrl.u32 %v4329, 7
        %v4331 = vsub.s32 %v4328, %v4330
        %v4332 = vrot.slane %v4318, %v4331
        %v4333 = vcombine.low %v4309, %v4325
        %v4334 = vcombine.high %v4309, %v4325
        %v4336 = vunpack.c.l.s4 1934713408
        %v4337 = vunpack.c.0.s8 %v4336
        %v4338 = vlaneseq
        %v4339 = vshrl.u32 %v4338, 7
        %v4340 = vsub.s32 %v4337, %v4339
        %v4341 = vrot.slane %v4333, %v4340
        %v4343 = vunpack.c.l.s4 1934713408
        %v4344 = vunpack.c.0.s8 %v4343
        %v4345 = vlaneseq
        %v4346 = vshrl.u32 %v4345, 7
        %v4347 = vsub.s32 %v4344, %v4346
        %v4348 = vrot.slane %v4334, %v4347
        %v4349 = vcombine.low %v4316, %v4332
        %v4350 = vcombine.high %v4316, %v4332
        %v4352 = vunpack.c.l.s4 1934713408
        %v4353 = vunpack.c.0.s8 %v4352
        %v4354 = vlaneseq
        %v4355 = vshrl.u32 %v4354, 7
        %v4356 = vsub.s32 %v4353, %v4355
        %v4357 = vrot.slane %v4349, %v4356
        %v4359 = vunpack.c.l.s4 1934713408
        %v4360 = vunpack.c.0.s8 %v4359
        %v4361 = vlaneseq
        %v4362 = vshrl.u32 %v4361, 7
        %v4363 = vsub.s32 %v4360, %v4362
        %v4364 = vrot.slane %v4350, %v4363
        %v4365 = vcombine.high %v4341, 0.0
        %v4366 = vcombine.high %v4348, 0.0
        %v4367 = vcombine.high %v4357, 0.0
        %v4368 = vcombine.high %v4364, 0.0
        %4370 = vrot.lane.b32.xlu0 %v4297, 16
        %v4371 = vpop.permute.xlu0 %4370
        %4374 = vrot.lane.b32.xlu0 %v4280, 32
        %v4375 = vpop.permute.xlu0 %4374
        %4378 = vrot.lane.b32.xlu0 %v4298, 48
        %v4379 = vpop.permute.xlu0 %4378
        %4382 = vrot.lane.b32.xlu0 %v4289, 64
        %v4383 = vpop.permute.xlu0 %4382
        %4386 = vrot.lane.b32.xlu0 %v4299, 80
        %v4387 = vpop.permute.xlu0 %4386
        %4390 = vrot.lane.b32.xlu0 %v4296, 96
        %v4391 = vpop.permute.xlu0 %4390
        %4394 = vrot.lane.b32.xlu0 %v4300, 112
        %v4395 = vpop.permute.xlu0 %4394
        %4398 = vrot.lane.b32.xlu0 %v4365, 16
        %v4399 = vpop.permute.xlu0 %4398
        %4402 = vrot.lane.b32.xlu0 %v4348, 32
        %v4403 = vpop.permute.xlu0 %4402
        %4406 = vrot.lane.b32.xlu0 %v4366, 48
        %v4407 = vpop.permute.xlu0 %4406
        %4410 = vrot.lane.b32.xlu0 %v4357, 64
        %v4411 = vpop.permute.xlu0 %4410
        %4414 = vrot.lane.b32.xlu0 %v4367, 80
        %v4415 = vpop.permute.xlu0 %4414
        %4418 = vrot.lane.b32.xlu0 %v4364, 96
        %v4419 = vpop.permute.xlu0 %4418
        %4422 = vrot.lane.b32.xlu0 %v4368, 112
        %v4423 = vpop.permute.xlu0 %4422
        %v4425 = vsel %vm577, %v4273, %v4371
        %v4426 = vsel %vm579, %v4425, %v4375
        %v4427 = vsel %vm581, %v4426, %v4379
        %v4428 = vsel %vm583, %v4427, %v4383
        %v4429 = vsel %vm585, %v4428, %v4387
        %v4430 = vsel %vm587, %v4429, %v4391
        %v4431 = vsel %vm589, %v4430, %v4395
        %v4432 = vsel %vm577, %v4341, %v4399
        %v4433 = vsel %vm579, %v4432, %v4403
        %v4434 = vsel %vm581, %v4433, %v4407
        %v4435 = vsel %vm583, %v4434, %v4411
        %v4436 = vsel %vm585, %v4435, %v4415
        %v4437 = vsel %vm587, %v4436, %v4419
        %v4438 = vsel %vm589, %v4437, %v4423
        %4439 = vrot.lane.b32.xlu0 %v4207, 127
        %v4440 = vpop.permute.xlu0 %4439
        %4441 = vrot.lane.b32.xlu0 %v4209, 127
        %v4442 = vpop.permute.xlu0 %4441
        %4443 = vrot.lane.b32.xlu0 %v4212, 127
        %v4444 = vpop.permute.xlu0 %4443
        %4445 = vrot.lane.b32.xlu0 %v4214, 127
        %v4446 = vpop.permute.xlu0 %4445
        %4447 = vrot.lane.b32.xlu0 %v4217, 127
        %v4448 = vpop.permute.xlu0 %4447
        %4449 = vrot.lane.b32.xlu0 %v4219, 127
        %v4450 = vpop.permute.xlu0 %4449
        %4451 = vrot.lane.b32.xlu0 %v4222, 127
        %v4452 = vpop.permute.xlu0 %4451
        %4453 = vrot.lane.b32.xlu0 %v4224, 127
        %v4454 = vpop.permute.xlu0 %4453
        %v4463 = vcombine.low %v4440, %v4448
        %v4464 = vcombine.high %v4440, %v4448
        %v4466 = vunpack.c.l.s4 1983009808
        %v4467 = vunpack.c.0.s8 %v4466
        %v4468 = vlaneseq
        %v4469 = vshrl.u32 %v4468, 7
        %v4470 = vsub.s32 %v4467, %v4469
        %v4471 = vrot.slane %v4463, %v4470
        %v4473 = vunpack.c.l.s4 1983009808
        %v4474 = vunpack.c.0.s8 %v4473
        %v4475 = vlaneseq
        %v4476 = vshrl.u32 %v4475, 7
        %v4477 = vsub.s32 %v4474, %v4476
        %v4478 = vrot.slane %v4464, %v4477
        %v4479 = vcombine.low %v4444, %v4452
        %v4480 = vcombine.high %v4444, %v4452
        %v4482 = vunpack.c.l.s4 1983009808
        %v4483 = vunpack.c.0.s8 %v4482
        %v4484 = vlaneseq
        %v4485 = vshrl.u32 %v4484, 7
        %v4486 = vsub.s32 %v4483, %v4485
        %v4487 = vrot.slane %v4479, %v4486
        %v4489 = vunpack.c.l.s4 1983009808
        %v4490 = vunpack.c.0.s8 %v4489
        %v4491 = vlaneseq
        %v4492 = vshrl.u32 %v4491, 7
        %v4493 = vsub.s32 %v4490, %v4492
        %v4494 = vrot.slane %v4480, %v4493
        %v4495 = vcombine.low %v4471, %v4487
        %v4496 = vcombine.high %v4471, %v4487
        %v4498 = vunpack.c.l.s4 1934713408
        %v4499 = vunpack.c.0.s8 %v4498
        %v4500 = vlaneseq
        %v4501 = vshrl.u32 %v4500, 7
        %v4502 = vsub.s32 %v4499, %v4501
        %v4503 = vrot.slane %v4495, %v4502
        %v4505 = vunpack.c.l.s4 1934713408
        %v4506 = vunpack.c.0.s8 %v4505
        %v4507 = vlaneseq
        %v4508 = vshrl.u32 %v4507, 7
        %v4509 = vsub.s32 %v4506, %v4508
        %v4510 = vrot.slane %v4496, %v4509
        %v4511 = vcombine.low %v4478, %v4494
        %v4512 = vcombine.high %v4478, %v4494
        %v4514 = vunpack.c.l.s4 1934713408
        %v4515 = vunpack.c.0.s8 %v4514
        %v4516 = vlaneseq
        %v4517 = vshrl.u32 %v4516, 7
        %v4518 = vsub.s32 %v4515, %v4517
        %v4519 = vrot.slane %v4511, %v4518
        %v4521 = vunpack.c.l.s4 1934713408
        %v4522 = vunpack.c.0.s8 %v4521
        %v4523 = vlaneseq
        %v4524 = vshrl.u32 %v4523, 7
        %v4525 = vsub.s32 %v4522, %v4524
        %v4526 = vrot.slane %v4512, %v4525
        %v4527 = vcombine.high %v4503, 0.0
        %v4528 = vcombine.high %v4510, 0.0
        %v4529 = vcombine.high %v4519, 0.0
        %v4530 = vcombine.high %v4526, 0.0
        %v4531 = vcombine.low %v4442, %v4450
        %v4532 = vcombine.high %v4442, %v4450
        %v4534 = vunpack.c.l.s4 1983009808
        %v4535 = vunpack.c.0.s8 %v4534
        %v4536 = vlaneseq
        %v4537 = vshrl.u32 %v4536, 7
        %v4538 = vsub.s32 %v4535, %v4537
        %v4539 = vrot.slane %v4531, %v4538
        %v4541 = vunpack.c.l.s4 1983009808
        %v4542 = vunpack.c.0.s8 %v4541
        %v4543 = vlaneseq
        %v4544 = vshrl.u32 %v4543, 7
        %v4545 = vsub.s32 %v4542, %v4544
        %v4546 = vrot.slane %v4532, %v4545
        %v4547 = vcombine.low %v4446, %v4454
        %v4548 = vcombine.high %v4446, %v4454
        %v4550 = vunpack.c.l.s4 1983009808
        %v4551 = vunpack.c.0.s8 %v4550
        %v4552 = vlaneseq
        %v4553 = vshrl.u32 %v4552, 7
        %v4554 = vsub.s32 %v4551, %v4553
        %v4555 = vrot.slane %v4547, %v4554
        %v4557 = vunpack.c.l.s4 1983009808
        %v4558 = vunpack.c.0.s8 %v4557
        %v4559 = vlaneseq
        %v4560 = vshrl.u32 %v4559, 7
        %v4561 = vsub.s32 %v4558, %v4560
        %v4562 = vrot.slane %v4548, %v4561
        %v4563 = vcombine.low %v4539, %v4555
        %v4564 = vcombine.high %v4539, %v4555
        %v4566 = vunpack.c.l.s4 1934713408
        %v4567 = vunpack.c.0.s8 %v4566
        %v4568 = vlaneseq
        %v4569 = vshrl.u32 %v4568, 7
        %v4570 = vsub.s32 %v4567, %v4569
        %v4571 = vrot.slane %v4563, %v4570
        %v4573 = vunpack.c.l.s4 1934713408
        %v4574 = vunpack.c.0.s8 %v4573
        %v4575 = vlaneseq
        %v4576 = vshrl.u32 %v4575, 7
        %v4577 = vsub.s32 %v4574, %v4576
        %v4578 = vrot.slane %v4564, %v4577
        %v4579 = vcombine.low %v4546, %v4562
        %v4580 = vcombine.high %v4546, %v4562
        %v4582 = vunpack.c.l.s4 1934713408
        %v4583 = vunpack.c.0.s8 %v4582
        %v4584 = vlaneseq
        %v4585 = vshrl.u32 %v4584, 7
        %v4586 = vsub.s32 %v4583, %v4585
        %v4587 = vrot.slane %v4579, %v4586
        %v4589 = vunpack.c.l.s4 1934713408
        %v4590 = vunpack.c.0.s8 %v4589
        %v4591 = vlaneseq
        %v4592 = vshrl.u32 %v4591, 7
        %v4593 = vsub.s32 %v4590, %v4592
        %v4594 = vrot.slane %v4580, %v4593
        %v4595 = vcombine.high %v4571, 0.0
        %v4596 = vcombine.high %v4578, 0.0
        %v4597 = vcombine.high %v4587, 0.0
        %v4598 = vcombine.high %v4594, 0.0
        %4600 = vrot.lane.b32.xlu0 %v4527, 16
        %v4601 = vpop.permute.xlu0 %4600
        %4604 = vrot.lane.b32.xlu0 %v4510, 32
        %v4605 = vpop.permute.xlu0 %4604
        %4608 = vrot.lane.b32.xlu0 %v4528, 48
        %v4609 = vpop.permute.xlu0 %4608
        %4612 = vrot.lane.b32.xlu0 %v4519, 64
        %v4613 = vpop.permute.xlu0 %4612
        %4616 = vrot.lane.b32.xlu0 %v4529, 80
        %v4617 = vpop.permute.xlu0 %4616
        %4620 = vrot.lane.b32.xlu0 %v4526, 96
        %v4621 = vpop.permute.xlu0 %4620
        %4624 = vrot.lane.b32.xlu0 %v4530, 112
        %v4625 = vpop.permute.xlu0 %4624
        %4628 = vrot.lane.b32.xlu0 %v4595, 16
        %v4629 = vpop.permute.xlu0 %4628
        %4632 = vrot.lane.b32.xlu0 %v4578, 32
        %v4633 = vpop.permute.xlu0 %4632
        %4636 = vrot.lane.b32.xlu0 %v4596, 48
        %v4637 = vpop.permute.xlu0 %4636
        %4640 = vrot.lane.b32.xlu0 %v4587, 64
        %v4641 = vpop.permute.xlu0 %4640
        %4644 = vrot.lane.b32.xlu0 %v4597, 80
        %v4645 = vpop.permute.xlu0 %4644
        %4648 = vrot.lane.b32.xlu0 %v4594, 96
        %v4649 = vpop.permute.xlu0 %4648
        %4652 = vrot.lane.b32.xlu0 %v4598, 112
        %v4653 = vpop.permute.xlu0 %4652
        %v4655 = vsel %vm577, %v4503, %v4601
        %v4656 = vsel %vm579, %v4655, %v4605
        %v4657 = vsel %vm581, %v4656, %v4609
        %v4658 = vsel %vm583, %v4657, %v4613
        %v4659 = vsel %vm585, %v4658, %v4617
        %v4660 = vsel %vm587, %v4659, %v4621
        %v4661 = vsel %vm589, %v4660, %v4625
        %v4662 = vsel %vm577, %v4571, %v4629
        %v4663 = vsel %vm579, %v4662, %v4633
        %v4664 = vsel %vm581, %v4663, %v4637
        %v4665 = vsel %vm583, %v4664, %v4641
        %v4666 = vsel %vm585, %v4665, %v4645
        %v4667 = vsel %vm587, %v4666, %v4649
        %v4668 = vsel %vm589, %v4667, %v4653
        %4669 = vrot.lane.b32.xlu0 %v4207, 126
        %v4670 = vpop.permute.xlu0 %4669
        %4671 = vrot.lane.b32.xlu0 %v4209, 126
        %v4672 = vpop.permute.xlu0 %4671
        %4673 = vrot.lane.b32.xlu0 %v4212, 126
        %v4674 = vpop.permute.xlu0 %4673
        %4675 = vrot.lane.b32.xlu0 %v4214, 126
        %v4676 = vpop.permute.xlu0 %4675
        %4677 = vrot.lane.b32.xlu0 %v4217, 126
        %v4678 = vpop.permute.xlu0 %4677
        %4679 = vrot.lane.b32.xlu0 %v4219, 126
        %v4680 = vpop.permute.xlu0 %4679
        %4681 = vrot.lane.b32.xlu0 %v4222, 126
        %v4682 = vpop.permute.xlu0 %4681
        %4683 = vrot.lane.b32.xlu0 %v4224, 126
        %v4684 = vpop.permute.xlu0 %4683
        %v4693 = vcombine.low %v4670, %v4678
        %v4694 = vcombine.high %v4670, %v4678
        %v4696 = vunpack.c.l.s4 1983009808
        %v4697 = vunpack.c.0.s8 %v4696
        %v4698 = vlaneseq
        %v4699 = vshrl.u32 %v4698, 7
        %v4700 = vsub.s32 %v4697, %v4699
        %v4701 = vrot.slane %v4693, %v4700
        %v4703 = vunpack.c.l.s4 1983009808
        %v4704 = vunpack.c.0.s8 %v4703
        %v4705 = vlaneseq
        %v4706 = vshrl.u32 %v4705, 7
        %v4707 = vsub.s32 %v4704, %v4706
        %v4708 = vrot.slane %v4694, %v4707
        %v4709 = vcombine.low %v4674, %v4682
        %v4710 = vcombine.high %v4674, %v4682
        %v4712 = vunpack.c.l.s4 1983009808
        %v4713 = vunpack.c.0.s8 %v4712
        %v4714 = vlaneseq
        %v4715 = vshrl.u32 %v4714, 7
        %v4716 = vsub.s32 %v4713, %v4715
        %v4717 = vrot.slane %v4709, %v4716
        %v4719 = vunpack.c.l.s4 1983009808
        %v4720 = vunpack.c.0.s8 %v4719
        %v4721 = vlaneseq
        %v4722 = vshrl.u32 %v4721, 7
        %v4723 = vsub.s32 %v4720, %v4722
        %v4724 = vrot.slane %v4710, %v4723
        %v4725 = vcombine.low %v4701, %v4717
        %v4726 = vcombine.high %v4701, %v4717
        %v4728 = vunpack.c.l.s4 1934713408
        %v4729 = vunpack.c.0.s8 %v4728
        %v4730 = vlaneseq
        %v4731 = vshrl.u32 %v4730, 7
        %v4732 = vsub.s32 %v4729, %v4731
        %v4733 = vrot.slane %v4725, %v4732
        %v4735 = vunpack.c.l.s4 1934713408
        %v4736 = vunpack.c.0.s8 %v4735
        %v4737 = vlaneseq
        %v4738 = vshrl.u32 %v4737, 7
        %v4739 = vsub.s32 %v4736, %v4738
        %v4740 = vrot.slane %v4726, %v4739
        %v4741 = vcombine.low %v4708, %v4724
        %v4742 = vcombine.high %v4708, %v4724
        %v4744 = vunpack.c.l.s4 1934713408
        %v4745 = vunpack.c.0.s8 %v4744
        %v4746 = vlaneseq
        %v4747 = vshrl.u32 %v4746, 7
        %v4748 = vsub.s32 %v4745, %v4747
        %v4749 = vrot.slane %v4741, %v4748
        %v4751 = vunpack.c.l.s4 1934713408
        %v4752 = vunpack.c.0.s8 %v4751
        %v4753 = vlaneseq
        %v4754 = vshrl.u32 %v4753, 7
        %v4755 = vsub.s32 %v4752, %v4754
        %v4756 = vrot.slane %v4742, %v4755
        %v4757 = vcombine.high %v4733, 0.0
        %v4758 = vcombine.high %v4740, 0.0
        %v4759 = vcombine.high %v4749, 0.0
        %v4760 = vcombine.high %v4756, 0.0
        %v4761 = vcombine.low %v4672, %v4680
        %v4762 = vcombine.high %v4672, %v4680
        %v4764 = vunpack.c.l.s4 1983009808
        %v4765 = vunpack.c.0.s8 %v4764
        %v4766 = vlaneseq
        %v4767 = vshrl.u32 %v4766, 7
        %v4768 = vsub.s32 %v4765, %v4767
        %v4769 = vrot.slane %v4761, %v4768
        %v4771 = vunpack.c.l.s4 1983009808
        %v4772 = vunpack.c.0.s8 %v4771
        %v4773 = vlaneseq
        %v4774 = vshrl.u32 %v4773, 7
        %v4775 = vsub.s32 %v4772, %v4774
        %v4776 = vrot.slane %v4762, %v4775
        %v4777 = vcombine.low %v4676, %v4684
        %v4778 = vcombine.high %v4676, %v4684
        %v4780 = vunpack.c.l.s4 1983009808
        %v4781 = vunpack.c.0.s8 %v4780
        %v4782 = vlaneseq
        %v4783 = vshrl.u32 %v4782, 7
        %v4784 = vsub.s32 %v4781, %v4783
        %v4785 = vrot.slane %v4777, %v4784
        %v4787 = vunpack.c.l.s4 1983009808
        %v4788 = vunpack.c.0.s8 %v4787
        %v4789 = vlaneseq
        %v4790 = vshrl.u32 %v4789, 7
        %v4791 = vsub.s32 %v4788, %v4790
        %v4792 = vrot.slane %v4778, %v4791
        %v4793 = vcombine.low %v4769, %v4785
        %v4794 = vcombine.high %v4769, %v4785
        %v4796 = vunpack.c.l.s4 1934713408
        %v4797 = vunpack.c.0.s8 %v4796
        %v4798 = vlaneseq
        %v4799 = vshrl.u32 %v4798, 7
        %v4800 = vsub.s32 %v4797, %v4799
        %v4801 = vrot.slane %v4793, %v4800
        %v4803 = vunpack.c.l.s4 1934713408
        %v4804 = vunpack.c.0.s8 %v4803
        %v4805 = vlaneseq
        %v4806 = vshrl.u32 %v4805, 7
        %v4807 = vsub.s32 %v4804, %v4806
        %v4808 = vrot.slane %v4794, %v4807
        %v4809 = vcombine.low %v4776, %v4792
        %v4810 = vcombine.high %v4776, %v4792
        %v4812 = vunpack.c.l.s4 1934713408
        %v4813 = vunpack.c.0.s8 %v4812
        %v4814 = vlaneseq
        %v4815 = vshrl.u32 %v4814, 7
        %v4816 = vsub.s32 %v4813, %v4815
        %v4817 = vrot.slane %v4809, %v4816
        %v4819 = vunpack.c.l.s4 1934713408
        %v4820 = vunpack.c.0.s8 %v4819
        %v4821 = vlaneseq
        %v4822 = vshrl.u32 %v4821, 7
        %v4823 = vsub.s32 %v4820, %v4822
        %v4824 = vrot.slane %v4810, %v4823
        %v4825 = vcombine.high %v4801, 0.0
        %v4826 = vcombine.high %v4808, 0.0
        %v4827 = vcombine.high %v4817, 0.0
        %v4828 = vcombine.high %v4824, 0.0
        %4830 = vrot.lane.b32.xlu0 %v4757, 16
        %v4831 = vpop.permute.xlu0 %4830
        %4834 = vrot.lane.b32.xlu0 %v4740, 32
        %v4835 = vpop.permute.xlu0 %4834
        %4838 = vrot.lane.b32.xlu0 %v4758, 48
        %v4839 = vpop.permute.xlu0 %4838
        %4842 = vrot.lane.b32.xlu0 %v4749, 64
        %v4843 = vpop.permute.xlu0 %4842
        %4846 = vrot.lane.b32.xlu0 %v4759, 80
        %v4847 = vpop.permute.xlu0 %4846
        %4850 = vrot.lane.b32.xlu0 %v4756, 96
        %v4851 = vpop.permute.xlu0 %4850
        %4854 = vrot.lane.b32.xlu0 %v4760, 112
        %v4855 = vpop.permute.xlu0 %4854
        %4858 = vrot.lane.b32.xlu0 %v4825, 16
        %v4859 = vpop.permute.xlu0 %4858
        %4862 = vrot.lane.b32.xlu0 %v4808, 32
        %v4863 = vpop.permute.xlu0 %4862
        %4866 = vrot.lane.b32.xlu0 %v4826, 48
        %v4867 = vpop.permute.xlu0 %4866
        %4870 = vrot.lane.b32.xlu0 %v4817, 64
        %v4871 = vpop.permute.xlu0 %4870
        %4874 = vrot.lane.b32.xlu0 %v4827, 80
        %v4875 = vpop.permute.xlu0 %4874
        %4878 = vrot.lane.b32.xlu0 %v4824, 96
        %v4879 = vpop.permute.xlu0 %4878
        %4882 = vrot.lane.b32.xlu0 %v4828, 112
        %v4883 = vpop.permute.xlu0 %4882
        %v4885 = vsel %vm577, %v4733, %v4831
        %v4886 = vsel %vm579, %v4885, %v4835
        %v4887 = vsel %vm581, %v4886, %v4839
        %v4888 = vsel %vm583, %v4887, %v4843
        %v4889 = vsel %vm585, %v4888, %v4847
        %v4890 = vsel %vm587, %v4889, %v4851
        %v4891 = vsel %vm589, %v4890, %v4855
        %v4892 = vsel %vm577, %v4801, %v4859
        %v4893 = vsel %vm579, %v4892, %v4863
        %v4894 = vsel %vm581, %v4893, %v4867
        %v4895 = vsel %vm583, %v4894, %v4871
        %v4896 = vsel %vm585, %v4895, %v4875
        %v4897 = vsel %vm587, %v4896, %v4879
        %v4898 = vsel %vm589, %v4897, %v4883
        %v4901 = vrot.slane %v3269, 4
        %v4902 = vrot.slane %v3276, 4
        %v4907 = vrot.slane %v3737, 4
        %v4908 = vrot.slane %v3744, 4
        %v4913 = vrot.slane %v4197, 4
        %v4914 = vrot.slane %v4204, 4
        %v4919 = vrot.slane %v4661, 4
        %v4920 = vrot.slane %v4668, 4
        %v4923 = vsel %vm2484, %v3031, %v4901
        %v4924 = vsel %vm2484, %v3038, %v4902
        %v4925 = vsel %vm2484, %v3499, %v4907
        %v4926 = vsel %vm2484, %v3506, %v4908
        %v4927 = vsel %vm2484, %v3967, %v4913
        %v4928 = vsel %vm2484, %v3974, %v4914
        %v4929 = vsel %vm2484, %v4431, %v4919
        %v4930 = vsel %vm2484, %v4438, %v4920
        %4931 = vst [vmem:[#allocation3 + $0x50] sm:$0xff] %v4923
        %4932 = vst [vmem:[#allocation3 + $0x58] sm:$0xff] %v4924
        %4933 = vst [vmem:[#allocation3 + $0x60] sm:$0xff] %v4925
        %4934 = vst [vmem:[#allocation3 + $0x68] sm:$0xff] %v4926
        %4935 = vst [vmem:[#allocation3 + $0x70] sm:$0xff] %v4927
        %4936 = vst [vmem:[#allocation3 + $0x78] sm:$0xff] %v4928
        %4937 = vst [vmem:[#allocation3 + $0x80] sm:$0xff] %v4929
        %4938 = vst [vmem:[#allocation3 + $0x88] sm:$0xff] %v4930
        %4939 = vst [vmem:[#allocation3 + $0x90] sm:$0xf] %v4891
        %4940 = vst [vmem:[#allocation3 + $0x98] sm:$0xf] %v4898
        %v4941 = vld [vmem:[%s2] sm:$0xf]
        %v4942 = vld [vmem:[#allocation3] sm:$0xff]
        %v4943 = vld [vmem:[#allocation3 + $0x8] sm:$0xff]
        %v4944 = vld [vmem:[#allocation3 + $0x10] sm:$0xff]
        %v4945 = vld [vmem:[#allocation3 + $0x18] sm:$0xff]
        %v4946 = vld [vmem:[#allocation3 + $0x20] sm:$0xff]
        %v4947 = vld [vmem:[#allocation3 + $0x28] sm:$0xff]
        %v4948 = vld [vmem:[#allocation3 + $0x30] sm:$0xff]
        %v4949 = vld [vmem:[#allocation3 + $0x38] sm:$0xff]
        %v4950 = vld [vmem:[#allocation3 + $0x40] sm:$0xff]
        %v4951 = vld [vmem:[#allocation3 + $0x48] sm:$0xff]
        %v4952 = vld [vmem:[#allocation3 + $0x50] sm:$0xff]
        %v4953 = vld [vmem:[#allocation3 + $0x58] sm:$0xff]
        %v4954 = vld [vmem:[#allocation3 + $0x60] sm:$0xff]
        %v4955 = vld [vmem:[#allocation3 + $0x68] sm:$0xff]
        %v4956 = vld [vmem:[#allocation3 + $0x70] sm:$0xff]
        %v4957 = vld [vmem:[#allocation3 + $0x78] sm:$0xff]
        %v4958 = vld [vmem:[#allocation3 + $0x80] sm:$0xff]
        %v4959 = vld [vmem:[#allocation3 + $0x88] sm:$0xff]
        %v4960 = vld [vmem:[#allocation3 + $0x90] sm:$0xff]
        %v4961 = vld [vmem:[#allocation3 + $0x98] sm:$0xff]
        %s4962 = scalar_lea.vmem %s5, 4
        %v4963 = vld [vmem:[%s4962] sm:$0xf]
        %4965 = vset.pattern.permute.xlu0 0
        %4966 = vperm.xlu0 %4965, %v4963
        %v4967 = vpop.permute.xlu0 %4966
        %v4970 = vsel %vm585, %v4941, 0
        %4972 = vmatprep.subr.mxu0 0.0
        %4973 = vmatpush1.msra.mxu0 0.0
        %4974 = vmatprep.subr.mxu0 0.0
        %4975 = vmatpush1.msra.mxu0 0.0
        %4976 = vmatprep.subr.mxu0 0.0
        %4977 = vmatpush1.msra.mxu0 0.0
        %4978 = vmatprep.subr.mxu0 0.0
        %4979 = vmatpush1.msra.mxu0 0.0
        %4980 = vmatprep.subr.mxu0 0.0
        %4981 = vmatpush1.msra.mxu0 0.0
        %4982 = vmatprep.subr.mxu0 0.0
        %4983 = vmatpush1.msra.mxu0 0.0
        %4984 = vmatprep.subr.mxu0 %v4961
        %4985 = vmatpush1.msra.mxu0 %v4960
        %4986 = vmatprep.subr.mxu0 %v4959
        %4987 = vmatpush1.msra.mxu0 %v4958
        %4988 = vmatprep.subr.mxu0 %v4957
        %4989 = vmatpush1.msra.mxu0 %v4956
        %4990 = vmatprep.subr.mxu0 %v4955
        %4991 = vmatpush1.msra.mxu0 %v4954
        %4992 = vmatprep.subr.mxu0 %v4953
        %4993 = vmatpush1.msra.mxu0 %v4952
        %4994 = vmatprep.subr.mxu0 %v4951
        %4995 = vmatpush1.msra.mxu0 %v4950
        %4996 = vmatprep.subr.mxu0 %v4949
        %4997 = vmatpush1.msra.mxu0 %v4948
        %4998 = vmatprep.subr.mxu0 %v4947
        %4999 = vmatpush1.msra.mxu0 %v4946
        %5000 = vmatprep.subr.mxu0 %v4945
        %5001 = vmatpush1.msra.mxu0 %v4944
        %5002 = vmatprep.subr.mxu0 %v4943
        %5003 = vmatpush1.msra.mxu0 %v4942
        %5004 = vmatprep.subr.mxu0 0.0
        %5005 = vmatpush2.msra.mxu0 0.0
        %5006 = vmatprep.subr.mxu0 0.0
        %5007 = vmatpush2.msra.mxu0 0.0
        %5008 = vmatprep.subr.mxu0 0.0
        %5009 = vmatpush2.msra.mxu0 0.0
        %5010 = vmatprep.subr.mxu0 0.0
        %5011 = vmatpush2.msra.mxu0 0.0
        %5012 = vmatprep.subr.mxu0 0.0
        %5013 = vmatpush2.msra.mxu0 0.0
        %5014 = vmatprep.subr.mxu0 0.0
        %5015 = vmatpush2.msra.mxu0 0.0
        %5016 = vmatprep.subr.mxu0 0.0
        %5017 = vmatpush2.msra.mxu0 0.0
        %5018 = vmatprep.subr.mxu0 0.0
        %5019 = vmatpush2.msra.mxu0 0.0
        %5020 = vmatprep.subr.mxu0 0.0
        %5021 = vmatpush2.msra.mxu0 0.0
        %5022 = vmatprep.subr.mxu0 0.0
        %5023 = vmatpush2.msra.mxu0 0.0
        %5024 = vmatprep.subr.mxu0 0.0
        %5025 = vmatpush2.msra.mxu0 0.0
        %5026 = vmatprep.subr.mxu0 0.0
        %5027 = vmatpush2.msra.mxu0 0.0
        %5028 = vmatprep.subr.mxu0 0.0
        %5029 = vmatpush2.msra.mxu0 0.0
        %5030 = vmatprep.subr.mxu0 0.0
        %5031 = vmatpush2.msra.mxu0 0.0
        %5032 = vmatprep.subr.mxu0 0.0
        %5033 = vmatpush2.msra.mxu0 0.0
        %5034 = vmatprep.subr.mxu0 0.0
        %5035 = vmatpush2.msra.mxu0 0.0
        %5036 = vmatprep.mubr.f32.mxu0 0.0
        %5037 = vmatmul.mubr.f32.gmra.mxu0 %v4970
        %v5038 = vpop.f32.mrf.mxu0
        %v5039 = vadd.f32 %v4967, %v5038
        %v5040 = vpop.f32.mrf.mxu0
        %v5041 = vadd.f32 %v4967, %v5040
        %5042 = vdwg.mxu0
        %vm5043 = vcmp.ge.f32.partialorder %v5039, 0.0
        %vm5044 = vcmp.ge.f32.partialorder %v5041, 0.0
        %v5045 = vmul.f32 %v5039, 0.01
        %v5046 = vmul.f32 %v5041, 0.01
        %v5047 = vsel %vm5043, %v5039, %v5045
        %v5048 = vsel %vm5044, %v5041, %v5046
        %5050 = vrot.lane.b32.xlu0 %v5047, 112
        %v5051 = vpop.permute.xlu0 %5050
        %5053 = vrot.lane.b32.xlu0 %v5047, 96
        %v5054 = vpop.permute.xlu0 %5053
        %5056 = vrot.lane.b32.xlu0 %v5047, 80
        %v5057 = vpop.permute.xlu0 %5056
        %5059 = vrot.lane.b32.xlu0 %v5047, 64
        %v5060 = vpop.permute.xlu0 %5059
        %5062 = vrot.lane.b32.xlu0 %v5047, 48
        %v5063 = vpop.permute.xlu0 %5062
        %5065 = vrot.lane.b32.xlu0 %v5047, 32
        %v5066 = vpop.permute.xlu0 %5065
        %5068 = vrot.lane.b32.xlu0 %v5047, 16
        %v5069 = vpop.permute.xlu0 %5068
        %5072 = vrot.lane.b32.xlu0 %v5048, 112
        %v5073 = vpop.permute.xlu0 %5072
        %5075 = vrot.lane.b32.xlu0 %v5048, 96
        %v5076 = vpop.permute.xlu0 %5075
        %5078 = vrot.lane.b32.xlu0 %v5048, 80
        %v5079 = vpop.permute.xlu0 %5078
        %5081 = vrot.lane.b32.xlu0 %v5048, 64
        %v5082 = vpop.permute.xlu0 %5081
        %5084 = vrot.lane.b32.xlu0 %v5048, 48
        %v5085 = vpop.permute.xlu0 %5084
        %5087 = vrot.lane.b32.xlu0 %v5048, 32
        %v5088 = vpop.permute.xlu0 %5087
        %5090 = vrot.lane.b32.xlu0 %v5048, 16
        %v5091 = vpop.permute.xlu0 %5090
        %v5093 = vcombine.low %v5047, %v5054
        %v5095 = vunpack.c.l.s4 1983009808
        %v5096 = vunpack.c.0.s8 %v5095
        %v5097 = vlaneseq
        %v5098 = vshrl.u32 %v5097, 7
        %v5099 = vsub.s32 %v5096, %v5098
        %v5100 = vrot.slane %v5093, %v5099
        %v5101 = vcombine.low %v5051, %v5057
        %v5103 = vunpack.c.l.s4 1983009808
        %v5104 = vunpack.c.0.s8 %v5103
        %v5105 = vlaneseq
        %v5106 = vshrl.u32 %v5105, 7
        %v5107 = vsub.s32 %v5104, %v5106
        %v5108 = vrot.slane %v5101, %v5107
        %v5109 = vcombine.low %v5060, %v5066
        %v5111 = vunpack.c.l.s4 1983009808
        %v5112 = vunpack.c.0.s8 %v5111
        %v5113 = vlaneseq
        %v5114 = vshrl.u32 %v5113, 7
        %v5115 = vsub.s32 %v5112, %v5114
        %v5116 = vrot.slane %v5109, %v5115
        %v5117 = vcombine.low %v5063, %v5069
        %v5119 = vunpack.c.l.s4 1983009808
        %v5120 = vunpack.c.0.s8 %v5119
        %v5121 = vlaneseq
        %v5122 = vshrl.u32 %v5121, 7
        %v5123 = vsub.s32 %v5120, %v5122
        %v5124 = vrot.slane %v5117, %v5123
        %v5125 = vcombine.low %v5100, %v5108
        %v5126 = vcombine.high %v5100, %v5108
        %v5128 = vunpack.c.l.s4 1934713408
        %v5129 = vunpack.c.0.s8 %v5128
        %v5130 = vlaneseq
        %v5131 = vshrl.u32 %v5130, 7
        %v5132 = vsub.s32 %v5129, %v5131
        %v5133 = vrot.slane %v5125, %v5132
        %v5135 = vunpack.c.l.s4 1934713408
        %v5136 = vunpack.c.0.s8 %v5135
        %v5137 = vlaneseq
        %v5138 = vshrl.u32 %v5137, 7
        %v5139 = vsub.s32 %v5136, %v5138
        %v5140 = vrot.slane %v5126, %v5139
        %v5141 = vcombine.low %v5116, %v5124
        %v5142 = vcombine.high %v5116, %v5124
        %v5144 = vunpack.c.l.s4 1934713408
        %v5145 = vunpack.c.0.s8 %v5144
        %v5146 = vlaneseq
        %v5147 = vshrl.u32 %v5146, 7
        %v5148 = vsub.s32 %v5145, %v5147
        %v5149 = vrot.slane %v5141, %v5148
        %v5151 = vunpack.c.l.s4 1934713408
        %v5152 = vunpack.c.0.s8 %v5151
        %v5153 = vlaneseq
        %v5154 = vshrl.u32 %v5153, 7
        %v5155 = vsub.s32 %v5152, %v5154
        %v5156 = vrot.slane %v5142, %v5155
        %v5157 = vcombine.low %v5133, %v5149
        %v5158 = vcombine.high %v5133, %v5149
        %v5159 = vcombine.low %v5140, %v5156
        %v5160 = vcombine.high %v5140, %v5156
        %v5161 = vcombine.low %v5048, %v5076
        %v5163 = vunpack.c.l.s4 1983009808
        %v5164 = vunpack.c.0.s8 %v5163
        %v5165 = vlaneseq
        %v5166 = vshrl.u32 %v5165, 7
        %v5167 = vsub.s32 %v5164, %v5166
        %v5168 = vrot.slane %v5161, %v5167
        %v5169 = vcombine.low %v5073, %v5079
        %v5171 = vunpack.c.l.s4 1983009808
        %v5172 = vunpack.c.0.s8 %v5171
        %v5173 = vlaneseq
        %v5174 = vshrl.u32 %v5173, 7
        %v5175 = vsub.s32 %v5172, %v5174
        %v5176 = vrot.slane %v5169, %v5175
        %v5177 = vcombine.low %v5082, %v5088
        %v5179 = vunpack.c.l.s4 1983009808
        %v5180 = vunpack.c.0.s8 %v5179
        %v5181 = vlaneseq
        %v5182 = vshrl.u32 %v5181, 7
        %v5183 = vsub.s32 %v5180, %v5182
        %v5184 = vrot.slane %v5177, %v5183
        %v5185 = vcombine.low %v5085, %v5091
        %v5187 = vunpack.c.l.s4 1983009808
        %v5188 = vunpack.c.0.s8 %v5187
        %v5189 = vlaneseq
        %v5190 = vshrl.u32 %v5189, 7
        %v5191 = vsub.s32 %v5188, %v5190
        %v5192 = vrot.slane %v5185, %v5191
        %v5193 = vcombine.low %v5168, %v5176
        %v5194 = vcombine.high %v5168, %v5176
        %v5196 = vunpack.c.l.s4 1934713408
        %v5197 = vunpack.c.0.s8 %v5196
        %v5198 = vlaneseq
        %v5199 = vshrl.u32 %v5198, 7
        %v5200 = vsub.s32 %v5197, %v5199
        %v5201 = vrot.slane %v5193, %v5200
        %v5203 = vunpack.c.l.s4 1934713408
        %v5204 = vunpack.c.0.s8 %v5203
        %v5205 = vlaneseq
        %v5206 = vshrl.u32 %v5205, 7
        %v5207 = vsub.s32 %v5204, %v5206
        %v5208 = vrot.slane %v5194, %v5207
        %v5209 = vcombine.low %v5184, %v5192
        %v5210 = vcombine.high %v5184, %v5192
        %v5212 = vunpack.c.l.s4 1934713408
        %v5213 = vunpack.c.0.s8 %v5212
        %v5214 = vlaneseq
        %v5215 = vshrl.u32 %v5214, 7
        %v5216 = vsub.s32 %v5213, %v5215
        %v5217 = vrot.slane %v5209, %v5216
        %v5219 = vunpack.c.l.s4 1934713408
        %v5220 = vunpack.c.0.s8 %v5219
        %v5221 = vlaneseq
        %v5222 = vshrl.u32 %v5221, 7
        %v5223 = vsub.s32 %v5220, %v5222
        %v5224 = vrot.slane %v5210, %v5223
        %v5225 = vcombine.low %v5201, %v5217
        %v5226 = vcombine.high %v5201, %v5217
        %v5227 = vcombine.low %v5208, %v5224
        %v5228 = vcombine.high %v5208, %v5224
        %5237 = vrot.lane.b32.xlu0 %v5157, 1
        %v5238 = vpop.permute.xlu0 %5237
        %5239 = vrot.lane.b32.xlu0 %v5225, 1
        %v5240 = vpop.permute.xlu0 %5239
        %5241 = vrot.lane.b32.xlu0 %v5158, 1
        %v5242 = vpop.permute.xlu0 %5241
        %5243 = vrot.lane.b32.xlu0 %v5226, 1
        %v5244 = vpop.permute.xlu0 %5243
        %5245 = vrot.lane.b32.xlu0 %v5159, 1
        %v5246 = vpop.permute.xlu0 %5245
        %5247 = vrot.lane.b32.xlu0 %v5227, 1
        %v5248 = vpop.permute.xlu0 %5247
        %5249 = vrot.lane.b32.xlu0 %v5160, 1
        %v5250 = vpop.permute.xlu0 %5249
        %5251 = vrot.lane.b32.xlu0 %v5228, 1
        %v5252 = vpop.permute.xlu0 %5251
        %5261 = vst.msk [vmem:[#allocation2 + $0x1] sm:$0xff] %vm364, %v5238
        %5262 = vst.msk [vmem:[#allocation2 + $0x9] sm:$0xff] %vm364, %v5240
        %5263 = vst.msk [vmem:[#allocation2 + $0x19] sm:$0xff] %vm364, %v5242
        %5264 = vst.msk [vmem:[#allocation2 + $0x21] sm:$0xff] %vm364, %v5244
        %5265 = vst.msk [vmem:[#allocation2 + $0x31] sm:$0xff] %vm364, %v5246
        %5266 = vst.msk [vmem:[#allocation2 + $0x39] sm:$0xff] %vm364, %v5248
        %5267 = vst.msk [vmem:[#allocation2 + $0x49] sm:$0xff] %vm364, %v5250
        %5268 = vst.msk [vmem:[#allocation2 + $0x51] sm:$0xff] %vm364, %v5252
        %v5269 = vld [vmem:[#allocation2] sm:$0xff]
        %v5270 = vld [vmem:[#allocation2 + $0x8] sm:$0xff]
        %v5271 = vld [vmem:[#allocation2 + $0x10] sm:$0x3]
        %v5272 = vld [vmem:[#allocation2 + $0x18] sm:$0xff]
        %v5273 = vld [vmem:[#allocation2 + $0x20] sm:$0xff]
        %v5274 = vld [vmem:[#allocation2 + $0x28] sm:$0x3]
        %v5275 = vld [vmem:[#allocation2 + $0x30] sm:$0xff]
        %v5276 = vld [vmem:[#allocation2 + $0x38] sm:$0xff]
        %v5277 = vld [vmem:[#allocation2 + $0x40] sm:$0x3]
        %v5278 = vld [vmem:[#allocation2 + $0x48] sm:$0xff]
        %v5279 = vld [vmem:[#allocation2 + $0x50] sm:$0xff]
        %v5280 = vld [vmem:[#allocation2 + $0x58] sm:$0x3]
        %v5281 = vcombine.low %v5269, %v5275
        %v5282 = vcombine.high %v5269, %v5275
        %v5284 = vunpack.c.l.s4 1983009808
        %v5285 = vunpack.c.0.s8 %v5284
        %v5286 = vlaneseq
        %v5287 = vshrl.u32 %v5286, 7
        %v5288 = vsub.s32 %v5285, %v5287
        %v5289 = vrot.slane %v5281, %v5288
        %v5291 = vunpack.c.l.s4 1983009808
        %v5292 = vunpack.c.0.s8 %v5291
        %v5293 = vlaneseq
        %v5294 = vshrl.u32 %v5293, 7
        %v5295 = vsub.s32 %v5292, %v5294
        %v5296 = vrot.slane %v5282, %v5295
        %v5297 = vcombine.low %v5272, %v5278
        %v5298 = vcombine.high %v5272, %v5278
        %v5300 = vunpack.c.l.s4 1983009808
        %v5301 = vunpack.c.0.s8 %v5300
        %v5302 = vlaneseq
        %v5303 = vshrl.u32 %v5302, 7
        %v5304 = vsub.s32 %v5301, %v5303
        %v5305 = vrot.slane %v5297, %v5304
        %v5307 = vunpack.c.l.s4 1983009808
        %v5308 = vunpack.c.0.s8 %v5307
        %v5309 = vlaneseq
        %v5310 = vshrl.u32 %v5309, 7
        %v5311 = vsub.s32 %v5308, %v5310
        %v5312 = vrot.slane %v5298, %v5311
        %v5313 = vcombine.low %v5289, %v5305
        %v5314 = vcombine.high %v5289, %v5305
        %v5316 = vunpack.c.l.s4 1934713408
        %v5317 = vunpack.c.0.s8 %v5316
        %v5318 = vlaneseq
        %v5319 = vshrl.u32 %v5318, 7
        %v5320 = vsub.s32 %v5317, %v5319
        %v5321 = vrot.slane %v5313, %v5320
        %v5323 = vunpack.c.l.s4 1934713408
        %v5324 = vunpack.c.0.s8 %v5323
        %v5325 = vlaneseq
        %v5326 = vshrl.u32 %v5325, 7
        %v5327 = vsub.s32 %v5324, %v5326
        %v5328 = vrot.slane %v5314, %v5327
        %v5329 = vcombine.low %v5296, %v5312
        %v5330 = vcombine.high %v5296, %v5312
        %v5332 = vunpack.c.l.s4 1934713408
        %v5333 = vunpack.c.0.s8 %v5332
        %v5334 = vlaneseq
        %v5335 = vshrl.u32 %v5334, 7
        %v5336 = vsub.s32 %v5333, %v5335
        %v5337 = vrot.slane %v5329, %v5336
        %v5339 = vunpack.c.l.s4 1934713408
        %v5340 = vunpack.c.0.s8 %v5339
        %v5341 = vlaneseq
        %v5342 = vshrl.u32 %v5341, 7
        %v5343 = vsub.s32 %v5340, %v5342
        %v5344 = vrot.slane %v5330, %v5343
        %v5345 = vcombine.high %v5321, 0.0
        %v5346 = vcombine.high %v5328, 0.0
        %v5347 = vcombine.high %v5337, 0.0
        %v5348 = vcombine.high %v5344, 0.0
        %v5349 = vcombine.low %v5270, %v5276
        %v5350 = vcombine.high %v5270, %v5276
        %v5352 = vunpack.c.l.s4 1983009808
        %v5353 = vunpack.c.0.s8 %v5352
        %v5354 = vlaneseq
        %v5355 = vshrl.u32 %v5354, 7
        %v5356 = vsub.s32 %v5353, %v5355
        %v5357 = vrot.slane %v5349, %v5356
        %v5359 = vunpack.c.l.s4 1983009808
        %v5360 = vunpack.c.0.s8 %v5359
        %v5361 = vlaneseq
        %v5362 = vshrl.u32 %v5361, 7
        %v5363 = vsub.s32 %v5360, %v5362
        %v5364 = vrot.slane %v5350, %v5363
        %v5365 = vcombine.low %v5273, %v5279
        %v5366 = vcombine.high %v5273, %v5279
        %v5368 = vunpack.c.l.s4 1983009808
        %v5369 = vunpack.c.0.s8 %v5368
        %v5370 = vlaneseq
        %v5371 = vshrl.u32 %v5370, 7
        %v5372 = vsub.s32 %v5369, %v5371
        %v5373 = vrot.slane %v5365, %v5372
        %v5375 = vunpack.c.l.s4 1983009808
        %v5376 = vunpack.c.0.s8 %v5375
        %v5377 = vlaneseq
        %v5378 = vshrl.u32 %v5377, 7
        %v5379 = vsub.s32 %v5376, %v5378
        %v5380 = vrot.slane %v5366, %v5379
        %v5381 = vcombine.low %v5357, %v5373
        %v5382 = vcombine.high %v5357, %v5373
        %v5384 = vunpack.c.l.s4 1934713408
        %v5385 = vunpack.c.0.s8 %v5384
        %v5386 = vlaneseq
        %v5387 = vshrl.u32 %v5386, 7
        %v5388 = vsub.s32 %v5385, %v5387
        %v5389 = vrot.slane %v5381, %v5388
        %v5391 = vunpack.c.l.s4 1934713408
        %v5392 = vunpack.c.0.s8 %v5391
        %v5393 = vlaneseq
        %v5394 = vshrl.u32 %v5393, 7
        %v5395 = vsub.s32 %v5392, %v5394
        %v5396 = vrot.slane %v5382, %v5395
        %v5397 = vcombine.low %v5364, %v5380
        %v5398 = vcombine.high %v5364, %v5380
        %v5400 = vunpack.c.l.s4 1934713408
        %v5401 = vunpack.c.0.s8 %v5400
        %v5402 = vlaneseq
        %v5403 = vshrl.u32 %v5402, 7
        %v5404 = vsub.s32 %v5401, %v5403
        %v5405 = vrot.slane %v5397, %v5404
        %v5407 = vunpack.c.l.s4 1934713408
        %v5408 = vunpack.c.0.s8 %v5407
        %v5409 = vlaneseq
        %v5410 = vshrl.u32 %v5409, 7
        %v5411 = vsub.s32 %v5408, %v5410
        %v5412 = vrot.slane %v5398, %v5411
        %v5413 = vcombine.high %v5389, 0.0
        %v5414 = vcombine.high %v5396, 0.0
        %v5415 = vcombine.high %v5405, 0.0
        %v5416 = vcombine.high %v5412, 0.0
        %5418 = vrot.lane.b32.xlu0 %v5345, 16
        %v5419 = vpop.permute.xlu0 %5418
        %5422 = vrot.lane.b32.xlu0 %v5328, 32
        %v5423 = vpop.permute.xlu0 %5422
        %5426 = vrot.lane.b32.xlu0 %v5346, 48
        %v5427 = vpop.permute.xlu0 %5426
        %5430 = vrot.lane.b32.xlu0 %v5337, 64
        %v5431 = vpop.permute.xlu0 %5430
        %5434 = vrot.lane.b32.xlu0 %v5347, 80
        %v5435 = vpop.permute.xlu0 %5434
        %5438 = vrot.lane.b32.xlu0 %v5344, 96
        %v5439 = vpop.permute.xlu0 %5438
        %5442 = vrot.lane.b32.xlu0 %v5348, 112
        %v5443 = vpop.permute.xlu0 %5442
        %5446 = vrot.lane.b32.xlu0 %v5413, 16
        %v5447 = vpop.permute.xlu0 %5446
        %5450 = vrot.lane.b32.xlu0 %v5396, 32
        %v5451 = vpop.permute.xlu0 %5450
        %5454 = vrot.lane.b32.xlu0 %v5414, 48
        %v5455 = vpop.permute.xlu0 %5454
        %5458 = vrot.lane.b32.xlu0 %v5405, 64
        %v5459 = vpop.permute.xlu0 %5458
        %5462 = vrot.lane.b32.xlu0 %v5415, 80
        %v5463 = vpop.permute.xlu0 %5462
        %5466 = vrot.lane.b32.xlu0 %v5412, 96
        %v5467 = vpop.permute.xlu0 %5466
        %5470 = vrot.lane.b32.xlu0 %v5416, 112
        %v5471 = vpop.permute.xlu0 %5470
        %v5473 = vsel %vm577, %v5321, %v5419
        %v5474 = vsel %vm579, %v5473, %v5423
        %v5475 = vsel %vm581, %v5474, %v5427
        %v5476 = vsel %vm583, %v5475, %v5431
        %v5477 = vsel %vm585, %v5476, %v5435
        %v5478 = vsel %vm587, %v5477, %v5439
        %v5479 = vsel %vm589, %v5478, %v5443
        %v5480 = vsel %vm577, %v5389, %v5447
        %v5481 = vsel %vm579, %v5480, %v5451
        %v5482 = vsel %vm581, %v5481, %v5455
        %v5483 = vsel %vm583, %v5482, %v5459
        %v5484 = vsel %vm585, %v5483, %v5463
        %v5485 = vsel %vm587, %v5484, %v5467
        %v5486 = vsel %vm589, %v5485, %v5471
        %5495 = vrot.lane.b32.xlu0 %v5269, 127
        %v5496 = vpop.permute.xlu0 %5495
        %5497 = vrot.lane.b32.xlu0 %v5270, 127
        %v5498 = vpop.permute.xlu0 %5497
        %5499 = vrot.lane.b32.xlu0 %v5272, 127
        %v5500 = vpop.permute.xlu0 %5499
        %5501 = vrot.lane.b32.xlu0 %v5273, 127
        %v5502 = vpop.permute.xlu0 %5501
        %5503 = vrot.lane.b32.xlu0 %v5275, 127
        %v5504 = vpop.permute.xlu0 %5503
        %5505 = vrot.lane.b32.xlu0 %v5276, 127
        %v5506 = vpop.permute.xlu0 %5505
        %5507 = vrot.lane.b32.xlu0 %v5278, 127
        %v5508 = vpop.permute.xlu0 %5507
        %5509 = vrot.lane.b32.xlu0 %v5279, 127
        %v5510 = vpop.permute.xlu0 %5509
        %v5519 = vcombine.low %v5496, %v5504
        %v5520 = vcombine.high %v5496, %v5504
        %v5522 = vunpack.c.l.s4 1983009808
        %v5523 = vunpack.c.0.s8 %v5522
        %v5524 = vlaneseq
        %v5525 = vshrl.u32 %v5524, 7
        %v5526 = vsub.s32 %v5523, %v5525
        %v5527 = vrot.slane %v5519, %v5526
        %v5529 = vunpack.c.l.s4 1983009808
        %v5530 = vunpack.c.0.s8 %v5529
        %v5531 = vlaneseq
        %v5532 = vshrl.u32 %v5531, 7
        %v5533 = vsub.s32 %v5530, %v5532
        %v5534 = vrot.slane %v5520, %v5533
        %v5535 = vcombine.low %v5500, %v5508
        %v5536 = vcombine.high %v5500, %v5508
        %v5538 = vunpack.c.l.s4 1983009808
        %v5539 = vunpack.c.0.s8 %v5538
        %v5540 = vlaneseq
        %v5541 = vshrl.u32 %v5540, 7
        %v5542 = vsub.s32 %v5539, %v5541
        %v5543 = vrot.slane %v5535, %v5542
        %v5545 = vunpack.c.l.s4 1983009808
        %v5546 = vunpack.c.0.s8 %v5545
        %v5547 = vlaneseq
        %v5548 = vshrl.u32 %v5547, 7
        %v5549 = vsub.s32 %v5546, %v5548
        %v5550 = vrot.slane %v5536, %v5549
        %v5551 = vcombine.low %v5527, %v5543
        %v5552 = vcombine.high %v5527, %v5543
        %v5554 = vunpack.c.l.s4 1934713408
        %v5555 = vunpack.c.0.s8 %v5554
        %v5556 = vlaneseq
        %v5557 = vshrl.u32 %v5556, 7
        %v5558 = vsub.s32 %v5555, %v5557
        %v5559 = vrot.slane %v5551, %v5558
        %v5561 = vunpack.c.l.s4 1934713408
        %v5562 = vunpack.c.0.s8 %v5561
        %v5563 = vlaneseq
        %v5564 = vshrl.u32 %v5563, 7
        %v5565 = vsub.s32 %v5562, %v5564
        %v5566 = vrot.slane %v5552, %v5565
        %v5567 = vcombine.low %v5534, %v5550
        %v5568 = vcombine.high %v5534, %v5550
        %v5570 = vunpack.c.l.s4 1934713408
        %v5571 = vunpack.c.0.s8 %v5570
        %v5572 = vlaneseq
        %v5573 = vshrl.u32 %v5572, 7
        %v5574 = vsub.s32 %v5571, %v5573
        %v5575 = vrot.slane %v5567, %v5574
        %v5577 = vunpack.c.l.s4 1934713408
        %v5578 = vunpack.c.0.s8 %v5577
        %v5579 = vlaneseq
        %v5580 = vshrl.u32 %v5579, 7
        %v5581 = vsub.s32 %v5578, %v5580
        %v5582 = vrot.slane %v5568, %v5581
        %v5583 = vcombine.high %v5559, 0.0
        %v5584 = vcombine.high %v5566, 0.0
        %v5585 = vcombine.high %v5575, 0.0
        %v5586 = vcombine.high %v5582, 0.0
        %v5587 = vcombine.low %v5498, %v5506
        %v5588 = vcombine.high %v5498, %v5506
        %v5590 = vunpack.c.l.s4 1983009808
        %v5591 = vunpack.c.0.s8 %v5590
        %v5592 = vlaneseq
        %v5593 = vshrl.u32 %v5592, 7
        %v5594 = vsub.s32 %v5591, %v5593
        %v5595 = vrot.slane %v5587, %v5594
        %v5597 = vunpack.c.l.s4 1983009808
        %v5598 = vunpack.c.0.s8 %v5597
        %v5599 = vlaneseq
        %v5600 = vshrl.u32 %v5599, 7
        %v5601 = vsub.s32 %v5598, %v5600
        %v5602 = vrot.slane %v5588, %v5601
        %v5603 = vcombine.low %v5502, %v5510
        %v5604 = vcombine.high %v5502, %v5510
        %v5606 = vunpack.c.l.s4 1983009808
        %v5607 = vunpack.c.0.s8 %v5606
        %v5608 = vlaneseq
        %v5609 = vshrl.u32 %v5608, 7
        %v5610 = vsub.s32 %v5607, %v5609
        %v5611 = vrot.slane %v5603, %v5610
        %v5613 = vunpack.c.l.s4 1983009808
        %v5614 = vunpack.c.0.s8 %v5613
        %v5615 = vlaneseq
        %v5616 = vshrl.u32 %v5615, 7
        %v5617 = vsub.s32 %v5614, %v5616
        %v5618 = vrot.slane %v5604, %v5617
        %v5619 = vcombine.low %v5595, %v5611
        %v5620 = vcombine.high %v5595, %v5611
        %v5622 = vunpack.c.l.s4 1934713408
        %v5623 = vunpack.c.0.s8 %v5622
        %v5624 = vlaneseq
        %v5625 = vshrl.u32 %v5624, 7
        %v5626 = vsub.s32 %v5623, %v5625
        %v5627 = vrot.slane %v5619, %v5626
        %v5629 = vunpack.c.l.s4 1934713408
        %v5630 = vunpack.c.0.s8 %v5629
        %v5631 = vlaneseq
        %v5632 = vshrl.u32 %v5631, 7
        %v5633 = vsub.s32 %v5630, %v5632
        %v5634 = vrot.slane %v5620, %v5633
        %v5635 = vcombine.low %v5602, %v5618
        %v5636 = vcombine.high %v5602, %v5618
        %v5638 = vunpack.c.l.s4 1934713408
        %v5639 = vunpack.c.0.s8 %v5638
        %v5640 = vlaneseq
        %v5641 = vshrl.u32 %v5640, 7
        %v5642 = vsub.s32 %v5639, %v5641
        %v5643 = vrot.slane %v5635, %v5642
        %v5645 = vunpack.c.l.s4 1934713408
        %v5646 = vunpack.c.0.s8 %v5645
        %v5647 = vlaneseq
        %v5648 = vshrl.u32 %v5647, 7
        %v5649 = vsub.s32 %v5646, %v5648
        %v5650 = vrot.slane %v5636, %v5649
        %v5651 = vcombine.high %v5627, 0.0
        %v5652 = vcombine.high %v5634, 0.0
        %v5653 = vcombine.high %v5643, 0.0
        %v5654 = vcombine.high %v5650, 0.0
        %5656 = vrot.lane.b32.xlu0 %v5583, 16
        %v5657 = vpop.permute.xlu0 %5656
        %5660 = vrot.lane.b32.xlu0 %v5566, 32
        %v5661 = vpop.permute.xlu0 %5660
        %5664 = vrot.lane.b32.xlu0 %v5584, 48
        %v5665 = vpop.permute.xlu0 %5664
        %5668 = vrot.lane.b32.xlu0 %v5575, 64
        %v5669 = vpop.permute.xlu0 %5668
        %5672 = vrot.lane.b32.xlu0 %v5585, 80
        %v5673 = vpop.permute.xlu0 %5672
        %5676 = vrot.lane.b32.xlu0 %v5582, 96
        %v5677 = vpop.permute.xlu0 %5676
        %5680 = vrot.lane.b32.xlu0 %v5586, 112
        %v5681 = vpop.permute.xlu0 %5680
        %5684 = vrot.lane.b32.xlu0 %v5651, 16
        %v5685 = vpop.permute.xlu0 %5684
        %5688 = vrot.lane.b32.xlu0 %v5634, 32
        %v5689 = vpop.permute.xlu0 %5688
        %5692 = vrot.lane.b32.xlu0 %v5652, 48
        %v5693 = vpop.permute.xlu0 %5692
        %5696 = vrot.lane.b32.xlu0 %v5643, 64
        %v5697 = vpop.permute.xlu0 %5696
        %5700 = vrot.lane.b32.xlu0 %v5653, 80
        %v5701 = vpop.permute.xlu0 %5700
        %5704 = vrot.lane.b32.xlu0 %v5650, 96
        %v5705 = vpop.permute.xlu0 %5704
        %5708 = vrot.lane.b32.xlu0 %v5654, 112
        %v5709 = vpop.permute.xlu0 %5708
        %v5711 = vsel %vm577, %v5559, %v5657
        %v5712 = vsel %vm579, %v5711, %v5661
        %v5713 = vsel %vm581, %v5712, %v5665
        %v5714 = vsel %vm583, %v5713, %v5669
        %v5715 = vsel %vm585, %v5714, %v5673
        %v5716 = vsel %vm587, %v5715, %v5677
        %v5717 = vsel %vm589, %v5716, %v5681
        %v5718 = vsel %vm577, %v5627, %v5685
        %v5719 = vsel %vm579, %v5718, %v5689
        %v5720 = vsel %vm581, %v5719, %v5693
        %v5721 = vsel %vm583, %v5720, %v5697
        %v5722 = vsel %vm585, %v5721, %v5701
        %v5723 = vsel %vm587, %v5722, %v5705
        %v5724 = vsel %vm589, %v5723, %v5709
        %5725 = vrot.lane.b32.xlu0 %v5269, 126
        %v5726 = vpop.permute.xlu0 %5725
        %5727 = vrot.lane.b32.xlu0 %v5270, 126
        %v5728 = vpop.permute.xlu0 %5727
        %5729 = vrot.lane.b32.xlu0 %v5272, 126
        %v5730 = vpop.permute.xlu0 %5729
        %5731 = vrot.lane.b32.xlu0 %v5273, 126
        %v5732 = vpop.permute.xlu0 %5731
        %5733 = vrot.lane.b32.xlu0 %v5275, 126
        %v5734 = vpop.permute.xlu0 %5733
        %5735 = vrot.lane.b32.xlu0 %v5276, 126
        %v5736 = vpop.permute.xlu0 %5735
        %5737 = vrot.lane.b32.xlu0 %v5278, 126
        %v5738 = vpop.permute.xlu0 %5737
        %5739 = vrot.lane.b32.xlu0 %v5279, 126
        %v5740 = vpop.permute.xlu0 %5739
        %v5749 = vcombine.low %v5726, %v5734
        %v5750 = vcombine.high %v5726, %v5734
        %v5752 = vunpack.c.l.s4 1983009808
        %v5753 = vunpack.c.0.s8 %v5752
        %v5754 = vlaneseq
        %v5755 = vshrl.u32 %v5754, 7
        %v5756 = vsub.s32 %v5753, %v5755
        %v5757 = vrot.slane %v5749, %v5756
        %v5759 = vunpack.c.l.s4 1983009808
        %v5760 = vunpack.c.0.s8 %v5759
        %v5761 = vlaneseq
        %v5762 = vshrl.u32 %v5761, 7
        %v5763 = vsub.s32 %v5760, %v5762
        %v5764 = vrot.slane %v5750, %v5763
        %v5765 = vcombine.low %v5730, %v5738
        %v5766 = vcombine.high %v5730, %v5738
        %v5768 = vunpack.c.l.s4 1983009808
        %v5769 = vunpack.c.0.s8 %v5768
        %v5770 = vlaneseq
        %v5771 = vshrl.u32 %v5770, 7
        %v5772 = vsub.s32 %v5769, %v5771
        %v5773 = vrot.slane %v5765, %v5772
        %v5775 = vunpack.c.l.s4 1983009808
        %v5776 = vunpack.c.0.s8 %v5775
        %v5777 = vlaneseq
        %v5778 = vshrl.u32 %v5777, 7
        %v5779 = vsub.s32 %v5776, %v5778
        %v5780 = vrot.slane %v5766, %v5779
        %v5781 = vcombine.low %v5757, %v5773
        %v5782 = vcombine.high %v5757, %v5773
        %v5784 = vunpack.c.l.s4 1934713408
        %v5785 = vunpack.c.0.s8 %v5784
        %v5786 = vlaneseq
        %v5787 = vshrl.u32 %v5786, 7
        %v5788 = vsub.s32 %v5785, %v5787
        %v5789 = vrot.slane %v5781, %v5788
        %v5791 = vunpack.c.l.s4 1934713408
        %v5792 = vunpack.c.0.s8 %v5791
        %v5793 = vlaneseq
        %v5794 = vshrl.u32 %v5793, 7
        %v5795 = vsub.s32 %v5792, %v5794
        %v5796 = vrot.slane %v5782, %v5795
        %v5797 = vcombine.low %v5764, %v5780
        %v5798 = vcombine.high %v5764, %v5780
        %v5800 = vunpack.c.l.s4 1934713408
        %v5801 = vunpack.c.0.s8 %v5800
        %v5802 = vlaneseq
        %v5803 = vshrl.u32 %v5802, 7
        %v5804 = vsub.s32 %v5801, %v5803
        %v5805 = vrot.slane %v5797, %v5804
        %v5807 = vunpack.c.l.s4 1934713408
        %v5808 = vunpack.c.0.s8 %v5807
        %v5809 = vlaneseq
        %v5810 = vshrl.u32 %v5809, 7
        %v5811 = vsub.s32 %v5808, %v5810
        %v5812 = vrot.slane %v5798, %v5811
        %v5813 = vcombine.high %v5789, 0.0
        %v5814 = vcombine.high %v5796, 0.0
        %v5815 = vcombine.high %v5805, 0.0
        %v5816 = vcombine.high %v5812, 0.0
        %v5817 = vcombine.low %v5728, %v5736
        %v5818 = vcombine.high %v5728, %v5736
        %v5820 = vunpack.c.l.s4 1983009808
        %v5821 = vunpack.c.0.s8 %v5820
        %v5822 = vlaneseq
        %v5823 = vshrl.u32 %v5822, 7
        %v5824 = vsub.s32 %v5821, %v5823
        %v5825 = vrot.slane %v5817, %v5824
        %v5827 = vunpack.c.l.s4 1983009808
        %v5828 = vunpack.c.0.s8 %v5827
        %v5829 = vlaneseq
        %v5830 = vshrl.u32 %v5829, 7
        %v5831 = vsub.s32 %v5828, %v5830
        %v5832 = vrot.slane %v5818, %v5831
        %v5833 = vcombine.low %v5732, %v5740
        %v5834 = vcombine.high %v5732, %v5740
        %v5836 = vunpack.c.l.s4 1983009808
        %v5837 = vunpack.c.0.s8 %v5836
        %v5838 = vlaneseq
        %v5839 = vshrl.u32 %v5838, 7
        %v5840 = vsub.s32 %v5837, %v5839
        %v5841 = vrot.slane %v5833, %v5840
        %v5843 = vunpack.c.l.s4 1983009808
        %v5844 = vunpack.c.0.s8 %v5843
        %v5845 = vlaneseq
        %v5846 = vshrl.u32 %v5845, 7
        %v5847 = vsub.s32 %v5844, %v5846
        %v5848 = vrot.slane %v5834, %v5847
        %v5849 = vcombine.low %v5825, %v5841
        %v5850 = vcombine.high %v5825, %v5841
        %v5852 = vunpack.c.l.s4 1934713408
        %v5853 = vunpack.c.0.s8 %v5852
        %v5854 = vlaneseq
        %v5855 = vshrl.u32 %v5854, 7
        %v5856 = vsub.s32 %v5853, %v5855
        %v5857 = vrot.slane %v5849, %v5856
        %v5859 = vunpack.c.l.s4 1934713408
        %v5860 = vunpack.c.0.s8 %v5859
        %v5861 = vlaneseq
        %v5862 = vshrl.u32 %v5861, 7
        %v5863 = vsub.s32 %v5860, %v5862
        %v5864 = vrot.slane %v5850, %v5863
        %v5865 = vcombine.low %v5832, %v5848
        %v5866 = vcombine.high %v5832, %v5848
        %v5868 = vunpack.c.l.s4 1934713408
        %v5869 = vunpack.c.0.s8 %v5868
        %v5870 = vlaneseq
        %v5871 = vshrl.u32 %v5870, 7
        %v5872 = vsub.s32 %v5869, %v5871
        %v5873 = vrot.slane %v5865, %v5872
        %v5875 = vunpack.c.l.s4 1934713408
        %v5876 = vunpack.c.0.s8 %v5875
        %v5877 = vlaneseq
        %v5878 = vshrl.u32 %v5877, 7
        %v5879 = vsub.s32 %v5876, %v5878
        %v5880 = vrot.slane %v5866, %v5879
        %v5881 = vcombine.high %v5857, 0.0
        %v5882 = vcombine.high %v5864, 0.0
        %v5883 = vcombine.high %v5873, 0.0
        %v5884 = vcombine.high %v5880, 0.0
        %5886 = vrot.lane.b32.xlu0 %v5813, 16
        %v5887 = vpop.permute.xlu0 %5886
        %5890 = vrot.lane.b32.xlu0 %v5796, 32
        %v5891 = vpop.permute.xlu0 %5890
        %5894 = vrot.lane.b32.xlu0 %v5814, 48
        %v5895 = vpop.permute.xlu0 %5894
        %5898 = vrot.lane.b32.xlu0 %v5805, 64
        %v5899 = vpop.permute.xlu0 %5898
        %5902 = vrot.lane.b32.xlu0 %v5815, 80
        %v5903 = vpop.permute.xlu0 %5902
        %5906 = vrot.lane.b32.xlu0 %v5812, 96
        %v5907 = vpop.permute.xlu0 %5906
        %5910 = vrot.lane.b32.xlu0 %v5816, 112
        %v5911 = vpop.permute.xlu0 %5910
        %5914 = vrot.lane.b32.xlu0 %v5881, 16
        %v5915 = vpop.permute.xlu0 %5914
        %5918 = vrot.lane.b32.xlu0 %v5864, 32
        %v5919 = vpop.permute.xlu0 %5918
        %5922 = vrot.lane.b32.xlu0 %v5882, 48
        %v5923 = vpop.permute.xlu0 %5922
        %5926 = vrot.lane.b32.xlu0 %v5873, 64
        %v5927 = vpop.permute.xlu0 %5926
        %5930 = vrot.lane.b32.xlu0 %v5883, 80
        %v5931 = vpop.permute.xlu0 %5930
        %5934 = vrot.lane.b32.xlu0 %v5880, 96
        %v5935 = vpop.permute.xlu0 %5934
        %5938 = vrot.lane.b32.xlu0 %v5884, 112
        %v5939 = vpop.permute.xlu0 %5938
        %v5941 = vsel %vm577, %v5789, %v5887
        %v5942 = vsel %vm579, %v5941, %v5891
        %v5943 = vsel %vm581, %v5942, %v5895
        %v5944 = vsel %vm583, %v5943, %v5899
        %v5945 = vsel %vm585, %v5944, %v5903
        %v5946 = vsel %vm587, %v5945, %v5907
        %v5947 = vsel %vm589, %v5946, %v5911
        %v5948 = vsel %vm577, %v5857, %v5915
        %v5949 = vsel %vm579, %v5948, %v5919
        %v5950 = vsel %vm581, %v5949, %v5923
        %v5951 = vsel %vm583, %v5950, %v5927
        %v5952 = vsel %vm585, %v5951, %v5931
        %v5953 = vsel %vm587, %v5952, %v5935
        %v5954 = vsel %vm589, %v5953, %v5939
        %v5959 = vrot.slane %v5269, 1
        %v5960 = vrot.slane %v5270, 1
        %v5961 = vsel %vm1070, %v5959, %v5960
        %v5962 = vrot.slane %v5271, 1
        %v5963 = vsel %vm1070, %v5960, %v5962
        %v5964 = vrot.slane %v5272, 1
        %v5965 = vrot.slane %v5273, 1
        %v5966 = vsel %vm1070, %v5964, %v5965
        %v5967 = vrot.slane %v5274, 1
        %v5968 = vsel %vm1070, %v5965, %v5967
        %v5969 = vrot.slane %v5275, 1
        %v5970 = vrot.slane %v5276, 1
        %v5971 = vsel %vm1070, %v5969, %v5970
        %v5972 = vrot.slane %v5277, 1
        %v5973 = vsel %vm1070, %v5970, %v5972
        %v5974 = vrot.slane %v5278, 1
        %v5975 = vrot.slane %v5279, 1
        %v5976 = vsel %vm1070, %v5974, %v5975
        %v5977 = vrot.slane %v5280, 1
        %v5978 = vsel %vm1070, %v5975, %v5977
        %v5987 = vcombine.low %v5961, %v5971
        %v5988 = vcombine.high %v5961, %v5971
        %v5990 = vunpack.c.l.s4 1983009808
        %v5991 = vunpack.c.0.s8 %v5990
        %v5992 = vlaneseq
        %v5993 = vshrl.u32 %v5992, 7
        %v5994 = vsub.s32 %v5991, %v5993
        %v5995 = vrot.slane %v5987, %v5994
        %v5997 = vunpack.c.l.s4 1983009808
        %v5998 = vunpack.c.0.s8 %v5997
        %v5999 = vlaneseq
        %v6000 = vshrl.u32 %v5999, 7
        %v6001 = vsub.s32 %v5998, %v6000
        %v6002 = vrot.slane %v5988, %v6001
        %v6003 = vcombine.low %v5966, %v5976
        %v6004 = vcombine.high %v5966, %v5976
        %v6006 = vunpack.c.l.s4 1983009808
        %v6007 = vunpack.c.0.s8 %v6006
        %v6008 = vlaneseq
        %v6009 = vshrl.u32 %v6008, 7
        %v6010 = vsub.s32 %v6007, %v6009
        %v6011 = vrot.slane %v6003, %v6010
        %v6013 = vunpack.c.l.s4 1983009808
        %v6014 = vunpack.c.0.s8 %v6013
        %v6015 = vlaneseq
        %v6016 = vshrl.u32 %v6015, 7
        %v6017 = vsub.s32 %v6014, %v6016
        %v6018 = vrot.slane %v6004, %v6017
        %v6019 = vcombine.low %v5995, %v6011
        %v6020 = vcombine.high %v5995, %v6011
        %v6022 = vunpack.c.l.s4 1934713408
        %v6023 = vunpack.c.0.s8 %v6022
        %v6024 = vlaneseq
        %v6025 = vshrl.u32 %v6024, 7
        %v6026 = vsub.s32 %v6023, %v6025
        %v6027 = vrot.slane %v6019, %v6026
        %v6029 = vunpack.c.l.s4 1934713408
        %v6030 = vunpack.c.0.s8 %v6029
        %v6031 = vlaneseq
        %v6032 = vshrl.u32 %v6031, 7
        %v6033 = vsub.s32 %v6030, %v6032
        %v6034 = vrot.slane %v6020, %v6033
        %v6035 = vcombine.low %v6002, %v6018
        %v6036 = vcombine.high %v6002, %v6018
        %v6038 = vunpack.c.l.s4 1934713408
        %v6039 = vunpack.c.0.s8 %v6038
        %v6040 = vlaneseq
        %v6041 = vshrl.u32 %v6040, 7
        %v6042 = vsub.s32 %v6039, %v6041
        %v6043 = vrot.slane %v6035, %v6042
        %v6045 = vunpack.c.l.s4 1934713408
        %v6046 = vunpack.c.0.s8 %v6045
        %v6047 = vlaneseq
        %v6048 = vshrl.u32 %v6047, 7
        %v6049 = vsub.s32 %v6046, %v6048
        %v6050 = vrot.slane %v6036, %v6049
        %v6051 = vcombine.high %v6027, 0.0
        %v6052 = vcombine.high %v6034, 0.0
        %v6053 = vcombine.high %v6043, 0.0
        %v6054 = vcombine.high %v6050, 0.0
        %v6055 = vcombine.low %v5963, %v5973
        %v6056 = vcombine.high %v5963, %v5973
        %v6058 = vunpack.c.l.s4 1983009808
        %v6059 = vunpack.c.0.s8 %v6058
        %v6060 = vlaneseq
        %v6061 = vshrl.u32 %v6060, 7
        %v6062 = vsub.s32 %v6059, %v6061
        %v6063 = vrot.slane %v6055, %v6062
        %v6065 = vunpack.c.l.s4 1983009808
        %v6066 = vunpack.c.0.s8 %v6065
        %v6067 = vlaneseq
        %v6068 = vshrl.u32 %v6067, 7
        %v6069 = vsub.s32 %v6066, %v6068
        %v6070 = vrot.slane %v6056, %v6069
        %v6071 = vcombine.low %v5968, %v5978
        %v6072 = vcombine.high %v5968, %v5978
        %v6074 = vunpack.c.l.s4 1983009808
        %v6075 = vunpack.c.0.s8 %v6074
        %v6076 = vlaneseq
        %v6077 = vshrl.u32 %v6076, 7
        %v6078 = vsub.s32 %v6075, %v6077
        %v6079 = vrot.slane %v6071, %v6078
        %v6081 = vunpack.c.l.s4 1983009808
        %v6082 = vunpack.c.0.s8 %v6081
        %v6083 = vlaneseq
        %v6084 = vshrl.u32 %v6083, 7
        %v6085 = vsub.s32 %v6082, %v6084
        %v6086 = vrot.slane %v6072, %v6085
        %v6087 = vcombine.low %v6063, %v6079
        %v6088 = vcombine.high %v6063, %v6079
        %v6090 = vunpack.c.l.s4 1934713408
        %v6091 = vunpack.c.0.s8 %v6090
        %v6092 = vlaneseq
        %v6093 = vshrl.u32 %v6092, 7
        %v6094 = vsub.s32 %v6091, %v6093
        %v6095 = vrot.slane %v6087, %v6094
        %v6097 = vunpack.c.l.s4 1934713408
        %v6098 = vunpack.c.0.s8 %v6097
        %v6099 = vlaneseq
        %v6100 = vshrl.u32 %v6099, 7
        %v6101 = vsub.s32 %v6098, %v6100
        %v6102 = vrot.slane %v6088, %v6101
        %v6103 = vcombine.low %v6070, %v6086
        %v6104 = vcombine.high %v6070, %v6086
        %v6106 = vunpack.c.l.s4 1934713408
        %v6107 = vunpack.c.0.s8 %v6106
        %v6108 = vlaneseq
        %v6109 = vshrl.u32 %v6108, 7
        %v6110 = vsub.s32 %v6107, %v6109
        %v6111 = vrot.slane %v6103, %v6110
        %v6113 = vunpack.c.l.s4 1934713408
        %v6114 = vunpack.c.0.s8 %v6113
        %v6115 = vlaneseq
        %v6116 = vshrl.u32 %v6115, 7
        %v6117 = vsub.s32 %v6114, %v6116
        %v6118 = vrot.slane %v6104, %v6117
        %v6119 = vcombine.high %v6095, 0.0
        %v6120 = vcombine.high %v6102, 0.0
        %v6121 = vcombine.high %v6111, 0.0
        %v6122 = vcombine.high %v6118, 0.0
        %6124 = vrot.lane.b32.xlu0 %v6051, 16
        %v6125 = vpop.permute.xlu0 %6124
        %6128 = vrot.lane.b32.xlu0 %v6034, 32
        %v6129 = vpop.permute.xlu0 %6128
        %6132 = vrot.lane.b32.xlu0 %v6052, 48
        %v6133 = vpop.permute.xlu0 %6132
        %6136 = vrot.lane.b32.xlu0 %v6043, 64
        %v6137 = vpop.permute.xlu0 %6136
        %6140 = vrot.lane.b32.xlu0 %v6053, 80
        %v6141 = vpop.permute.xlu0 %6140
        %6144 = vrot.lane.b32.xlu0 %v6050, 96
        %v6145 = vpop.permute.xlu0 %6144
        %6148 = vrot.lane.b32.xlu0 %v6054, 112
        %v6149 = vpop.permute.xlu0 %6148
        %6152 = vrot.lane.b32.xlu0 %v6119, 16
        %v6153 = vpop.permute.xlu0 %6152
        %6156 = vrot.lane.b32.xlu0 %v6102, 32
        %v6157 = vpop.permute.xlu0 %6156
        %6160 = vrot.lane.b32.xlu0 %v6120, 48
        %v6161 = vpop.permute.xlu0 %6160
        %6164 = vrot.lane.b32.xlu0 %v6111, 64
        %v6165 = vpop.permute.xlu0 %6164
        %6168 = vrot.lane.b32.xlu0 %v6121, 80
        %v6169 = vpop.permute.xlu0 %6168
        %6172 = vrot.lane.b32.xlu0 %v6118, 96
        %v6173 = vpop.permute.xlu0 %6172
        %6176 = vrot.lane.b32.xlu0 %v6122, 112
        %v6177 = vpop.permute.xlu0 %6176
        %v6179 = vsel %vm577, %v6027, %v6125
        %v6180 = vsel %vm579, %v6179, %v6129
        %v6181 = vsel %vm581, %v6180, %v6133
        %v6182 = vsel %vm583, %v6181, %v6137
        %v6183 = vsel %vm585, %v6182, %v6141
        %v6184 = vsel %vm587, %v6183, %v6145
        %v6185 = vsel %vm589, %v6184, %v6149
        %v6186 = vsel %vm577, %v6095, %v6153
        %v6187 = vsel %vm579, %v6186, %v6157
        %v6188 = vsel %vm581, %v6187, %v6161
        %v6189 = vsel %vm583, %v6188, %v6165
        %v6190 = vsel %vm585, %v6189, %v6169
        %v6191 = vsel %vm587, %v6190, %v6173
        %v6192 = vsel %vm589, %v6191, %v6177
        %6193 = vrot.lane.b32.xlu0 %v5961, 127
        %v6194 = vpop.permute.xlu0 %6193
        %6195 = vrot.lane.b32.xlu0 %v5963, 127
        %v6196 = vpop.permute.xlu0 %6195
        %6197 = vrot.lane.b32.xlu0 %v5966, 127
        %v6198 = vpop.permute.xlu0 %6197
        %6199 = vrot.lane.b32.xlu0 %v5968, 127
        %v6200 = vpop.permute.xlu0 %6199
        %6201 = vrot.lane.b32.xlu0 %v5971, 127
        %v6202 = vpop.permute.xlu0 %6201
        %6203 = vrot.lane.b32.xlu0 %v5973, 127
        %v6204 = vpop.permute.xlu0 %6203
        %6205 = vrot.lane.b32.xlu0 %v5976, 127
        %v6206 = vpop.permute.xlu0 %6205
        %6207 = vrot.lane.b32.xlu0 %v5978, 127
        %v6208 = vpop.permute.xlu0 %6207
        %v6217 = vcombine.low %v6194, %v6202
        %v6218 = vcombine.high %v6194, %v6202
        %v6220 = vunpack.c.l.s4 1983009808
        %v6221 = vunpack.c.0.s8 %v6220
        %v6222 = vlaneseq
        %v6223 = vshrl.u32 %v6222, 7
        %v6224 = vsub.s32 %v6221, %v6223
        %v6225 = vrot.slane %v6217, %v6224
        %v6227 = vunpack.c.l.s4 1983009808
        %v6228 = vunpack.c.0.s8 %v6227
        %v6229 = vlaneseq
        %v6230 = vshrl.u32 %v6229, 7
        %v6231 = vsub.s32 %v6228, %v6230
        %v6232 = vrot.slane %v6218, %v6231
        %v6233 = vcombine.low %v6198, %v6206
        %v6234 = vcombine.high %v6198, %v6206
        %v6236 = vunpack.c.l.s4 1983009808
        %v6237 = vunpack.c.0.s8 %v6236
        %v6238 = vlaneseq
        %v6239 = vshrl.u32 %v6238, 7
        %v6240 = vsub.s32 %v6237, %v6239
        %v6241 = vrot.slane %v6233, %v6240
        %v6243 = vunpack.c.l.s4 1983009808
        %v6244 = vunpack.c.0.s8 %v6243
        %v6245 = vlaneseq
        %v6246 = vshrl.u32 %v6245, 7
        %v6247 = vsub.s32 %v6244, %v6246
        %v6248 = vrot.slane %v6234, %v6247
        %v6249 = vcombine.low %v6225, %v6241
        %v6250 = vcombine.high %v6225, %v6241
        %v6252 = vunpack.c.l.s4 1934713408
        %v6253 = vunpack.c.0.s8 %v6252
        %v6254 = vlaneseq
        %v6255 = vshrl.u32 %v6254, 7
        %v6256 = vsub.s32 %v6253, %v6255
        %v6257 = vrot.slane %v6249, %v6256
        %v6259 = vunpack.c.l.s4 1934713408
        %v6260 = vunpack.c.0.s8 %v6259
        %v6261 = vlaneseq
        %v6262 = vshrl.u32 %v6261, 7
        %v6263 = vsub.s32 %v6260, %v6262
        %v6264 = vrot.slane %v6250, %v6263
        %v6265 = vcombine.low %v6232, %v6248
        %v6266 = vcombine.high %v6232, %v6248
        %v6268 = vunpack.c.l.s4 1934713408
        %v6269 = vunpack.c.0.s8 %v6268
        %v6270 = vlaneseq
        %v6271 = vshrl.u32 %v6270, 7
        %v6272 = vsub.s32 %v6269, %v6271
        %v6273 = vrot.slane %v6265, %v6272
        %v6275 = vunpack.c.l.s4 1934713408
        %v6276 = vunpack.c.0.s8 %v6275
        %v6277 = vlaneseq
        %v6278 = vshrl.u32 %v6277, 7
        %v6279 = vsub.s32 %v6276, %v6278
        %v6280 = vrot.slane %v6266, %v6279
        %v6281 = vcombine.high %v6257, 0.0
        %v6282 = vcombine.high %v6264, 0.0
        %v6283 = vcombine.high %v6273, 0.0
        %v6284 = vcombine.high %v6280, 0.0
        %v6285 = vcombine.low %v6196, %v6204
        %v6286 = vcombine.high %v6196, %v6204
        %v6288 = vunpack.c.l.s4 1983009808
        %v6289 = vunpack.c.0.s8 %v6288
        %v6290 = vlaneseq
        %v6291 = vshrl.u32 %v6290, 7
        %v6292 = vsub.s32 %v6289, %v6291
        %v6293 = vrot.slane %v6285, %v6292
        %v6295 = vunpack.c.l.s4 1983009808
        %v6296 = vunpack.c.0.s8 %v6295
        %v6297 = vlaneseq
        %v6298 = vshrl.u32 %v6297, 7
        %v6299 = vsub.s32 %v6296, %v6298
        %v6300 = vrot.slane %v6286, %v6299
        %v6301 = vcombine.low %v6200, %v6208
        %v6302 = vcombine.high %v6200, %v6208
        %v6304 = vunpack.c.l.s4 1983009808
        %v6305 = vunpack.c.0.s8 %v6304
        %v6306 = vlaneseq
        %v6307 = vshrl.u32 %v6306, 7
        %v6308 = vsub.s32 %v6305, %v6307
        %v6309 = vrot.slane %v6301, %v6308
        %v6311 = vunpack.c.l.s4 1983009808
        %v6312 = vunpack.c.0.s8 %v6311
        %v6313 = vlaneseq
        %v6314 = vshrl.u32 %v6313, 7
        %v6315 = vsub.s32 %v6312, %v6314
        %v6316 = vrot.slane %v6302, %v6315
        %v6317 = vcombine.low %v6293, %v6309
        %v6318 = vcombine.high %v6293, %v6309
        %v6320 = vunpack.c.l.s4 1934713408
        %v6321 = vunpack.c.0.s8 %v6320
        %v6322 = vlaneseq
        %v6323 = vshrl.u32 %v6322, 7
        %v6324 = vsub.s32 %v6321, %v6323
        %v6325 = vrot.slane %v6317, %v6324
        %v6327 = vunpack.c.l.s4 1934713408
        %v6328 = vunpack.c.0.s8 %v6327
        %v6329 = vlaneseq
        %v6330 = vshrl.u32 %v6329, 7
        %v6331 = vsub.s32 %v6328, %v6330
        %v6332 = vrot.slane %v6318, %v6331
        %v6333 = vcombine.low %v6300, %v6316
        %v6334 = vcombine.high %v6300, %v6316
        %v6336 = vunpack.c.l.s4 1934713408
        %v6337 = vunpack.c.0.s8 %v6336
        %v6338 = vlaneseq
        %v6339 = vshrl.u32 %v6338, 7
        %v6340 = vsub.s32 %v6337, %v6339
        %v6341 = vrot.slane %v6333, %v6340
        %v6343 = vunpack.c.l.s4 1934713408
        %v6344 = vunpack.c.0.s8 %v6343
        %v6345 = vlaneseq
        %v6346 = vshrl.u32 %v6345, 7
        %v6347 = vsub.s32 %v6344, %v6346
        %v6348 = vrot.slane %v6334, %v6347
        %v6349 = vcombine.high %v6325, 0.0
        %v6350 = vcombine.high %v6332, 0.0
        %v6351 = vcombine.high %v6341, 0.0
        %v6352 = vcombine.high %v6348, 0.0
        %6354 = vrot.lane.b32.xlu0 %v6281, 16
        %v6355 = vpop.permute.xlu0 %6354
        %6358 = vrot.lane.b32.xlu0 %v6264, 32
        %v6359 = vpop.permute.xlu0 %6358
        %6362 = vrot.lane.b32.xlu0 %v6282, 48
        %v6363 = vpop.permute.xlu0 %6362
        %6366 = vrot.lane.b32.xlu0 %v6273, 64
        %v6367 = vpop.permute.xlu0 %6366
        %6370 = vrot.lane.b32.xlu0 %v6283, 80
        %v6371 = vpop.permute.xlu0 %6370
        %6374 = vrot.lane.b32.xlu0 %v6280, 96
        %v6375 = vpop.permute.xlu0 %6374
        %6378 = vrot.lane.b32.xlu0 %v6284, 112
        %v6379 = vpop.permute.xlu0 %6378
        %6382 = vrot.lane.b32.xlu0 %v6349, 16
        %v6383 = vpop.permute.xlu0 %6382
        %6386 = vrot.lane.b32.xlu0 %v6332, 32
        %v6387 = vpop.permute.xlu0 %6386
        %6390 = vrot.lane.b32.xlu0 %v6350, 48
        %v6391 = vpop.permute.xlu0 %6390
        %6394 = vrot.lane.b32.xlu0 %v6341, 64
        %v6395 = vpop.permute.xlu0 %6394
        %6398 = vrot.lane.b32.xlu0 %v6351, 80
        %v6399 = vpop.permute.xlu0 %6398
        %6402 = vrot.lane.b32.xlu0 %v6348, 96
        %v6403 = vpop.permute.xlu0 %6402
        %6406 = vrot.lane.b32.xlu0 %v6352, 112
        %v6407 = vpop.permute.xlu0 %6406
        %v6409 = vsel %vm577, %v6257, %v6355
        %v6410 = vsel %vm579, %v6409, %v6359
        %v6411 = vsel %vm581, %v6410, %v6363
        %v6412 = vsel %vm583, %v6411, %v6367
        %v6413 = vsel %vm585, %v6412, %v6371
        %v6414 = vsel %vm587, %v6413, %v6375
        %v6415 = vsel %vm589, %v6414, %v6379
        %v6416 = vsel %vm577, %v6325, %v6383
        %v6417 = vsel %vm579, %v6416, %v6387
        %v6418 = vsel %vm581, %v6417, %v6391
        %v6419 = vsel %vm583, %v6418, %v6395
        %v6420 = vsel %vm585, %v6419, %v6399
        %v6421 = vsel %vm587, %v6420, %v6403
        %v6422 = vsel %vm589, %v6421, %v6407
        %6423 = vrot.lane.b32.xlu0 %v5961, 126
        %v6424 = vpop.permute.xlu0 %6423
        %6425 = vrot.lane.b32.xlu0 %v5963, 126
        %v6426 = vpop.permute.xlu0 %6425
        %6427 = vrot.lane.b32.xlu0 %v5966, 126
        %v6428 = vpop.permute.xlu0 %6427
        %6429 = vrot.lane.b32.xlu0 %v5968, 126
        %v6430 = vpop.permute.xlu0 %6429
        %6431 = vrot.lane.b32.xlu0 %v5971, 126
        %v6432 = vpop.permute.xlu0 %6431
        %6433 = vrot.lane.b32.xlu0 %v5973, 126
        %v6434 = vpop.permute.xlu0 %6433
        %6435 = vrot.lane.b32.xlu0 %v5976, 126
        %v6436 = vpop.permute.xlu0 %6435
        %6437 = vrot.lane.b32.xlu0 %v5978, 126
        %v6438 = vpop.permute.xlu0 %6437
        %v6447 = vcombine.low %v6424, %v6432
        %v6448 = vcombine.high %v6424, %v6432
        %v6450 = vunpack.c.l.s4 1983009808
        %v6451 = vunpack.c.0.s8 %v6450
        %v6452 = vlaneseq
        %v6453 = vshrl.u32 %v6452, 7
        %v6454 = vsub.s32 %v6451, %v6453
        %v6455 = vrot.slane %v6447, %v6454
        %v6457 = vunpack.c.l.s4 1983009808
        %v6458 = vunpack.c.0.s8 %v6457
        %v6459 = vlaneseq
        %v6460 = vshrl.u32 %v6459, 7
        %v6461 = vsub.s32 %v6458, %v6460
        %v6462 = vrot.slane %v6448, %v6461
        %v6463 = vcombine.low %v6428, %v6436
        %v6464 = vcombine.high %v6428, %v6436
        %v6466 = vunpack.c.l.s4 1983009808
        %v6467 = vunpack.c.0.s8 %v6466
        %v6468 = vlaneseq
        %v6469 = vshrl.u32 %v6468, 7
        %v6470 = vsub.s32 %v6467, %v6469
        %v6471 = vrot.slane %v6463, %v6470
        %v6473 = vunpack.c.l.s4 1983009808
        %v6474 = vunpack.c.0.s8 %v6473
        %v6475 = vlaneseq
        %v6476 = vshrl.u32 %v6475, 7
        %v6477 = vsub.s32 %v6474, %v6476
        %v6478 = vrot.slane %v6464, %v6477
        %v6479 = vcombine.low %v6455, %v6471
        %v6480 = vcombine.high %v6455, %v6471
        %v6482 = vunpack.c.l.s4 1934713408
        %v6483 = vunpack.c.0.s8 %v6482
        %v6484 = vlaneseq
        %v6485 = vshrl.u32 %v6484, 7
        %v6486 = vsub.s32 %v6483, %v6485
        %v6487 = vrot.slane %v6479, %v6486
        %v6489 = vunpack.c.l.s4 1934713408
        %v6490 = vunpack.c.0.s8 %v6489
        %v6491 = vlaneseq
        %v6492 = vshrl.u32 %v6491, 7
        %v6493 = vsub.s32 %v6490, %v6492
        %v6494 = vrot.slane %v6480, %v6493
        %v6495 = vcombine.low %v6462, %v6478
        %v6496 = vcombine.high %v6462, %v6478
        %v6498 = vunpack.c.l.s4 1934713408
        %v6499 = vunpack.c.0.s8 %v6498
        %v6500 = vlaneseq
        %v6501 = vshrl.u32 %v6500, 7
        %v6502 = vsub.s32 %v6499, %v6501
        %v6503 = vrot.slane %v6495, %v6502
        %v6505 = vunpack.c.l.s4 1934713408
        %v6506 = vunpack.c.0.s8 %v6505
        %v6507 = vlaneseq
        %v6508 = vshrl.u32 %v6507, 7
        %v6509 = vsub.s32 %v6506, %v6508
        %v6510 = vrot.slane %v6496, %v6509
        %v6511 = vcombine.high %v6487, 0.0
        %v6512 = vcombine.high %v6494, 0.0
        %v6513 = vcombine.high %v6503, 0.0
        %v6514 = vcombine.high %v6510, 0.0
        %v6515 = vcombine.low %v6426, %v6434
        %v6516 = vcombine.high %v6426, %v6434
        %v6518 = vunpack.c.l.s4 1983009808
        %v6519 = vunpack.c.0.s8 %v6518
        %v6520 = vlaneseq
        %v6521 = vshrl.u32 %v6520, 7
        %v6522 = vsub.s32 %v6519, %v6521
        %v6523 = vrot.slane %v6515, %v6522
        %v6525 = vunpack.c.l.s4 1983009808
        %v6526 = vunpack.c.0.s8 %v6525
        %v6527 = vlaneseq
        %v6528 = vshrl.u32 %v6527, 7
        %v6529 = vsub.s32 %v6526, %v6528
        %v6530 = vrot.slane %v6516, %v6529
        %v6531 = vcombine.low %v6430, %v6438
        %v6532 = vcombine.high %v6430, %v6438
        %v6534 = vunpack.c.l.s4 1983009808
        %v6535 = vunpack.c.0.s8 %v6534
        %v6536 = vlaneseq
        %v6537 = vshrl.u32 %v6536, 7
        %v6538 = vsub.s32 %v6535, %v6537
        %v6539 = vrot.slane %v6531, %v6538
        %v6541 = vunpack.c.l.s4 1983009808
        %v6542 = vunpack.c.0.s8 %v6541
        %v6543 = vlaneseq
        %v6544 = vshrl.u32 %v6543, 7
        %v6545 = vsub.s32 %v6542, %v6544
        %v6546 = vrot.slane %v6532, %v6545
        %v6547 = vcombine.low %v6523, %v6539
        %v6548 = vcombine.high %v6523, %v6539
        %v6550 = vunpack.c.l.s4 1934713408
        %v6551 = vunpack.c.0.s8 %v6550
        %v6552 = vlaneseq
        %v6553 = vshrl.u32 %v6552, 7
        %v6554 = vsub.s32 %v6551, %v6553
        %v6555 = vrot.slane %v6547, %v6554
        %v6557 = vunpack.c.l.s4 1934713408
        %v6558 = vunpack.c.0.s8 %v6557
        %v6559 = vlaneseq
        %v6560 = vshrl.u32 %v6559, 7
        %v6561 = vsub.s32 %v6558, %v6560
        %v6562 = vrot.slane %v6548, %v6561
        %v6563 = vcombine.low %v6530, %v6546
        %v6564 = vcombine.high %v6530, %v6546
        %v6566 = vunpack.c.l.s4 1934713408
        %v6567 = vunpack.c.0.s8 %v6566
        %v6568 = vlaneseq
        %v6569 = vshrl.u32 %v6568, 7
        %v6570 = vsub.s32 %v6567, %v6569
        %v6571 = vrot.slane %v6563, %v6570
        %v6573 = vunpack.c.l.s4 1934713408
        %v6574 = vunpack.c.0.s8 %v6573
        %v6575 = vlaneseq
        %v6576 = vshrl.u32 %v6575, 7
        %v6577 = vsub.s32 %v6574, %v6576
        %v6578 = vrot.slane %v6564, %v6577
        %v6579 = vcombine.high %v6555, 0.0
        %v6580 = vcombine.high %v6562, 0.0
        %v6581 = vcombine.high %v6571, 0.0
        %v6582 = vcombine.high %v6578, 0.0
        %6584 = vrot.lane.b32.xlu0 %v6511, 16
        %v6585 = vpop.permute.xlu0 %6584
        %6588 = vrot.lane.b32.xlu0 %v6494, 32
        %v6589 = vpop.permute.xlu0 %6588
        %6592 = vrot.lane.b32.xlu0 %v6512, 48
        %v6593 = vpop.permute.xlu0 %6592
        %6596 = vrot.lane.b32.xlu0 %v6503, 64
        %v6597 = vpop.permute.xlu0 %6596
        %6600 = vrot.lane.b32.xlu0 %v6513, 80
        %v6601 = vpop.permute.xlu0 %6600
        %6604 = vrot.lane.b32.xlu0 %v6510, 96
        %v6605 = vpop.permute.xlu0 %6604
        %6608 = vrot.lane.b32.xlu0 %v6514, 112
        %v6609 = vpop.permute.xlu0 %6608
        %6612 = vrot.lane.b32.xlu0 %v6579, 16
        %v6613 = vpop.permute.xlu0 %6612
        %6616 = vrot.lane.b32.xlu0 %v6562, 32
        %v6617 = vpop.permute.xlu0 %6616
        %6620 = vrot.lane.b32.xlu0 %v6580, 48
        %v6621 = vpop.permute.xlu0 %6620
        %6624 = vrot.lane.b32.xlu0 %v6571, 64
        %v6625 = vpop.permute.xlu0 %6624
        %6628 = vrot.lane.b32.xlu0 %v6581, 80
        %v6629 = vpop.permute.xlu0 %6628
        %6632 = vrot.lane.b32.xlu0 %v6578, 96
        %v6633 = vpop.permute.xlu0 %6632
        %6636 = vrot.lane.b32.xlu0 %v6582, 112
        %v6637 = vpop.permute.xlu0 %6636
        %v6639 = vsel %vm577, %v6487, %v6585
        %v6640 = vsel %vm579, %v6639, %v6589
        %v6641 = vsel %vm581, %v6640, %v6593
        %v6642 = vsel %vm583, %v6641, %v6597
        %v6643 = vsel %vm585, %v6642, %v6601
        %v6644 = vsel %vm587, %v6643, %v6605
        %v6645 = vsel %vm589, %v6644, %v6609
        %v6646 = vsel %vm577, %v6555, %v6613
        %v6647 = vsel %vm579, %v6646, %v6617
        %v6648 = vsel %vm581, %v6647, %v6621
        %v6649 = vsel %vm583, %v6648, %v6625
        %v6650 = vsel %vm585, %v6649, %v6629
        %v6651 = vsel %vm587, %v6650, %v6633
        %v6652 = vsel %vm589, %v6651, %v6637
        %v6653 = vrot.slane %v5269, 2
        %v6654 = vrot.slane %v5270, 2
        %v6655 = vsel %vm1765, %v6653, %v6654
        %v6656 = vrot.slane %v5271, 2
        %v6657 = vsel %vm1765, %v6654, %v6656
        %v6658 = vrot.slane %v5272, 2
        %v6659 = vrot.slane %v5273, 2
        %v6660 = vsel %vm1765, %v6658, %v6659
        %v6661 = vrot.slane %v5274, 2
        %v6662 = vsel %vm1765, %v6659, %v6661
        %v6663 = vrot.slane %v5275, 2
        %v6664 = vrot.slane %v5276, 2
        %v6665 = vsel %vm1765, %v6663, %v6664
        %v6666 = vrot.slane %v5277, 2
        %v6667 = vsel %vm1765, %v6664, %v6666
        %v6668 = vrot.slane %v5278, 2
        %v6669 = vrot.slane %v5279, 2
        %v6670 = vsel %vm1765, %v6668, %v6669
        %v6671 = vrot.slane %v5280, 2
        %v6672 = vsel %vm1765, %v6669, %v6671
        %v6681 = vcombine.low %v6655, %v6665
        %v6682 = vcombine.high %v6655, %v6665
        %v6684 = vunpack.c.l.s4 1983009808
        %v6685 = vunpack.c.0.s8 %v6684
        %v6686 = vlaneseq
        %v6687 = vshrl.u32 %v6686, 7
        %v6688 = vsub.s32 %v6685, %v6687
        %v6689 = vrot.slane %v6681, %v6688
        %v6691 = vunpack.c.l.s4 1983009808
        %v6692 = vunpack.c.0.s8 %v6691
        %v6693 = vlaneseq
        %v6694 = vshrl.u32 %v6693, 7
        %v6695 = vsub.s32 %v6692, %v6694
        %v6696 = vrot.slane %v6682, %v6695
        %v6697 = vcombine.low %v6660, %v6670
        %v6698 = vcombine.high %v6660, %v6670
        %v6700 = vunpack.c.l.s4 1983009808
        %v6701 = vunpack.c.0.s8 %v6700
        %v6702 = vlaneseq
        %v6703 = vshrl.u32 %v6702, 7
        %v6704 = vsub.s32 %v6701, %v6703
        %v6705 = vrot.slane %v6697, %v6704
        %v6707 = vunpack.c.l.s4 1983009808
        %v6708 = vunpack.c.0.s8 %v6707
        %v6709 = vlaneseq
        %v6710 = vshrl.u32 %v6709, 7
        %v6711 = vsub.s32 %v6708, %v6710
        %v6712 = vrot.slane %v6698, %v6711
        %v6713 = vcombine.low %v6689, %v6705
        %v6714 = vcombine.high %v6689, %v6705
        %v6716 = vunpack.c.l.s4 1934713408
        %v6717 = vunpack.c.0.s8 %v6716
        %v6718 = vlaneseq
        %v6719 = vshrl.u32 %v6718, 7
        %v6720 = vsub.s32 %v6717, %v6719
        %v6721 = vrot.slane %v6713, %v6720
        %v6723 = vunpack.c.l.s4 1934713408
        %v6724 = vunpack.c.0.s8 %v6723
        %v6725 = vlaneseq
        %v6726 = vshrl.u32 %v6725, 7
        %v6727 = vsub.s32 %v6724, %v6726
        %v6728 = vrot.slane %v6714, %v6727
        %v6729 = vcombine.low %v6696, %v6712
        %v6730 = vcombine.high %v6696, %v6712
        %v6732 = vunpack.c.l.s4 1934713408
        %v6733 = vunpack.c.0.s8 %v6732
        %v6734 = vlaneseq
        %v6735 = vshrl.u32 %v6734, 7
        %v6736 = vsub.s32 %v6733, %v6735
        %v6737 = vrot.slane %v6729, %v6736
        %v6739 = vunpack.c.l.s4 1934713408
        %v6740 = vunpack.c.0.s8 %v6739
        %v6741 = vlaneseq
        %v6742 = vshrl.u32 %v6741, 7
        %v6743 = vsub.s32 %v6740, %v6742
        %v6744 = vrot.slane %v6730, %v6743
        %v6745 = vcombine.high %v6721, 0.0
        %v6746 = vcombine.high %v6728, 0.0
        %v6747 = vcombine.high %v6737, 0.0
        %v6748 = vcombine.high %v6744, 0.0
        %v6749 = vcombine.low %v6657, %v6667
        %v6750 = vcombine.high %v6657, %v6667
        %v6752 = vunpack.c.l.s4 1983009808
        %v6753 = vunpack.c.0.s8 %v6752
        %v6754 = vlaneseq
        %v6755 = vshrl.u32 %v6754, 7
        %v6756 = vsub.s32 %v6753, %v6755
        %v6757 = vrot.slane %v6749, %v6756
        %v6759 = vunpack.c.l.s4 1983009808
        %v6760 = vunpack.c.0.s8 %v6759
        %v6761 = vlaneseq
        %v6762 = vshrl.u32 %v6761, 7
        %v6763 = vsub.s32 %v6760, %v6762
        %v6764 = vrot.slane %v6750, %v6763
        %v6765 = vcombine.low %v6662, %v6672
        %v6766 = vcombine.high %v6662, %v6672
        %v6768 = vunpack.c.l.s4 1983009808
        %v6769 = vunpack.c.0.s8 %v6768
        %v6770 = vlaneseq
        %v6771 = vshrl.u32 %v6770, 7
        %v6772 = vsub.s32 %v6769, %v6771
        %v6773 = vrot.slane %v6765, %v6772
        %v6775 = vunpack.c.l.s4 1983009808
        %v6776 = vunpack.c.0.s8 %v6775
        %v6777 = vlaneseq
        %v6778 = vshrl.u32 %v6777, 7
        %v6779 = vsub.s32 %v6776, %v6778
        %v6780 = vrot.slane %v6766, %v6779
        %v6781 = vcombine.low %v6757, %v6773
        %v6782 = vcombine.high %v6757, %v6773
        %v6784 = vunpack.c.l.s4 1934713408
        %v6785 = vunpack.c.0.s8 %v6784
        %v6786 = vlaneseq
        %v6787 = vshrl.u32 %v6786, 7
        %v6788 = vsub.s32 %v6785, %v6787
        %v6789 = vrot.slane %v6781, %v6788
        %v6791 = vunpack.c.l.s4 1934713408
        %v6792 = vunpack.c.0.s8 %v6791
        %v6793 = vlaneseq
        %v6794 = vshrl.u32 %v6793, 7
        %v6795 = vsub.s32 %v6792, %v6794
        %v6796 = vrot.slane %v6782, %v6795
        %v6797 = vcombine.low %v6764, %v6780
        %v6798 = vcombine.high %v6764, %v6780
        %v6800 = vunpack.c.l.s4 1934713408
        %v6801 = vunpack.c.0.s8 %v6800
        %v6802 = vlaneseq
        %v6803 = vshrl.u32 %v6802, 7
        %v6804 = vsub.s32 %v6801, %v6803
        %v6805 = vrot.slane %v6797, %v6804
        %v6807 = vunpack.c.l.s4 1934713408
        %v6808 = vunpack.c.0.s8 %v6807
        %v6809 = vlaneseq
        %v6810 = vshrl.u32 %v6809, 7
        %v6811 = vsub.s32 %v6808, %v6810
        %v6812 = vrot.slane %v6798, %v6811
        %v6813 = vcombine.high %v6789, 0.0
        %v6814 = vcombine.high %v6796, 0.0
        %v6815 = vcombine.high %v6805, 0.0
        %v6816 = vcombine.high %v6812, 0.0
        %6818 = vrot.lane.b32.xlu0 %v6745, 16
        %v6819 = vpop.permute.xlu0 %6818
        %6822 = vrot.lane.b32.xlu0 %v6728, 32
        %v6823 = vpop.permute.xlu0 %6822
        %6826 = vrot.lane.b32.xlu0 %v6746, 48
        %v6827 = vpop.permute.xlu0 %6826
        %6830 = vrot.lane.b32.xlu0 %v6737, 64
        %v6831 = vpop.permute.xlu0 %6830
        %6834 = vrot.lane.b32.xlu0 %v6747, 80
        %v6835 = vpop.permute.xlu0 %6834
        %6838 = vrot.lane.b32.xlu0 %v6744, 96
        %v6839 = vpop.permute.xlu0 %6838
        %6842 = vrot.lane.b32.xlu0 %v6748, 112
        %v6843 = vpop.permute.xlu0 %6842
        %6846 = vrot.lane.b32.xlu0 %v6813, 16
        %v6847 = vpop.permute.xlu0 %6846
        %6850 = vrot.lane.b32.xlu0 %v6796, 32
        %v6851 = vpop.permute.xlu0 %6850
        %6854 = vrot.lane.b32.xlu0 %v6814, 48
        %v6855 = vpop.permute.xlu0 %6854
        %6858 = vrot.lane.b32.xlu0 %v6805, 64
        %v6859 = vpop.permute.xlu0 %6858
        %6862 = vrot.lane.b32.xlu0 %v6815, 80
        %v6863 = vpop.permute.xlu0 %6862
        %6866 = vrot.lane.b32.xlu0 %v6812, 96
        %v6867 = vpop.permute.xlu0 %6866
        %6870 = vrot.lane.b32.xlu0 %v6816, 112
        %v6871 = vpop.permute.xlu0 %6870
        %v6873 = vsel %vm577, %v6721, %v6819
        %v6874 = vsel %vm579, %v6873, %v6823
        %v6875 = vsel %vm581, %v6874, %v6827
        %v6876 = vsel %vm583, %v6875, %v6831
        %v6877 = vsel %vm585, %v6876, %v6835
        %v6878 = vsel %vm587, %v6877, %v6839
        %v6879 = vsel %vm589, %v6878, %v6843
        %v6880 = vsel %vm577, %v6789, %v6847
        %v6881 = vsel %vm579, %v6880, %v6851
        %v6882 = vsel %vm581, %v6881, %v6855
        %v6883 = vsel %vm583, %v6882, %v6859
        %v6884 = vsel %vm585, %v6883, %v6863
        %v6885 = vsel %vm587, %v6884, %v6867
        %v6886 = vsel %vm589, %v6885, %v6871
        %6887 = vrot.lane.b32.xlu0 %v6655, 127
        %v6888 = vpop.permute.xlu0 %6887
        %6889 = vrot.lane.b32.xlu0 %v6657, 127
        %v6890 = vpop.permute.xlu0 %6889
        %6891 = vrot.lane.b32.xlu0 %v6660, 127
        %v6892 = vpop.permute.xlu0 %6891
        %6893 = vrot.lane.b32.xlu0 %v6662, 127
        %v6894 = vpop.permute.xlu0 %6893
        %6895 = vrot.lane.b32.xlu0 %v6665, 127
        %v6896 = vpop.permute.xlu0 %6895
        %6897 = vrot.lane.b32.xlu0 %v6667, 127
        %v6898 = vpop.permute.xlu0 %6897
        %6899 = vrot.lane.b32.xlu0 %v6670, 127
        %v6900 = vpop.permute.xlu0 %6899
        %6901 = vrot.lane.b32.xlu0 %v6672, 127
        %v6902 = vpop.permute.xlu0 %6901
        %v6911 = vcombine.low %v6888, %v6896
        %v6912 = vcombine.high %v6888, %v6896
        %v6914 = vunpack.c.l.s4 1983009808
        %v6915 = vunpack.c.0.s8 %v6914
        %v6916 = vlaneseq
        %v6917 = vshrl.u32 %v6916, 7
        %v6918 = vsub.s32 %v6915, %v6917
        %v6919 = vrot.slane %v6911, %v6918
        %v6921 = vunpack.c.l.s4 1983009808
        %v6922 = vunpack.c.0.s8 %v6921
        %v6923 = vlaneseq
        %v6924 = vshrl.u32 %v6923, 7
        %v6925 = vsub.s32 %v6922, %v6924
        %v6926 = vrot.slane %v6912, %v6925
        %v6927 = vcombine.low %v6892, %v6900
        %v6928 = vcombine.high %v6892, %v6900
        %v6930 = vunpack.c.l.s4 1983009808
        %v6931 = vunpack.c.0.s8 %v6930
        %v6932 = vlaneseq
        %v6933 = vshrl.u32 %v6932, 7
        %v6934 = vsub.s32 %v6931, %v6933
        %v6935 = vrot.slane %v6927, %v6934
        %v6937 = vunpack.c.l.s4 1983009808
        %v6938 = vunpack.c.0.s8 %v6937
        %v6939 = vlaneseq
        %v6940 = vshrl.u32 %v6939, 7
        %v6941 = vsub.s32 %v6938, %v6940
        %v6942 = vrot.slane %v6928, %v6941
        %v6943 = vcombine.low %v6919, %v6935
        %v6944 = vcombine.high %v6919, %v6935
        %v6946 = vunpack.c.l.s4 1934713408
        %v6947 = vunpack.c.0.s8 %v6946
        %v6948 = vlaneseq
        %v6949 = vshrl.u32 %v6948, 7
        %v6950 = vsub.s32 %v6947, %v6949
        %v6951 = vrot.slane %v6943, %v6950
        %v6953 = vunpack.c.l.s4 1934713408
        %v6954 = vunpack.c.0.s8 %v6953
        %v6955 = vlaneseq
        %v6956 = vshrl.u32 %v6955, 7
        %v6957 = vsub.s32 %v6954, %v6956
        %v6958 = vrot.slane %v6944, %v6957
        %v6959 = vcombine.low %v6926, %v6942
        %v6960 = vcombine.high %v6926, %v6942
        %v6962 = vunpack.c.l.s4 1934713408
        %v6963 = vunpack.c.0.s8 %v6962
        %v6964 = vlaneseq
        %v6965 = vshrl.u32 %v6964, 7
        %v6966 = vsub.s32 %v6963, %v6965
        %v6967 = vrot.slane %v6959, %v6966
        %v6969 = vunpack.c.l.s4 1934713408
        %v6970 = vunpack.c.0.s8 %v6969
        %v6971 = vlaneseq
        %v6972 = vshrl.u32 %v6971, 7
        %v6973 = vsub.s32 %v6970, %v6972
        %v6974 = vrot.slane %v6960, %v6973
        %v6975 = vcombine.high %v6951, 0.0
        %v6976 = vcombine.high %v6958, 0.0
        %v6977 = vcombine.high %v6967, 0.0
        %v6978 = vcombine.high %v6974, 0.0
        %v6979 = vcombine.low %v6890, %v6898
        %v6980 = vcombine.high %v6890, %v6898
        %v6982 = vunpack.c.l.s4 1983009808
        %v6983 = vunpack.c.0.s8 %v6982
        %v6984 = vlaneseq
        %v6985 = vshrl.u32 %v6984, 7
        %v6986 = vsub.s32 %v6983, %v6985
        %v6987 = vrot.slane %v6979, %v6986
        %v6989 = vunpack.c.l.s4 1983009808
        %v6990 = vunpack.c.0.s8 %v6989
        %v6991 = vlaneseq
        %v6992 = vshrl.u32 %v6991, 7
        %v6993 = vsub.s32 %v6990, %v6992
        %v6994 = vrot.slane %v6980, %v6993
        %v6995 = vcombine.low %v6894, %v6902
        %v6996 = vcombine.high %v6894, %v6902
        %v6998 = vunpack.c.l.s4 1983009808
        %v6999 = vunpack.c.0.s8 %v6998
        %v7000 = vlaneseq
        %v7001 = vshrl.u32 %v7000, 7
        %v7002 = vsub.s32 %v6999, %v7001
        %v7003 = vrot.slane %v6995, %v7002
        %v7005 = vunpack.c.l.s4 1983009808
        %v7006 = vunpack.c.0.s8 %v7005
        %v7007 = vlaneseq
        %v7008 = vshrl.u32 %v7007, 7
        %v7009 = vsub.s32 %v7006, %v7008
        %v7010 = vrot.slane %v6996, %v7009
        %v7011 = vcombine.low %v6987, %v7003
        %v7012 = vcombine.high %v6987, %v7003
        %v7014 = vunpack.c.l.s4 1934713408
        %v7015 = vunpack.c.0.s8 %v7014
        %v7016 = vlaneseq
        %v7017 = vshrl.u32 %v7016, 7
        %v7018 = vsub.s32 %v7015, %v7017
        %v7019 = vrot.slane %v7011, %v7018
        %v7021 = vunpack.c.l.s4 1934713408
        %v7022 = vunpack.c.0.s8 %v7021
        %v7023 = vlaneseq
        %v7024 = vshrl.u32 %v7023, 7
        %v7025 = vsub.s32 %v7022, %v7024
        %v7026 = vrot.slane %v7012, %v7025
        %v7027 = vcombine.low %v6994, %v7010
        %v7028 = vcombine.high %v6994, %v7010
        %v7030 = vunpack.c.l.s4 1934713408
        %v7031 = vunpack.c.0.s8 %v7030
        %v7032 = vlaneseq
        %v7033 = vshrl.u32 %v7032, 7
        %v7034 = vsub.s32 %v7031, %v7033
        %v7035 = vrot.slane %v7027, %v7034
        %v7037 = vunpack.c.l.s4 1934713408
        %v7038 = vunpack.c.0.s8 %v7037
        %v7039 = vlaneseq
        %v7040 = vshrl.u32 %v7039, 7
        %v7041 = vsub.s32 %v7038, %v7040
        %v7042 = vrot.slane %v7028, %v7041
        %v7043 = vcombine.high %v7019, 0.0
        %v7044 = vcombine.high %v7026, 0.0
        %v7045 = vcombine.high %v7035, 0.0
        %v7046 = vcombine.high %v7042, 0.0
        %7048 = vrot.lane.b32.xlu0 %v6975, 16
        %v7049 = vpop.permute.xlu0 %7048
        %7052 = vrot.lane.b32.xlu0 %v6958, 32
        %v7053 = vpop.permute.xlu0 %7052
        %7056 = vrot.lane.b32.xlu0 %v6976, 48
        %v7057 = vpop.permute.xlu0 %7056
        %7060 = vrot.lane.b32.xlu0 %v6967, 64
        %v7061 = vpop.permute.xlu0 %7060
        %7064 = vrot.lane.b32.xlu0 %v6977, 80
        %v7065 = vpop.permute.xlu0 %7064
        %7068 = vrot.lane.b32.xlu0 %v6974, 96
        %v7069 = vpop.permute.xlu0 %7068
        %7072 = vrot.lane.b32.xlu0 %v6978, 112
        %v7073 = vpop.permute.xlu0 %7072
        %7076 = vrot.lane.b32.xlu0 %v7043, 16
        %v7077 = vpop.permute.xlu0 %7076
        %7080 = vrot.lane.b32.xlu0 %v7026, 32
        %v7081 = vpop.permute.xlu0 %7080
        %7084 = vrot.lane.b32.xlu0 %v7044, 48
        %v7085 = vpop.permute.xlu0 %7084
        %7088 = vrot.lane.b32.xlu0 %v7035, 64
        %v7089 = vpop.permute.xlu0 %7088
        %7092 = vrot.lane.b32.xlu0 %v7045, 80
        %v7093 = vpop.permute.xlu0 %7092
        %7096 = vrot.lane.b32.xlu0 %v7042, 96
        %v7097 = vpop.permute.xlu0 %7096
        %7100 = vrot.lane.b32.xlu0 %v7046, 112
        %v7101 = vpop.permute.xlu0 %7100
        %v7103 = vsel %vm577, %v6951, %v7049
        %v7104 = vsel %vm579, %v7103, %v7053
        %v7105 = vsel %vm581, %v7104, %v7057
        %v7106 = vsel %vm583, %v7105, %v7061
        %v7107 = vsel %vm585, %v7106, %v7065
        %v7108 = vsel %vm587, %v7107, %v7069
        %v7109 = vsel %vm589, %v7108, %v7073
        %v7110 = vsel %vm577, %v7019, %v7077
        %v7111 = vsel %vm579, %v7110, %v7081
        %v7112 = vsel %vm581, %v7111, %v7085
        %v7113 = vsel %vm583, %v7112, %v7089
        %v7114 = vsel %vm585, %v7113, %v7093
        %v7115 = vsel %vm587, %v7114, %v7097
        %v7116 = vsel %vm589, %v7115, %v7101
        %7117 = vrot.lane.b32.xlu0 %v6655, 126
        %v7118 = vpop.permute.xlu0 %7117
        %7119 = vrot.lane.b32.xlu0 %v6657, 126
        %v7120 = vpop.permute.xlu0 %7119
        %7121 = vrot.lane.b32.xlu0 %v6660, 126
        %v7122 = vpop.permute.xlu0 %7121
        %7123 = vrot.lane.b32.xlu0 %v6662, 126
        %v7124 = vpop.permute.xlu0 %7123
        %7125 = vrot.lane.b32.xlu0 %v6665, 126
        %v7126 = vpop.permute.xlu0 %7125
        %7127 = vrot.lane.b32.xlu0 %v6667, 126
        %v7128 = vpop.permute.xlu0 %7127
        %7129 = vrot.lane.b32.xlu0 %v6670, 126
        %v7130 = vpop.permute.xlu0 %7129
        %7131 = vrot.lane.b32.xlu0 %v6672, 126
        %v7132 = vpop.permute.xlu0 %7131
        %v7141 = vcombine.low %v7118, %v7126
        %v7142 = vcombine.high %v7118, %v7126
        %v7144 = vunpack.c.l.s4 1983009808
        %v7145 = vunpack.c.0.s8 %v7144
        %v7146 = vlaneseq
        %v7147 = vshrl.u32 %v7146, 7
        %v7148 = vsub.s32 %v7145, %v7147
        %v7149 = vrot.slane %v7141, %v7148
        %v7151 = vunpack.c.l.s4 1983009808
        %v7152 = vunpack.c.0.s8 %v7151
        %v7153 = vlaneseq
        %v7154 = vshrl.u32 %v7153, 7
        %v7155 = vsub.s32 %v7152, %v7154
        %v7156 = vrot.slane %v7142, %v7155
        %v7157 = vcombine.low %v7122, %v7130
        %v7158 = vcombine.high %v7122, %v7130
        %v7160 = vunpack.c.l.s4 1983009808
        %v7161 = vunpack.c.0.s8 %v7160
        %v7162 = vlaneseq
        %v7163 = vshrl.u32 %v7162, 7
        %v7164 = vsub.s32 %v7161, %v7163
        %v7165 = vrot.slane %v7157, %v7164
        %v7167 = vunpack.c.l.s4 1983009808
        %v7168 = vunpack.c.0.s8 %v7167
        %v7169 = vlaneseq
        %v7170 = vshrl.u32 %v7169, 7
        %v7171 = vsub.s32 %v7168, %v7170
        %v7172 = vrot.slane %v7158, %v7171
        %v7173 = vcombine.low %v7149, %v7165
        %v7174 = vcombine.high %v7149, %v7165
        %v7176 = vunpack.c.l.s4 1934713408
        %v7177 = vunpack.c.0.s8 %v7176
        %v7178 = vlaneseq
        %v7179 = vshrl.u32 %v7178, 7
        %v7180 = vsub.s32 %v7177, %v7179
        %v7181 = vrot.slane %v7173, %v7180
        %v7183 = vunpack.c.l.s4 1934713408
        %v7184 = vunpack.c.0.s8 %v7183
        %v7185 = vlaneseq
        %v7186 = vshrl.u32 %v7185, 7
        %v7187 = vsub.s32 %v7184, %v7186
        %v7188 = vrot.slane %v7174, %v7187
        %v7189 = vcombine.low %v7156, %v7172
        %v7190 = vcombine.high %v7156, %v7172
        %v7192 = vunpack.c.l.s4 1934713408
        %v7193 = vunpack.c.0.s8 %v7192
        %v7194 = vlaneseq
        %v7195 = vshrl.u32 %v7194, 7
        %v7196 = vsub.s32 %v7193, %v7195
        %v7197 = vrot.slane %v7189, %v7196
        %v7199 = vunpack.c.l.s4 1934713408
        %v7200 = vunpack.c.0.s8 %v7199
        %v7201 = vlaneseq
        %v7202 = vshrl.u32 %v7201, 7
        %v7203 = vsub.s32 %v7200, %v7202
        %v7204 = vrot.slane %v7190, %v7203
        %v7205 = vcombine.high %v7181, 0.0
        %v7206 = vcombine.high %v7188, 0.0
        %v7207 = vcombine.high %v7197, 0.0
        %v7208 = vcombine.high %v7204, 0.0
        %v7209 = vcombine.low %v7120, %v7128
        %v7210 = vcombine.high %v7120, %v7128
        %v7212 = vunpack.c.l.s4 1983009808
        %v7213 = vunpack.c.0.s8 %v7212
        %v7214 = vlaneseq
        %v7215 = vshrl.u32 %v7214, 7
        %v7216 = vsub.s32 %v7213, %v7215
        %v7217 = vrot.slane %v7209, %v7216
        %v7219 = vunpack.c.l.s4 1983009808
        %v7220 = vunpack.c.0.s8 %v7219
        %v7221 = vlaneseq
        %v7222 = vshrl.u32 %v7221, 7
        %v7223 = vsub.s32 %v7220, %v7222
        %v7224 = vrot.slane %v7210, %v7223
        %v7225 = vcombine.low %v7124, %v7132
        %v7226 = vcombine.high %v7124, %v7132
        %v7228 = vunpack.c.l.s4 1983009808
        %v7229 = vunpack.c.0.s8 %v7228
        %v7230 = vlaneseq
        %v7231 = vshrl.u32 %v7230, 7
        %v7232 = vsub.s32 %v7229, %v7231
        %v7233 = vrot.slane %v7225, %v7232
        %v7235 = vunpack.c.l.s4 1983009808
        %v7236 = vunpack.c.0.s8 %v7235
        %v7237 = vlaneseq
        %v7238 = vshrl.u32 %v7237, 7
        %v7239 = vsub.s32 %v7236, %v7238
        %v7240 = vrot.slane %v7226, %v7239
        %v7241 = vcombine.low %v7217, %v7233
        %v7242 = vcombine.high %v7217, %v7233
        %v7244 = vunpack.c.l.s4 1934713408
        %v7245 = vunpack.c.0.s8 %v7244
        %v7246 = vlaneseq
        %v7247 = vshrl.u32 %v7246, 7
        %v7248 = vsub.s32 %v7245, %v7247
        %v7249 = vrot.slane %v7241, %v7248
        %v7251 = vunpack.c.l.s4 1934713408
        %v7252 = vunpack.c.0.s8 %v7251
        %v7253 = vlaneseq
        %v7254 = vshrl.u32 %v7253, 7
        %v7255 = vsub.s32 %v7252, %v7254
        %v7256 = vrot.slane %v7242, %v7255
        %v7257 = vcombine.low %v7224, %v7240
        %v7258 = vcombine.high %v7224, %v7240
        %v7260 = vunpack.c.l.s4 1934713408
        %v7261 = vunpack.c.0.s8 %v7260
        %v7262 = vlaneseq
        %v7263 = vshrl.u32 %v7262, 7
        %v7264 = vsub.s32 %v7261, %v7263
        %v7265 = vrot.slane %v7257, %v7264
        %v7267 = vunpack.c.l.s4 1934713408
        %v7268 = vunpack.c.0.s8 %v7267
        %v7269 = vlaneseq
        %v7270 = vshrl.u32 %v7269, 7
        %v7271 = vsub.s32 %v7268, %v7270
        %v7272 = vrot.slane %v7258, %v7271
        %v7273 = vcombine.high %v7249, 0.0
        %v7274 = vcombine.high %v7256, 0.0
        %v7275 = vcombine.high %v7265, 0.0
        %v7276 = vcombine.high %v7272, 0.0
        %7278 = vrot.lane.b32.xlu0 %v7205, 16
        %v7279 = vpop.permute.xlu0 %7278
        %7282 = vrot.lane.b32.xlu0 %v7188, 32
        %v7283 = vpop.permute.xlu0 %7282
        %7286 = vrot.lane.b32.xlu0 %v7206, 48
        %v7287 = vpop.permute.xlu0 %7286
        %7290 = vrot.lane.b32.xlu0 %v7197, 64
        %v7291 = vpop.permute.xlu0 %7290
        %7294 = vrot.lane.b32.xlu0 %v7207, 80
        %v7295 = vpop.permute.xlu0 %7294
        %7298 = vrot.lane.b32.xlu0 %v7204, 96
        %v7299 = vpop.permute.xlu0 %7298
        %7302 = vrot.lane.b32.xlu0 %v7208, 112
        %v7303 = vpop.permute.xlu0 %7302
        %7306 = vrot.lane.b32.xlu0 %v7273, 16
        %v7307 = vpop.permute.xlu0 %7306
        %7310 = vrot.lane.b32.xlu0 %v7256, 32
        %v7311 = vpop.permute.xlu0 %7310
        %7314 = vrot.lane.b32.xlu0 %v7274, 48
        %v7315 = vpop.permute.xlu0 %7314
        %7318 = vrot.lane.b32.xlu0 %v7265, 64
        %v7319 = vpop.permute.xlu0 %7318
        %7322 = vrot.lane.b32.xlu0 %v7275, 80
        %v7323 = vpop.permute.xlu0 %7322
        %7326 = vrot.lane.b32.xlu0 %v7272, 96
        %v7327 = vpop.permute.xlu0 %7326
        %7330 = vrot.lane.b32.xlu0 %v7276, 112
        %v7331 = vpop.permute.xlu0 %7330
        %v7333 = vsel %vm577, %v7181, %v7279
        %v7334 = vsel %vm579, %v7333, %v7283
        %v7335 = vsel %vm581, %v7334, %v7287
        %v7336 = vsel %vm583, %v7335, %v7291
        %v7337 = vsel %vm585, %v7336, %v7295
        %v7338 = vsel %vm587, %v7337, %v7299
        %v7339 = vsel %vm589, %v7338, %v7303
        %v7340 = vsel %vm577, %v7249, %v7307
        %v7341 = vsel %vm579, %v7340, %v7311
        %v7342 = vsel %vm581, %v7341, %v7315
        %v7343 = vsel %vm583, %v7342, %v7319
        %v7344 = vsel %vm585, %v7343, %v7323
        %v7345 = vsel %vm587, %v7344, %v7327
        %v7346 = vsel %vm589, %v7345, %v7331
        %v7349 = vrot.slane %v5717, 4
        %v7350 = vrot.slane %v5724, 4
        %v7355 = vrot.slane %v6185, 4
        %v7356 = vrot.slane %v6192, 4
        %v7361 = vrot.slane %v6645, 4
        %v7362 = vrot.slane %v6652, 4
        %v7367 = vrot.slane %v7109, 4
        %v7368 = vrot.slane %v7116, 4
        %v7371 = vsel %vm2484, %v5479, %v7349
        %v7372 = vsel %vm2484, %v5486, %v7350
        %v7373 = vsel %vm2484, %v5947, %v7355
        %v7374 = vsel %vm2484, %v5954, %v7356
        %v7375 = vsel %vm2484, %v6415, %v7361
        %v7376 = vsel %vm2484, %v6422, %v7362
        %v7377 = vsel %vm2484, %v6879, %v7367
        %v7378 = vsel %vm2484, %v6886, %v7368
        %7379 = vst [vmem:[#allocation3 + $0xa0] sm:$0xff] %v7371
        %7380 = vst [vmem:[#allocation3 + $0xa8] sm:$0xff] %v7372
        %7381 = vst [vmem:[#allocation3 + $0xb0] sm:$0xff] %v7373
        %7382 = vst [vmem:[#allocation3 + $0xb8] sm:$0xff] %v7374
        %7383 = vst [vmem:[#allocation3 + $0xc0] sm:$0xff] %v7375
        %7384 = vst [vmem:[#allocation3 + $0xc8] sm:$0xff] %v7376
        %7385 = vst [vmem:[#allocation3 + $0xd0] sm:$0xff] %v7377
        %7386 = vst [vmem:[#allocation3 + $0xd8] sm:$0xff] %v7378
        %7387 = vst [vmem:[#allocation3 + $0xe0] sm:$0xf] %v7339
        %7388 = vst [vmem:[#allocation3 + $0xe8] sm:$0xf] %v7346
        %v7389 = vld [vmem:[%s3] sm:$0xf]
        %v7390 = vld [vmem:[#allocation3] sm:$0xff]
        %v7391 = vld [vmem:[#allocation3 + $0x8] sm:$0xff]
        %v7392 = vld [vmem:[#allocation3 + $0x10] sm:$0xff]
        %v7393 = vld [vmem:[#allocation3 + $0x18] sm:$0xff]
        %v7394 = vld [vmem:[#allocation3 + $0x20] sm:$0xff]
        %v7395 = vld [vmem:[#allocation3 + $0x28] sm:$0xff]
        %v7396 = vld [vmem:[#allocation3 + $0x30] sm:$0xff]
        %v7397 = vld [vmem:[#allocation3 + $0x38] sm:$0xff]
        %v7398 = vld [vmem:[#allocation3 + $0x40] sm:$0xff]
        %v7399 = vld [vmem:[#allocation3 + $0x48] sm:$0xff]
        %v7400 = vld [vmem:[#allocation3 + $0x50] sm:$0xff]
        %v7401 = vld [vmem:[#allocation3 + $0x58] sm:$0xff]
        %v7402 = vld [vmem:[#allocation3 + $0x60] sm:$0xff]
        %v7403 = vld [vmem:[#allocation3 + $0x68] sm:$0xff]
        %v7404 = vld [vmem:[#allocation3 + $0x70] sm:$0xff]
        %v7405 = vld [vmem:[#allocation3 + $0x78] sm:$0xff]
        %v7406 = vld [vmem:[#allocation3 + $0x80] sm:$0xff]
        %v7407 = vld [vmem:[#allocation3 + $0x88] sm:$0xff]
        %v7408 = vld [vmem:[#allocation3 + $0x90] sm:$0xff]
        %v7409 = vld [vmem:[#allocation3 + $0x98] sm:$0xff]
        %v7410 = vld [vmem:[#allocation3 + $0xa0] sm:$0xff]
        %v7411 = vld [vmem:[#allocation3 + $0xa8] sm:$0xff]
        %v7412 = vld [vmem:[#allocation3 + $0xb0] sm:$0xff]
        %v7413 = vld [vmem:[#allocation3 + $0xb8] sm:$0xff]
        %v7414 = vld [vmem:[#allocation3 + $0xc0] sm:$0xff]
        %v7415 = vld [vmem:[#allocation3 + $0xc8] sm:$0xff]
        %v7416 = vld [vmem:[#allocation3 + $0xd0] sm:$0xff]
        %v7417 = vld [vmem:[#allocation3 + $0xd8] sm:$0xff]
        %v7418 = vld [vmem:[#allocation3 + $0xe0] sm:$0xff]
        %v7419 = vld [vmem:[#allocation3 + $0xe8] sm:$0xff]
        %s7420 = scalar_lea.vmem %s5, 8
        %v7421 = vld [vmem:[%s7420] sm:$0xf]
        %7423 = vset.pattern.permute.xlu0 0
        %7424 = vperm.xlu0 %7423, %v7421
        %v7425 = vpop.permute.xlu0 %7424
        %vm7427 = vcmask 982016
        %v7429 = vsel %vm7427, %v7389, 0
        %7431 = vmatprep.subr.mxu0 0.0
        %7432 = vmatpush1.msra.mxu0 0.0
        %7433 = vmatprep.subr.mxu0 %v7419
        %7434 = vmatpush1.msra.mxu0 %v7418
        %7435 = vmatprep.subr.mxu0 %v7417
        %7436 = vmatpush1.msra.mxu0 %v7416
        %7437 = vmatprep.subr.mxu0 %v7415
        %7438 = vmatpush1.msra.mxu0 %v7414
        %7439 = vmatprep.subr.mxu0 %v7413
        %7440 = vmatpush1.msra.mxu0 %v7412
        %7441 = vmatprep.subr.mxu0 %v7411
        %7442 = vmatpush1.msra.mxu0 %v7410
        %7443 = vmatprep.subr.mxu0 %v7409
        %7444 = vmatpush1.msra.mxu0 %v7408
        %7445 = vmatprep.subr.mxu0 %v7407
        %7446 = vmatpush1.msra.mxu0 %v7406
        %7447 = vmatprep.subr.mxu0 %v7405
        %7448 = vmatpush1.msra.mxu0 %v7404
        %7449 = vmatprep.subr.mxu0 %v7403
        %7450 = vmatpush1.msra.mxu0 %v7402
        %7451 = vmatprep.subr.mxu0 %v7401
        %7452 = vmatpush1.msra.mxu0 %v7400
        %7453 = vmatprep.subr.mxu0 %v7399
        %7454 = vmatpush1.msra.mxu0 %v7398
        %7455 = vmatprep.subr.mxu0 %v7397
        %7456 = vmatpush1.msra.mxu0 %v7396
        %7457 = vmatprep.subr.mxu0 %v7395
        %7458 = vmatpush1.msra.mxu0 %v7394
        %7459 = vmatprep.subr.mxu0 %v7393
        %7460 = vmatpush1.msra.mxu0 %v7392
        %7461 = vmatprep.subr.mxu0 %v7391
        %7462 = vmatpush1.msra.mxu0 %v7390
        %7463 = vmatprep.subr.mxu0 0.0
        %7464 = vmatpush2.msra.mxu0 0.0
        %7465 = vmatprep.subr.mxu0 0.0
        %7466 = vmatpush2.msra.mxu0 0.0
        %7467 = vmatprep.subr.mxu0 0.0
        %7468 = vmatpush2.msra.mxu0 0.0
        %7469 = vmatprep.subr.mxu0 0.0
        %7470 = vmatpush2.msra.mxu0 0.0
        %7471 = vmatprep.subr.mxu0 0.0
        %7472 = vmatpush2.msra.mxu0 0.0
        %7473 = vmatprep.subr.mxu0 0.0
        %7474 = vmatpush2.msra.mxu0 0.0
        %7475 = vmatprep.subr.mxu0 0.0
        %7476 = vmatpush2.msra.mxu0 0.0
        %7477 = vmatprep.subr.mxu0 0.0
        %7478 = vmatpush2.msra.mxu0 0.0
        %7479 = vmatprep.subr.mxu0 0.0
        %7480 = vmatpush2.msra.mxu0 0.0
        %7481 = vmatprep.subr.mxu0 0.0
        %7482 = vmatpush2.msra.mxu0 0.0
        %7483 = vmatprep.subr.mxu0 0.0
        %7484 = vmatpush2.msra.mxu0 0.0
        %7485 = vmatprep.subr.mxu0 0.0
        %7486 = vmatpush2.msra.mxu0 0.0
        %7487 = vmatprep.subr.mxu0 0.0
        %7488 = vmatpush2.msra.mxu0 0.0
        %7489 = vmatprep.subr.mxu0 0.0
        %7490 = vmatpush2.msra.mxu0 0.0
        %7491 = vmatprep.subr.mxu0 0.0
        %7492 = vmatpush2.msra.mxu0 0.0
        %7493 = vmatprep.subr.mxu0 0.0
        %7494 = vmatpush2.msra.mxu0 0.0
        %7495 = vmatprep.mubr.f32.mxu0 0.0
        %7496 = vmatmul.mubr.f32.gmra.mxu0 %v7429
        %v7497 = vpop.f32.mrf.mxu0
        %v7498 = vadd.f32 %v7425, %v7497
        %v7499 = vpop.f32.mrf.mxu0
        %v7500 = vadd.f32 %v7425, %v7499
        %7501 = vdwg.mxu0
        %vm7502 = vcmp.ge.f32.partialorder %v7498, 0.0
        %vm7503 = vcmp.ge.f32.partialorder %v7500, 0.0
        %v7504 = vmul.f32 %v7498, 0.01
        %v7505 = vmul.f32 %v7500, 0.01
        %v7506 = vsel %vm7502, %v7498, %v7504
        %v7507 = vsel %vm7503, %v7500, %v7505
        %7509 = vrot.lane.b32.xlu0 %v7506, 112
        %v7510 = vpop.permute.xlu0 %7509
        %7512 = vrot.lane.b32.xlu0 %v7506, 96
        %v7513 = vpop.permute.xlu0 %7512
        %7515 = vrot.lane.b32.xlu0 %v7506, 80
        %v7516 = vpop.permute.xlu0 %7515
        %7518 = vrot.lane.b32.xlu0 %v7506, 64
        %v7519 = vpop.permute.xlu0 %7518
        %7521 = vrot.lane.b32.xlu0 %v7506, 48
        %v7522 = vpop.permute.xlu0 %7521
        %7524 = vrot.lane.b32.xlu0 %v7506, 32
        %v7525 = vpop.permute.xlu0 %7524
        %7527 = vrot.lane.b32.xlu0 %v7506, 16
        %v7528 = vpop.permute.xlu0 %7527
        %7531 = vrot.lane.b32.xlu0 %v7507, 112
        %v7532 = vpop.permute.xlu0 %7531
        %7534 = vrot.lane.b32.xlu0 %v7507, 96
        %v7535 = vpop.permute.xlu0 %7534
        %7537 = vrot.lane.b32.xlu0 %v7507, 80
        %v7538 = vpop.permute.xlu0 %7537
        %7540 = vrot.lane.b32.xlu0 %v7507, 64
        %v7541 = vpop.permute.xlu0 %7540
        %7543 = vrot.lane.b32.xlu0 %v7507, 48
        %v7544 = vpop.permute.xlu0 %7543
        %7546 = vrot.lane.b32.xlu0 %v7507, 32
        %v7547 = vpop.permute.xlu0 %7546
        %7549 = vrot.lane.b32.xlu0 %v7507, 16
        %v7550 = vpop.permute.xlu0 %7549
        %v7552 = vcombine.low %v7506, %v7513
        %v7554 = vunpack.c.l.s4 1983009808
        %v7555 = vunpack.c.0.s8 %v7554
        %v7556 = vlaneseq
        %v7557 = vshrl.u32 %v7556, 7
        %v7558 = vsub.s32 %v7555, %v7557
        %v7559 = vrot.slane %v7552, %v7558
        %v7560 = vcombine.low %v7510, %v7516
        %v7562 = vunpack.c.l.s4 1983009808
        %v7563 = vunpack.c.0.s8 %v7562
        %v7564 = vlaneseq
        %v7565 = vshrl.u32 %v7564, 7
        %v7566 = vsub.s32 %v7563, %v7565
        %v7567 = vrot.slane %v7560, %v7566
        %v7568 = vcombine.low %v7519, %v7525
        %v7570 = vunpack.c.l.s4 1983009808
        %v7571 = vunpack.c.0.s8 %v7570
        %v7572 = vlaneseq
        %v7573 = vshrl.u32 %v7572, 7
        %v7574 = vsub.s32 %v7571, %v7573
        %v7575 = vrot.slane %v7568, %v7574
        %v7576 = vcombine.low %v7522, %v7528
        %v7578 = vunpack.c.l.s4 1983009808
        %v7579 = vunpack.c.0.s8 %v7578
        %v7580 = vlaneseq
        %v7581 = vshrl.u32 %v7580, 7
        %v7582 = vsub.s32 %v7579, %v7581
        %v7583 = vrot.slane %v7576, %v7582
        %v7584 = vcombine.low %v7559, %v7567
        %v7585 = vcombine.high %v7559, %v7567
        %v7587 = vunpack.c.l.s4 1934713408
        %v7588 = vunpack.c.0.s8 %v7587
        %v7589 = vlaneseq
        %v7590 = vshrl.u32 %v7589, 7
        %v7591 = vsub.s32 %v7588, %v7590
        %v7592 = vrot.slane %v7584, %v7591
        %v7594 = vunpack.c.l.s4 1934713408
        %v7595 = vunpack.c.0.s8 %v7594
        %v7596 = vlaneseq
        %v7597 = vshrl.u32 %v7596, 7
        %v7598 = vsub.s32 %v7595, %v7597
        %v7599 = vrot.slane %v7585, %v7598
        %v7600 = vcombine.low %v7575, %v7583
        %v7601 = vcombine.high %v7575, %v7583
        %v7603 = vunpack.c.l.s4 1934713408
        %v7604 = vunpack.c.0.s8 %v7603
        %v7605 = vlaneseq
        %v7606 = vshrl.u32 %v7605, 7
        %v7607 = vsub.s32 %v7604, %v7606
        %v7608 = vrot.slane %v7600, %v7607
        %v7610 = vunpack.c.l.s4 1934713408
        %v7611 = vunpack.c.0.s8 %v7610
        %v7612 = vlaneseq
        %v7613 = vshrl.u32 %v7612, 7
        %v7614 = vsub.s32 %v7611, %v7613
        %v7615 = vrot.slane %v7601, %v7614
        %v7616 = vcombine.low %v7592, %v7608
        %v7617 = vcombine.high %v7592, %v7608
        %v7618 = vcombine.low %v7599, %v7615
        %v7619 = vcombine.high %v7599, %v7615
        %v7620 = vcombine.low %v7507, %v7535
        %v7622 = vunpack.c.l.s4 1983009808
        %v7623 = vunpack.c.0.s8 %v7622
        %v7624 = vlaneseq
        %v7625 = vshrl.u32 %v7624, 7
        %v7626 = vsub.s32 %v7623, %v7625
        %v7627 = vrot.slane %v7620, %v7626
        %v7628 = vcombine.low %v7532, %v7538
        %v7630 = vunpack.c.l.s4 1983009808
        %v7631 = vunpack.c.0.s8 %v7630
        %v7632 = vlaneseq
        %v7633 = vshrl.u32 %v7632, 7
        %v7634 = vsub.s32 %v7631, %v7633
        %v7635 = vrot.slane %v7628, %v7634
        %v7636 = vcombine.low %v7541, %v7547
        %v7638 = vunpack.c.l.s4 1983009808
        %v7639 = vunpack.c.0.s8 %v7638
        %v7640 = vlaneseq
        %v7641 = vshrl.u32 %v7640, 7
        %v7642 = vsub.s32 %v7639, %v7641
        %v7643 = vrot.slane %v7636, %v7642
        %v7644 = vcombine.low %v7544, %v7550
        %v7646 = vunpack.c.l.s4 1983009808
        %v7647 = vunpack.c.0.s8 %v7646
        %v7648 = vlaneseq
        %v7649 = vshrl.u32 %v7648, 7
        %v7650 = vsub.s32 %v7647, %v7649
        %v7651 = vrot.slane %v7644, %v7650
        %v7652 = vcombine.low %v7627, %v7635
        %v7653 = vcombine.high %v7627, %v7635
        %v7655 = vunpack.c.l.s4 1934713408
        %v7656 = vunpack.c.0.s8 %v7655
        %v7657 = vlaneseq
        %v7658 = vshrl.u32 %v7657, 7
        %v7659 = vsub.s32 %v7656, %v7658
        %v7660 = vrot.slane %v7652, %v7659
        %v7662 = vunpack.c.l.s4 1934713408
        %v7663 = vunpack.c.0.s8 %v7662
        %v7664 = vlaneseq
        %v7665 = vshrl.u32 %v7664, 7
        %v7666 = vsub.s32 %v7663, %v7665
        %v7667 = vrot.slane %v7653, %v7666
        %v7668 = vcombine.low %v7643, %v7651
        %v7669 = vcombine.high %v7643, %v7651
        %v7671 = vunpack.c.l.s4 1934713408
        %v7672 = vunpack.c.0.s8 %v7671
        %v7673 = vlaneseq
        %v7674 = vshrl.u32 %v7673, 7
        %v7675 = vsub.s32 %v7672, %v7674
        %v7676 = vrot.slane %v7668, %v7675
        %v7678 = vunpack.c.l.s4 1934713408
        %v7679 = vunpack.c.0.s8 %v7678
        %v7680 = vlaneseq
        %v7681 = vshrl.u32 %v7680, 7
        %v7682 = vsub.s32 %v7679, %v7681
        %v7683 = vrot.slane %v7669, %v7682
        %v7684 = vcombine.low %v7660, %v7676
        %v7685 = vcombine.high %v7660, %v7676
        %v7686 = vcombine.low %v7667, %v7683
        %v7687 = vcombine.high %v7667, %v7683
        %7696 = vrot.lane.b32.xlu0 %v7616, 1
        %v7697 = vpop.permute.xlu0 %7696
        %7698 = vrot.lane.b32.xlu0 %v7684, 1
        %v7699 = vpop.permute.xlu0 %7698
        %7700 = vrot.lane.b32.xlu0 %v7617, 1
        %v7701 = vpop.permute.xlu0 %7700
        %7702 = vrot.lane.b32.xlu0 %v7685, 1
        %v7703 = vpop.permute.xlu0 %7702
        %7704 = vrot.lane.b32.xlu0 %v7618, 1
        %v7705 = vpop.permute.xlu0 %7704
        %7706 = vrot.lane.b32.xlu0 %v7686, 1
        %v7707 = vpop.permute.xlu0 %7706
        %7708 = vrot.lane.b32.xlu0 %v7619, 1
        %v7709 = vpop.permute.xlu0 %7708
        %7710 = vrot.lane.b32.xlu0 %v7687, 1
        %v7711 = vpop.permute.xlu0 %7710
        %7720 = vst.msk [vmem:[#allocation2 + $0x1] sm:$0xff] %vm364, %v7697
        %7721 = vst.msk [vmem:[#allocation2 + $0x9] sm:$0xff] %vm364, %v7699
        %7722 = vst.msk [vmem:[#allocation2 + $0x19] sm:$0xff] %vm364, %v7701
        %7723 = vst.msk [vmem:[#allocation2 + $0x21] sm:$0xff] %vm364, %v7703
        %7724 = vst.msk [vmem:[#allocation2 + $0x31] sm:$0xff] %vm364, %v7705
        %7725 = vst.msk [vmem:[#allocation2 + $0x39] sm:$0xff] %vm364, %v7707
        %7726 = vst.msk [vmem:[#allocation2 + $0x49] sm:$0xff] %vm364, %v7709
        %7727 = vst.msk [vmem:[#allocation2 + $0x51] sm:$0xff] %vm364, %v7711
        %v7728 = vld [vmem:[#allocation2] sm:$0xff]
        %v7729 = vld [vmem:[#allocation2 + $0x8] sm:$0xff]
        %v7730 = vld [vmem:[#allocation2 + $0x10] sm:$0x3]
        %v7731 = vld [vmem:[#allocation2 + $0x18] sm:$0xff]
        %v7732 = vld [vmem:[#allocation2 + $0x20] sm:$0xff]
        %v7733 = vld [vmem:[#allocation2 + $0x28] sm:$0x3]
        %v7734 = vld [vmem:[#allocation2 + $0x30] sm:$0xff]
        %v7735 = vld [vmem:[#allocation2 + $0x38] sm:$0xff]
        %v7736 = vld [vmem:[#allocation2 + $0x40] sm:$0x3]
        %v7737 = vld [vmem:[#allocation2 + $0x48] sm:$0xff]
        %v7738 = vld [vmem:[#allocation2 + $0x50] sm:$0xff]
        %v7739 = vld [vmem:[#allocation2 + $0x58] sm:$0x3]
        %v7740 = vcombine.low %v7728, %v7734
        %v7741 = vcombine.high %v7728, %v7734
        %v7743 = vunpack.c.l.s4 1983009808
        %v7744 = vunpack.c.0.s8 %v7743
        %v7745 = vlaneseq
        %v7746 = vshrl.u32 %v7745, 7
        %v7747 = vsub.s32 %v7744, %v7746
        %v7748 = vrot.slane %v7740, %v7747
        %v7750 = vunpack.c.l.s4 1983009808
        %v7751 = vunpack.c.0.s8 %v7750
        %v7752 = vlaneseq
        %v7753 = vshrl.u32 %v7752, 7
        %v7754 = vsub.s32 %v7751, %v7753
        %v7755 = vrot.slane %v7741, %v7754
        %v7756 = vcombine.low %v7731, %v7737
        %v7757 = vcombine.high %v7731, %v7737
        %v7759 = vunpack.c.l.s4 1983009808
        %v7760 = vunpack.c.0.s8 %v7759
        %v7761 = vlaneseq
        %v7762 = vshrl.u32 %v7761, 7
        %v7763 = vsub.s32 %v7760, %v7762
        %v7764 = vrot.slane %v7756, %v7763
        %v7766 = vunpack.c.l.s4 1983009808
        %v7767 = vunpack.c.0.s8 %v7766
        %v7768 = vlaneseq
        %v7769 = vshrl.u32 %v7768, 7
        %v7770 = vsub.s32 %v7767, %v7769
        %v7771 = vrot.slane %v7757, %v7770
        %v7772 = vcombine.low %v7748, %v7764
        %v7773 = vcombine.high %v7748, %v7764
        %v7775 = vunpack.c.l.s4 1934713408
        %v7776 = vunpack.c.0.s8 %v7775
        %v7777 = vlaneseq
        %v7778 = vshrl.u32 %v7777, 7
        %v7779 = vsub.s32 %v7776, %v7778
        %v7780 = vrot.slane %v7772, %v7779
        %v7782 = vunpack.c.l.s4 1934713408
        %v7783 = vunpack.c.0.s8 %v7782
        %v7784 = vlaneseq
        %v7785 = vshrl.u32 %v7784, 7
        %v7786 = vsub.s32 %v7783, %v7785
        %v7787 = vrot.slane %v7773, %v7786
        %v7788 = vcombine.low %v7755, %v7771
        %v7789 = vcombine.high %v7755, %v7771
        %v7791 = vunpack.c.l.s4 1934713408
        %v7792 = vunpack.c.0.s8 %v7791
        %v7793 = vlaneseq
        %v7794 = vshrl.u32 %v7793, 7
        %v7795 = vsub.s32 %v7792, %v7794
        %v7796 = vrot.slane %v7788, %v7795
        %v7798 = vunpack.c.l.s4 1934713408
        %v7799 = vunpack.c.0.s8 %v7798
        %v7800 = vlaneseq
        %v7801 = vshrl.u32 %v7800, 7
        %v7802 = vsub.s32 %v7799, %v7801
        %v7803 = vrot.slane %v7789, %v7802
        %v7804 = vcombine.high %v7780, 0.0
        %v7805 = vcombine.high %v7787, 0.0
        %v7806 = vcombine.high %v7796, 0.0
        %v7807 = vcombine.high %v7803, 0.0
        %v7808 = vcombine.low %v7729, %v7735
        %v7809 = vcombine.high %v7729, %v7735
        %v7811 = vunpack.c.l.s4 1983009808
        %v7812 = vunpack.c.0.s8 %v7811
        %v7813 = vlaneseq
        %v7814 = vshrl.u32 %v7813, 7
        %v7815 = vsub.s32 %v7812, %v7814
        %v7816 = vrot.slane %v7808, %v7815
        %v7818 = vunpack.c.l.s4 1983009808
        %v7819 = vunpack.c.0.s8 %v7818
        %v7820 = vlaneseq
        %v7821 = vshrl.u32 %v7820, 7
        %v7822 = vsub.s32 %v7819, %v7821
        %v7823 = vrot.slane %v7809, %v7822
        %v7824 = vcombine.low %v7732, %v7738
        %v7825 = vcombine.high %v7732, %v7738
        %v7827 = vunpack.c.l.s4 1983009808
        %v7828 = vunpack.c.0.s8 %v7827
        %v7829 = vlaneseq
        %v7830 = vshrl.u32 %v7829, 7
        %v7831 = vsub.s32 %v7828, %v7830
        %v7832 = vrot.slane %v7824, %v7831
        %v7834 = vunpack.c.l.s4 1983009808
        %v7835 = vunpack.c.0.s8 %v7834
        %v7836 = vlaneseq
        %v7837 = vshrl.u32 %v7836, 7
        %v7838 = vsub.s32 %v7835, %v7837
        %v7839 = vrot.slane %v7825, %v7838
        %v7840 = vcombine.low %v7816, %v7832
        %v7841 = vcombine.high %v7816, %v7832
        %v7843 = vunpack.c.l.s4 1934713408
        %v7844 = vunpack.c.0.s8 %v7843
        %v7845 = vlaneseq
        %v7846 = vshrl.u32 %v7845, 7
        %v7847 = vsub.s32 %v7844, %v7846
        %v7848 = vrot.slane %v7840, %v7847
        %v7850 = vunpack.c.l.s4 1934713408
        %v7851 = vunpack.c.0.s8 %v7850
        %v7852 = vlaneseq
        %v7853 = vshrl.u32 %v7852, 7
        %v7854 = vsub.s32 %v7851, %v7853
        %v7855 = vrot.slane %v7841, %v7854
        %v7856 = vcombine.low %v7823, %v7839
        %v7857 = vcombine.high %v7823, %v7839
        %v7859 = vunpack.c.l.s4 1934713408
        %v7860 = vunpack.c.0.s8 %v7859
        %v7861 = vlaneseq
        %v7862 = vshrl.u32 %v7861, 7
        %v7863 = vsub.s32 %v7860, %v7862
        %v7864 = vrot.slane %v7856, %v7863
        %v7866 = vunpack.c.l.s4 1934713408
        %v7867 = vunpack.c.0.s8 %v7866
        %v7868 = vlaneseq
        %v7869 = vshrl.u32 %v7868, 7
        %v7870 = vsub.s32 %v7867, %v7869
        %v7871 = vrot.slane %v7857, %v7870
        %v7872 = vcombine.high %v7848, 0.0
        %v7873 = vcombine.high %v7855, 0.0
        %v7874 = vcombine.high %v7864, 0.0
        %v7875 = vcombine.high %v7871, 0.0
        %7877 = vrot.lane.b32.xlu0 %v7804, 16
        %v7878 = vpop.permute.xlu0 %7877
        %7881 = vrot.lane.b32.xlu0 %v7787, 32
        %v7882 = vpop.permute.xlu0 %7881
        %7885 = vrot.lane.b32.xlu0 %v7805, 48
        %v7886 = vpop.permute.xlu0 %7885
        %7889 = vrot.lane.b32.xlu0 %v7796, 64
        %v7890 = vpop.permute.xlu0 %7889
        %7893 = vrot.lane.b32.xlu0 %v7806, 80
        %v7894 = vpop.permute.xlu0 %7893
        %7897 = vrot.lane.b32.xlu0 %v7803, 96
        %v7898 = vpop.permute.xlu0 %7897
        %7901 = vrot.lane.b32.xlu0 %v7807, 112
        %v7902 = vpop.permute.xlu0 %7901
        %7905 = vrot.lane.b32.xlu0 %v7872, 16
        %v7906 = vpop.permute.xlu0 %7905
        %7909 = vrot.lane.b32.xlu0 %v7855, 32
        %v7910 = vpop.permute.xlu0 %7909
        %7913 = vrot.lane.b32.xlu0 %v7873, 48
        %v7914 = vpop.permute.xlu0 %7913
        %7917 = vrot.lane.b32.xlu0 %v7864, 64
        %v7918 = vpop.permute.xlu0 %7917
        %7921 = vrot.lane.b32.xlu0 %v7874, 80
        %v7922 = vpop.permute.xlu0 %7921
        %7925 = vrot.lane.b32.xlu0 %v7871, 96
        %v7926 = vpop.permute.xlu0 %7925
        %7929 = vrot.lane.b32.xlu0 %v7875, 112
        %v7930 = vpop.permute.xlu0 %7929
        %v7932 = vsel %vm577, %v7780, %v7878
        %v7933 = vsel %vm579, %v7932, %v7882
        %v7934 = vsel %vm581, %v7933, %v7886
        %v7935 = vsel %vm583, %v7934, %v7890
        %v7936 = vsel %vm585, %v7935, %v7894
        %v7937 = vsel %vm587, %v7936, %v7898
        %v7938 = vsel %vm589, %v7937, %v7902
        %v7939 = vsel %vm577, %v7848, %v7906
        %v7940 = vsel %vm579, %v7939, %v7910
        %v7941 = vsel %vm581, %v7940, %v7914
        %v7942 = vsel %vm583, %v7941, %v7918
        %v7943 = vsel %vm585, %v7942, %v7922
        %v7944 = vsel %vm587, %v7943, %v7926
        %v7945 = vsel %vm589, %v7944, %v7930
        %7954 = vrot.lane.b32.xlu0 %v7728, 127
        %v7955 = vpop.permute.xlu0 %7954
        %7956 = vrot.lane.b32.xlu0 %v7729, 127
        %v7957 = vpop.permute.xlu0 %7956
        %7958 = vrot.lane.b32.xlu0 %v7731, 127
        %v7959 = vpop.permute.xlu0 %7958
        %7960 = vrot.lane.b32.xlu0 %v7732, 127
        %v7961 = vpop.permute.xlu0 %7960
        %7962 = vrot.lane.b32.xlu0 %v7734, 127
        %v7963 = vpop.permute.xlu0 %7962
        %7964 = vrot.lane.b32.xlu0 %v7735, 127
        %v7965 = vpop.permute.xlu0 %7964
        %7966 = vrot.lane.b32.xlu0 %v7737, 127
        %v7967 = vpop.permute.xlu0 %7966
        %7968 = vrot.lane.b32.xlu0 %v7738, 127
        %v7969 = vpop.permute.xlu0 %7968
        %v7978 = vcombine.low %v7955, %v7963
        %v7979 = vcombine.high %v7955, %v7963
        %v7981 = vunpack.c.l.s4 1983009808
        %v7982 = vunpack.c.0.s8 %v7981
        %v7983 = vlaneseq
        %v7984 = vshrl.u32 %v7983, 7
        %v7985 = vsub.s32 %v7982, %v7984
        %v7986 = vrot.slane %v7978, %v7985
        %v7988 = vunpack.c.l.s4 1983009808
        %v7989 = vunpack.c.0.s8 %v7988
        %v7990 = vlaneseq
        %v7991 = vshrl.u32 %v7990, 7
        %v7992 = vsub.s32 %v7989, %v7991
        %v7993 = vrot.slane %v7979, %v7992
        %v7994 = vcombine.low %v7959, %v7967
        %v7995 = vcombine.high %v7959, %v7967
        %v7997 = vunpack.c.l.s4 1983009808
        %v7998 = vunpack.c.0.s8 %v7997
        %v7999 = vlaneseq
        %v8000 = vshrl.u32 %v7999, 7
        %v8001 = vsub.s32 %v7998, %v8000
        %v8002 = vrot.slane %v7994, %v8001
        %v8004 = vunpack.c.l.s4 1983009808
        %v8005 = vunpack.c.0.s8 %v8004
        %v8006 = vlaneseq
        %v8007 = vshrl.u32 %v8006, 7
        %v8008 = vsub.s32 %v8005, %v8007
        %v8009 = vrot.slane %v7995, %v8008
        %v8010 = vcombine.low %v7986, %v8002
        %v8011 = vcombine.high %v7986, %v8002
        %v8013 = vunpack.c.l.s4 1934713408
        %v8014 = vunpack.c.0.s8 %v8013
        %v8015 = vlaneseq
        %v8016 = vshrl.u32 %v8015, 7
        %v8017 = vsub.s32 %v8014, %v8016
        %v8018 = vrot.slane %v8010, %v8017
        %v8020 = vunpack.c.l.s4 1934713408
        %v8021 = vunpack.c.0.s8 %v8020
        %v8022 = vlaneseq
        %v8023 = vshrl.u32 %v8022, 7
        %v8024 = vsub.s32 %v8021, %v8023
        %v8025 = vrot.slane %v8011, %v8024
        %v8026 = vcombine.low %v7993, %v8009
        %v8027 = vcombine.high %v7993, %v8009
        %v8029 = vunpack.c.l.s4 1934713408
        %v8030 = vunpack.c.0.s8 %v8029
        %v8031 = vlaneseq
        %v8032 = vshrl.u32 %v8031, 7
        %v8033 = vsub.s32 %v8030, %v8032
        %v8034 = vrot.slane %v8026, %v8033
        %v8036 = vunpack.c.l.s4 1934713408
        %v8037 = vunpack.c.0.s8 %v8036
        %v8038 = vlaneseq
        %v8039 = vshrl.u32 %v8038, 7
        %v8040 = vsub.s32 %v8037, %v8039
        %v8041 = vrot.slane %v8027, %v8040
        %v8042 = vcombine.high %v8018, 0.0
        %v8043 = vcombine.high %v8025, 0.0
        %v8044 = vcombine.high %v8034, 0.0
        %v8045 = vcombine.high %v8041, 0.0
        %v8046 = vcombine.low %v7957, %v7965
        %v8047 = vcombine.high %v7957, %v7965
        %v8049 = vunpack.c.l.s4 1983009808
        %v8050 = vunpack.c.0.s8 %v8049
        %v8051 = vlaneseq
        %v8052 = vshrl.u32 %v8051, 7
        %v8053 = vsub.s32 %v8050, %v8052
        %v8054 = vrot.slane %v8046, %v8053
        %v8056 = vunpack.c.l.s4 1983009808
        %v8057 = vunpack.c.0.s8 %v8056
        %v8058 = vlaneseq
        %v8059 = vshrl.u32 %v8058, 7
        %v8060 = vsub.s32 %v8057, %v8059
        %v8061 = vrot.slane %v8047, %v8060
        %v8062 = vcombine.low %v7961, %v7969
        %v8063 = vcombine.high %v7961, %v7969
        %v8065 = vunpack.c.l.s4 1983009808
        %v8066 = vunpack.c.0.s8 %v8065
        %v8067 = vlaneseq
        %v8068 = vshrl.u32 %v8067, 7
        %v8069 = vsub.s32 %v8066, %v8068
        %v8070 = vrot.slane %v8062, %v8069
        %v8072 = vunpack.c.l.s4 1983009808
        %v8073 = vunpack.c.0.s8 %v8072
        %v8074 = vlaneseq
        %v8075 = vshrl.u32 %v8074, 7
        %v8076 = vsub.s32 %v8073, %v8075
        %v8077 = vrot.slane %v8063, %v8076
        %v8078 = vcombine.low %v8054, %v8070
        %v8079 = vcombine.high %v8054, %v8070
        %v8081 = vunpack.c.l.s4 1934713408
        %v8082 = vunpack.c.0.s8 %v8081
        %v8083 = vlaneseq
        %v8084 = vshrl.u32 %v8083, 7
        %v8085 = vsub.s32 %v8082, %v8084
        %v8086 = vrot.slane %v8078, %v8085
        %v8088 = vunpack.c.l.s4 1934713408
        %v8089 = vunpack.c.0.s8 %v8088
        %v8090 = vlaneseq
        %v8091 = vshrl.u32 %v8090, 7
        %v8092 = vsub.s32 %v8089, %v8091
        %v8093 = vrot.slane %v8079, %v8092
        %v8094 = vcombine.low %v8061, %v8077
        %v8095 = vcombine.high %v8061, %v8077
        %v8097 = vunpack.c.l.s4 1934713408
        %v8098 = vunpack.c.0.s8 %v8097
        %v8099 = vlaneseq
        %v8100 = vshrl.u32 %v8099, 7
        %v8101 = vsub.s32 %v8098, %v8100
        %v8102 = vrot.slane %v8094, %v8101
        %v8104 = vunpack.c.l.s4 1934713408
        %v8105 = vunpack.c.0.s8 %v8104
        %v8106 = vlaneseq
        %v8107 = vshrl.u32 %v8106, 7
        %v8108 = vsub.s32 %v8105, %v8107
        %v8109 = vrot.slane %v8095, %v8108
        %v8110 = vcombine.high %v8086, 0.0
        %v8111 = vcombine.high %v8093, 0.0
        %v8112 = vcombine.high %v8102, 0.0
        %v8113 = vcombine.high %v8109, 0.0
        %8115 = vrot.lane.b32.xlu0 %v8042, 16
        %v8116 = vpop.permute.xlu0 %8115
        %8119 = vrot.lane.b32.xlu0 %v8025, 32
        %v8120 = vpop.permute.xlu0 %8119
        %8123 = vrot.lane.b32.xlu0 %v8043, 48
        %v8124 = vpop.permute.xlu0 %8123
        %8127 = vrot.lane.b32.xlu0 %v8034, 64
        %v8128 = vpop.permute.xlu0 %8127
        %8131 = vrot.lane.b32.xlu0 %v8044, 80
        %v8132 = vpop.permute.xlu0 %8131
        %8135 = vrot.lane.b32.xlu0 %v8041, 96
        %v8136 = vpop.permute.xlu0 %8135
        %8139 = vrot.lane.b32.xlu0 %v8045, 112
        %v8140 = vpop.permute.xlu0 %8139
        %8143 = vrot.lane.b32.xlu0 %v8110, 16
        %v8144 = vpop.permute.xlu0 %8143
        %8147 = vrot.lane.b32.xlu0 %v8093, 32
        %v8148 = vpop.permute.xlu0 %8147
        %8151 = vrot.lane.b32.xlu0 %v8111, 48
        %v8152 = vpop.permute.xlu0 %8151
        %8155 = vrot.lane.b32.xlu0 %v8102, 64
        %v8156 = vpop.permute.xlu0 %8155
        %8159 = vrot.lane.b32.xlu0 %v8112, 80
        %v8160 = vpop.permute.xlu0 %8159
        %8163 = vrot.lane.b32.xlu0 %v8109, 96
        %v8164 = vpop.permute.xlu0 %8163
        %8167 = vrot.lane.b32.xlu0 %v8113, 112
        %v8168 = vpop.permute.xlu0 %8167
        %v8170 = vsel %vm577, %v8018, %v8116
        %v8171 = vsel %vm579, %v8170, %v8120
        %v8172 = vsel %vm581, %v8171, %v8124
        %v8173 = vsel %vm583, %v8172, %v8128
        %v8174 = vsel %vm585, %v8173, %v8132
        %v8175 = vsel %vm587, %v8174, %v8136
        %v8176 = vsel %vm589, %v8175, %v8140
        %v8177 = vsel %vm577, %v8086, %v8144
        %v8178 = vsel %vm579, %v8177, %v8148
        %v8179 = vsel %vm581, %v8178, %v8152
        %v8180 = vsel %vm583, %v8179, %v8156
        %v8181 = vsel %vm585, %v8180, %v8160
        %v8182 = vsel %vm587, %v8181, %v8164
        %v8183 = vsel %vm589, %v8182, %v8168
        %8184 = vrot.lane.b32.xlu0 %v7728, 126
        %v8185 = vpop.permute.xlu0 %8184
        %8186 = vrot.lane.b32.xlu0 %v7729, 126
        %v8187 = vpop.permute.xlu0 %8186
        %8188 = vrot.lane.b32.xlu0 %v7731, 126
        %v8189 = vpop.permute.xlu0 %8188
        %8190 = vrot.lane.b32.xlu0 %v7732, 126
        %v8191 = vpop.permute.xlu0 %8190
        %8192 = vrot.lane.b32.xlu0 %v7734, 126
        %v8193 = vpop.permute.xlu0 %8192
        %8194 = vrot.lane.b32.xlu0 %v7735, 126
        %v8195 = vpop.permute.xlu0 %8194
        %8196 = vrot.lane.b32.xlu0 %v7737, 126
        %v8197 = vpop.permute.xlu0 %8196
        %8198 = vrot.lane.b32.xlu0 %v7738, 126
        %v8199 = vpop.permute.xlu0 %8198
        %v8208 = vcombine.low %v8185, %v8193
        %v8209 = vcombine.high %v8185, %v8193
        %v8211 = vunpack.c.l.s4 1983009808
        %v8212 = vunpack.c.0.s8 %v8211
        %v8213 = vlaneseq
        %v8214 = vshrl.u32 %v8213, 7
        %v8215 = vsub.s32 %v8212, %v8214
        %v8216 = vrot.slane %v8208, %v8215
        %v8218 = vunpack.c.l.s4 1983009808
        %v8219 = vunpack.c.0.s8 %v8218
        %v8220 = vlaneseq
        %v8221 = vshrl.u32 %v8220, 7
        %v8222 = vsub.s32 %v8219, %v8221
        %v8223 = vrot.slane %v8209, %v8222
        %v8224 = vcombine.low %v8189, %v8197
        %v8225 = vcombine.high %v8189, %v8197
        %v8227 = vunpack.c.l.s4 1983009808
        %v8228 = vunpack.c.0.s8 %v8227
        %v8229 = vlaneseq
        %v8230 = vshrl.u32 %v8229, 7
        %v8231 = vsub.s32 %v8228, %v8230
        %v8232 = vrot.slane %v8224, %v8231
        %v8234 = vunpack.c.l.s4 1983009808
        %v8235 = vunpack.c.0.s8 %v8234
        %v8236 = vlaneseq
        %v8237 = vshrl.u32 %v8236, 7
        %v8238 = vsub.s32 %v8235, %v8237
        %v8239 = vrot.slane %v8225, %v8238
        %v8240 = vcombine.low %v8216, %v8232
        %v8241 = vcombine.high %v8216, %v8232
        %v8243 = vunpack.c.l.s4 1934713408
        %v8244 = vunpack.c.0.s8 %v8243
        %v8245 = vlaneseq
        %v8246 = vshrl.u32 %v8245, 7
        %v8247 = vsub.s32 %v8244, %v8246
        %v8248 = vrot.slane %v8240, %v8247
        %v8250 = vunpack.c.l.s4 1934713408
        %v8251 = vunpack.c.0.s8 %v8250
        %v8252 = vlaneseq
        %v8253 = vshrl.u32 %v8252, 7
        %v8254 = vsub.s32 %v8251, %v8253
        %v8255 = vrot.slane %v8241, %v8254
        %v8256 = vcombine.low %v8223, %v8239
        %v8257 = vcombine.high %v8223, %v8239
        %v8259 = vunpack.c.l.s4 1934713408
        %v8260 = vunpack.c.0.s8 %v8259
        %v8261 = vlaneseq
        %v8262 = vshrl.u32 %v8261, 7
        %v8263 = vsub.s32 %v8260, %v8262
        %v8264 = vrot.slane %v8256, %v8263
        %v8266 = vunpack.c.l.s4 1934713408
        %v8267 = vunpack.c.0.s8 %v8266
        %v8268 = vlaneseq
        %v8269 = vshrl.u32 %v8268, 7
        %v8270 = vsub.s32 %v8267, %v8269
        %v8271 = vrot.slane %v8257, %v8270
        %v8272 = vcombine.high %v8248, 0.0
        %v8273 = vcombine.high %v8255, 0.0
        %v8274 = vcombine.high %v8264, 0.0
        %v8275 = vcombine.high %v8271, 0.0
        %v8276 = vcombine.low %v8187, %v8195
        %v8277 = vcombine.high %v8187, %v8195
        %v8279 = vunpack.c.l.s4 1983009808
        %v8280 = vunpack.c.0.s8 %v8279
        %v8281 = vlaneseq
        %v8282 = vshrl.u32 %v8281, 7
        %v8283 = vsub.s32 %v8280, %v8282
        %v8284 = vrot.slane %v8276, %v8283
        %v8286 = vunpack.c.l.s4 1983009808
        %v8287 = vunpack.c.0.s8 %v8286
        %v8288 = vlaneseq
        %v8289 = vshrl.u32 %v8288, 7
        %v8290 = vsub.s32 %v8287, %v8289
        %v8291 = vrot.slane %v8277, %v8290
        %v8292 = vcombine.low %v8191, %v8199
        %v8293 = vcombine.high %v8191, %v8199
        %v8295 = vunpack.c.l.s4 1983009808
        %v8296 = vunpack.c.0.s8 %v8295
        %v8297 = vlaneseq
        %v8298 = vshrl.u32 %v8297, 7
        %v8299 = vsub.s32 %v8296, %v8298
        %v8300 = vrot.slane %v8292, %v8299
        %v8302 = vunpack.c.l.s4 1983009808
        %v8303 = vunpack.c.0.s8 %v8302
        %v8304 = vlaneseq
        %v8305 = vshrl.u32 %v8304, 7
        %v8306 = vsub.s32 %v8303, %v8305
        %v8307 = vrot.slane %v8293, %v8306
        %v8308 = vcombine.low %v8284, %v8300
        %v8309 = vcombine.high %v8284, %v8300
        %v8311 = vunpack.c.l.s4 1934713408
        %v8312 = vunpack.c.0.s8 %v8311
        %v8313 = vlaneseq
        %v8314 = vshrl.u32 %v8313, 7
        %v8315 = vsub.s32 %v8312, %v8314
        %v8316 = vrot.slane %v8308, %v8315
        %v8318 = vunpack.c.l.s4 1934713408
        %v8319 = vunpack.c.0.s8 %v8318
        %v8320 = vlaneseq
        %v8321 = vshrl.u32 %v8320, 7
        %v8322 = vsub.s32 %v8319, %v8321
        %v8323 = vrot.slane %v8309, %v8322
        %v8324 = vcombine.low %v8291, %v8307
        %v8325 = vcombine.high %v8291, %v8307
        %v8327 = vunpack.c.l.s4 1934713408
        %v8328 = vunpack.c.0.s8 %v8327
        %v8329 = vlaneseq
        %v8330 = vshrl.u32 %v8329, 7
        %v8331 = vsub.s32 %v8328, %v8330
        %v8332 = vrot.slane %v8324, %v8331
        %v8334 = vunpack.c.l.s4 1934713408
        %v8335 = vunpack.c.0.s8 %v8334
        %v8336 = vlaneseq
        %v8337 = vshrl.u32 %v8336, 7
        %v8338 = vsub.s32 %v8335, %v8337
        %v8339 = vrot.slane %v8325, %v8338
        %v8340 = vcombine.high %v8316, 0.0
        %v8341 = vcombine.high %v8323, 0.0
        %v8342 = vcombine.high %v8332, 0.0
        %v8343 = vcombine.high %v8339, 0.0
        %8345 = vrot.lane.b32.xlu0 %v8272, 16
        %v8346 = vpop.permute.xlu0 %8345
        %8349 = vrot.lane.b32.xlu0 %v8255, 32
        %v8350 = vpop.permute.xlu0 %8349
        %8353 = vrot.lane.b32.xlu0 %v8273, 48
        %v8354 = vpop.permute.xlu0 %8353
        %8357 = vrot.lane.b32.xlu0 %v8264, 64
        %v8358 = vpop.permute.xlu0 %8357
        %8361 = vrot.lane.b32.xlu0 %v8274, 80
        %v8362 = vpop.permute.xlu0 %8361
        %8365 = vrot.lane.b32.xlu0 %v8271, 96
        %v8366 = vpop.permute.xlu0 %8365
        %8369 = vrot.lane.b32.xlu0 %v8275, 112
        %v8370 = vpop.permute.xlu0 %8369
        %8373 = vrot.lane.b32.xlu0 %v8340, 16
        %v8374 = vpop.permute.xlu0 %8373
        %8377 = vrot.lane.b32.xlu0 %v8323, 32
        %v8378 = vpop.permute.xlu0 %8377
        %8381 = vrot.lane.b32.xlu0 %v8341, 48
        %v8382 = vpop.permute.xlu0 %8381
        %8385 = vrot.lane.b32.xlu0 %v8332, 64
        %v8386 = vpop.permute.xlu0 %8385
        %8389 = vrot.lane.b32.xlu0 %v8342, 80
        %v8390 = vpop.permute.xlu0 %8389
        %8393 = vrot.lane.b32.xlu0 %v8339, 96
        %v8394 = vpop.permute.xlu0 %8393
        %8397 = vrot.lane.b32.xlu0 %v8343, 112
        %v8398 = vpop.permute.xlu0 %8397
        %v8400 = vsel %vm577, %v8248, %v8346
        %v8401 = vsel %vm579, %v8400, %v8350
        %v8402 = vsel %vm581, %v8401, %v8354
        %v8403 = vsel %vm583, %v8402, %v8358
        %v8404 = vsel %vm585, %v8403, %v8362
        %v8405 = vsel %vm587, %v8404, %v8366
        %v8406 = vsel %vm589, %v8405, %v8370
        %v8407 = vsel %vm577, %v8316, %v8374
        %v8408 = vsel %vm579, %v8407, %v8378
        %v8409 = vsel %vm581, %v8408, %v8382
        %v8410 = vsel %vm583, %v8409, %v8386
        %v8411 = vsel %vm585, %v8410, %v8390
        %v8412 = vsel %vm587, %v8411, %v8394
        %v8413 = vsel %vm589, %v8412, %v8398
        %v8418 = vrot.slane %v7728, 1
        %v8419 = vrot.slane %v7729, 1
        %v8420 = vsel %vm1070, %v8418, %v8419
        %v8421 = vrot.slane %v7730, 1
        %v8422 = vsel %vm1070, %v8419, %v8421
        %v8423 = vrot.slane %v7731, 1
        %v8424 = vrot.slane %v7732, 1
        %v8425 = vsel %vm1070, %v8423, %v8424
        %v8426 = vrot.slane %v7733, 1
        %v8427 = vsel %vm1070, %v8424, %v8426
        %v8428 = vrot.slane %v7734, 1
        %v8429 = vrot.slane %v7735, 1
        %v8430 = vsel %vm1070, %v8428, %v8429
        %v8431 = vrot.slane %v7736, 1
        %v8432 = vsel %vm1070, %v8429, %v8431
        %v8433 = vrot.slane %v7737, 1
        %v8434 = vrot.slane %v7738, 1
        %v8435 = vsel %vm1070, %v8433, %v8434
        %v8436 = vrot.slane %v7739, 1
        %v8437 = vsel %vm1070, %v8434, %v8436
        %v8446 = vcombine.low %v8420, %v8430
        %v8447 = vcombine.high %v8420, %v8430
        %v8449 = vunpack.c.l.s4 1983009808
        %v8450 = vunpack.c.0.s8 %v8449
        %v8451 = vlaneseq
        %v8452 = vshrl.u32 %v8451, 7
        %v8453 = vsub.s32 %v8450, %v8452
        %v8454 = vrot.slane %v8446, %v8453
        %v8456 = vunpack.c.l.s4 1983009808
        %v8457 = vunpack.c.0.s8 %v8456
        %v8458 = vlaneseq
        %v8459 = vshrl.u32 %v8458, 7
        %v8460 = vsub.s32 %v8457, %v8459
        %v8461 = vrot.slane %v8447, %v8460
        %v8462 = vcombine.low %v8425, %v8435
        %v8463 = vcombine.high %v8425, %v8435
        %v8465 = vunpack.c.l.s4 1983009808
        %v8466 = vunpack.c.0.s8 %v8465
        %v8467 = vlaneseq
        %v8468 = vshrl.u32 %v8467, 7
        %v8469 = vsub.s32 %v8466, %v8468
        %v8470 = vrot.slane %v8462, %v8469
        %v8472 = vunpack.c.l.s4 1983009808
        %v8473 = vunpack.c.0.s8 %v8472
        %v8474 = vlaneseq
        %v8475 = vshrl.u32 %v8474, 7
        %v8476 = vsub.s32 %v8473, %v8475
        %v8477 = vrot.slane %v8463, %v8476
        %v8478 = vcombine.low %v8454, %v8470
        %v8479 = vcombine.high %v8454, %v8470
        %v8481 = vunpack.c.l.s4 1934713408
        %v8482 = vunpack.c.0.s8 %v8481
        %v8483 = vlaneseq
        %v8484 = vshrl.u32 %v8483, 7
        %v8485 = vsub.s32 %v8482, %v8484
        %v8486 = vrot.slane %v8478, %v8485
        %v8488 = vunpack.c.l.s4 1934713408
        %v8489 = vunpack.c.0.s8 %v8488
        %v8490 = vlaneseq
        %v8491 = vshrl.u32 %v8490, 7
        %v8492 = vsub.s32 %v8489, %v8491
        %v8493 = vrot.slane %v8479, %v8492
        %v8494 = vcombine.low %v8461, %v8477
        %v8495 = vcombine.high %v8461, %v8477
        %v8497 = vunpack.c.l.s4 1934713408
        %v8498 = vunpack.c.0.s8 %v8497
        %v8499 = vlaneseq
        %v8500 = vshrl.u32 %v8499, 7
        %v8501 = vsub.s32 %v8498, %v8500
        %v8502 = vrot.slane %v8494, %v8501
        %v8504 = vunpack.c.l.s4 1934713408
        %v8505 = vunpack.c.0.s8 %v8504
        %v8506 = vlaneseq
        %v8507 = vshrl.u32 %v8506, 7
        %v8508 = vsub.s32 %v8505, %v8507
        %v8509 = vrot.slane %v8495, %v8508
        %v8510 = vcombine.high %v8486, 0.0
        %v8511 = vcombine.high %v8493, 0.0
        %v8512 = vcombine.high %v8502, 0.0
        %v8513 = vcombine.high %v8509, 0.0
        %v8514 = vcombine.low %v8422, %v8432
        %v8515 = vcombine.high %v8422, %v8432
        %v8517 = vunpack.c.l.s4 1983009808
        %v8518 = vunpack.c.0.s8 %v8517
        %v8519 = vlaneseq
        %v8520 = vshrl.u32 %v8519, 7
        %v8521 = vsub.s32 %v8518, %v8520
        %v8522 = vrot.slane %v8514, %v8521
        %v8524 = vunpack.c.l.s4 1983009808
        %v8525 = vunpack.c.0.s8 %v8524
        %v8526 = vlaneseq
        %v8527 = vshrl.u32 %v8526, 7
        %v8528 = vsub.s32 %v8525, %v8527
        %v8529 = vrot.slane %v8515, %v8528
        %v8530 = vcombine.low %v8427, %v8437
        %v8531 = vcombine.high %v8427, %v8437
        %v8533 = vunpack.c.l.s4 1983009808
        %v8534 = vunpack.c.0.s8 %v8533
        %v8535 = vlaneseq
        %v8536 = vshrl.u32 %v8535, 7
        %v8537 = vsub.s32 %v8534, %v8536
        %v8538 = vrot.slane %v8530, %v8537
        %v8540 = vunpack.c.l.s4 1983009808
        %v8541 = vunpack.c.0.s8 %v8540
        %v8542 = vlaneseq
        %v8543 = vshrl.u32 %v8542, 7
        %v8544 = vsub.s32 %v8541, %v8543
        %v8545 = vrot.slane %v8531, %v8544
        %v8546 = vcombine.low %v8522, %v8538
        %v8547 = vcombine.high %v8522, %v8538
        %v8549 = vunpack.c.l.s4 1934713408
        %v8550 = vunpack.c.0.s8 %v8549
        %v8551 = vlaneseq
        %v8552 = vshrl.u32 %v8551, 7
        %v8553 = vsub.s32 %v8550, %v8552
        %v8554 = vrot.slane %v8546, %v8553
        %v8556 = vunpack.c.l.s4 1934713408
        %v8557 = vunpack.c.0.s8 %v8556
        %v8558 = vlaneseq
        %v8559 = vshrl.u32 %v8558, 7
        %v8560 = vsub.s32 %v8557, %v8559
        %v8561 = vrot.slane %v8547, %v8560
        %v8562 = vcombine.low %v8529, %v8545
        %v8563 = vcombine.high %v8529, %v8545
        %v8565 = vunpack.c.l.s4 1934713408
        %v8566 = vunpack.c.0.s8 %v8565
        %v8567 = vlaneseq
        %v8568 = vshrl.u32 %v8567, 7
        %v8569 = vsub.s32 %v8566, %v8568
        %v8570 = vrot.slane %v8562, %v8569
        %v8572 = vunpack.c.l.s4 1934713408
        %v8573 = vunpack.c.0.s8 %v8572
        %v8574 = vlaneseq
        %v8575 = vshrl.u32 %v8574, 7
        %v8576 = vsub.s32 %v8573, %v8575
        %v8577 = vrot.slane %v8563, %v8576
        %v8578 = vcombine.high %v8554, 0.0
        %v8579 = vcombine.high %v8561, 0.0
        %v8580 = vcombine.high %v8570, 0.0
        %v8581 = vcombine.high %v8577, 0.0
        %8583 = vrot.lane.b32.xlu0 %v8510, 16
        %v8584 = vpop.permute.xlu0 %8583
        %8587 = vrot.lane.b32.xlu0 %v8493, 32
        %v8588 = vpop.permute.xlu0 %8587
        %8591 = vrot.lane.b32.xlu0 %v8511, 48
        %v8592 = vpop.permute.xlu0 %8591
        %8595 = vrot.lane.b32.xlu0 %v8502, 64
        %v8596 = vpop.permute.xlu0 %8595
        %8599 = vrot.lane.b32.xlu0 %v8512, 80
        %v8600 = vpop.permute.xlu0 %8599
        %8603 = vrot.lane.b32.xlu0 %v8509, 96
        %v8604 = vpop.permute.xlu0 %8603
        %8607 = vrot.lane.b32.xlu0 %v8513, 112
        %v8608 = vpop.permute.xlu0 %8607
        %8611 = vrot.lane.b32.xlu0 %v8578, 16
        %v8612 = vpop.permute.xlu0 %8611
        %8615 = vrot.lane.b32.xlu0 %v8561, 32
        %v8616 = vpop.permute.xlu0 %8615
        %8619 = vrot.lane.b32.xlu0 %v8579, 48
        %v8620 = vpop.permute.xlu0 %8619
        %8623 = vrot.lane.b32.xlu0 %v8570, 64
        %v8624 = vpop.permute.xlu0 %8623
        %8627 = vrot.lane.b32.xlu0 %v8580, 80
        %v8628 = vpop.permute.xlu0 %8627
        %8631 = vrot.lane.b32.xlu0 %v8577, 96
        %v8632 = vpop.permute.xlu0 %8631
        %8635 = vrot.lane.b32.xlu0 %v8581, 112
        %v8636 = vpop.permute.xlu0 %8635
        %v8638 = vsel %vm577, %v8486, %v8584
        %v8639 = vsel %vm579, %v8638, %v8588
        %v8640 = vsel %vm581, %v8639, %v8592
        %v8641 = vsel %vm583, %v8640, %v8596
        %v8642 = vsel %vm585, %v8641, %v8600
        %v8643 = vsel %vm587, %v8642, %v8604
        %v8644 = vsel %vm589, %v8643, %v8608
        %v8645 = vsel %vm577, %v8554, %v8612
        %v8646 = vsel %vm579, %v8645, %v8616
        %v8647 = vsel %vm581, %v8646, %v8620
        %v8648 = vsel %vm583, %v8647, %v8624
        %v8649 = vsel %vm585, %v8648, %v8628
        %v8650 = vsel %vm587, %v8649, %v8632
        %v8651 = vsel %vm589, %v8650, %v8636
        %8652 = vrot.lane.b32.xlu0 %v8420, 127
        %v8653 = vpop.permute.xlu0 %8652
        %8654 = vrot.lane.b32.xlu0 %v8422, 127
        %v8655 = vpop.permute.xlu0 %8654
        %8656 = vrot.lane.b32.xlu0 %v8425, 127
        %v8657 = vpop.permute.xlu0 %8656
        %8658 = vrot.lane.b32.xlu0 %v8427, 127
        %v8659 = vpop.permute.xlu0 %8658
        %8660 = vrot.lane.b32.xlu0 %v8430, 127
        %v8661 = vpop.permute.xlu0 %8660
        %8662 = vrot.lane.b32.xlu0 %v8432, 127
        %v8663 = vpop.permute.xlu0 %8662
        %8664 = vrot.lane.b32.xlu0 %v8435, 127
        %v8665 = vpop.permute.xlu0 %8664
        %8666 = vrot.lane.b32.xlu0 %v8437, 127
        %v8667 = vpop.permute.xlu0 %8666
        %v8676 = vcombine.low %v8653, %v8661
        %v8677 = vcombine.high %v8653, %v8661
        %v8679 = vunpack.c.l.s4 1983009808
        %v8680 = vunpack.c.0.s8 %v8679
        %v8681 = vlaneseq
        %v8682 = vshrl.u32 %v8681, 7
        %v8683 = vsub.s32 %v8680, %v8682
        %v8684 = vrot.slane %v8676, %v8683
        %v8686 = vunpack.c.l.s4 1983009808
        %v8687 = vunpack.c.0.s8 %v8686
        %v8688 = vlaneseq
        %v8689 = vshrl.u32 %v8688, 7
        %v8690 = vsub.s32 %v8687, %v8689
        %v8691 = vrot.slane %v8677, %v8690
        %v8692 = vcombine.low %v8657, %v8665
        %v8693 = vcombine.high %v8657, %v8665
        %v8695 = vunpack.c.l.s4 1983009808
        %v8696 = vunpack.c.0.s8 %v8695
        %v8697 = vlaneseq
        %v8698 = vshrl.u32 %v8697, 7
        %v8699 = vsub.s32 %v8696, %v8698
        %v8700 = vrot.slane %v8692, %v8699
        %v8702 = vunpack.c.l.s4 1983009808
        %v8703 = vunpack.c.0.s8 %v8702
        %v8704 = vlaneseq
        %v8705 = vshrl.u32 %v8704, 7
        %v8706 = vsub.s32 %v8703, %v8705
        %v8707 = vrot.slane %v8693, %v8706
        %v8708 = vcombine.low %v8684, %v8700
        %v8709 = vcombine.high %v8684, %v8700
        %v8711 = vunpack.c.l.s4 1934713408
        %v8712 = vunpack.c.0.s8 %v8711
        %v8713 = vlaneseq
        %v8714 = vshrl.u32 %v8713, 7
        %v8715 = vsub.s32 %v8712, %v8714
        %v8716 = vrot.slane %v8708, %v8715
        %v8718 = vunpack.c.l.s4 1934713408
        %v8719 = vunpack.c.0.s8 %v8718
        %v8720 = vlaneseq
        %v8721 = vshrl.u32 %v8720, 7
        %v8722 = vsub.s32 %v8719, %v8721
        %v8723 = vrot.slane %v8709, %v8722
        %v8724 = vcombine.low %v8691, %v8707
        %v8725 = vcombine.high %v8691, %v8707
        %v8727 = vunpack.c.l.s4 1934713408
        %v8728 = vunpack.c.0.s8 %v8727
        %v8729 = vlaneseq
        %v8730 = vshrl.u32 %v8729, 7
        %v8731 = vsub.s32 %v8728, %v8730
        %v8732 = vrot.slane %v8724, %v8731
        %v8734 = vunpack.c.l.s4 1934713408
        %v8735 = vunpack.c.0.s8 %v8734
        %v8736 = vlaneseq
        %v8737 = vshrl.u32 %v8736, 7
        %v8738 = vsub.s32 %v8735, %v8737
        %v8739 = vrot.slane %v8725, %v8738
        %v8740 = vcombine.high %v8716, 0.0
        %v8741 = vcombine.high %v8723, 0.0
        %v8742 = vcombine.high %v8732, 0.0
        %v8743 = vcombine.high %v8739, 0.0
        %v8744 = vcombine.low %v8655, %v8663
        %v8745 = vcombine.high %v8655, %v8663
        %v8747 = vunpack.c.l.s4 1983009808
        %v8748 = vunpack.c.0.s8 %v8747
        %v8749 = vlaneseq
        %v8750 = vshrl.u32 %v8749, 7
        %v8751 = vsub.s32 %v8748, %v8750
        %v8752 = vrot.slane %v8744, %v8751
        %v8754 = vunpack.c.l.s4 1983009808
        %v8755 = vunpack.c.0.s8 %v8754
        %v8756 = vlaneseq
        %v8757 = vshrl.u32 %v8756, 7
        %v8758 = vsub.s32 %v8755, %v8757
        %v8759 = vrot.slane %v8745, %v8758
        %v8760 = vcombine.low %v8659, %v8667
        %v8761 = vcombine.high %v8659, %v8667
        %v8763 = vunpack.c.l.s4 1983009808
        %v8764 = vunpack.c.0.s8 %v8763
        %v8765 = vlaneseq
        %v8766 = vshrl.u32 %v8765, 7
        %v8767 = vsub.s32 %v8764, %v8766
        %v8768 = vrot.slane %v8760, %v8767
        %v8770 = vunpack.c.l.s4 1983009808
        %v8771 = vunpack.c.0.s8 %v8770
        %v8772 = vlaneseq
        %v8773 = vshrl.u32 %v8772, 7
        %v8774 = vsub.s32 %v8771, %v8773
        %v8775 = vrot.slane %v8761, %v8774
        %v8776 = vcombine.low %v8752, %v8768
        %v8777 = vcombine.high %v8752, %v8768
        %v8779 = vunpack.c.l.s4 1934713408
        %v8780 = vunpack.c.0.s8 %v8779
        %v8781 = vlaneseq
        %v8782 = vshrl.u32 %v8781, 7
        %v8783 = vsub.s32 %v8780, %v8782
        %v8784 = vrot.slane %v8776, %v8783
        %v8786 = vunpack.c.l.s4 1934713408
        %v8787 = vunpack.c.0.s8 %v8786
        %v8788 = vlaneseq
        %v8789 = vshrl.u32 %v8788, 7
        %v8790 = vsub.s32 %v8787, %v8789
        %v8791 = vrot.slane %v8777, %v8790
        %v8792 = vcombine.low %v8759, %v8775
        %v8793 = vcombine.high %v8759, %v8775
        %v8795 = vunpack.c.l.s4 1934713408
        %v8796 = vunpack.c.0.s8 %v8795
        %v8797 = vlaneseq
        %v8798 = vshrl.u32 %v8797, 7
        %v8799 = vsub.s32 %v8796, %v8798
        %v8800 = vrot.slane %v8792, %v8799
        %v8802 = vunpack.c.l.s4 1934713408
        %v8803 = vunpack.c.0.s8 %v8802
        %v8804 = vlaneseq
        %v8805 = vshrl.u32 %v8804, 7
        %v8806 = vsub.s32 %v8803, %v8805
        %v8807 = vrot.slane %v8793, %v8806
        %v8808 = vcombine.high %v8784, 0.0
        %v8809 = vcombine.high %v8791, 0.0
        %v8810 = vcombine.high %v8800, 0.0
        %v8811 = vcombine.high %v8807, 0.0
        %8813 = vrot.lane.b32.xlu0 %v8740, 16
        %v8814 = vpop.permute.xlu0 %8813
        %8817 = vrot.lane.b32.xlu0 %v8723, 32
        %v8818 = vpop.permute.xlu0 %8817
        %8821 = vrot.lane.b32.xlu0 %v8741, 48
        %v8822 = vpop.permute.xlu0 %8821
        %8825 = vrot.lane.b32.xlu0 %v8732, 64
        %v8826 = vpop.permute.xlu0 %8825
        %8829 = vrot.lane.b32.xlu0 %v8742, 80
        %v8830 = vpop.permute.xlu0 %8829
        %8833 = vrot.lane.b32.xlu0 %v8739, 96
        %v8834 = vpop.permute.xlu0 %8833
        %8837 = vrot.lane.b32.xlu0 %v8743, 112
        %v8838 = vpop.permute.xlu0 %8837
        %8841 = vrot.lane.b32.xlu0 %v8808, 16
        %v8842 = vpop.permute.xlu0 %8841
        %8845 = vrot.lane.b32.xlu0 %v8791, 32
        %v8846 = vpop.permute.xlu0 %8845
        %8849 = vrot.lane.b32.xlu0 %v8809, 48
        %v8850 = vpop.permute.xlu0 %8849
        %8853 = vrot.lane.b32.xlu0 %v8800, 64
        %v8854 = vpop.permute.xlu0 %8853
        %8857 = vrot.lane.b32.xlu0 %v8810, 80
        %v8858 = vpop.permute.xlu0 %8857
        %8861 = vrot.lane.b32.xlu0 %v8807, 96
        %v8862 = vpop.permute.xlu0 %8861
        %8865 = vrot.lane.b32.xlu0 %v8811, 112
        %v8866 = vpop.permute.xlu0 %8865
        %v8868 = vsel %vm577, %v8716, %v8814
        %v8869 = vsel %vm579, %v8868, %v8818
        %v8870 = vsel %vm581, %v8869, %v8822
        %v8871 = vsel %vm583, %v8870, %v8826
        %v8872 = vsel %vm585, %v8871, %v8830
        %v8873 = vsel %vm587, %v8872, %v8834
        %v8874 = vsel %vm589, %v8873, %v8838
        %v8875 = vsel %vm577, %v8784, %v8842
        %v8876 = vsel %vm579, %v8875, %v8846
        %v8877 = vsel %vm581, %v8876, %v8850
        %v8878 = vsel %vm583, %v8877, %v8854
        %v8879 = vsel %vm585, %v8878, %v8858
        %v8880 = vsel %vm587, %v8879, %v8862
        %v8881 = vsel %vm589, %v8880, %v8866
        %8882 = vrot.lane.b32.xlu0 %v8420, 126
        %v8883 = vpop.permute.xlu0 %8882
        %8884 = vrot.lane.b32.xlu0 %v8422, 126
        %v8885 = vpop.permute.xlu0 %8884
        %8886 = vrot.lane.b32.xlu0 %v8425, 126
        %v8887 = vpop.permute.xlu0 %8886
        %8888 = vrot.lane.b32.xlu0 %v8427, 126
        %v8889 = vpop.permute.xlu0 %8888
        %8890 = vrot.lane.b32.xlu0 %v8430, 126
        %v8891 = vpop.permute.xlu0 %8890
        %8892 = vrot.lane.b32.xlu0 %v8432, 126
        %v8893 = vpop.permute.xlu0 %8892
        %8894 = vrot.lane.b32.xlu0 %v8435, 126
        %v8895 = vpop.permute.xlu0 %8894
        %8896 = vrot.lane.b32.xlu0 %v8437, 126
        %v8897 = vpop.permute.xlu0 %8896
        %v8906 = vcombine.low %v8883, %v8891
        %v8907 = vcombine.high %v8883, %v8891
        %v8909 = vunpack.c.l.s4 1983009808
        %v8910 = vunpack.c.0.s8 %v8909
        %v8911 = vlaneseq
        %v8912 = vshrl.u32 %v8911, 7
        %v8913 = vsub.s32 %v8910, %v8912
        %v8914 = vrot.slane %v8906, %v8913
        %v8916 = vunpack.c.l.s4 1983009808
        %v8917 = vunpack.c.0.s8 %v8916
        %v8918 = vlaneseq
        %v8919 = vshrl.u32 %v8918, 7
        %v8920 = vsub.s32 %v8917, %v8919
        %v8921 = vrot.slane %v8907, %v8920
        %v8922 = vcombine.low %v8887, %v8895
        %v8923 = vcombine.high %v8887, %v8895
        %v8925 = vunpack.c.l.s4 1983009808
        %v8926 = vunpack.c.0.s8 %v8925
        %v8927 = vlaneseq
        %v8928 = vshrl.u32 %v8927, 7
        %v8929 = vsub.s32 %v8926, %v8928
        %v8930 = vrot.slane %v8922, %v8929
        %v8932 = vunpack.c.l.s4 1983009808
        %v8933 = vunpack.c.0.s8 %v8932
        %v8934 = vlaneseq
        %v8935 = vshrl.u32 %v8934, 7
        %v8936 = vsub.s32 %v8933, %v8935
        %v8937 = vrot.slane %v8923, %v8936
        %v8938 = vcombine.low %v8914, %v8930
        %v8939 = vcombine.high %v8914, %v8930
        %v8941 = vunpack.c.l.s4 1934713408
        %v8942 = vunpack.c.0.s8 %v8941
        %v8943 = vlaneseq
        %v8944 = vshrl.u32 %v8943, 7
        %v8945 = vsub.s32 %v8942, %v8944
        %v8946 = vrot.slane %v8938, %v8945
        %v8948 = vunpack.c.l.s4 1934713408
        %v8949 = vunpack.c.0.s8 %v8948
        %v8950 = vlaneseq
        %v8951 = vshrl.u32 %v8950, 7
        %v8952 = vsub.s32 %v8949, %v8951
        %v8953 = vrot.slane %v8939, %v8952
        %v8954 = vcombine.low %v8921, %v8937
        %v8955 = vcombine.high %v8921, %v8937
        %v8957 = vunpack.c.l.s4 1934713408
        %v8958 = vunpack.c.0.s8 %v8957
        %v8959 = vlaneseq
        %v8960 = vshrl.u32 %v8959, 7
        %v8961 = vsub.s32 %v8958, %v8960
        %v8962 = vrot.slane %v8954, %v8961
        %v8964 = vunpack.c.l.s4 1934713408
        %v8965 = vunpack.c.0.s8 %v8964
        %v8966 = vlaneseq
        %v8967 = vshrl.u32 %v8966, 7
        %v8968 = vsub.s32 %v8965, %v8967
        %v8969 = vrot.slane %v8955, %v8968
        %v8970 = vcombine.high %v8946, 0.0
        %v8971 = vcombine.high %v8953, 0.0
        %v8972 = vcombine.high %v8962, 0.0
        %v8973 = vcombine.high %v8969, 0.0
        %v8974 = vcombine.low %v8885, %v8893
        %v8975 = vcombine.high %v8885, %v8893
        %v8977 = vunpack.c.l.s4 1983009808
        %v8978 = vunpack.c.0.s8 %v8977
        %v8979 = vlaneseq
        %v8980 = vshrl.u32 %v8979, 7
        %v8981 = vsub.s32 %v8978, %v8980
        %v8982 = vrot.slane %v8974, %v8981
        %v8984 = vunpack.c.l.s4 1983009808
        %v8985 = vunpack.c.0.s8 %v8984
        %v8986 = vlaneseq
        %v8987 = vshrl.u32 %v8986, 7
        %v8988 = vsub.s32 %v8985, %v8987
        %v8989 = vrot.slane %v8975, %v8988
        %v8990 = vcombine.low %v8889, %v8897
        %v8991 = vcombine.high %v8889, %v8897
        %v8993 = vunpack.c.l.s4 1983009808
        %v8994 = vunpack.c.0.s8 %v8993
        %v8995 = vlaneseq
        %v8996 = vshrl.u32 %v8995, 7
        %v8997 = vsub.s32 %v8994, %v8996
        %v8998 = vrot.slane %v8990, %v8997
        %v9000 = vunpack.c.l.s4 1983009808
        %v9001 = vunpack.c.0.s8 %v9000
        %v9002 = vlaneseq
        %v9003 = vshrl.u32 %v9002, 7
        %v9004 = vsub.s32 %v9001, %v9003
        %v9005 = vrot.slane %v8991, %v9004
        %v9006 = vcombine.low %v8982, %v8998
        %v9007 = vcombine.high %v8982, %v8998
        %v9009 = vunpack.c.l.s4 1934713408
        %v9010 = vunpack.c.0.s8 %v9009
        %v9011 = vlaneseq
        %v9012 = vshrl.u32 %v9011, 7
        %v9013 = vsub.s32 %v9010, %v9012
        %v9014 = vrot.slane %v9006, %v9013
        %v9016 = vunpack.c.l.s4 1934713408
        %v9017 = vunpack.c.0.s8 %v9016
        %v9018 = vlaneseq
        %v9019 = vshrl.u32 %v9018, 7
        %v9020 = vsub.s32 %v9017, %v9019
        %v9021 = vrot.slane %v9007, %v9020
        %v9022 = vcombine.low %v8989, %v9005
        %v9023 = vcombine.high %v8989, %v9005
        %v9025 = vunpack.c.l.s4 1934713408
        %v9026 = vunpack.c.0.s8 %v9025
        %v9027 = vlaneseq
        %v9028 = vshrl.u32 %v9027, 7
        %v9029 = vsub.s32 %v9026, %v9028
        %v9030 = vrot.slane %v9022, %v9029
        %v9032 = vunpack.c.l.s4 1934713408
        %v9033 = vunpack.c.0.s8 %v9032
        %v9034 = vlaneseq
        %v9035 = vshrl.u32 %v9034, 7
        %v9036 = vsub.s32 %v9033, %v9035
        %v9037 = vrot.slane %v9023, %v9036
        %v9038 = vcombine.high %v9014, 0.0
        %v9039 = vcombine.high %v9021, 0.0
        %v9040 = vcombine.high %v9030, 0.0
        %v9041 = vcombine.high %v9037, 0.0
        %9043 = vrot.lane.b32.xlu0 %v8970, 16
        %v9044 = vpop.permute.xlu0 %9043
        %9047 = vrot.lane.b32.xlu0 %v8953, 32
        %v9048 = vpop.permute.xlu0 %9047
        %9051 = vrot.lane.b32.xlu0 %v8971, 48
        %v9052 = vpop.permute.xlu0 %9051
        %9055 = vrot.lane.b32.xlu0 %v8962, 64
        %v9056 = vpop.permute.xlu0 %9055
        %9059 = vrot.lane.b32.xlu0 %v8972, 80
        %v9060 = vpop.permute.xlu0 %9059
        %9063 = vrot.lane.b32.xlu0 %v8969, 96
        %v9064 = vpop.permute.xlu0 %9063
        %9067 = vrot.lane.b32.xlu0 %v8973, 112
        %v9068 = vpop.permute.xlu0 %9067
        %9071 = vrot.lane.b32.xlu0 %v9038, 16
        %v9072 = vpop.permute.xlu0 %9071
        %9075 = vrot.lane.b32.xlu0 %v9021, 32
        %v9076 = vpop.permute.xlu0 %9075
        %9079 = vrot.lane.b32.xlu0 %v9039, 48
        %v9080 = vpop.permute.xlu0 %9079
        %9083 = vrot.lane.b32.xlu0 %v9030, 64
        %v9084 = vpop.permute.xlu0 %9083
        %9087 = vrot.lane.b32.xlu0 %v9040, 80
        %v9088 = vpop.permute.xlu0 %9087
        %9091 = vrot.lane.b32.xlu0 %v9037, 96
        %v9092 = vpop.permute.xlu0 %9091
        %9095 = vrot.lane.b32.xlu0 %v9041, 112
        %v9096 = vpop.permute.xlu0 %9095
        %v9098 = vsel %vm577, %v8946, %v9044
        %v9099 = vsel %vm579, %v9098, %v9048
        %v9100 = vsel %vm581, %v9099, %v9052
        %v9101 = vsel %vm583, %v9100, %v9056
        %v9102 = vsel %vm585, %v9101, %v9060
        %v9103 = vsel %vm587, %v9102, %v9064
        %v9104 = vsel %vm589, %v9103, %v9068
        %v9105 = vsel %vm577, %v9014, %v9072
        %v9106 = vsel %vm579, %v9105, %v9076
        %v9107 = vsel %vm581, %v9106, %v9080
        %v9108 = vsel %vm583, %v9107, %v9084
        %v9109 = vsel %vm585, %v9108, %v9088
        %v9110 = vsel %vm587, %v9109, %v9092
        %v9111 = vsel %vm589, %v9110, %v9096
        %v9112 = vrot.slane %v7728, 2
        %v9113 = vrot.slane %v7729, 2
        %v9114 = vsel %vm1765, %v9112, %v9113
        %v9115 = vrot.slane %v7730, 2
        %v9116 = vsel %vm1765, %v9113, %v9115
        %v9117 = vrot.slane %v7731, 2
        %v9118 = vrot.slane %v7732, 2
        %v9119 = vsel %vm1765, %v9117, %v9118
        %v9120 = vrot.slane %v7733, 2
        %v9121 = vsel %vm1765, %v9118, %v9120
        %v9122 = vrot.slane %v7734, 2
        %v9123 = vrot.slane %v7735, 2
        %v9124 = vsel %vm1765, %v9122, %v9123
        %v9125 = vrot.slane %v7736, 2
        %v9126 = vsel %vm1765, %v9123, %v9125
        %v9127 = vrot.slane %v7737, 2
        %v9128 = vrot.slane %v7738, 2
        %v9129 = vsel %vm1765, %v9127, %v9128
        %v9130 = vrot.slane %v7739, 2
        %v9131 = vsel %vm1765, %v9128, %v9130
        %v9140 = vcombine.low %v9114, %v9124
        %v9141 = vcombine.high %v9114, %v9124
        %v9143 = vunpack.c.l.s4 1983009808
        %v9144 = vunpack.c.0.s8 %v9143
        %v9145 = vlaneseq
        %v9146 = vshrl.u32 %v9145, 7
        %v9147 = vsub.s32 %v9144, %v9146
        %v9148 = vrot.slane %v9140, %v9147
        %v9150 = vunpack.c.l.s4 1983009808
        %v9151 = vunpack.c.0.s8 %v9150
        %v9152 = vlaneseq
        %v9153 = vshrl.u32 %v9152, 7
        %v9154 = vsub.s32 %v9151, %v9153
        %v9155 = vrot.slane %v9141, %v9154
        %v9156 = vcombine.low %v9119, %v9129
        %v9157 = vcombine.high %v9119, %v9129
        %v9159 = vunpack.c.l.s4 1983009808
        %v9160 = vunpack.c.0.s8 %v9159
        %v9161 = vlaneseq
        %v9162 = vshrl.u32 %v9161, 7
        %v9163 = vsub.s32 %v9160, %v9162
        %v9164 = vrot.slane %v9156, %v9163
        %v9166 = vunpack.c.l.s4 1983009808
        %v9167 = vunpack.c.0.s8 %v9166
        %v9168 = vlaneseq
        %v9169 = vshrl.u32 %v9168, 7
        %v9170 = vsub.s32 %v9167, %v9169
        %v9171 = vrot.slane %v9157, %v9170
        %v9172 = vcombine.low %v9148, %v9164
        %v9173 = vcombine.high %v9148, %v9164
        %v9175 = vunpack.c.l.s4 1934713408
        %v9176 = vunpack.c.0.s8 %v9175
        %v9177 = vlaneseq
        %v9178 = vshrl.u32 %v9177, 7
        %v9179 = vsub.s32 %v9176, %v9178
        %v9180 = vrot.slane %v9172, %v9179
        %v9182 = vunpack.c.l.s4 1934713408
        %v9183 = vunpack.c.0.s8 %v9182
        %v9184 = vlaneseq
        %v9185 = vshrl.u32 %v9184, 7
        %v9186 = vsub.s32 %v9183, %v9185
        %v9187 = vrot.slane %v9173, %v9186
        %v9188 = vcombine.low %v9155, %v9171
        %v9189 = vcombine.high %v9155, %v9171
        %v9191 = vunpack.c.l.s4 1934713408
        %v9192 = vunpack.c.0.s8 %v9191
        %v9193 = vlaneseq
        %v9194 = vshrl.u32 %v9193, 7
        %v9195 = vsub.s32 %v9192, %v9194
        %v9196 = vrot.slane %v9188, %v9195
        %v9198 = vunpack.c.l.s4 1934713408
        %v9199 = vunpack.c.0.s8 %v9198
        %v9200 = vlaneseq
        %v9201 = vshrl.u32 %v9200, 7
        %v9202 = vsub.s32 %v9199, %v9201
        %v9203 = vrot.slane %v9189, %v9202
        %v9204 = vcombine.high %v9180, 0.0
        %v9205 = vcombine.high %v9187, 0.0
        %v9206 = vcombine.high %v9196, 0.0
        %v9207 = vcombine.high %v9203, 0.0
        %v9208 = vcombine.low %v9116, %v9126
        %v9209 = vcombine.high %v9116, %v9126
        %v9211 = vunpack.c.l.s4 1983009808
        %v9212 = vunpack.c.0.s8 %v9211
        %v9213 = vlaneseq
        %v9214 = vshrl.u32 %v9213, 7
        %v9215 = vsub.s32 %v9212, %v9214
        %v9216 = vrot.slane %v9208, %v9215
        %v9218 = vunpack.c.l.s4 1983009808
        %v9219 = vunpack.c.0.s8 %v9218
        %v9220 = vlaneseq
        %v9221 = vshrl.u32 %v9220, 7
        %v9222 = vsub.s32 %v9219, %v9221
        %v9223 = vrot.slane %v9209, %v9222
        %v9224 = vcombine.low %v9121, %v9131
        %v9225 = vcombine.high %v9121, %v9131
        %v9227 = vunpack.c.l.s4 1983009808
        %v9228 = vunpack.c.0.s8 %v9227
        %v9229 = vlaneseq
        %v9230 = vshrl.u32 %v9229, 7
        %v9231 = vsub.s32 %v9228, %v9230
        %v9232 = vrot.slane %v9224, %v9231
        %v9234 = vunpack.c.l.s4 1983009808
        %v9235 = vunpack.c.0.s8 %v9234
        %v9236 = vlaneseq
        %v9237 = vshrl.u32 %v9236, 7
        %v9238 = vsub.s32 %v9235, %v9237
        %v9239 = vrot.slane %v9225, %v9238
        %v9240 = vcombine.low %v9216, %v9232
        %v9241 = vcombine.high %v9216, %v9232
        %v9243 = vunpack.c.l.s4 1934713408
        %v9244 = vunpack.c.0.s8 %v9243
        %v9245 = vlaneseq
        %v9246 = vshrl.u32 %v9245, 7
        %v9247 = vsub.s32 %v9244, %v9246
        %v9248 = vrot.slane %v9240, %v9247
        %v9250 = vunpack.c.l.s4 1934713408
        %v9251 = vunpack.c.0.s8 %v9250
        %v9252 = vlaneseq
        %v9253 = vshrl.u32 %v9252, 7
        %v9254 = vsub.s32 %v9251, %v9253
        %v9255 = vrot.slane %v9241, %v9254
        %v9256 = vcombine.low %v9223, %v9239
        %v9257 = vcombine.high %v9223, %v9239
        %v9259 = vunpack.c.l.s4 1934713408
        %v9260 = vunpack.c.0.s8 %v9259
        %v9261 = vlaneseq
        %v9262 = vshrl.u32 %v9261, 7
        %v9263 = vsub.s32 %v9260, %v9262
        %v9264 = vrot.slane %v9256, %v9263
        %v9266 = vunpack.c.l.s4 1934713408
        %v9267 = vunpack.c.0.s8 %v9266
        %v9268 = vlaneseq
        %v9269 = vshrl.u32 %v9268, 7
        %v9270 = vsub.s32 %v9267, %v9269
        %v9271 = vrot.slane %v9257, %v9270
        %v9272 = vcombine.high %v9248, 0.0
        %v9273 = vcombine.high %v9255, 0.0
        %v9274 = vcombine.high %v9264, 0.0
        %v9275 = vcombine.high %v9271, 0.0
        %9277 = vrot.lane.b32.xlu0 %v9204, 16
        %v9278 = vpop.permute.xlu0 %9277
        %9281 = vrot.lane.b32.xlu0 %v9187, 32
        %v9282 = vpop.permute.xlu0 %9281
        %9285 = vrot.lane.b32.xlu0 %v9205, 48
        %v9286 = vpop.permute.xlu0 %9285
        %9289 = vrot.lane.b32.xlu0 %v9196, 64
        %v9290 = vpop.permute.xlu0 %9289
        %9293 = vrot.lane.b32.xlu0 %v9206, 80
        %v9294 = vpop.permute.xlu0 %9293
        %9297 = vrot.lane.b32.xlu0 %v9203, 96
        %v9298 = vpop.permute.xlu0 %9297
        %9301 = vrot.lane.b32.xlu0 %v9207, 112
        %v9302 = vpop.permute.xlu0 %9301
        %9305 = vrot.lane.b32.xlu0 %v9272, 16
        %v9306 = vpop.permute.xlu0 %9305
        %9309 = vrot.lane.b32.xlu0 %v9255, 32
        %v9310 = vpop.permute.xlu0 %9309
        %9313 = vrot.lane.b32.xlu0 %v9273, 48
        %v9314 = vpop.permute.xlu0 %9313
        %9317 = vrot.lane.b32.xlu0 %v9264, 64
        %v9318 = vpop.permute.xlu0 %9317
        %9321 = vrot.lane.b32.xlu0 %v9274, 80
        %v9322 = vpop.permute.xlu0 %9321
        %9325 = vrot.lane.b32.xlu0 %v9271, 96
        %v9326 = vpop.permute.xlu0 %9325
        %9329 = vrot.lane.b32.xlu0 %v9275, 112
        %v9330 = vpop.permute.xlu0 %9329
        %v9332 = vsel %vm577, %v9180, %v9278
        %v9333 = vsel %vm579, %v9332, %v9282
        %v9334 = vsel %vm581, %v9333, %v9286
        %v9335 = vsel %vm583, %v9334, %v9290
        %v9336 = vsel %vm585, %v9335, %v9294
        %v9337 = vsel %vm587, %v9336, %v9298
        %v9338 = vsel %vm589, %v9337, %v9302
        %v9339 = vsel %vm577, %v9248, %v9306
        %v9340 = vsel %vm579, %v9339, %v9310
        %v9341 = vsel %vm581, %v9340, %v9314
        %v9342 = vsel %vm583, %v9341, %v9318
        %v9343 = vsel %vm585, %v9342, %v9322
        %v9344 = vsel %vm587, %v9343, %v9326
        %v9345 = vsel %vm589, %v9344, %v9330
        %9346 = vrot.lane.b32.xlu0 %v9114, 127
        %v9347 = vpop.permute.xlu0 %9346
        %9348 = vrot.lane.b32.xlu0 %v9116, 127
        %v9349 = vpop.permute.xlu0 %9348
        %9350 = vrot.lane.b32.xlu0 %v9119, 127
        %v9351 = vpop.permute.xlu0 %9350
        %9352 = vrot.lane.b32.xlu0 %v9121, 127
        %v9353 = vpop.permute.xlu0 %9352
        %9354 = vrot.lane.b32.xlu0 %v9124, 127
        %v9355 = vpop.permute.xlu0 %9354
        %9356 = vrot.lane.b32.xlu0 %v9126, 127
        %v9357 = vpop.permute.xlu0 %9356
        %9358 = vrot.lane.b32.xlu0 %v9129, 127
        %v9359 = vpop.permute.xlu0 %9358
        %9360 = vrot.lane.b32.xlu0 %v9131, 127
        %v9361 = vpop.permute.xlu0 %9360
        %v9370 = vcombine.low %v9347, %v9355
        %v9371 = vcombine.high %v9347, %v9355
        %v9373 = vunpack.c.l.s4 1983009808
        %v9374 = vunpack.c.0.s8 %v9373
        %v9375 = vlaneseq
        %v9376 = vshrl.u32 %v9375, 7
        %v9377 = vsub.s32 %v9374, %v9376
        %v9378 = vrot.slane %v9370, %v9377
        %v9380 = vunpack.c.l.s4 1983009808
        %v9381 = vunpack.c.0.s8 %v9380
        %v9382 = vlaneseq
        %v9383 = vshrl.u32 %v9382, 7
        %v9384 = vsub.s32 %v9381, %v9383
        %v9385 = vrot.slane %v9371, %v9384
        %v9386 = vcombine.low %v9351, %v9359
        %v9387 = vcombine.high %v9351, %v9359
        %v9389 = vunpack.c.l.s4 1983009808
        %v9390 = vunpack.c.0.s8 %v9389
        %v9391 = vlaneseq
        %v9392 = vshrl.u32 %v9391, 7
        %v9393 = vsub.s32 %v9390, %v9392
        %v9394 = vrot.slane %v9386, %v9393
        %v9396 = vunpack.c.l.s4 1983009808
        %v9397 = vunpack.c.0.s8 %v9396
        %v9398 = vlaneseq
        %v9399 = vshrl.u32 %v9398, 7
        %v9400 = vsub.s32 %v9397, %v9399
        %v9401 = vrot.slane %v9387, %v9400
        %v9402 = vcombine.low %v9378, %v9394
        %v9403 = vcombine.high %v9378, %v9394
        %v9405 = vunpack.c.l.s4 1934713408
        %v9406 = vunpack.c.0.s8 %v9405
        %v9407 = vlaneseq
        %v9408 = vshrl.u32 %v9407, 7
        %v9409 = vsub.s32 %v9406, %v9408
        %v9410 = vrot.slane %v9402, %v9409
        %v9412 = vunpack.c.l.s4 1934713408
        %v9413 = vunpack.c.0.s8 %v9412
        %v9414 = vlaneseq
        %v9415 = vshrl.u32 %v9414, 7
        %v9416 = vsub.s32 %v9413, %v9415
        %v9417 = vrot.slane %v9403, %v9416
        %v9418 = vcombine.low %v9385, %v9401
        %v9419 = vcombine.high %v9385, %v9401
        %v9421 = vunpack.c.l.s4 1934713408
        %v9422 = vunpack.c.0.s8 %v9421
        %v9423 = vlaneseq
        %v9424 = vshrl.u32 %v9423, 7
        %v9425 = vsub.s32 %v9422, %v9424
        %v9426 = vrot.slane %v9418, %v9425
        %v9428 = vunpack.c.l.s4 1934713408
        %v9429 = vunpack.c.0.s8 %v9428
        %v9430 = vlaneseq
        %v9431 = vshrl.u32 %v9430, 7
        %v9432 = vsub.s32 %v9429, %v9431
        %v9433 = vrot.slane %v9419, %v9432
        %v9434 = vcombine.high %v9410, 0.0
        %v9435 = vcombine.high %v9417, 0.0
        %v9436 = vcombine.high %v9426, 0.0
        %v9437 = vcombine.high %v9433, 0.0
        %v9438 = vcombine.low %v9349, %v9357
        %v9439 = vcombine.high %v9349, %v9357
        %v9441 = vunpack.c.l.s4 1983009808
        %v9442 = vunpack.c.0.s8 %v9441
        %v9443 = vlaneseq
        %v9444 = vshrl.u32 %v9443, 7
        %v9445 = vsub.s32 %v9442, %v9444
        %v9446 = vrot.slane %v9438, %v9445
        %v9448 = vunpack.c.l.s4 1983009808
        %v9449 = vunpack.c.0.s8 %v9448
        %v9450 = vlaneseq
        %v9451 = vshrl.u32 %v9450, 7
        %v9452 = vsub.s32 %v9449, %v9451
        %v9453 = vrot.slane %v9439, %v9452
        %v9454 = vcombine.low %v9353, %v9361
        %v9455 = vcombine.high %v9353, %v9361
        %v9457 = vunpack.c.l.s4 1983009808
        %v9458 = vunpack.c.0.s8 %v9457
        %v9459 = vlaneseq
        %v9460 = vshrl.u32 %v9459, 7
        %v9461 = vsub.s32 %v9458, %v9460
        %v9462 = vrot.slane %v9454, %v9461
        %v9464 = vunpack.c.l.s4 1983009808
        %v9465 = vunpack.c.0.s8 %v9464
        %v9466 = vlaneseq
        %v9467 = vshrl.u32 %v9466, 7
        %v9468 = vsub.s32 %v9465, %v9467
        %v9469 = vrot.slane %v9455, %v9468
        %v9470 = vcombine.low %v9446, %v9462
        %v9471 = vcombine.high %v9446, %v9462
        %v9473 = vunpack.c.l.s4 1934713408
        %v9474 = vunpack.c.0.s8 %v9473
        %v9475 = vlaneseq
        %v9476 = vshrl.u32 %v9475, 7
        %v9477 = vsub.s32 %v9474, %v9476
        %v9478 = vrot.slane %v9470, %v9477
        %v9480 = vunpack.c.l.s4 1934713408
        %v9481 = vunpack.c.0.s8 %v9480
        %v9482 = vlaneseq
        %v9483 = vshrl.u32 %v9482, 7
        %v9484 = vsub.s32 %v9481, %v9483
        %v9485 = vrot.slane %v9471, %v9484
        %v9486 = vcombine.low %v9453, %v9469
        %v9487 = vcombine.high %v9453, %v9469
        %v9489 = vunpack.c.l.s4 1934713408
        %v9490 = vunpack.c.0.s8 %v9489
        %v9491 = vlaneseq
        %v9492 = vshrl.u32 %v9491, 7
        %v9493 = vsub.s32 %v9490, %v9492
        %v9494 = vrot.slane %v9486, %v9493
        %v9496 = vunpack.c.l.s4 1934713408
        %v9497 = vunpack.c.0.s8 %v9496
        %v9498 = vlaneseq
        %v9499 = vshrl.u32 %v9498, 7
        %v9500 = vsub.s32 %v9497, %v9499
        %v9501 = vrot.slane %v9487, %v9500
        %v9502 = vcombine.high %v9478, 0.0
        %v9503 = vcombine.high %v9485, 0.0
        %v9504 = vcombine.high %v9494, 0.0
        %v9505 = vcombine.high %v9501, 0.0
        %9507 = vrot.lane.b32.xlu0 %v9434, 16
        %v9508 = vpop.permute.xlu0 %9507
        %9511 = vrot.lane.b32.xlu0 %v9417, 32
        %v9512 = vpop.permute.xlu0 %9511
        %9515 = vrot.lane.b32.xlu0 %v9435, 48
        %v9516 = vpop.permute.xlu0 %9515
        %9519 = vrot.lane.b32.xlu0 %v9426, 64
        %v9520 = vpop.permute.xlu0 %9519
        %9523 = vrot.lane.b32.xlu0 %v9436, 80
        %v9524 = vpop.permute.xlu0 %9523
        %9527 = vrot.lane.b32.xlu0 %v9433, 96
        %v9528 = vpop.permute.xlu0 %9527
        %9531 = vrot.lane.b32.xlu0 %v9437, 112
        %v9532 = vpop.permute.xlu0 %9531
        %9535 = vrot.lane.b32.xlu0 %v9502, 16
        %v9536 = vpop.permute.xlu0 %9535
        %9539 = vrot.lane.b32.xlu0 %v9485, 32
        %v9540 = vpop.permute.xlu0 %9539
        %9543 = vrot.lane.b32.xlu0 %v9503, 48
        %v9544 = vpop.permute.xlu0 %9543
        %9547 = vrot.lane.b32.xlu0 %v9494, 64
        %v9548 = vpop.permute.xlu0 %9547
        %9551 = vrot.lane.b32.xlu0 %v9504, 80
        %v9552 = vpop.permute.xlu0 %9551
        %9555 = vrot.lane.b32.xlu0 %v9501, 96
        %v9556 = vpop.permute.xlu0 %9555
        %9559 = vrot.lane.b32.xlu0 %v9505, 112
        %v9560 = vpop.permute.xlu0 %9559
        %v9562 = vsel %vm577, %v9410, %v9508
        %v9563 = vsel %vm579, %v9562, %v9512
        %v9564 = vsel %vm581, %v9563, %v9516
        %v9565 = vsel %vm583, %v9564, %v9520
        %v9566 = vsel %vm585, %v9565, %v9524
        %v9567 = vsel %vm587, %v9566, %v9528
        %v9568 = vsel %vm589, %v9567, %v9532
        %v9569 = vsel %vm577, %v9478, %v9536
        %v9570 = vsel %vm579, %v9569, %v9540
        %v9571 = vsel %vm581, %v9570, %v9544
        %v9572 = vsel %vm583, %v9571, %v9548
        %v9573 = vsel %vm585, %v9572, %v9552
        %v9574 = vsel %vm587, %v9573, %v9556
        %v9575 = vsel %vm589, %v9574, %v9560
        %9576 = vrot.lane.b32.xlu0 %v9114, 126
        %v9577 = vpop.permute.xlu0 %9576
        %9578 = vrot.lane.b32.xlu0 %v9116, 126
        %v9579 = vpop.permute.xlu0 %9578
        %9580 = vrot.lane.b32.xlu0 %v9119, 126
        %v9581 = vpop.permute.xlu0 %9580
        %9582 = vrot.lane.b32.xlu0 %v9121, 126
        %v9583 = vpop.permute.xlu0 %9582
        %9584 = vrot.lane.b32.xlu0 %v9124, 126
        %v9585 = vpop.permute.xlu0 %9584
        %9586 = vrot.lane.b32.xlu0 %v9126, 126
        %v9587 = vpop.permute.xlu0 %9586
        %9588 = vrot.lane.b32.xlu0 %v9129, 126
        %v9589 = vpop.permute.xlu0 %9588
        %9590 = vrot.lane.b32.xlu0 %v9131, 126
        %v9591 = vpop.permute.xlu0 %9590
        %v9600 = vcombine.low %v9577, %v9585
        %v9601 = vcombine.high %v9577, %v9585
        %v9603 = vunpack.c.l.s4 1983009808
        %v9604 = vunpack.c.0.s8 %v9603
        %v9605 = vlaneseq
        %v9606 = vshrl.u32 %v9605, 7
        %v9607 = vsub.s32 %v9604, %v9606
        %v9608 = vrot.slane %v9600, %v9607
        %v9610 = vunpack.c.l.s4 1983009808
        %v9611 = vunpack.c.0.s8 %v9610
        %v9612 = vlaneseq
        %v9613 = vshrl.u32 %v9612, 7
        %v9614 = vsub.s32 %v9611, %v9613
        %v9615 = vrot.slane %v9601, %v9614
        %v9616 = vcombine.low %v9581, %v9589
        %v9617 = vcombine.high %v9581, %v9589
        %v9619 = vunpack.c.l.s4 1983009808
        %v9620 = vunpack.c.0.s8 %v9619
        %v9621 = vlaneseq
        %v9622 = vshrl.u32 %v9621, 7
        %v9623 = vsub.s32 %v9620, %v9622
        %v9624 = vrot.slane %v9616, %v9623
        %v9626 = vunpack.c.l.s4 1983009808
        %v9627 = vunpack.c.0.s8 %v9626
        %v9628 = vlaneseq
        %v9629 = vshrl.u32 %v9628, 7
        %v9630 = vsub.s32 %v9627, %v9629
        %v9631 = vrot.slane %v9617, %v9630
        %v9632 = vcombine.low %v9608, %v9624
        %v9633 = vcombine.high %v9608, %v9624
        %v9635 = vunpack.c.l.s4 1934713408
        %v9636 = vunpack.c.0.s8 %v9635
        %v9637 = vlaneseq
        %v9638 = vshrl.u32 %v9637, 7
        %v9639 = vsub.s32 %v9636, %v9638
        %v9640 = vrot.slane %v9632, %v9639
        %v9642 = vunpack.c.l.s4 1934713408
        %v9643 = vunpack.c.0.s8 %v9642
        %v9644 = vlaneseq
        %v9645 = vshrl.u32 %v9644, 7
        %v9646 = vsub.s32 %v9643, %v9645
        %v9647 = vrot.slane %v9633, %v9646
        %v9648 = vcombine.low %v9615, %v9631
        %v9649 = vcombine.high %v9615, %v9631
        %v9651 = vunpack.c.l.s4 1934713408
        %v9652 = vunpack.c.0.s8 %v9651
        %v9653 = vlaneseq
        %v9654 = vshrl.u32 %v9653, 7
        %v9655 = vsub.s32 %v9652, %v9654
        %v9656 = vrot.slane %v9648, %v9655
        %v9658 = vunpack.c.l.s4 1934713408
        %v9659 = vunpack.c.0.s8 %v9658
        %v9660 = vlaneseq
        %v9661 = vshrl.u32 %v9660, 7
        %v9662 = vsub.s32 %v9659, %v9661
        %v9663 = vrot.slane %v9649, %v9662
        %v9664 = vcombine.high %v9640, 0.0
        %v9665 = vcombine.high %v9647, 0.0
        %v9666 = vcombine.high %v9656, 0.0
        %v9667 = vcombine.high %v9663, 0.0
        %v9668 = vcombine.low %v9579, %v9587
        %v9669 = vcombine.high %v9579, %v9587
        %v9671 = vunpack.c.l.s4 1983009808
        %v9672 = vunpack.c.0.s8 %v9671
        %v9673 = vlaneseq
        %v9674 = vshrl.u32 %v9673, 7
        %v9675 = vsub.s32 %v9672, %v9674
        %v9676 = vrot.slane %v9668, %v9675
        %v9678 = vunpack.c.l.s4 1983009808
        %v9679 = vunpack.c.0.s8 %v9678
        %v9680 = vlaneseq
        %v9681 = vshrl.u32 %v9680, 7
        %v9682 = vsub.s32 %v9679, %v9681
        %v9683 = vrot.slane %v9669, %v9682
        %v9684 = vcombine.low %v9583, %v9591
        %v9685 = vcombine.high %v9583, %v9591
        %v9687 = vunpack.c.l.s4 1983009808
        %v9688 = vunpack.c.0.s8 %v9687
        %v9689 = vlaneseq
        %v9690 = vshrl.u32 %v9689, 7
        %v9691 = vsub.s32 %v9688, %v9690
        %v9692 = vrot.slane %v9684, %v9691
        %v9694 = vunpack.c.l.s4 1983009808
        %v9695 = vunpack.c.0.s8 %v9694
        %v9696 = vlaneseq
        %v9697 = vshrl.u32 %v9696, 7
        %v9698 = vsub.s32 %v9695, %v9697
        %v9699 = vrot.slane %v9685, %v9698
        %v9700 = vcombine.low %v9676, %v9692
        %v9701 = vcombine.high %v9676, %v9692
        %v9703 = vunpack.c.l.s4 1934713408
        %v9704 = vunpack.c.0.s8 %v9703
        %v9705 = vlaneseq
        %v9706 = vshrl.u32 %v9705, 7
        %v9707 = vsub.s32 %v9704, %v9706
        %v9708 = vrot.slane %v9700, %v9707
        %v9710 = vunpack.c.l.s4 1934713408
        %v9711 = vunpack.c.0.s8 %v9710
        %v9712 = vlaneseq
        %v9713 = vshrl.u32 %v9712, 7
        %v9714 = vsub.s32 %v9711, %v9713
        %v9715 = vrot.slane %v9701, %v9714
        %v9716 = vcombine.low %v9683, %v9699
        %v9717 = vcombine.high %v9683, %v9699
        %v9719 = vunpack.c.l.s4 1934713408
        %v9720 = vunpack.c.0.s8 %v9719
        %v9721 = vlaneseq
        %v9722 = vshrl.u32 %v9721, 7
        %v9723 = vsub.s32 %v9720, %v9722
        %v9724 = vrot.slane %v9716, %v9723
        %v9726 = vunpack.c.l.s4 1934713408
        %v9727 = vunpack.c.0.s8 %v9726
        %v9728 = vlaneseq
        %v9729 = vshrl.u32 %v9728, 7
        %v9730 = vsub.s32 %v9727, %v9729
        %v9731 = vrot.slane %v9717, %v9730
        %v9732 = vcombine.high %v9708, 0.0
        %v9733 = vcombine.high %v9715, 0.0
        %v9734 = vcombine.high %v9724, 0.0
        %v9735 = vcombine.high %v9731, 0.0
        %9737 = vrot.lane.b32.xlu0 %v9664, 16
        %v9738 = vpop.permute.xlu0 %9737
        %9741 = vrot.lane.b32.xlu0 %v9647, 32
        %v9742 = vpop.permute.xlu0 %9741
        %9745 = vrot.lane.b32.xlu0 %v9665, 48
        %v9746 = vpop.permute.xlu0 %9745
        %9749 = vrot.lane.b32.xlu0 %v9656, 64
        %v9750 = vpop.permute.xlu0 %9749
        %9753 = vrot.lane.b32.xlu0 %v9666, 80
        %v9754 = vpop.permute.xlu0 %9753
        %9757 = vrot.lane.b32.xlu0 %v9663, 96
        %v9758 = vpop.permute.xlu0 %9757
        %9761 = vrot.lane.b32.xlu0 %v9667, 112
        %v9762 = vpop.permute.xlu0 %9761
        %9765 = vrot.lane.b32.xlu0 %v9732, 16
        %v9766 = vpop.permute.xlu0 %9765
        %9769 = vrot.lane.b32.xlu0 %v9715, 32
        %v9770 = vpop.permute.xlu0 %9769
        %9773 = vrot.lane.b32.xlu0 %v9733, 48
        %v9774 = vpop.permute.xlu0 %9773
        %9777 = vrot.lane.b32.xlu0 %v9724, 64
        %v9778 = vpop.permute.xlu0 %9777
        %9781 = vrot.lane.b32.xlu0 %v9734, 80
        %v9782 = vpop.permute.xlu0 %9781
        %9785 = vrot.lane.b32.xlu0 %v9731, 96
        %v9786 = vpop.permute.xlu0 %9785
        %9789 = vrot.lane.b32.xlu0 %v9735, 112
        %v9790 = vpop.permute.xlu0 %9789
        %v9792 = vsel %vm577, %v9640, %v9738
        %v9793 = vsel %vm579, %v9792, %v9742
        %v9794 = vsel %vm581, %v9793, %v9746
        %v9795 = vsel %vm583, %v9794, %v9750
        %v9796 = vsel %vm585, %v9795, %v9754
        %v9797 = vsel %vm587, %v9796, %v9758
        %v9798 = vsel %vm589, %v9797, %v9762
        %v9799 = vsel %vm577, %v9708, %v9766
        %v9800 = vsel %vm579, %v9799, %v9770
        %v9801 = vsel %vm581, %v9800, %v9774
        %v9802 = vsel %vm583, %v9801, %v9778
        %v9803 = vsel %vm585, %v9802, %v9782
        %v9804 = vsel %vm587, %v9803, %v9786
        %v9805 = vsel %vm589, %v9804, %v9790
        %v9808 = vrot.slane %v8176, 4
        %v9809 = vrot.slane %v8183, 4
        %v9814 = vrot.slane %v8644, 4
        %v9815 = vrot.slane %v8651, 4
        %v9820 = vrot.slane %v9104, 4
        %v9821 = vrot.slane %v9111, 4
        %v9826 = vrot.slane %v9568, 4
        %v9827 = vrot.slane %v9575, 4
        %v9830 = vsel %vm2484, %v7938, %v9808
        %v9831 = vsel %vm2484, %v7945, %v9809
        %v9832 = vsel %vm2484, %v8406, %v9814
        %v9833 = vsel %vm2484, %v8413, %v9815
        %v9834 = vsel %vm2484, %v8874, %v9820
        %v9835 = vsel %vm2484, %v8881, %v9821
        %v9836 = vsel %vm2484, %v9338, %v9826
        %v9837 = vsel %vm2484, %v9345, %v9827
        %9838 = vst [vmem:[#allocation3 + $0xf0] sm:$0xff] %v9830
        %9839 = vst [vmem:[#allocation3 + $0xf8] sm:$0xff] %v9831
        %9840 = vst [vmem:[#allocation3 + $0x100] sm:$0xff] %v9832
        %9841 = vst [vmem:[#allocation3 + $0x108] sm:$0xff] %v9833
        %9842 = vst [vmem:[#allocation3 + $0x110] sm:$0xff] %v9834
        %9843 = vst [vmem:[#allocation3 + $0x118] sm:$0xff] %v9835
        %9844 = vst [vmem:[#allocation3 + $0x120] sm:$0xff] %v9836
        %9845 = vst [vmem:[#allocation3 + $0x128] sm:$0xff] %v9837
        %9846 = vst [vmem:[#allocation3 + $0x130] sm:$0xf] %v9798
        %9847 = vst [vmem:[#allocation3 + $0x138] sm:$0xf] %v9805
        %v9848 = vld [vmem:[%s4] sm:$0xff]
        %v9849 = vld [vmem:[#allocation3] sm:$0xff]
        %v9850 = vld [vmem:[#allocation3 + $0x8] sm:$0xff]
        %v9851 = vld [vmem:[#allocation3 + $0x10] sm:$0xff]
        %v9852 = vld [vmem:[#allocation3 + $0x18] sm:$0xff]
        %v9853 = vld [vmem:[#allocation3 + $0x20] sm:$0xff]
        %v9854 = vld [vmem:[#allocation3 + $0x28] sm:$0xff]
        %v9855 = vld [vmem:[#allocation3 + $0x30] sm:$0xff]
        %v9856 = vld [vmem:[#allocation3 + $0x38] sm:$0xff]
        %v9857 = vld [vmem:[#allocation3 + $0x40] sm:$0xff]
        %v9858 = vld [vmem:[#allocation3 + $0x48] sm:$0xff]
        %v9859 = vld [vmem:[#allocation3 + $0x50] sm:$0xff]
        %v9860 = vld [vmem:[#allocation3 + $0x58] sm:$0xff]
        %v9861 = vld [vmem:[#allocation3 + $0x60] sm:$0xff]
        %v9862 = vld [vmem:[#allocation3 + $0x68] sm:$0xff]
        %v9863 = vld [vmem:[#allocation3 + $0x70] sm:$0xff]
        %v9864 = vld [vmem:[#allocation3 + $0x78] sm:$0xff]
        %v9865 = vld [vmem:[#allocation3 + $0x80] sm:$0xff]
        %v9866 = vld [vmem:[#allocation3 + $0x88] sm:$0xff]
        %v9867 = vld [vmem:[#allocation3 + $0x90] sm:$0xff]
        %v9868 = vld [vmem:[#allocation3 + $0x98] sm:$0xff]
        %v9869 = vld [vmem:[#allocation3 + $0xa0] sm:$0xff]
        %v9870 = vld [vmem:[#allocation3 + $0xa8] sm:$0xff]
        %v9871 = vld [vmem:[#allocation3 + $0xb0] sm:$0xff]
        %v9872 = vld [vmem:[#allocation3 + $0xb8] sm:$0xff]
        %v9873 = vld [vmem:[#allocation3 + $0xc0] sm:$0xff]
        %v9874 = vld [vmem:[#allocation3 + $0xc8] sm:$0xff]
        %v9875 = vld [vmem:[#allocation3 + $0xd0] sm:$0xff]
        %v9876 = vld [vmem:[#allocation3 + $0xd8] sm:$0xff]
        %v9877 = vld [vmem:[#allocation3 + $0xe0] sm:$0xff]
        %v9878 = vld [vmem:[#allocation3 + $0xe8] sm:$0xff]
        %v9879 = vld [vmem:[#allocation3 + $0xf0] sm:$0xff]
        %v9880 = vld [vmem:[#allocation3 + $0xf8] sm:$0xff]
        %v9881 = vld [vmem:[#allocation3 + $0x100] sm:$0xff]
        %v9882 = vld [vmem:[#allocation3 + $0x108] sm:$0xff]
        %v9883 = vld [vmem:[#allocation3 + $0x110] sm:$0xff]
        %v9884 = vld [vmem:[#allocation3 + $0x118] sm:$0xff]
        %v9885 = vld [vmem:[#allocation3 + $0x120] sm:$0xff]
        %v9886 = vld [vmem:[#allocation3 + $0x128] sm:$0xff]
        %v9887 = vld [vmem:[#allocation3 + $0x130] sm:$0xff]
        %v9888 = vld [vmem:[#allocation3 + $0x138] sm:$0xff]
        %s9889 = scalar_lea.vmem %s5, 12
        %v9890 = vld [vmem:[%s9889] sm:$0xf]
        %9892 = vset.pattern.permute.xlu0 0
        %9893 = vperm.xlu0 %9892, %v9890
        %v9894 = vpop.permute.xlu0 %9893
        %v9897 = vcombine.high %v9848, %v9848
        %v9898 = vsel %vm579, %v9897, 0
        %9900 = vmatprep.subr.mxu0 %v9880
        %9901 = vmatpush1.msra.mxu0 %v9879
        %9902 = vmatprep.subr.mxu0 %v9878
        %9903 = vmatpush1.msra.mxu0 %v9877
        %9904 = vmatprep.subr.mxu0 %v9876
        %9905 = vmatpush1.msra.mxu0 %v9875
        %9906 = vmatprep.subr.mxu0 %v9874
        %9907 = vmatpush1.msra.mxu0 %v9873
        %9908 = vmatprep.subr.mxu0 %v9872
        %9909 = vmatpush1.msra.mxu0 %v9871
        %9910 = vmatprep.subr.mxu0 %v9870
        %9911 = vmatpush1.msra.mxu0 %v9869
        %9912 = vmatprep.subr.mxu0 %v9868
        %9913 = vmatpush1.msra.mxu0 %v9867
        %9914 = vmatprep.subr.mxu0 %v9866
        %9915 = vmatpush1.msra.mxu0 %v9865
        %9916 = vmatprep.subr.mxu0 %v9864
        %9917 = vmatpush1.msra.mxu0 %v9863
        %9918 = vmatprep.subr.mxu0 %v9862
        %9919 = vmatpush1.msra.mxu0 %v9861
        %9920 = vmatprep.subr.mxu0 %v9860
        %9921 = vmatpush1.msra.mxu0 %v9859
        %9922 = vmatprep.subr.mxu0 %v9858
        %9923 = vmatpush1.msra.mxu0 %v9857
        %9924 = vmatprep.subr.mxu0 %v9856
        %9925 = vmatpush1.msra.mxu0 %v9855
        %9926 = vmatprep.subr.mxu0 %v9854
        %9927 = vmatpush1.msra.mxu0 %v9853
        %9928 = vmatprep.subr.mxu0 %v9852
        %9929 = vmatpush1.msra.mxu0 %v9851
        %9930 = vmatprep.subr.mxu0 %v9850
        %9931 = vmatpush1.msra.mxu0 %v9849
        %9932 = vmatprep.subr.mxu0 0.0
        %9933 = vmatpush2.msra.mxu0 0.0
        %9934 = vmatprep.subr.mxu0 0.0
        %9935 = vmatpush2.msra.mxu0 0.0
        %9936 = vmatprep.subr.mxu0 0.0
        %9937 = vmatpush2.msra.mxu0 0.0
        %9938 = vmatprep.subr.mxu0 0.0
        %9939 = vmatpush2.msra.mxu0 0.0
        %9940 = vmatprep.subr.mxu0 0.0
        %9941 = vmatpush2.msra.mxu0 0.0
        %9942 = vmatprep.subr.mxu0 0.0
        %9943 = vmatpush2.msra.mxu0 0.0
        %9944 = vmatprep.subr.mxu0 0.0
        %9945 = vmatpush2.msra.mxu0 0.0
        %9946 = vmatprep.subr.mxu0 0.0
        %9947 = vmatpush2.msra.mxu0 0.0
        %9948 = vmatprep.subr.mxu0 0.0
        %9949 = vmatpush2.msra.mxu0 0.0
        %9950 = vmatprep.subr.mxu0 0.0
        %9951 = vmatpush2.msra.mxu0 0.0
        %9952 = vmatprep.subr.mxu0 0.0
        %9953 = vmatpush2.msra.mxu0 0.0
        %9954 = vmatprep.subr.mxu0 0.0
        %9955 = vmatpush2.msra.mxu0 0.0
        %9956 = vmatprep.subr.mxu0 %v9888
        %9957 = vmatpush2.msra.mxu0 %v9887
        %9958 = vmatprep.subr.mxu0 %v9886
        %9959 = vmatpush2.msra.mxu0 %v9885
        %9960 = vmatprep.subr.mxu0 %v9884
        %9961 = vmatpush2.msra.mxu0 %v9883
        %9962 = vmatprep.subr.mxu0 %v9882
        %9963 = vmatpush2.msra.mxu0 %v9881
        %9964 = vmatprep.mubr.f32.mxu0 %v9898
        %9965 = vmatmul.mubr.f32.gmra.mxu0 %v9848
        %v9966 = vpop.f32.mrf.mxu0
        %v9967 = vadd.f32 %v9894, %v9966
        %v9968 = vpop.f32.mrf.mxu0
        %v9969 = vadd.f32 %v9894, %v9968
        %9970 = vdwg.mxu0
        %vm9971 = vcmp.ge.f32.partialorder %v9967, 0.0
        %vm9972 = vcmp.ge.f32.partialorder %v9969, 0.0
        %v9973 = vmul.f32 %v9967, 0.01
        %v9974 = vmul.f32 %v9969, 0.01
        %v9975 = vsel %vm9971, %v9967, %v9973
        %v9976 = vsel %vm9972, %v9969, %v9974
        %v9979 = vcombine.low %v9975, %v9976
        %9981 = vst [vmem:[%s269] sm:$0xff] %v9979
        %s9982 = sand.u32 %s162, 1
        %s9983 = scalar_lea.sflag [#allocation6], %s9982
        %s9984 = sand.u32 %s162, 1
        %s9985 = smul.addr %s9984, 8
        %s9986 = scalar_lea.vmem [#allocation7], %s9985
        // Predicated region
        $region49: #{tpu_custom_call.1} parent=43 // pred_check
          %p9987 = pneg %p172
        $region50: #{tpu_custom_call.1} parent=43 // pred_check_branch
          %9989 = sbr.rel (%p9987) target = $region52
        $region51: #{tpu_custom_call.1} parent=43 // pred_region
          %s9991 = ssub.s32 128, 128
          %9992 = vsyncadd %s9983, %s9991
          %s9993 = smul.addr %s23, 2
          %s9994 = smul.addr %s9993, 64
          %s9995 = scalar_lea.hbm %s6, %s9994
          %s9997 = sshll.u32 %s9986, 4
          %s9998 = int_to_ptr.vmem [resolvable:$true] %s9997
          %10000 = dma.vmem_to_hbm [thread:$0]  %s9998, 128, %s9995, %s9983
        $region52: #{tpu_custom_call.1} parent=43 // pred_fallthru
          _
      $region44: #{tpu_custom_call.1} parent=5 // pred_fallthru
        _
      %p10001 = scmp.le.s32.totalorder 2, %s18
      // Predicated region
      $region53: #{tpu_custom_call.1} parent=5 // pred_check
        %p10002 = pneg %p10001
      $region54: #{tpu_custom_call.1} parent=5 // pred_check_branch
        %10004 = sbr.rel (%p10002) target = $region56
      $region55: #{tpu_custom_call.1} parent=5 // pred_region
        %s10005 = ssub.s32 %s18, 2
        // Predicated region
        $region57: #{tpu_custom_call.1} parent=55 // pred_check
          %p10006 = pneg %p178
        $region58: #{tpu_custom_call.1} parent=55 // pred_check_branch
          %10008 = sbr.rel (%p10006) target = $region60
        $region59: #{tpu_custom_call.1} parent=55 // pred_region
          %s10009 = sand.u32 %s163, 1
          %s10010 = scalar_lea.sflag [#allocation6], %s10009
          %s10011 = sand.u32 %s163, 1
          %s10012 = smul.addr %s10011, 8
          %s10013 = scalar_lea.vmem [#allocation7], %s10012
          %10014 = dma.done %s10010, 128
        $region60: #{tpu_custom_call.1} parent=55 // pred_fallthru
          _
      $region56: #{tpu_custom_call.1} parent=5 // pred_fallthru
        _
    $region6: #{tpu_custom_call.1} parent=1 // loop_footer
      %s22 = sadd.s32 1, %s18
    $region7: #{tpu_custom_call.1} parent=1 // loop_footer_branch
      %17 = sbr.rel target = $region3
    $region8: #{tpu_custom_call.1} parent=1 // loop_exit
      _
    %10015 = vsyncpa [#allocation5], 1
    %s10016 = scalar_lea.sflag [#allocation5], 1
    %10017 = vsyncpa %s10016, 1
    %10018 = vsyncpa [#allocation6], 1
    %s10019 = scalar_lea.sflag [#allocation6], 1
    %10020 = vsyncpa %s10019, 1

</llo_original>
